<compile_context>
chip_gen: v6e
topology: v6e:2x2x1
jax: 0.10.0
libtpu: 0.0.40
codegen_flags: <defaults>
</compile_context>

<pallas_src>
import jax
import jax.numpy as jnp
from jax import lax
from jax.experimental import pallas as pl
from jax.experimental.pallas import tpu as pltpu

_BN_EPS = 1e-5


# ----------------------------------------------------------------------------
# Pallas kernels
# ----------------------------------------------------------------------------
def _inception_decoder_kernel(x_ref, wb_ref, sb_ref, hb_ref,
                              wall_ref, sall_ref, hall_ref,
                              out_ref, pad_bn_ref, pad_x_ref):
  """All repeat_num inception blocks fused, one batch image per grid step."""
  _, H, W, C = x_ref.shape
  L, _, BN = wb_ref.shape
  Hp_bn = H + 6          # conv halo 3 rows on each side
  Wp = W + 16            # left W-halo 8 (sublane aligned), right halo >= 8

  # Borders (zero / -inf) once per grid step; interiors are rewritten per block.
  pad_bn_ref[...] = jnp.zeros(pad_bn_ref.shape, jnp.float32)
  pad_x_ref[...] = jnp.full(pad_x_ref.shape, -jnp.inf, jnp.float32)

  x_img = x_ref[0].astype(jnp.float32)                       # (H, W, C)

  for l in range(L):                   # static unroll over decoder blocks
    # ---- bottleneck 1x1 tconv + BN(eval, bias folded) + ReLU ---------------
    x2 = x_img.reshape(H * W, C)
    bnv = jnp.dot(x2, wb_ref[l], preferred_element_type=jnp.float32)
    bnv = jnp.maximum(bnv * sb_ref[l] + hb_ref[l], 0.0)      # (H*W, BN)

    # ---- shared 7x7 im2col for the 1/3/5/7 conv branches -------------------
    pad_bn_ref[pl.ds(3, H), pl.ds(8, W), :] = bnv.reshape(H, W, BN)
    wcat = jnp.concatenate(
        [pad_bn_ref[pl.ds(0, Hp_bn), pl.ds(5 + dx, W), :] for dx in range(7)],
        axis=2)                                              # (H+6, W, 7*BN)
    patch = jnp.concatenate([wcat[dy:dy + H] for dy in range(7)], axis=2)
    patch = patch.reshape(H * W, 49 * BN)                    # (H*W, 196)

    # one MXU matmul for all four branches (weights concatenated on N axis)
    y = jnp.dot(patch, wall_ref[l], preferred_element_type=jnp.float32)
    y = jnp.maximum(y * sall_ref[l] + hall_ref[l], 0.0)      # (H*W, 4*C)
    conv_sum = (y[:, 0:C] + y[:, C:2 * C] + y[:, 2 * C:3 * C]
                + y[:, 3 * C:4 * C]).reshape(H, W, C)

    # ---- pool3 + pool5 (stride 1, "same"): separable, shared row-max -------
    pad_x_ref[pl.ds(2, H), pl.ds(8, W), :] = x_img
    rows = [pad_x_ref[pl.ds(d, H), pl.ds(0, Wp), :] for d in range(5)]
    r3 = jnp.maximum(jnp.maximum(rows[1], rows[2]), rows[3])  # (H, Wp, C)
    r5 = jnp.maximum(jnp.maximum(rows[0], r3), rows[4])
    p3 = jnp.maximum(jnp.maximum(r3[:, 7:7 + W], r3[:, 8:8 + W]),
                     r3[:, 9:9 + W])
    p5 = jnp.maximum(
        jnp.maximum(jnp.maximum(r5[:, 6:6 + W], r5[:, 7:7 + W]),
                    jnp.maximum(r5[:, 8:8 + W], r5[:, 9:9 + W])),
        r5[:, 10:10 + W])

    x_img = conv_sum + p3 + p5

  out_ref[0] = x_img.astype(out_ref.dtype)


def _simple_decoder_kernel(x_ref, w_ref, s_ref, h_ref, out_ref, pad_ref):
  """use_inception=False: repeat_num x (conv3 'same' + BN(eval) + ReLU), fused."""
  _, H, W, C = x_ref.shape
  L = w_ref.shape[0]
  Hp = H + 2

  pad_ref[...] = jnp.zeros(pad_ref.shape, jnp.float32)
  x_img = x_ref[0].astype(jnp.float32)                       # (H, W, C)

  for l in range(L):
    pad_ref[pl.ds(1, H), pl.ds(8, W), :] = x_img
    wcat = jnp.concatenate(
        [pad_ref[pl.ds(0, Hp), pl.ds(7 + dx, W), :] for dx in range(3)],
        axis=2)                                              # (H+2, W, 3*C)
    patch = jnp.concatenate([wcat[dy:dy + H] for dy in range(3)], axis=2)
    y = jnp.dot(patch.reshape(H * W, 9 * C), w_ref[l],
                preferred_element_type=jnp.float32)
    x_img = jnp.maximum(y * s_ref[l] + h_ref[l], 0.0).reshape(H, W, C)

  out_ref[0] = x_img.astype(out_ref.dtype)


# ----------------------------------------------------------------------------
# pallas_call plumbing
# ----------------------------------------------------------------------------
def _full_spec(a):
  nd = a.ndim
  return pl.BlockSpec(a.shape, lambda n, _nd=nd: (0,) * _nd)


def _decoder_call(kernel, x_nhwc, packed, scratch_shapes):
  N, H, W, C = x_nhwc.shape
  img_spec = pl.BlockSpec((1, H, W, C), lambda n: (n, 0, 0, 0))
  return pl.pallas_call(
      kernel,
      out_shape=jax.ShapeDtypeStruct((N, H, W, C), jnp.float32),
      grid=(N,),
      in_specs=[img_spec] + [_full_spec(p) for p in packed],
      out_specs=img_spec,
      scratch_shapes=scratch_shapes,
      compiler_params=pltpu.CompilerParams(dimension_semantics=("parallel",)),
  )(x_nhwc, *packed)


def decoder_forward(x_nchw, layers, use_inception):
  """DecoderModule.forward (eval mode). Input/output NCHW."""
  N, C, H, W = x_nchw.shape
  x = jnp.transpose(x_nchw, (0, 2, 3, 1)).astype(jnp.float32)     # -> NHWC
  if use_inception:
    BN = C // 4
    packed = _pack_inception(layers, C)
    y = _decoder_call(
        _inception_decoder_kernel, x, packed,
        scratch_shapes=[pltpu.VMEM((H + 6, W + 16, BN), jnp.float32),
                        pltpu.VMEM((H + 4, W + 16, C), jnp.float32)])
  else:
    packed = _pack_simple(layers, C)
    y = _decoder_call(
        _simple_decoder_kernel, x, packed,
        scratch_shapes=[pltpu.VMEM((H + 2, W + 16, C), jnp.float32)])
  return jnp.transpose(y, (0, 3, 1, 2))                           # -> NCHW


# ----------------------------------------------------------------------------
# Parameter construction and packing (glue code, runs once)
# ----------------------------------------------------------------------------
def _make_tconv_bn(key, in_ch, out_ch, k):
  """Random ConvTranspose2d(k, stride=1, pad=(k-1)//2) + BatchNorm2d params,
  pre-folded to same-conv form: (w_eff HWIO, bias, bn_scale, bn_shift)."""
  ks = jax.random.split(key, 6)
  wt = 0.1 * jax.random.normal(ks[0], (in_ch, out_ch, k, k), jnp.float32)
  b = 0.1 * jax.random.normal(ks[1], (out_ch,), jnp.float32)
  gamma = 1.0 + 0.1 * jax.random.normal(ks[2], (out_ch,), jnp.float32)
  beta = 0.1 * jax.random.normal(ks[3], (out_ch,), jnp.float32)
  mean = 0.1 * jax.random.normal(ks[4], (out_ch,), jnp.float32)
  var = jnp.abs(jax.random.normal(ks[5], (out_ch,), jnp.float32)) + 0.5
  # ConvTranspose2d (stride 1) == same-conv with flipped, in/out-swapped kernel
  w_eff = jnp.flip(jnp.transpose(wt, (2, 3, 0, 1)), axis=(0, 1))  # (k,k,in,out)
  scale = gamma / jnp.sqrt(var + _BN_EPS)
  shift = beta - mean * scale
  return w_eff, b, scale, shift


def make_inception_params(key, C):
  assert C % 2 == 0
  BN = C // 4
  kb, k1, k3, k5, k7 = jax.random.split(key, 5)
  return {"bneck": _make_tconv_bn(kb, C, BN, 1),
          "conv1": _make_tconv_bn(k1, BN, C, 1),
          "conv3": _make_tconv_bn(k3, BN, C, 3),
          "conv5": _make_tconv_bn(k5, BN, C, 5),
          "conv7": _make_tconv_bn(k7, BN, C, 7)}


def make_simple_params(key, C):
  return _make_tconv_bn(key, C, C, 3)


def _pack_inception(layers, C):
  """Stack per-block params; fold bias into BN shift; embed the 1/3/5/7 branch
  kernels (centered) into a shared 7x7 grid and concat them to (49*BN, 4*C)."""
  BN = C // 4
  wb_l, sb_l, hb_l, wa_l, sa_l, ha_l = [], [], [], [], [], []
  for p in layers:
    wb, bb, sb, hb = p["bneck"]
    wb_l.append(wb.reshape(C, BN))
    sb_l.append(sb.reshape(1, BN))
    hb_l.append((bb * sb + hb).reshape(1, BN))
    w_parts, s_parts, h_parts = [], [], []
    for name, k in (("conv1", 1), ("conv3", 3), ("conv5", 5), ("conv7", 7)):
      w, b, s, h = p[name]
      o = (7 - k) // 2
      w7 = jnp.zeros((7, 7, BN, C), jnp.float32).at[o:o + k, o:o + k].set(w)
      w_parts.append(w7)
      s_parts.append(s)
      h_parts.append(b * s + h)
    wa_l.append(jnp.concatenate(w_parts, axis=-1).reshape(49 * BN, 4 * C))
    sa_l.append(jnp.concatenate(s_parts).reshape(1, 4 * C))
    ha_l.append(jnp.concatenate(h_parts).reshape(1, 4 * C))
  return (jnp.stack(wb_l), jnp.stack(sb_l), jnp.stack(hb_l),
          jnp.stack(wa_l), jnp.stack(sa_l), jnp.stack(ha_l))


def _pack_simple(layers, C):
  w_l, s_l, h_l = [], [], []
  for (w, b, s, h) in layers:
    w_l.append(w.reshape(9 * C, C))
    s_l.append(s.reshape(1, C))
    h_l.append((b * s + h).reshape(1, C))
  return jnp.stack(w_l), jnp.stack(s_l), jnp.stack(h_l)


# ----------------------------------------------------------------------------
# Pure-JAX reference (validation only)
# ----------------------------------------------------------------------------
def _conv_bn_relu_ref(x, w_eff, b, scale, shift):
  y = lax.conv_general_dilated(x, w_eff, (1, 1), "SAME",
                               dimension_numbers=("NHWC", "HWIO", "NHWC"))
  return jnp.maximum((y + b) * scale + shift, 0.0)


def _maxpool_ref(x, k):
  p = (k - 1) // 2
  return lax.reduce_window(x, -jnp.inf, lax.max, (1, k, k, 1), (1, 1, 1, 1),
                           ((0, 0), (p, p), (p, p), (0, 0)))


def _inception_block_ref(x, p):
  bn = _conv_bn_relu_ref(x, *p["bneck"])
  return (_conv_bn_relu_ref(bn, *p["conv1"]) + _conv_bn_relu_ref(bn, *p["conv3"])
          + _conv_bn_relu_ref(bn, *p["conv5"]) + _conv_bn_relu_ref(bn, *p["conv7"])
          + _maxpool_ref(x, 3) + _maxpool_ref(x, 5))


def decoder_ref(x_nchw, layers, use_inception):
  x = jnp.transpose(x_nchw, (0, 2, 3, 1)).astype(jnp.float32)
  for p in layers:
    x = _inception_block_ref(x, p) if use_inception else _conv_bn_relu_ref(x, *p)
  return jnp.transpose(x, (0, 3, 1, 2))


# ----------------------------------------------------------------------------
if __name__ == "__main__":
  key = jax.random.PRNGKey(0)
  N, C, H, W = 2, 16, 16, 16     # NCHW; C % 4 == 0 so bn_ch = C // 4
  repeat_num = 2

  kx, kp_a, kp_b = jax.random.split(key, 3)
  x = jax.random.normal(kx, (N, C, H, W), jnp.float32)

  # use_inception = True
  inc_layers = [make_inception_params(k, C)
                for k in jax.random.split(kp_a, repeat_num)]
  y = jax.block_until_ready(decoder_forward(x, inc_layers, use_inception=True))
  y_ref = decoder_ref(x, inc_layers, use_inception=True)
  assert y.shape == (N, C, H, W)
  err = float(jnp.max(jnp.abs(y - y_ref)))
  assert jnp.allclose(y, y_ref, rtol=1e-2, atol=1e-2), err

  # use_inception = False
  smp_layers = [make_simple_params(k, C)
                for k in jax.random.split(kp_b, repeat_num)]
  y2 = jax.block_until_ready(decoder_forward(x, smp_layers, use_inception=False))
  y2_ref = decoder_ref(x, smp_layers, use_inception=False)
  err2 = float(jnp.max(jnp.abs(y2 - y2_ref)))
  assert jnp.allclose(y2, y2_ref, rtol=1e-2, atol=1e-2), err2

  print("KERNEL_OK")
</pallas_src>

<mosaic_0001>
module attributes {stable_mosaic.version = 11 : i64} {
  func.func @_inception_decoder_kernel(%arg0: i32, %arg1: memref<1x16x16x16xf32, #tpu.memory_space<vmem>>, %arg2: memref<2x16x4xf32, #tpu.memory_space<vmem>>, %arg3: memref<2x1x4xf32, #tpu.memory_space<vmem>>, %arg4: memref<2x1x4xf32, #tpu.memory_space<vmem>>, %arg5: memref<2x196x64xf32, #tpu.memory_space<vmem>>, %arg6: memref<2x1x64xf32, #tpu.memory_space<vmem>>, %arg7: memref<2x1x64xf32, #tpu.memory_space<vmem>>, %arg8: memref<1x16x16x16xf32, #tpu.memory_space<vmem>>, %arg9: memref<22x32x4xf32, #tpu.memory_space<vmem>>, %arg10: memref<20x32x16xf32, #tpu.memory_space<vmem>>) attributes {dimension_semantics = [#tpu.dimension_semantics<parallel>], iteration_bounds = array<i64: 2>, scalar_prefetch = 0 : i64, scratch_operands = 2 : i64, tpu.core_type = #tpu.core_type<tc>, window_params = [{transform_indices = @transform_0, window_bounds = array<i64: 1, 16, 16, 16>}, {pipeline_mode = #tpu.pipeline_mode<synchronous>, transform_indices = @transform_1, window_bounds = array<i64: 2, 16, 4>}, {pipeline_mode = #tpu.pipeline_mode<synchronous>, transform_indices = @transform_2, window_bounds = array<i64: 2, 1, 4>}, {pipeline_mode = #tpu.pipeline_mode<synchronous>, transform_indices = @transform_3, window_bounds = array<i64: 2, 1, 4>}, {pipeline_mode = #tpu.pipeline_mode<synchronous>, transform_indices = @transform_4, window_bounds = array<i64: 2, 196, 64>}, {pipeline_mode = #tpu.pipeline_mode<synchronous>, transform_indices = @transform_5, window_bounds = array<i64: 2, 1, 64>}, {pipeline_mode = #tpu.pipeline_mode<synchronous>, transform_indices = @transform_6, window_bounds = array<i64: 2, 1, 64>}, {transform_indices = @transform_7, window_bounds = array<i64: 1, 16, 16, 16>}]} {
    %cst = arith.constant 0.000000e+00 : f32
    %0 = vector.broadcast %cst : f32 to vector<22x32x4xf32>
    %c0 = arith.constant 0 : index
    %c0_0 = arith.constant 0 : index
    %c0_1 = arith.constant 0 : index
    %1 = vector.load %arg9[%c0, %c0_0, %c0_1] : memref<22x32x4xf32, #tpu.memory_space<vmem>>, vector<22x32x4xf32>
    tpu.vector_store %arg9[%c0, %c0_0, %c0_1], %0 {strides = array<i32>} : memref<22x32x4xf32, #tpu.memory_space<vmem>>, vector<22x32x4xf32>,
    %cst_2 = arith.constant 0xFF800000 : f32
    %2 = vector.broadcast %cst_2 : f32 to vector<20x32x16xf32>
    %c0_3 = arith.constant 0 : index
    %c0_4 = arith.constant 0 : index
    %c0_5 = arith.constant 0 : index
    %3 = vector.load %arg10[%c0_3, %c0_4, %c0_5] : memref<20x32x16xf32, #tpu.memory_space<vmem>>, vector<20x32x16xf32>
    tpu.vector_store %arg10[%c0_3, %c0_4, %c0_5], %2 {strides = array<i32>} : memref<20x32x16xf32, #tpu.memory_space<vmem>>, vector<20x32x16xf32>,
    %c0_6 = arith.constant 0 : index
    %c0_7 = arith.constant 0 : index
    %c0_8 = arith.constant 0 : index
    %c0_9 = arith.constant 0 : index
    %4 = vector.load %arg1[%c0_6, %c0_7, %c0_8, %c0_9] : memref<1x16x16x16xf32, #tpu.memory_space<vmem>>, vector<1x16x16x16xf32>
    %5 = vector.shape_cast %4 : vector<1x16x16x16xf32> to vector<16x16x16xf32>
    %6 = vector.shape_cast %5 : vector<16x16x16xf32> to vector<256x16xf32>
    %c0_10 = arith.constant 0 : index
    %c0_11 = arith.constant 0 : index
    %c0_12 = arith.constant 0 : index
    %7 = vector.load %arg2[%c0_10, %c0_11, %c0_12] : memref<2x16x4xf32, #tpu.memory_space<vmem>>, vector<1x16x4xf32>
    %8 = vector.shape_cast %7 : vector<1x16x4xf32> to vector<16x4xf32>
    %cst_13 = arith.constant dense<0.000000e+00> : vector<256x4xf32>
    %9 = tpu.matmul %6, %8, %cst_13 {dimension_numbers = #tpu.dot_dimension_numbers<[1], [0], [0], [1], [0, 0, 1, 1], [], []>} : vector<256x16xf32>, vector<16x4xf32>, vector<256x4xf32> -> vector<256x4xf32>
    %c0_14 = arith.constant 0 : index
    %c0_15 = arith.constant 0 : index
    %c0_16 = arith.constant 0 : index
    %10 = vector.load %arg3[%c0_14, %c0_15, %c0_16] : memref<2x1x4xf32, #tpu.memory_space<vmem>>, vector<1x1x4xf32>
    %11 = vector.shape_cast %10 : vector<1x1x4xf32> to vector<1x4xf32>
    %12 = vector.broadcast %11 : vector<1x4xf32> to vector<256x4xf32>
    %13 = arith.mulf %9, %12 : vector<256x4xf32>
    %c0_17 = arith.constant 0 : index
    %c0_18 = arith.constant 0 : index
    %c0_19 = arith.constant 0 : index
    %14 = vector.load %arg4[%c0_17, %c0_18, %c0_19] : memref<2x1x4xf32, #tpu.memory_space<vmem>>, vector<1x1x4xf32>
    %15 = vector.shape_cast %14 : vector<1x1x4xf32> to vector<1x4xf32>
    %16 = vector.broadcast %15 : vector<1x4xf32> to vector<256x4xf32>
    %17 = arith.addf %13, %16 : vector<256x4xf32>
    %cst_20 = arith.constant 0.000000e+00 : f32
    %18 = vector.broadcast %cst_20 : f32 to vector<256x4xf32>
    %19 = arith.maximumf %17, %18 : vector<256x4xf32>
    %20 = vector.shape_cast %19 : vector<256x4xf32> to vector<16x16x4xf32>
    %c3 = arith.constant 3 : index
    %c8 = arith.constant 8 : index
    %c0_21 = arith.constant 0 : index
    %21 = vector.load %arg9[%c3, %c8, %c0_21] : memref<22x32x4xf32, #tpu.memory_space<vmem>>, vector<16x16x4xf32>
    tpu.vector_store %arg9[%c3, %c8, %c0_21], %20 {strides = array<i32>} : memref<22x32x4xf32, #tpu.memory_space<vmem>>, vector<16x16x4xf32>,
    %c0_22 = arith.constant 0 : index
    %c5 = arith.constant 5 : index
    %c0_23 = arith.constant 0 : index
    %22 = vector.load %arg9[%c0_22, %c5, %c0_23] : memref<22x32x4xf32, #tpu.memory_space<vmem>>, vector<22x16x4xf32>
    %c0_24 = arith.constant 0 : index
    %c6 = arith.constant 6 : index
    %c0_25 = arith.constant 0 : index
    %23 = vector.load %arg9[%c0_24, %c6, %c0_25] : memref<22x32x4xf32, #tpu.memory_space<vmem>>, vector<22x16x4xf32>
    %c0_26 = arith.constant 0 : index
    %c7 = arith.constant 7 : index
    %c0_27 = arith.constant 0 : index
    %24 = vector.load %arg9[%c0_26, %c7, %c0_27] : memref<22x32x4xf32, #tpu.memory_space<vmem>>, vector<22x16x4xf32>
    %c0_28 = arith.constant 0 : index
    %c8_29 = arith.constant 8 : index
    %c0_30 = arith.constant 0 : index
    %25 = vector.load %arg9[%c0_28, %c8_29, %c0_30] : memref<22x32x4xf32, #tpu.memory_space<vmem>>, vector<22x16x4xf32>
    %c0_31 = arith.constant 0 : index
    %c9 = arith.constant 9 : index
    %c0_32 = arith.constant 0 : index
    %26 = vector.load %arg9[%c0_31, %c9, %c0_32] : memref<22x32x4xf32, #tpu.memory_space<vmem>>, vector<22x16x4xf32>
    %c0_33 = arith.constant 0 : index
    %c10 = arith.constant 10 : index
    %c0_34 = arith.constant 0 : index
    %27 = vector.load %arg9[%c0_33, %c10, %c0_34] : memref<22x32x4xf32, #tpu.memory_space<vmem>>, vector<22x16x4xf32>
    %c0_35 = arith.constant 0 : index
    %c11 = arith.constant 11 : index
    %c0_36 = arith.constant 0 : index
    %28 = vector.load %arg9[%c0_35, %c11, %c0_36] : memref<22x32x4xf32, #tpu.memory_space<vmem>>, vector<22x16x4xf32>
    %29 = tpu.concatenate %22, %23, %24, %25, %26, %27, %28 in 2 : vector<22x16x4xf32>, vector<22x16x4xf32>, vector<22x16x4xf32>, vector<22x16x4xf32>, vector<22x16x4xf32>, vector<22x16x4xf32>, vector<22x16x4xf32> -> vector<22x16x28xf32>
    %30 = vector.extract_strided_slice %29 {offsets = [0, 0, 0], sizes = [16, 16, 28], strides = [1, 1, 1]} : vector<22x16x28xf32> to vector<16x16x28xf32>
    %31 = vector.extract_strided_slice %29 {offsets = [1, 0, 0], sizes = [16, 16, 28], strides = [1, 1, 1]} : vector<22x16x28xf32> to vector<16x16x28xf32>
    %32 = vector.extract_strided_slice %29 {offsets = [2, 0, 0], sizes = [16, 16, 28], strides = [1, 1, 1]} : vector<22x16x28xf32> to vector<16x16x28xf32>
    %33 = vector.extract_strided_slice %29 {offsets = [3, 0, 0], sizes = [16, 16, 28], strides = [1, 1, 1]} : vector<22x16x28xf32> to vector<16x16x28xf32>
    %34 = vector.extract_strided_slice %29 {offsets = [4, 0, 0], sizes = [16, 16, 28], strides = [1, 1, 1]} : vector<22x16x28xf32> to vector<16x16x28xf32>
    %35 = vector.extract_strided_slice %29 {offsets = [5, 0, 0], sizes = [16, 16, 28], strides = [1, 1, 1]} : vector<22x16x28xf32> to vector<16x16x28xf32>
    %36 = vector.extract_strided_slice %29 {offsets = [6, 0, 0], sizes = [16, 16, 28], strides = [1, 1, 1]} : vector<22x16x28xf32> to vector<16x16x28xf32>
    %37 = tpu.concatenate %30, %31, %32, %33, %34, %35, %36 in 2 : vector<16x16x28xf32>, vector<16x16x28xf32>, vector<16x16x28xf32>, vector<16x16x28xf32>, vector<16x16x28xf32>, vector<16x16x28xf32>, vector<16x16x28xf32> -> vector<16x16x196xf32>
    %38 = vector.shape_cast %37 : vector<16x16x196xf32> to vector<256x196xf32>
    %c0_37 = arith.constant 0 : index
    %c0_38 = arith.constant 0 : index
    %c0_39 = arith.constant 0 : index
    %39 = vector.load %arg5[%c0_37, %c0_38, %c0_39] : memref<2x196x64xf32, #tpu.memory_space<vmem>>, vector<1x196x64xf32>
    %40 = vector.shape_cast %39 : vector<1x196x64xf32> to vector<196x64xf32>
    %cst_40 = arith.constant dense<0.000000e+00> : vector<256x64xf32>
    %41 = tpu.matmul %38, %40, %cst_40 {dimension_numbers = #tpu.dot_dimension_numbers<[1], [0], [0], [1], [0, 0, 1, 1], [], []>} : vector<256x196xf32>, vector<196x64xf32>, vector<256x64xf32> -> vector<256x64xf32>
    %c0_41 = arith.constant 0 : index
    %c0_42 = arith.constant 0 : index
    %c0_43 = arith.constant 0 : index
    %42 = vector.load %arg6[%c0_41, %c0_42, %c0_43] : memref<2x1x64xf32, #tpu.memory_space<vmem>>, vector<1x1x64xf32>
    %43 = vector.shape_cast %42 : vector<1x1x64xf32> to vector<1x64xf32>
    %44 = vector.broadcast %43 : vector<1x64xf32> to vector<256x64xf32>
    %45 = arith.mulf %41, %44 : vector<256x64xf32>
    %c0_44 = arith.constant 0 : index
    %c0_45 = arith.constant 0 : index
    %c0_46 = arith.constant 0 : index
    %46 = vector.load %arg7[%c0_44, %c0_45, %c0_46] : memref<2x1x64xf32, #tpu.memory_space<vmem>>, vector<1x1x64xf32>
    %47 = vector.shape_cast %46 : vector<1x1x64xf32> to vector<1x64xf32>
    %48 = vector.broadcast %47 : vector<1x64xf32> to vector<256x64xf32>
    %49 = arith.addf %45, %48 : vector<256x64xf32>
    %cst_47 = arith.constant 0.000000e+00 : f32
    %50 = vector.broadcast %cst_47 : f32 to vector<256x64xf32>
    %51 = arith.maximumf %49, %50 : vector<256x64xf32>
    %52 = vector.extract_strided_slice %51 {offsets = [0, 0], sizes = [256, 16], strides = [1, 1]} : vector<256x64xf32> to vector<256x16xf32>
    %53 = vector.extract_strided_slice %51 {offsets = [0, 16], sizes = [256, 16], strides = [1, 1]} : vector<256x64xf32> to vector<256x16xf32>
    %54 = arith.addf %52, %53 : vector<256x16xf32>
    %55 = vector.extract_strided_slice %51 {offsets = [0, 32], sizes = [256, 16], strides = [1, 1]} : vector<256x64xf32> to vector<256x16xf32>
    %56 = arith.addf %54, %55 : vector<256x16xf32>
    %57 = vector.extract_strided_slice %51 {offsets = [0, 48], sizes = [256, 16], strides = [1, 1]} : vector<256x64xf32> to vector<256x16xf32>
    %58 = arith.addf %56, %57 : vector<256x16xf32>
    %59 = vector.shape_cast %58 : vector<256x16xf32> to vector<16x16x16xf32>
    %c2 = arith.constant 2 : index
    %c8_48 = arith.constant 8 : index
    %c0_49 = arith.constant 0 : index
    %60 = vector.load %arg10[%c2, %c8_48, %c0_49] : memref<20x32x16xf32, #tpu.memory_space<vmem>>, vector<16x16x16xf32>
    tpu.vector_store %arg10[%c2, %c8_48, %c0_49], %5 {strides = array<i32>} : memref<20x32x16xf32, #tpu.memory_space<vmem>>, vector<16x16x16xf32>,
    %c0_50 = arith.constant 0 : index
    %c0_51 = arith.constant 0 : index
    %c0_52 = arith.constant 0 : index
    %61 = vector.load %arg10[%c0_50, %c0_51, %c0_52] : memref<20x32x16xf32, #tpu.memory_space<vmem>>, vector<16x32x16xf32>
    %c1 = arith.constant 1 : index
    %c0_53 = arith.constant 0 : index
    %c0_54 = arith.constant 0 : index
    %62 = vector.load %arg10[%c1, %c0_53, %c0_54] : memref<20x32x16xf32, #tpu.memory_space<vmem>>, vector<16x32x16xf32>
    %c2_55 = arith.constant 2 : index
    %c0_56 = arith.constant 0 : index
    %c0_57 = arith.constant 0 : index
    %63 = vector.load %arg10[%c2_55, %c0_56, %c0_57] : memref<20x32x16xf32, #tpu.memory_space<vmem>>, vector<16x32x16xf32>
    %c3_58 = arith.constant 3 : index
    %c0_59 = arith.constant 0 : index
    %c0_60 = arith.constant 0 : index
    %64 = vector.load %arg10[%c3_58, %c0_59, %c0_60] : memref<20x32x16xf32, #tpu.memory_space<vmem>>, vector<16x32x16xf32>
    %c4 = arith.constant 4 : index
    %c0_61 = arith.constant 0 : index
    %c0_62 = arith.constant 0 : index
    %65 = vector.load %arg10[%c4, %c0_61, %c0_62] : memref<20x32x16xf32, #tpu.memory_space<vmem>>, vector<16x32x16xf32>
    %66 = arith.maximumf %62, %63 : vector<16x32x16xf32>
    %67 = arith.maximumf %66, %64 : vector<16x32x16xf32>
    %68 = arith.maximumf %61, %67 : vector<16x32x16xf32>
    %69 = arith.maximumf %68, %65 : vector<16x32x16xf32>
    %70 = vector.extract_strided_slice %67 {offsets = [0, 7, 0], sizes = [16, 16, 16], strides = [1, 1, 1]} : vector<16x32x16xf32> to vector<16x16x16xf32>
    %71 = vector.extract_strided_slice %67 {offsets = [0, 8, 0], sizes = [16, 16, 16], strides = [1, 1, 1]} : vector<16x32x16xf32> to vector<16x16x16xf32>
    %72 = arith.maximumf %70, %71 : vector<16x16x16xf32>
    %73 = vector.extract_strided_slice %67 {offsets = [0, 9, 0], sizes = [16, 16, 16], strides = [1, 1, 1]} : vector<16x32x16xf32> to vector<16x16x16xf32>
    %74 = arith.maximumf %72, %73 : vector<16x16x16xf32>
    %75 = vector.extract_strided_slice %69 {offsets = [0, 6, 0], sizes = [16, 16, 16], strides = [1, 1, 1]} : vector<16x32x16xf32> to vector<16x16x16xf32>
    %76 = vector.extract_strided_slice %69 {offsets = [0, 7, 0], sizes = [16, 16, 16], strides = [1, 1, 1]} : vector<16x32x16xf32> to vector<16x16x16xf32>
    %77 = arith.maximumf %75, %76 : vector<16x16x16xf32>
    %78 = vector.extract_strided_slice %69 {offsets = [0, 8, 0], sizes = [16, 16, 16], strides = [1, 1, 1]} : vector<16x32x16xf32> to vector<16x16x16xf32>
    %79 = vector.extract_strided_slice %69 {offsets = [0, 9, 0], sizes = [16, 16, 16], strides = [1, 1, 1]} : vector<16x32x16xf32> to vector<16x16x16xf32>
    %80 = arith.maximumf %78, %79 : vector<16x16x16xf32>
    %81 = arith.maximumf %77, %80 : vector<16x16x16xf32>
    %82 = vector.extract_strided_slice %69 {offsets = [0, 10, 0], sizes = [16, 16, 16], strides = [1, 1, 1]} : vector<16x32x16xf32> to vector<16x16x16xf32>
    %83 = arith.maximumf %81, %82 : vector<16x16x16xf32>
    %84 = arith.addf %59, %74 : vector<16x16x16xf32>
    %85 = arith.addf %84, %83 : vector<16x16x16xf32>
    %86 = vector.shape_cast %85 : vector<16x16x16xf32> to vector<256x16xf32>
    %c1_63 = arith.constant 1 : index
    %c0_64 = arith.constant 0 : index
    %c0_65 = arith.constant 0 : index
    %87 = vector.load %arg2[%c1_63, %c0_64, %c0_65] : memref<2x16x4xf32, #tpu.memory_space<vmem>>, vector<1x16x4xf32>
    %88 = vector.shape_cast %87 : vector<1x16x4xf32> to vector<16x4xf32>
    %cst_66 = arith.constant dense<0.000000e+00> : vector<256x4xf32>
    %89 = tpu.matmul %86, %88, %cst_66 {dimension_numbers = #tpu.dot_dimension_numbers<[1], [0], [0], [1], [0, 0, 1, 1], [], []>} : vector<256x16xf32>, vector<16x4xf32>, vector<256x4xf32> -> vector<256x4xf32>
    %c1_67 = arith.constant 1 : index
    %c0_68 = arith.constant 0 : index
    %c0_69 = arith.constant 0 : index
    %90 = vector.load %arg3[%c1_67, %c0_68, %c0_69] : memref<2x1x4xf32, #tpu.memory_space<vmem>>, vector<1x1x4xf32>
    %91 = vector.shape_cast %90 : vector<1x1x4xf32> to vector<1x4xf32>
    %92 = vector.broadcast %91 : vector<1x4xf32> to vector<256x4xf32>
    %93 = arith.mulf %89, %92 : vector<256x4xf32>
    %c1_70 = arith.constant 1 : index
    %c0_71 = arith.constant 0 : index
    %c0_72 = arith.constant 0 : index
    %94 = vector.load %arg4[%c1_70, %c0_71, %c0_72] : memref<2x1x4xf32, #tpu.memory_space<vmem>>, vector<1x1x4xf32>
    %95 = vector.shape_cast %94 : vector<1x1x4xf32> to vector<1x4xf32>
    %96 = vector.broadcast %95 : vector<1x4xf32> to vector<256x4xf32>
    %97 = arith.addf %93, %96 : vector<256x4xf32>
    %cst_73 = arith.constant 0.000000e+00 : f32
    %98 = vector.broadcast %cst_73 : f32 to vector<256x4xf32>
    %99 = arith.maximumf %97, %98 : vector<256x4xf32>
    %100 = vector.shape_cast %99 : vector<256x4xf32> to vector<16x16x4xf32>
    %c3_74 = arith.constant 3 : index
    %c8_75 = arith.constant 8 : index
    %c0_76 = arith.constant 0 : index
    %101 = vector.load %arg9[%c3_74, %c8_75, %c0_76] : memref<22x32x4xf32, #tpu.memory_space<vmem>>, vector<16x16x4xf32>
    tpu.vector_store %arg9[%c3_74, %c8_75, %c0_76], %100 {strides = array<i32>} : memref<22x32x4xf32, #tpu.memory_space<vmem>>, vector<16x16x4xf32>,
    %c0_77 = arith.constant 0 : index
    %c5_78 = arith.constant 5 : index
    %c0_79 = arith.constant 0 : index
    %102 = vector.load %arg9[%c0_77, %c5_78, %c0_79] : memref<22x32x4xf32, #tpu.memory_space<vmem>>, vector<22x16x4xf32>
    %c0_80 = arith.constant 0 : index
    %c6_81 = arith.constant 6 : index
    %c0_82 = arith.constant 0 : index
    %103 = vector.load %arg9[%c0_80, %c6_81, %c0_82] : memref<22x32x4xf32, #tpu.memory_space<vmem>>, vector<22x16x4xf32>
    %c0_83 = arith.constant 0 : index
    %c7_84 = arith.constant 7 : index
    %c0_85 = arith.constant 0 : index
    %104 = vector.load %arg9[%c0_83, %c7_84, %c0_85] : memref<22x32x4xf32, #tpu.memory_space<vmem>>, vector<22x16x4xf32>
    %c0_86 = arith.constant 0 : index
    %c8_87 = arith.constant 8 : index
    %c0_88 = arith.constant 0 : index
    %105 = vector.load %arg9[%c0_86, %c8_87, %c0_88] : memref<22x32x4xf32, #tpu.memory_space<vmem>>, vector<22x16x4xf32>
    %c0_89 = arith.constant 0 : index
    %c9_90 = arith.constant 9 : index
    %c0_91 = arith.constant 0 : index
    %106 = vector.load %arg9[%c0_89, %c9_90, %c0_91] : memref<22x32x4xf32, #tpu.memory_space<vmem>>, vector<22x16x4xf32>
    %c0_92 = arith.constant 0 : index
    %c10_93 = arith.constant 10 : index
    %c0_94 = arith.constant 0 : index
    %107 = vector.load %arg9[%c0_92, %c10_93, %c0_94] : memref<22x32x4xf32, #tpu.memory_space<vmem>>, vector<22x16x4xf32>
    %c0_95 = arith.constant 0 : index
    %c11_96 = arith.constant 11 : index
    %c0_97 = arith.constant 0 : index
    %108 = vector.load %arg9[%c0_95, %c11_96, %c0_97] : memref<22x32x4xf32, #tpu.memory_space<vmem>>, vector<22x16x4xf32>
    %109 = tpu.concatenate %102, %103, %104, %105, %106, %107, %108 in 2 : vector<22x16x4xf32>, vector<22x16x4xf32>, vector<22x16x4xf32>, vector<22x16x4xf32>, vector<22x16x4xf32>, vector<22x16x4xf32>, vector<22x16x4xf32> -> vector<22x16x28xf32>
    %110 = vector.extract_strided_slice %109 {offsets = [0, 0, 0], sizes = [16, 16, 28], strides = [1, 1, 1]} : vector<22x16x28xf32> to vector<16x16x28xf32>
    %111 = vector.extract_strided_slice %109 {offsets = [1, 0, 0], sizes = [16, 16, 28], strides = [1, 1, 1]} : vector<22x16x28xf32> to vector<16x16x28xf32>
    %112 = vector.extract_strided_slice %109 {offsets = [2, 0, 0], sizes = [16, 16, 28], strides = [1, 1, 1]} : vector<22x16x28xf32> to vector<16x16x28xf32>
    %113 = vector.extract_strided_slice %109 {offsets = [3, 0, 0], sizes = [16, 16, 28], strides = [1, 1, 1]} : vector<22x16x28xf32> to vector<16x16x28xf32>
    %114 = vector.extract_strided_slice %109 {offsets = [4, 0, 0], sizes = [16, 16, 28], strides = [1, 1, 1]} : vector<22x16x28xf32> to vector<16x16x28xf32>
    %115 = vector.extract_strided_slice %109 {offsets = [5, 0, 0], sizes = [16, 16, 28], strides = [1, 1, 1]} : vector<22x16x28xf32> to vector<16x16x28xf32>
    %116 = vector.extract_strided_slice %109 {offsets = [6, 0, 0], sizes = [16, 16, 28], strides = [1, 1, 1]} : vector<22x16x28xf32> to vector<16x16x28xf32>
    %117 = tpu.concatenate %110, %111, %112, %113, %114, %115, %116 in 2 : vector<16x16x28xf32>, vector<16x16x28xf32>, vector<16x16x28xf32>, vector<16x16x28xf32>, vector<16x16x28xf32>, vector<16x16x28xf32>, vector<16x16x28xf32> -> vector<16x16x196xf32>
    %118 = vector.shape_cast %117 : vector<16x16x196xf32> to vector<256x196xf32>
    %c1_98 = arith.constant 1 : index
    %c0_99 = arith.constant 0 : index
    %c0_100 = arith.constant 0 : index
    %119 = vector.load %arg5[%c1_98, %c0_99, %c0_100] : memref<2x196x64xf32, #tpu.memory_space<vmem>>, vector<1x196x64xf32>
    %120 = vector.shape_cast %119 : vector<1x196x64xf32> to vector<196x64xf32>
    %cst_101 = arith.constant dense<0.000000e+00> : vector<256x64xf32>
    %121 = tpu.matmul %118, %120, %cst_101 {dimension_numbers = #tpu.dot_dimension_numbers<[1], [0], [0], [1], [0, 0, 1, 1], [], []>} : vector<256x196xf32>, vector<196x64xf32>, vector<256x64xf32> -> vector<256x64xf32>
    %c1_102 = arith.constant 1 : index
    %c0_103 = arith.constant 0 : index
    %c0_104 = arith.constant 0 : index
    %122 = vector.load %arg6[%c1_102, %c0_103, %c0_104] : memref<2x1x64xf32, #tpu.memory_space<vmem>>, vector<1x1x64xf32>
    %123 = vector.shape_cast %122 : vector<1x1x64xf32> to vector<1x64xf32>
    %124 = vector.broadcast %123 : vector<1x64xf32> to vector<256x64xf32>
    %125 = arith.mulf %121, %124 : vector<256x64xf32>
    %c1_105 = arith.constant 1 : index
    %c0_106 = arith.constant 0 : index
    %c0_107 = arith.constant 0 : index
    %126 = vector.load %arg7[%c1_105, %c0_106, %c0_107] : memref<2x1x64xf32, #tpu.memory_space<vmem>>, vector<1x1x64xf32>
    %127 = vector.shape_cast %126 : vector<1x1x64xf32> to vector<1x64xf32>
    %128 = vector.broadcast %127 : vector<1x64xf32> to vector<256x64xf32>
    %129 = arith.addf %125, %128 : vector<256x64xf32>
    %cst_108 = arith.constant 0.000000e+00 : f32
    %130 = vector.broadcast %cst_108 : f32 to vector<256x64xf32>
    %131 = arith.maximumf %129, %130 : vector<256x64xf32>
    %132 = vector.extract_strided_slice %131 {offsets = [0, 0], sizes = [256, 16], strides = [1, 1]} : vector<256x64xf32> to vector<256x16xf32>
    %133 = vector.extract_strided_slice %131 {offsets = [0, 16], sizes = [256, 16], strides = [1, 1]} : vector<256x64xf32> to vector<256x16xf32>
    %134 = arith.addf %132, %133 : vector<256x16xf32>
    %135 = vector.extract_strided_slice %131 {offsets = [0, 32], sizes = [256, 16], strides = [1, 1]} : vector<256x64xf32> to vector<256x16xf32>
    %136 = arith.addf %134, %135 : vector<256x16xf32>
    %137 = vector.extract_strided_slice %131 {offsets = [0, 48], sizes = [256, 16], strides = [1, 1]} : vector<256x64xf32> to vector<256x16xf32>
    %138 = arith.addf %136, %137 : vector<256x16xf32>
    %139 = vector.shape_cast %138 : vector<256x16xf32> to vector<16x16x16xf32>
    %c2_109 = arith.constant 2 : index
    %c8_110 = arith.constant 8 : index
    %c0_111 = arith.constant 0 : index
    %140 = vector.load %arg10[%c2_109, %c8_110, %c0_111] : memref<20x32x16xf32, #tpu.memory_space<vmem>>, vector<16x16x16xf32>
    tpu.vector_store %arg10[%c2_109, %c8_110, %c0_111], %85 {strides = array<i32>} : memref<20x32x16xf32, #tpu.memory_space<vmem>>, vector<16x16x16xf32>,
    %c0_112 = arith.constant 0 : index
    %c0_113 = arith.constant 0 : index
    %c0_114 = arith.constant 0 : index
    %141 = vector.load %arg10[%c0_112, %c0_113, %c0_114] : memref<20x32x16xf32, #tpu.memory_space<vmem>>, vector<16x32x16xf32>
    %c1_115 = arith.constant 1 : index
    %c0_116 = arith.constant 0 : index
    %c0_117 = arith.constant 0 : index
    %142 = vector.load %arg10[%c1_115, %c0_116, %c0_117] : memref<20x32x16xf32, #tpu.memory_space<vmem>>, vector<16x32x16xf32>
    %c2_118 = arith.constant 2 : index
    %c0_119 = arith.constant 0 : index
    %c0_120 = arith.constant 0 : index
    %143 = vector.load %arg10[%c2_118, %c0_119, %c0_120] : memref<20x32x16xf32, #tpu.memory_space<vmem>>, vector<16x32x16xf32>
    %c3_121 = arith.constant 3 : index
    %c0_122 = arith.constant 0 : index
    %c0_123 = arith.constant 0 : index
    %144 = vector.load %arg10[%c3_121, %c0_122, %c0_123] : memref<20x32x16xf32, #tpu.memory_space<vmem>>, vector<16x32x16xf32>
    %c4_124 = arith.constant 4 : index
    %c0_125 = arith.constant 0 : index
    %c0_126 = arith.constant 0 : index
    %145 = vector.load %arg10[%c4_124, %c0_125, %c0_126] : memref<20x32x16xf32, #tpu.memory_space<vmem>>, vector<16x32x16xf32>
    %146 = arith.maximumf %142, %143 : vector<16x32x16xf32>
    %147 = arith.maximumf %146, %144 : vector<16x32x16xf32>
    %148 = arith.maximumf %141, %147 : vector<16x32x16xf32>
    %149 = arith.maximumf %148, %145 : vector<16x32x16xf32>
    %150 = vector.extract_strided_slice %147 {offsets = [0, 7, 0], sizes = [16, 16, 16], strides = [1, 1, 1]} : vector<16x32x16xf32> to vector<16x16x16xf32>
    %151 = vector.extract_strided_slice %147 {offsets = [0, 8, 0], sizes = [16, 16, 16], strides = [1, 1, 1]} : vector<16x32x16xf32> to vector<16x16x16xf32>
    %152 = arith.maximumf %150, %151 : vector<16x16x16xf32>
    %153 = vector.extract_strided_slice %147 {offsets = [0, 9, 0], sizes = [16, 16, 16], strides = [1, 1, 1]} : vector<16x32x16xf32> to vector<16x16x16xf32>
    %154 = arith.maximumf %152, %153 : vector<16x16x16xf32>
    %155 = vector.extract_strided_slice %149 {offsets = [0, 6, 0], sizes = [16, 16, 16], strides = [1, 1, 1]} : vector<16x32x16xf32> to vector<16x16x16xf32>
    %156 = vector.extract_strided_slice %149 {offsets = [0, 7, 0], sizes = [16, 16, 16], strides = [1, 1, 1]} : vector<16x32x16xf32> to vector<16x16x16xf32>
    %157 = arith.maximumf %155, %156 : vector<16x16x16xf32>
    %158 = vector.extract_strided_slice %149 {offsets = [0, 8, 0], sizes = [16, 16, 16], strides = [1, 1, 1]} : vector<16x32x16xf32> to vector<16x16x16xf32>
    %159 = vector.extract_strided_slice %149 {offsets = [0, 9, 0], sizes = [16, 16, 16], strides = [1, 1, 1]} : vector<16x32x16xf32> to vector<16x16x16xf32>
    %160 = arith.maximumf %158, %159 : vector<16x16x16xf32>
    %161 = arith.maximumf %157, %160 : vector<16x16x16xf32>
    %162 = vector.extract_strided_slice %149 {offsets = [0, 10, 0], sizes = [16, 16, 16], strides = [1, 1, 1]} : vector<16x32x16xf32> to vector<16x16x16xf32>
    %163 = arith.maximumf %161, %162 : vector<16x16x16xf32>
    %164 = arith.addf %139, %154 : vector<16x16x16xf32>
    %165 = arith.addf %164, %163 : vector<16x16x16xf32>
    %c0_127 = arith.constant 0 : index
    %c0_128 = arith.constant 0 : index
    %c0_129 = arith.constant 0 : index
    %c0_130 = arith.constant 0 : index
    %166 = vector.load %arg8[%c0_127, %c0_128, %c0_129, %c0_130] : memref<1x16x16x16xf32, #tpu.memory_space<vmem>>, vector<1x16x16x16xf32>
    %167 = vector.shape_cast %166 : vector<1x16x16x16xf32> to vector<16x16x16xf32>
    %168 = vector.shape_cast %165 : vector<16x16x16xf32> to vector<1x16x16x16xf32>
    tpu.vector_store %arg8[%c0_127, %c0_128, %c0_129, %c0_130], %168 {strides = array<i32>} : memref<1x16x16x16xf32, #tpu.memory_space<vmem>>, vector<1x16x16x16xf32>,
    return
  }
  func.func @transform_0(%arg0: i32) -> (i32, i32, i32, i32) {
    %c0_i32 = arith.constant 0 : i32
    %c0_i32_0 = arith.constant 0 : i32
    %c0_i32_1 = arith.constant 0 : i32
    %c0_i32_2 = arith.constant 0 : i32
    return %arg0, %c0_i32, %c0_i32_0, %c0_i32_1 : i32, i32, i32, i32
  }
  func.func @transform_1(%arg0: i32) -> (i32, i32, i32) {
    %c0_i32 = arith.constant 0 : i32
    %c0_i32_0 = arith.constant 0 : i32
    %c0_i32_1 = arith.constant 0 : i32
    %c0_i32_2 = arith.constant 0 : i32
    return %c0_i32, %c0_i32_0, %c0_i32_1 : i32, i32, i32
  }
  func.func @transform_2(%arg0: i32) -> (i32, i32, i32) {
    %c0_i32 = arith.constant 0 : i32
    %c0_i32_0 = arith.constant 0 : i32
    %c0_i32_1 = arith.constant 0 : i32
    %c0_i32_2 = arith.constant 0 : i32
    return %c0_i32, %c0_i32_0, %c0_i32_1 : i32, i32, i32
  }
  func.func @transform_3(%arg0: i32) -> (i32, i32, i32) {
    %c0_i32 = arith.constant 0 : i32
    %c0_i32_0 = arith.constant 0 : i32
    %c0_i32_1 = arith.constant 0 : i32
    %c0_i32_2 = arith.constant 0 : i32
    return %c0_i32, %c0_i32_0, %c0_i32_1 : i32, i32, i32
  }
  func.func @transform_4(%arg0: i32) -> (i32, i32, i32) {
    %c0_i32 = arith.constant 0 : i32
    %c0_i32_0 = arith.constant 0 : i32
    %c0_i32_1 = arith.constant 0 : i32
    %c0_i32_2 = arith.constant 0 : i32
    return %c0_i32, %c0_i32_0, %c0_i32_1 : i32, i32, i32
  }
  func.func @transform_5(%arg0: i32) -> (i32, i32, i32) {
    %c0_i32 = arith.constant 0 : i32
    %c0_i32_0 = arith.constant 0 : i32
    %c0_i32_1 = arith.constant 0 : i32
    %c0_i32_2 = arith.constant 0 : i32
    return %c0_i32, %c0_i32_0, %c0_i32_1 : i32, i32, i32
  }
  func.func @transform_6(%arg0: i32) -> (i32, i32, i32) {
    %c0_i32 = arith.constant 0 : i32
    %c0_i32_0 = arith.constant 0 : i32
    %c0_i32_1 = arith.constant 0 : i32
    %c0_i32_2 = arith.constant 0 : i32
    return %c0_i32, %c0_i32_0, %c0_i32_1 : i32, i32, i32
  }
  func.func @transform_7(%arg0: i32) -> (i32, i32, i32, i32) {
    %c0_i32 = arith.constant 0 : i32
    %c0_i32_0 = arith.constant 0 : i32
    %c0_i32_1 = arith.constant 0 : i32
    %c0_i32_2 = arith.constant 0 : i32
    return %arg0, %c0_i32, %c0_i32_0, %c0_i32_1 : i32, i32, i32, i32
  }
}

</mosaic_0001>

<llo_original>
// kernel: tpu_custom_call.1
$region0: #{tpu_custom_call.1}
  #allocation0 [shape = 'u32[]', space=smem, size = 0x4, offset = 0x4, fixed_abs, tag = 'smem constant byte address 0x4 - core index']
  #allocation1 [shape = 'u32[144,128]{1,0:T(1,128)}', space=vmem, size = 0x12000, scoped, tag = 'internal scratch']
  #allocation2 [shape = 'f32[22,32,4]{2,1,0:T(8,128)}', space=vmem, size = 0x58000, scoped, tag = 'scratch operand']
  #allocation3 [shape = 'f32[20,32,16]{2,1,0:T(8,128)}', space=vmem, size = 0x50000, scoped, tag = 'scratch operand']
  %s0 = inlined_call_operand.vmem [shape: f32[2,16,16,16], index: 0, kind: input, shape index: {}]
  %s1 = inlined_call_operand.vmem [shape: f32[2,16,4], index: 1, kind: input, shape index: {}]
  %s2 = inlined_call_operand.vmem [shape: f32[2,1,4], index: 2, kind: input, shape index: {}]
  %s3 = inlined_call_operand.vmem [shape: f32[2,1,4], index: 3, kind: input, shape index: {}]
  %s4 = inlined_call_operand.vmem [shape: f32[2,196,64], index: 4, kind: input, shape index: {}]
  %s5 = inlined_call_operand.vmem [shape: f32[2,1,64], index: 5, kind: input, shape index: {}]
  %s6 = inlined_call_operand.vmem [shape: f32[2,1,64], index: 6, kind: input, shape index: {}]
  %s7 = inlined_call_operand.hbm [shape: f32[2,16,16,16], index: 7, kind: output, shape index: {}]
  %s8 = sld [smem:[#allocation0]]
  $region61: #{tpu_custom_call.1} parent=0
    _
  %s10 = ssub.s32 1, %s8
  %s11 = scalar_select 0, %s10, %s8
  $region1: #{tpu_custom_call.1} parent=0
    #allocation4 [shape = 'u8[262144]{0}', space=vmem, size = 0x40000, scoped, tag = 'output window, operand 0']
    #allocation5 [shape = 's32[2]{0}', space=sflag, size = 0x8, scoped, tag = 'scoped memory for tpu_custom_call.1']
    %12 = vsyncpa [#allocation5], 0
    %s13 = scalar_lea.sflag [#allocation5], 1
    %14 = vsyncpa %s13, 0
    loop: start=0, step=1, limit=4
    $region2: #{tpu_custom_call.1} parent=1 // loop_pre_header
      _
    $region3: #{tpu_custom_call.1} parent=1 // loop_header
      %s16 = sphi 0, %s20
      %p17 = scmp.ge.s32.totalorder %s16, 4
      %s26 = sphi 0, %s28
      %s29 = sphi 0, %s26
      %s30 = sphi 0, %s29
      %s46 = sphi 0, %s30
      %s50 = sphi 0, %s50
      %s52 = sphi 0, %s50
      %s53 = sphi 0, %s52
      %s67 = sphi 0, %s53
      %s71 = sphi 0, %s71
      %s73 = sphi 0, %s71
      %s74 = sphi 0, %s73
      %s88 = sphi 0, %s74
      %s92 = sphi 0, %s92
      %s94 = sphi 0, %s92
      %s95 = sphi 0, %s94
      %s109 = sphi 0, %s95
      %s113 = sphi 0, %s113
      %s115 = sphi 0, %s113
      %s116 = sphi 0, %s115
      %s130 = sphi 0, %s116
      %s134 = sphi 0, %s134
      %s136 = sphi 0, %s134
      %s137 = sphi 0, %s136
      %s151 = sphi 0, %s137
      %s155 = sphi 0, %s155
      %s157 = sphi 0, %s155
      %s158 = sphi 0, %s157
      %s172 = sphi 0, %s158
      %s178 = sphi 0, %s180
      %s181 = sphi 0, %s178
      %s182 = sphi 0, %s181
      %s198 = sphi 0, %s182
    $region4: #{tpu_custom_call.1} parent=1 // loop_header_branch
      %19 = sbr.rel (%p17) target = $region8
    $region5: #{tpu_custom_call.1} parent=1 // loop_body
      %s21 = ssub.s32 %s16, 1
      %s22 = ssub.s32 %s16, 2
      %s23 = sadd.s32 %s16, 1
      %s24 = ssub.s32 %s16, %s23
      %p25 = scmp.eq.s32.totalorder %s24, 0
      %s27 = sadd.s32 %s26, 1
      %s28 = scalar_select %p25, %s26, %s27
      %p31 = pneg %p25
      %p32 = scmp.eq.s32.totalorder %s16, 1
      %p33 = por %p31, %p32
      %p34 = scmp.ne.s32.totalorder %s26, %s29
      %p35 = scmp.eq.s32.totalorder %s16, 0
      %p36 = por %p34, %p35
      %p37 = scmp.ne.s32.totalorder %s26, %s29
      %p38 = scmp.eq.s32.totalorder %s21, 1
      %p39 = por %p37, %p38
      %p40 = scmp.ne.s32.totalorder %s29, %s30
      %p41 = scmp.eq.s32.totalorder %s21, 0
      %p42 = por %p40, %p41
      %p43 = scmp.ne.s32.totalorder %s29, %s30
      %p44 = scmp.eq.s32.totalorder %s22, 1
      %p45 = por %p43, %p44
      %p47 = scmp.ne.s32.totalorder %s30, %s46
      %p48 = scmp.eq.s32.totalorder %s22, 0
      %p49 = por %p47, %p48
      %s51 = sadd.s32 %s50, 1
      %p54 = scmp.eq.s32.totalorder %s16, 1
      %p55 = scmp.ne.s32.totalorder %s50, %s52
      %p56 = scmp.eq.s32.totalorder %s16, 0
      %p57 = por %p55, %p56
      %p58 = scmp.ne.s32.totalorder %s50, %s52
      %p59 = scmp.eq.s32.totalorder %s21, 1
      %p60 = por %p58, %p59
      %p61 = scmp.ne.s32.totalorder %s52, %s53
      %p62 = scmp.eq.s32.totalorder %s21, 0
      %p63 = por %p61, %p62
      %p64 = scmp.ne.s32.totalorder %s52, %s53
      %p65 = scmp.eq.s32.totalorder %s22, 1
      %p66 = por %p64, %p65
      %p68 = scmp.ne.s32.totalorder %s53, %s67
      %p69 = scmp.eq.s32.totalorder %s22, 0
      %p70 = por %p68, %p69
      %s72 = sadd.s32 %s71, 1
      %p75 = scmp.eq.s32.totalorder %s16, 1
      %p76 = scmp.ne.s32.totalorder %s71, %s73
      %p77 = scmp.eq.s32.totalorder %s16, 0
      %p78 = por %p76, %p77
      %p79 = scmp.ne.s32.totalorder %s71, %s73
      %p80 = scmp.eq.s32.totalorder %s21, 1
      %p81 = por %p79, %p80
      %p82 = scmp.ne.s32.totalorder %s73, %s74
      %p83 = scmp.eq.s32.totalorder %s21, 0
      %p84 = por %p82, %p83
      %p85 = scmp.ne.s32.totalorder %s73, %s74
      %p86 = scmp.eq.s32.totalorder %s22, 1
      %p87 = por %p85, %p86
      %p89 = scmp.ne.s32.totalorder %s74, %s88
      %p90 = scmp.eq.s32.totalorder %s22, 0
      %p91 = por %p89, %p90
      %s93 = sadd.s32 %s92, 1
      %p96 = scmp.eq.s32.totalorder %s16, 1
      %p97 = scmp.ne.s32.totalorder %s92, %s94
      %p98 = scmp.eq.s32.totalorder %s16, 0
      %p99 = por %p97, %p98
      %p100 = scmp.ne.s32.totalorder %s92, %s94
      %p101 = scmp.eq.s32.totalorder %s21, 1
      %p102 = por %p100, %p101
      %p103 = scmp.ne.s32.totalorder %s94, %s95
      %p104 = scmp.eq.s32.totalorder %s21, 0
      %p105 = por %p103, %p104
      %p106 = scmp.ne.s32.totalorder %s94, %s95
      %p107 = scmp.eq.s32.totalorder %s22, 1
      %p108 = por %p106, %p107
      %p110 = scmp.ne.s32.totalorder %s95, %s109
      %p111 = scmp.eq.s32.totalorder %s22, 0
      %p112 = por %p110, %p111
      %s114 = sadd.s32 %s113, 1
      %p117 = scmp.eq.s32.totalorder %s16, 1
      %p118 = scmp.ne.s32.totalorder %s113, %s115
      %p119 = scmp.eq.s32.totalorder %s16, 0
      %p120 = por %p118, %p119
      %p121 = scmp.ne.s32.totalorder %s113, %s115
      %p122 = scmp.eq.s32.totalorder %s21, 1
      %p123 = por %p121, %p122
      %p124 = scmp.ne.s32.totalorder %s115, %s116
      %p125 = scmp.eq.s32.totalorder %s21, 0
      %p126 = por %p124, %p125
      %p127 = scmp.ne.s32.totalorder %s115, %s116
      %p128 = scmp.eq.s32.totalorder %s22, 1
      %p129 = por %p127, %p128
      %p131 = scmp.ne.s32.totalorder %s116, %s130
      %p132 = scmp.eq.s32.totalorder %s22, 0
      %p133 = por %p131, %p132
      %s135 = sadd.s32 %s134, 1
      %p138 = scmp.eq.s32.totalorder %s16, 1
      %p139 = scmp.ne.s32.totalorder %s134, %s136
      %p140 = scmp.eq.s32.totalorder %s16, 0
      %p141 = por %p139, %p140
      %p142 = scmp.ne.s32.totalorder %s134, %s136
      %p143 = scmp.eq.s32.totalorder %s21, 1
      %p144 = por %p142, %p143
      %p145 = scmp.ne.s32.totalorder %s136, %s137
      %p146 = scmp.eq.s32.totalorder %s21, 0
      %p147 = por %p145, %p146
      %p148 = scmp.ne.s32.totalorder %s136, %s137
      %p149 = scmp.eq.s32.totalorder %s22, 1
      %p150 = por %p148, %p149
      %p152 = scmp.ne.s32.totalorder %s137, %s151
      %p153 = scmp.eq.s32.totalorder %s22, 0
      %p154 = por %p152, %p153
      %s156 = sadd.s32 %s155, 1
      %p159 = scmp.eq.s32.totalorder %s16, 1
      %p160 = scmp.ne.s32.totalorder %s155, %s157
      %p161 = scmp.eq.s32.totalorder %s16, 0
      %p162 = por %p160, %p161
      %p163 = scmp.ne.s32.totalorder %s155, %s157
      %p164 = scmp.eq.s32.totalorder %s21, 1
      %p165 = por %p163, %p164
      %p166 = scmp.ne.s32.totalorder %s157, %s158
      %p167 = scmp.eq.s32.totalorder %s21, 0
      %p168 = por %p166, %p167
      %p169 = scmp.ne.s32.totalorder %s157, %s158
      %p170 = scmp.eq.s32.totalorder %s22, 1
      %p171 = por %p169, %p170
      %p173 = scmp.ne.s32.totalorder %s158, %s172
      %p174 = scmp.eq.s32.totalorder %s22, 0
      %p175 = por %p173, %p174
      %s176 = ssub.s32 %s16, %s23
      %p177 = scmp.eq.s32.totalorder %s176, 0
      %s179 = sadd.s32 %s178, 1
      %s180 = scalar_select %p177, %s178, %s179
      %p183 = pneg %p177
      %p184 = scmp.eq.s32.totalorder %s16, 1
      %p185 = por %p183, %p184
      %p186 = scmp.ne.s32.totalorder %s178, %s181
      %p187 = scmp.eq.s32.totalorder %s16, 0
      %p188 = por %p186, %p187
      %p189 = scmp.ne.s32.totalorder %s178, %s181
      %p190 = scmp.eq.s32.totalorder %s21, 1
      %p191 = por %p189, %p190
      %p192 = scmp.ne.s32.totalorder %s181, %s182
      %p193 = scmp.eq.s32.totalorder %s21, 0
      %p194 = por %p192, %p193
      %p195 = scmp.ne.s32.totalorder %s181, %s182
      %p196 = scmp.eq.s32.totalorder %s22, 1
      %p197 = por %p195, %p196
      %p199 = scmp.ne.s32.totalorder %s182, %s198
      %p200 = scmp.eq.s32.totalorder %s22, 0
      %p201 = por %p199, %p200
      %p202 = scmp.le.s32.totalorder 1, %s16
      %p203 = scmp.lt.s32.totalorder %s16, 3
      %p204 = pnand %p202, %p203
      %p205 = pneg %p204
      // Predicated region
      $region9: #{tpu_custom_call.1} parent=5 // pred_check
        _
      $region10: #{tpu_custom_call.1} parent=5 // pred_check_branch
        %207 = sbr.rel (%p204) target = $region12
      $region11: #{tpu_custom_call.1} parent=5 // pred_region
        %s208 = ssub.s32 %s16, 1
        // Predicated region
        $region13: #{tpu_custom_call.1} parent=11 // pred_check
          %p209 = pneg %p63
        $region14: #{tpu_custom_call.1} parent=11 // pred_check_branch
          %211 = sbr.rel (%p209) target = $region16
        $region15: #{tpu_custom_call.1} parent=11 // pred_region
          _
        $region16: #{tpu_custom_call.1} parent=11 // pred_fallthru
          _
        // Predicated region
        $region17: #{tpu_custom_call.1} parent=11 // pred_check
          %p212 = pneg %p84
        $region18: #{tpu_custom_call.1} parent=11 // pred_check_branch
          %214 = sbr.rel (%p212) target = $region20
        $region19: #{tpu_custom_call.1} parent=11 // pred_region
          _
        $region20: #{tpu_custom_call.1} parent=11 // pred_fallthru
          _
        // Predicated region
        $region21: #{tpu_custom_call.1} parent=11 // pred_check
          %p215 = pneg %p105
        $region22: #{tpu_custom_call.1} parent=11 // pred_check_branch
          %217 = sbr.rel (%p215) target = $region24
        $region23: #{tpu_custom_call.1} parent=11 // pred_region
          _
        $region24: #{tpu_custom_call.1} parent=11 // pred_fallthru
          _
        // Predicated region
        $region25: #{tpu_custom_call.1} parent=11 // pred_check
          %p218 = pneg %p126
        $region26: #{tpu_custom_call.1} parent=11 // pred_check_branch
          %220 = sbr.rel (%p218) target = $region28
        $region27: #{tpu_custom_call.1} parent=11 // pred_region
          _
        $region28: #{tpu_custom_call.1} parent=11 // pred_fallthru
          _
        // Predicated region
        $region29: #{tpu_custom_call.1} parent=11 // pred_check
          %p221 = pneg %p147
        $region30: #{tpu_custom_call.1} parent=11 // pred_check_branch
          %223 = sbr.rel (%p221) target = $region32
        $region31: #{tpu_custom_call.1} parent=11 // pred_region
          _
        $region32: #{tpu_custom_call.1} parent=11 // pred_fallthru
          _
        // Predicated region
        $region33: #{tpu_custom_call.1} parent=11 // pred_check
          %p224 = pneg %p168
        $region34: #{tpu_custom_call.1} parent=11 // pred_check_branch
          %226 = sbr.rel (%p224) target = $region36
        $region35: #{tpu_custom_call.1} parent=11 // pred_region
          _
        $region36: #{tpu_custom_call.1} parent=11 // pred_fallthru
          _
      $region12: #{tpu_custom_call.1} parent=5 // pred_fallthru
        _
      %p227 = scmp.lt.s32.totalorder %s16, 2
      // Predicated region
      $region37: #{tpu_custom_call.1} parent=5 // pred_check
        %p228 = pneg %p227
      $region38: #{tpu_custom_call.1} parent=5 // pred_check_branch
        %230 = sbr.rel (%p228) target = $region40
      $region39: #{tpu_custom_call.1} parent=5 // pred_region
        // Predicated region
        $region41: #{tpu_custom_call.1} parent=39 // pred_check
          %p231 = pneg %p36
        $region42: #{tpu_custom_call.1} parent=39 // pred_check_branch
          %233 = sbr.rel (%p231) target = $region44
        $region43: #{tpu_custom_call.1} parent=39 // pred_region
          %p234 = scmp.lt.s32.totalorder %s16, 1
          %s235 = scalar_select %p234, %s16, 1
          %s236 = smul.addr %s235, 32
          %s237 = smul.addr %s236, 8
          %s238 = scalar_lea.vmem %s0, %s237
        $region44: #{tpu_custom_call.1} parent=39 // pred_fallthru
          _
      $region40: #{tpu_custom_call.1} parent=5 // pred_fallthru
        _
      %p239 = scmp.le.s32.totalorder 1, %s16
      %p240 = scmp.lt.s32.totalorder %s16, 3
      %p241 = pnand %p239, %p240
      %p242 = pneg %p241
      // Predicated region
      $region45: #{tpu_custom_call.1} parent=5 // pred_check
        _
      $region46: #{tpu_custom_call.1} parent=5 // pred_check_branch
        %244 = sbr.rel (%p241) target = $region48
      $region47: #{tpu_custom_call.1} parent=5 // pred_region
        %s245 = ssub.s32 %s16, 1
        %p246 = scmp.lt.s32.totalorder %s21, 1
        %s247 = scalar_select %p246, %s21, 1
        %s248 = smul.addr %s247, 32
        %s249 = smul.addr %s248, 8
        %s250 = scalar_lea.vmem %s0, %s249
        %p251 = pneg %p42
        %p252 = pneg %p39
        %p253 = pneg %p63
        %p254 = pneg %p60
        %p255 = pneg %p84
        %p256 = pneg %p81
        %p257 = pneg %p105
        %p258 = pneg %p102
        %p259 = pneg %p126
        %p260 = pneg %p123
        %p261 = pneg %p147
        %p262 = pneg %p144
        %p263 = pneg %p168
        %p264 = pneg %p165
        %p265 = pneg %p194
        %p266 = pneg %p191
        %s267 = sand.u32 %s181, 1
        %s268 = scalar_lea.sflag [#allocation5], %s267
        %s269 = sand.u32 %s181, 1
        %s270 = smul.addr %s269, 256
        %s271 = scalar_lea.vmem [#allocation4], %s270
        %p272 = scmp.lt.s32.totalorder %s21, 1
        %s273 = scalar_select %p272, %s21, 1
        %s274 = smul.addr %s273, 32
        %s275 = smul.addr %s274, 8
        %s276 = scalar_lea.vmem %s0, %s275
        %vm277 = vcmask 31744
        %278 = vst.msk [vmem:[#allocation2] sm:$0xff] %vm277, 0.0
        %279 = vst.msk [vmem:[#allocation2 + $0x8] sm:$0xff] %vm277, 0.0
        %280 = vst.msk [vmem:[#allocation2 + $0x10] sm:$0xff] %vm277, 0.0
        %281 = vst.msk [vmem:[#allocation2 + $0x18] sm:$0xff] %vm277, 0.0
        %282 = vst.msk [vmem:[#allocation2 + $0x20] sm:$0xff] %vm277, 0.0
        %283 = vst.msk [vmem:[#allocation2 + $0x28] sm:$0xff] %vm277, 0.0
        %284 = vst.msk [vmem:[#allocation2 + $0x30] sm:$0xff] %vm277, 0.0
        %285 = vst.msk [vmem:[#allocation2 + $0x38] sm:$0xff] %vm277, 0.0
        %286 = vst.msk [vmem:[#allocation2 + $0x40] sm:$0xff] %vm277, 0.0
        %287 = vst.msk [vmem:[#allocation2 + $0x48] sm:$0xff] %vm277, 0.0
        %288 = vst.msk [vmem:[#allocation2 + $0x50] sm:$0xff] %vm277, 0.0
        %289 = vst.msk [vmem:[#allocation2 + $0x58] sm:$0xff] %vm277, 0.0
        %290 = vst.msk [vmem:[#allocation2 + $0x60] sm:$0xff] %vm277, 0.0
        %291 = vst.msk [vmem:[#allocation2 + $0x68] sm:$0xff] %vm277, 0.0
        %292 = vst.msk [vmem:[#allocation2 + $0x70] sm:$0xff] %vm277, 0.0
        %293 = vst.msk [vmem:[#allocation2 + $0x78] sm:$0xff] %vm277, 0.0
        %294 = vst.msk [vmem:[#allocation2 + $0x80] sm:$0xff] %vm277, 0.0
        %295 = vst.msk [vmem:[#allocation2 + $0x88] sm:$0xff] %vm277, 0.0
        %296 = vst.msk [vmem:[#allocation2 + $0x90] sm:$0xff] %vm277, 0.0
        %297 = vst.msk [vmem:[#allocation2 + $0x98] sm:$0xff] %vm277, 0.0
        %298 = vst.msk [vmem:[#allocation2 + $0xa0] sm:$0xff] %vm277, 0.0
        %299 = vst.msk [vmem:[#allocation2 + $0xa8] sm:$0xff] %vm277, 0.0
        %300 = vst.msk [vmem:[#allocation2 + $0xb0] sm:$0xff] %vm277, 0.0
        %301 = vst.msk [vmem:[#allocation2 + $0xb8] sm:$0xff] %vm277, 0.0
        %302 = vst.msk [vmem:[#allocation2 + $0xc0] sm:$0xff] %vm277, 0.0
        %303 = vst.msk [vmem:[#allocation2 + $0xc8] sm:$0xff] %vm277, 0.0
        %304 = vst.msk [vmem:[#allocation2 + $0xd0] sm:$0xff] %vm277, 0.0
        %305 = vst.msk [vmem:[#allocation2 + $0xd8] sm:$0xff] %vm277, 0.0
        %306 = vst.msk [vmem:[#allocation2 + $0xe0] sm:$0xff] %vm277, 0.0
        %307 = vst.msk [vmem:[#allocation2 + $0xe8] sm:$0xff] %vm277, 0.0
        %308 = vst.msk [vmem:[#allocation2 + $0xf0] sm:$0xff] %vm277, 0.0
        %309 = vst.msk [vmem:[#allocation2 + $0xf8] sm:$0xff] %vm277, 0.0
        %310 = vst.msk [vmem:[#allocation2 + $0x100] sm:$0xff] %vm277, 0.0
        %311 = vst.msk [vmem:[#allocation2 + $0x108] sm:$0xff] %vm277, 0.0
        %312 = vst.msk [vmem:[#allocation2 + $0x110] sm:$0xff] %vm277, 0.0
        %313 = vst.msk [vmem:[#allocation2 + $0x118] sm:$0xff] %vm277, 0.0
        %314 = vst.msk [vmem:[#allocation2 + $0x120] sm:$0xff] %vm277, 0.0
        %315 = vst.msk [vmem:[#allocation2 + $0x128] sm:$0xff] %vm277, 0.0
        %316 = vst.msk [vmem:[#allocation2 + $0x130] sm:$0xff] %vm277, 0.0
        %317 = vst.msk [vmem:[#allocation2 + $0x138] sm:$0xff] %vm277, 0.0
        %318 = vst.msk [vmem:[#allocation2 + $0x140] sm:$0xff] %vm277, 0.0
        %319 = vst.msk [vmem:[#allocation2 + $0x148] sm:$0xff] %vm277, 0.0
        %320 = vst.msk [vmem:[#allocation2 + $0x150] sm:$0xff] %vm277, 0.0
        %321 = vst.msk [vmem:[#allocation2 + $0x158] sm:$0xff] %vm277, 0.0
        %322 = vst.msk [vmem:[#allocation2 + $0x160] sm:$0xff] %vm277, 0.0
        %323 = vst.msk [vmem:[#allocation2 + $0x168] sm:$0xff] %vm277, 0.0
        %324 = vst.msk [vmem:[#allocation2 + $0x170] sm:$0xff] %vm277, 0.0
        %325 = vst.msk [vmem:[#allocation2 + $0x178] sm:$0xff] %vm277, 0.0
        %326 = vst.msk [vmem:[#allocation2 + $0x180] sm:$0xff] %vm277, 0.0
        %327 = vst.msk [vmem:[#allocation2 + $0x188] sm:$0xff] %vm277, 0.0
        %328 = vst.msk [vmem:[#allocation2 + $0x190] sm:$0xff] %vm277, 0.0
        %329 = vst.msk [vmem:[#allocation2 + $0x198] sm:$0xff] %vm277, 0.0
        %330 = vst.msk [vmem:[#allocation2 + $0x1a0] sm:$0xff] %vm277, 0.0
        %331 = vst.msk [vmem:[#allocation2 + $0x1a8] sm:$0xff] %vm277, 0.0
        %332 = vst.msk [vmem:[#allocation2 + $0x1b0] sm:$0xff] %vm277, 0.0
        %333 = vst.msk [vmem:[#allocation2 + $0x1b8] sm:$0xff] %vm277, 0.0
        %334 = vst.msk [vmem:[#allocation2 + $0x1c0] sm:$0xff] %vm277, 0.0
        %335 = vst.msk [vmem:[#allocation2 + $0x1c8] sm:$0xff] %vm277, 0.0
        %336 = vst.msk [vmem:[#allocation2 + $0x1d0] sm:$0xff] %vm277, 0.0
        %337 = vst.msk [vmem:[#allocation2 + $0x1d8] sm:$0xff] %vm277, 0.0
        %338 = vst.msk [vmem:[#allocation2 + $0x1e0] sm:$0xff] %vm277, 0.0
        %339 = vst.msk [vmem:[#allocation2 + $0x1e8] sm:$0xff] %vm277, 0.0
        %340 = vst.msk [vmem:[#allocation2 + $0x1f0] sm:$0xff] %vm277, 0.0
        %341 = vst.msk [vmem:[#allocation2 + $0x1f8] sm:$0xff] %vm277, 0.0
        %342 = vst.msk [vmem:[#allocation2 + $0x200] sm:$0xff] %vm277, 0.0
        %343 = vst.msk [vmem:[#allocation2 + $0x208] sm:$0xff] %vm277, 0.0
        %344 = vst.msk [vmem:[#allocation2 + $0x210] sm:$0xff] %vm277, 0.0
        %345 = vst.msk [vmem:[#allocation2 + $0x218] sm:$0xff] %vm277, 0.0
        %346 = vst.msk [vmem:[#allocation2 + $0x220] sm:$0xff] %vm277, 0.0
        %347 = vst.msk [vmem:[#allocation2 + $0x228] sm:$0xff] %vm277, 0.0
        %348 = vst.msk [vmem:[#allocation2 + $0x230] sm:$0xff] %vm277, 0.0
        %349 = vst.msk [vmem:[#allocation2 + $0x238] sm:$0xff] %vm277, 0.0
        %350 = vst.msk [vmem:[#allocation2 + $0x240] sm:$0xff] %vm277, 0.0
        %351 = vst.msk [vmem:[#allocation2 + $0x248] sm:$0xff] %vm277, 0.0
        %352 = vst.msk [vmem:[#allocation2 + $0x250] sm:$0xff] %vm277, 0.0
        %353 = vst.msk [vmem:[#allocation2 + $0x258] sm:$0xff] %vm277, 0.0
        %354 = vst.msk [vmem:[#allocation2 + $0x260] sm:$0xff] %vm277, 0.0
        %355 = vst.msk [vmem:[#allocation2 + $0x268] sm:$0xff] %vm277, 0.0
        %356 = vst.msk [vmem:[#allocation2 + $0x270] sm:$0xff] %vm277, 0.0
        %357 = vst.msk [vmem:[#allocation2 + $0x278] sm:$0xff] %vm277, 0.0
        %358 = vst.msk [vmem:[#allocation2 + $0x280] sm:$0xff] %vm277, 0.0
        %359 = vst.msk [vmem:[#allocation2 + $0x288] sm:$0xff] %vm277, 0.0
        %360 = vst.msk [vmem:[#allocation2 + $0x290] sm:$0xff] %vm277, 0.0
        %361 = vst.msk [vmem:[#allocation2 + $0x298] sm:$0xff] %vm277, 0.0
        %362 = vst.msk [vmem:[#allocation2 + $0x2a0] sm:$0xff] %vm277, 0.0
        %363 = vst.msk [vmem:[#allocation2 + $0x2a8] sm:$0xff] %vm277, 0.0
        %364 = vst.msk [vmem:[#allocation2 + $0x2b0] sm:$0xff] %vm277, 0.0
        %365 = vst.msk [vmem:[#allocation2 + $0x2b8] sm:$0xff] %vm277, 0.0
        %vm366 = vcmask 130048
        %367 = vst.msk [vmem:[#allocation3] sm:$0xff] %vm366, -inf
        %368 = vst.msk [vmem:[#allocation3 + $0x8] sm:$0xff] %vm366, -inf
        %369 = vst.msk [vmem:[#allocation3 + $0x10] sm:$0xff] %vm366, -inf
        %370 = vst.msk [vmem:[#allocation3 + $0x18] sm:$0xff] %vm366, -inf
        %371 = vst.msk [vmem:[#allocation3 + $0x20] sm:$0xff] %vm366, -inf
        %372 = vst.msk [vmem:[#allocation3 + $0x28] sm:$0xff] %vm366, -inf
        %373 = vst.msk [vmem:[#allocation3 + $0x30] sm:$0xff] %vm366, -inf
        %374 = vst.msk [vmem:[#allocation3 + $0x38] sm:$0xff] %vm366, -inf
        %375 = vst.msk [vmem:[#allocation3 + $0x40] sm:$0xff] %vm366, -inf
        %376 = vst.msk [vmem:[#allocation3 + $0x48] sm:$0xff] %vm366, -inf
        %377 = vst.msk [vmem:[#allocation3 + $0x50] sm:$0xff] %vm366, -inf
        %378 = vst.msk [vmem:[#allocation3 + $0x58] sm:$0xff] %vm366, -inf
        %379 = vst.msk [vmem:[#allocation3 + $0x60] sm:$0xff] %vm366, -inf
        %380 = vst.msk [vmem:[#allocation3 + $0x68] sm:$0xff] %vm366, -inf
        %381 = vst.msk [vmem:[#allocation3 + $0x70] sm:$0xff] %vm366, -inf
        %382 = vst.msk [vmem:[#allocation3 + $0x78] sm:$0xff] %vm366, -inf
        %383 = vst.msk [vmem:[#allocation3 + $0x80] sm:$0xff] %vm366, -inf
        %384 = vst.msk [vmem:[#allocation3 + $0x88] sm:$0xff] %vm366, -inf
        %385 = vst.msk [vmem:[#allocation3 + $0x90] sm:$0xff] %vm366, -inf
        %386 = vst.msk [vmem:[#allocation3 + $0x98] sm:$0xff] %vm366, -inf
        %387 = vst.msk [vmem:[#allocation3 + $0xa0] sm:$0xff] %vm366, -inf
        %388 = vst.msk [vmem:[#allocation3 + $0xa8] sm:$0xff] %vm366, -inf
        %389 = vst.msk [vmem:[#allocation3 + $0xb0] sm:$0xff] %vm366, -inf
        %390 = vst.msk [vmem:[#allocation3 + $0xb8] sm:$0xff] %vm366, -inf
        %391 = vst.msk [vmem:[#allocation3 + $0xc0] sm:$0xff] %vm366, -inf
        %392 = vst.msk [vmem:[#allocation3 + $0xc8] sm:$0xff] %vm366, -inf
        %393 = vst.msk [vmem:[#allocation3 + $0xd0] sm:$0xff] %vm366, -inf
        %394 = vst.msk [vmem:[#allocation3 + $0xd8] sm:$0xff] %vm366, -inf
        %395 = vst.msk [vmem:[#allocation3 + $0xe0] sm:$0xff] %vm366, -inf
        %396 = vst.msk [vmem:[#allocation3 + $0xe8] sm:$0xff] %vm366, -inf
        %397 = vst.msk [vmem:[#allocation3 + $0xf0] sm:$0xff] %vm366, -inf
        %398 = vst.msk [vmem:[#allocation3 + $0xf8] sm:$0xff] %vm366, -inf
        %399 = vst.msk [vmem:[#allocation3 + $0x100] sm:$0xff] %vm366, -inf
        %400 = vst.msk [vmem:[#allocation3 + $0x108] sm:$0xff] %vm366, -inf
        %401 = vst.msk [vmem:[#allocation3 + $0x110] sm:$0xff] %vm366, -inf
        %402 = vst.msk [vmem:[#allocation3 + $0x118] sm:$0xff] %vm366, -inf
        %403 = vst.msk [vmem:[#allocation3 + $0x120] sm:$0xff] %vm366, -inf
        %404 = vst.msk [vmem:[#allocation3 + $0x128] sm:$0xff] %vm366, -inf
        %405 = vst.msk [vmem:[#allocation3 + $0x130] sm:$0xff] %vm366, -inf
        %406 = vst.msk [vmem:[#allocation3 + $0x138] sm:$0xff] %vm366, -inf
        %407 = vst.msk [vmem:[#allocation3 + $0x140] sm:$0xff] %vm366, -inf
        %408 = vst.msk [vmem:[#allocation3 + $0x148] sm:$0xff] %vm366, -inf
        %409 = vst.msk [vmem:[#allocation3 + $0x150] sm:$0xff] %vm366, -inf
        %410 = vst.msk [vmem:[#allocation3 + $0x158] sm:$0xff] %vm366, -inf
        %411 = vst.msk [vmem:[#allocation3 + $0x160] sm:$0xff] %vm366, -inf
        %412 = vst.msk [vmem:[#allocation3 + $0x168] sm:$0xff] %vm366, -inf
        %413 = vst.msk [vmem:[#allocation3 + $0x170] sm:$0xff] %vm366, -inf
        %414 = vst.msk [vmem:[#allocation3 + $0x178] sm:$0xff] %vm366, -inf
        %415 = vst.msk [vmem:[#allocation3 + $0x180] sm:$0xff] %vm366, -inf
        %416 = vst.msk [vmem:[#allocation3 + $0x188] sm:$0xff] %vm366, -inf
        %417 = vst.msk [vmem:[#allocation3 + $0x190] sm:$0xff] %vm366, -inf
        %418 = vst.msk [vmem:[#allocation3 + $0x198] sm:$0xff] %vm366, -inf
        %419 = vst.msk [vmem:[#allocation3 + $0x1a0] sm:$0xff] %vm366, -inf
        %420 = vst.msk [vmem:[#allocation3 + $0x1a8] sm:$0xff] %vm366, -inf
        %421 = vst.msk [vmem:[#allocation3 + $0x1b0] sm:$0xff] %vm366, -inf
        %422 = vst.msk [vmem:[#allocation3 + $0x1b8] sm:$0xff] %vm366, -inf
        %423 = vst.msk [vmem:[#allocation3 + $0x1c0] sm:$0xff] %vm366, -inf
        %424 = vst.msk [vmem:[#allocation3 + $0x1c8] sm:$0xff] %vm366, -inf
        %425 = vst.msk [vmem:[#allocation3 + $0x1d0] sm:$0xff] %vm366, -inf
        %426 = vst.msk [vmem:[#allocation3 + $0x1d8] sm:$0xff] %vm366, -inf
        %427 = vst.msk [vmem:[#allocation3 + $0x1e0] sm:$0xff] %vm366, -inf
        %428 = vst.msk [vmem:[#allocation3 + $0x1e8] sm:$0xff] %vm366, -inf
        %429 = vst.msk [vmem:[#allocation3 + $0x1f0] sm:$0xff] %vm366, -inf
        %430 = vst.msk [vmem:[#allocation3 + $0x1f8] sm:$0xff] %vm366, -inf
        %431 = vst.msk [vmem:[#allocation3 + $0x200] sm:$0xff] %vm366, -inf
        %432 = vst.msk [vmem:[#allocation3 + $0x208] sm:$0xff] %vm366, -inf
        %433 = vst.msk [vmem:[#allocation3 + $0x210] sm:$0xff] %vm366, -inf
        %434 = vst.msk [vmem:[#allocation3 + $0x218] sm:$0xff] %vm366, -inf
        %435 = vst.msk [vmem:[#allocation3 + $0x220] sm:$0xff] %vm366, -inf
        %436 = vst.msk [vmem:[#allocation3 + $0x228] sm:$0xff] %vm366, -inf
        %437 = vst.msk [vmem:[#allocation3 + $0x230] sm:$0xff] %vm366, -inf
        %438 = vst.msk [vmem:[#allocation3 + $0x238] sm:$0xff] %vm366, -inf
        %439 = vst.msk [vmem:[#allocation3 + $0x240] sm:$0xff] %vm366, -inf
        %440 = vst.msk [vmem:[#allocation3 + $0x248] sm:$0xff] %vm366, -inf
        %441 = vst.msk [vmem:[#allocation3 + $0x250] sm:$0xff] %vm366, -inf
        %442 = vst.msk [vmem:[#allocation3 + $0x258] sm:$0xff] %vm366, -inf
        %443 = vst.msk [vmem:[#allocation3 + $0x260] sm:$0xff] %vm366, -inf
        %444 = vst.msk [vmem:[#allocation3 + $0x268] sm:$0xff] %vm366, -inf
        %445 = vst.msk [vmem:[#allocation3 + $0x270] sm:$0xff] %vm366, -inf
        %446 = vst.msk [vmem:[#allocation3 + $0x278] sm:$0xff] %vm366, -inf
        %v447 = vld [vmem:[%s276] sm:$0xff]
        %v448 = vld [vmem:[%s276 + $0x8] sm:$0xff]
        %v449 = vld [vmem:[%s276 + $0x10] sm:$0xff]
        %v450 = vld [vmem:[%s276 + $0x18] sm:$0xff]
        %v451 = vld [vmem:[%s276 + $0x20] sm:$0xff]
        %v452 = vld [vmem:[%s276 + $0x28] sm:$0xff]
        %v453 = vld [vmem:[%s276 + $0x30] sm:$0xff]
        %v454 = vld [vmem:[%s276 + $0x38] sm:$0xff]
        %v455 = vld [vmem:[%s276 + $0x40] sm:$0xff]
        %v456 = vld [vmem:[%s276 + $0x48] sm:$0xff]
        %v457 = vld [vmem:[%s276 + $0x50] sm:$0xff]
        %v458 = vld [vmem:[%s276 + $0x58] sm:$0xff]
        %v459 = vld [vmem:[%s276 + $0x60] sm:$0xff]
        %v460 = vld [vmem:[%s276 + $0x68] sm:$0xff]
        %v461 = vld [vmem:[%s276 + $0x70] sm:$0xff]
        %v462 = vld [vmem:[%s276 + $0x78] sm:$0xff]
        %v463 = vld [vmem:[%s276 + $0x80] sm:$0xff]
        %v464 = vld [vmem:[%s276 + $0x88] sm:$0xff]
        %v465 = vld [vmem:[%s276 + $0x90] sm:$0xff]
        %v466 = vld [vmem:[%s276 + $0x98] sm:$0xff]
        %v467 = vld [vmem:[%s276 + $0xa0] sm:$0xff]
        %v468 = vld [vmem:[%s276 + $0xa8] sm:$0xff]
        %v469 = vld [vmem:[%s276 + $0xb0] sm:$0xff]
        %v470 = vld [vmem:[%s276 + $0xb8] sm:$0xff]
        %v471 = vld [vmem:[%s276 + $0xc0] sm:$0xff]
        %v472 = vld [vmem:[%s276 + $0xc8] sm:$0xff]
        %v473 = vld [vmem:[%s276 + $0xd0] sm:$0xff]
        %v474 = vld [vmem:[%s276 + $0xd8] sm:$0xff]
        %v475 = vld [vmem:[%s276 + $0xe0] sm:$0xff]
        %v476 = vld [vmem:[%s276 + $0xe8] sm:$0xff]
        %v477 = vld [vmem:[%s276 + $0xf0] sm:$0xff]
        %v478 = vld [vmem:[%s276 + $0xf8] sm:$0xff]
        %v479 = vld [vmem:[%s1] sm:$0xff]
        %v480 = vld [vmem:[%s1 + $0x8] sm:$0xff]
        %v482 = vsel %vm366, %v447, 0
        %v485 = vsel %vm366, %v448, 0
        %v488 = vsel %vm366, %v449, 0
        %v491 = vsel %vm366, %v450, 0
        %v494 = vsel %vm366, %v451, 0
        %v497 = vsel %vm366, %v452, 0
        %v500 = vsel %vm366, %v453, 0
        %v503 = vsel %vm366, %v454, 0
        %v506 = vsel %vm366, %v455, 0
        %v509 = vsel %vm366, %v456, 0
        %v512 = vsel %vm366, %v457, 0
        %v515 = vsel %vm366, %v458, 0
        %v518 = vsel %vm366, %v459, 0
        %v521 = vsel %vm366, %v460, 0
        %v524 = vsel %vm366, %v461, 0
        %v527 = vsel %vm366, %v462, 0
        %v530 = vsel %vm366, %v463, 0
        %v533 = vsel %vm366, %v464, 0
        %v536 = vsel %vm366, %v465, 0
        %v539 = vsel %vm366, %v466, 0
        %v542 = vsel %vm366, %v467, 0
        %v545 = vsel %vm366, %v468, 0
        %v548 = vsel %vm366, %v469, 0
        %v551 = vsel %vm366, %v470, 0
        %v554 = vsel %vm366, %v471, 0
        %v557 = vsel %vm366, %v472, 0
        %v560 = vsel %vm366, %v473, 0
        %v563 = vsel %vm366, %v474, 0
        %v566 = vsel %vm366, %v475, 0
        %v569 = vsel %vm366, %v476, 0
        %v572 = vsel %vm366, %v477, 0
        %v575 = vsel %vm366, %v478, 0
        %577 = vmatprep.subr.mxu0 0.0
        %578 = vmatpush1.msra.mxu0 0.0
        %579 = vmatprep.subr.mxu0 0.0
        %580 = vmatpush1.msra.mxu0 0.0
        %581 = vmatprep.subr.mxu0 0.0
        %582 = vmatpush1.msra.mxu0 0.0
        %583 = vmatprep.subr.mxu0 0.0
        %584 = vmatpush1.msra.mxu0 0.0
        %585 = vmatprep.subr.mxu0 0.0
        %586 = vmatpush1.msra.mxu0 0.0
        %587 = vmatprep.subr.mxu0 0.0
        %588 = vmatpush1.msra.mxu0 0.0
        %589 = vmatprep.subr.mxu0 0.0
        %590 = vmatpush1.msra.mxu0 0.0
        %591 = vmatprep.subr.mxu0 0.0
        %592 = vmatpush1.msra.mxu0 0.0
        %593 = vmatprep.subr.mxu0 0.0
        %594 = vmatpush1.msra.mxu0 0.0
        %595 = vmatprep.subr.mxu0 0.0
        %596 = vmatpush1.msra.mxu0 0.0
        %597 = vmatprep.subr.mxu0 0.0
        %598 = vmatpush1.msra.mxu0 0.0
        %599 = vmatprep.subr.mxu0 0.0
        %600 = vmatpush1.msra.mxu0 0.0
        %601 = vmatprep.subr.mxu0 0.0
        %602 = vmatpush1.msra.mxu0 0.0
        %603 = vmatprep.subr.mxu0 0.0
        %604 = vmatpush1.msra.mxu0 0.0
        %605 = vmatprep.subr.mxu0 0.0
        %606 = vmatpush1.msra.mxu0 %v480
        %607 = vmatprep.subr.mxu0 0.0
        %608 = vmatpush1.msra.mxu0 %v479
        %609 = vmatprep.subr.mxu0 0.0
        %610 = vmatpush2.msra.mxu0 0.0
        %611 = vmatprep.subr.mxu0 0.0
        %612 = vmatpush2.msra.mxu0 0.0
        %613 = vmatprep.subr.mxu0 0.0
        %614 = vmatpush2.msra.mxu0 0.0
        %615 = vmatprep.subr.mxu0 0.0
        %616 = vmatpush2.msra.mxu0 0.0
        %617 = vmatprep.subr.mxu0 0.0
        %618 = vmatpush2.msra.mxu0 0.0
        %619 = vmatprep.subr.mxu0 0.0
        %620 = vmatpush2.msra.mxu0 0.0
        %621 = vmatprep.subr.mxu0 0.0
        %622 = vmatpush2.msra.mxu0 0.0
        %623 = vmatprep.subr.mxu0 0.0
        %624 = vmatpush2.msra.mxu0 0.0
        %625 = vmatprep.subr.mxu0 0.0
        %626 = vmatpush2.msra.mxu0 0.0
        %627 = vmatprep.subr.mxu0 0.0
        %628 = vmatpush2.msra.mxu0 0.0
        %629 = vmatprep.subr.mxu0 0.0
        %630 = vmatpush2.msra.mxu0 0.0
        %631 = vmatprep.subr.mxu0 0.0
        %632 = vmatpush2.msra.mxu0 0.0
        %633 = vmatprep.subr.mxu0 0.0
        %634 = vmatpush2.msra.mxu0 0.0
        %635 = vmatprep.subr.mxu0 0.0
        %636 = vmatpush2.msra.mxu0 0.0
        %637 = vmatprep.subr.mxu0 0.0
        %638 = vmatpush2.msra.mxu0 0.0
        %639 = vmatprep.subr.mxu0 0.0
        %640 = vmatpush2.msra.mxu0 0.0
        %641 = vmatprep.mubr.f32.mxu0 0.0
        %642 = vmatmul.mubr.f32.gmra.mxu0 %v482
        %v643 = vpop.f32.mrf.mxu0
        %v644 = vadd.f32 0.0, %v643
        %v645 = vpop.f32.mrf.mxu0
        %646 = vmatprep.mubr.f32.mxu0 0.0
        %647 = vmatmul.mubr.f32.gmra.mxu0 %v485
        %v648 = vpop.f32.mrf.mxu0
        %v649 = vadd.f32 0.0, %v648
        %v650 = vpop.f32.mrf.mxu0
        %651 = vmatprep.mubr.f32.mxu0 0.0
        %652 = vmatmul.mubr.f32.gmra.mxu0 %v488
        %v653 = vpop.f32.mrf.mxu0
        %v654 = vadd.f32 0.0, %v653
        %v655 = vpop.f32.mrf.mxu0
        %656 = vmatprep.mubr.f32.mxu0 0.0
        %657 = vmatmul.mubr.f32.gmra.mxu0 %v491
        %v658 = vpop.f32.mrf.mxu0
        %v659 = vadd.f32 0.0, %v658
        %v660 = vpop.f32.mrf.mxu0
        %661 = vmatprep.mubr.f32.mxu0 0.0
        %662 = vmatmul.mubr.f32.gmra.mxu0 %v494
        %v663 = vpop.f32.mrf.mxu0
        %v664 = vadd.f32 0.0, %v663
        %v665 = vpop.f32.mrf.mxu0
        %666 = vmatprep.mubr.f32.mxu0 0.0
        %667 = vmatmul.mubr.f32.gmra.mxu0 %v497
        %v668 = vpop.f32.mrf.mxu0
        %v669 = vadd.f32 0.0, %v668
        %v670 = vpop.f32.mrf.mxu0
        %671 = vmatprep.mubr.f32.mxu0 0.0
        %672 = vmatmul.mubr.f32.gmra.mxu0 %v500
        %v673 = vpop.f32.mrf.mxu0
        %v674 = vadd.f32 0.0, %v673
        %v675 = vpop.f32.mrf.mxu0
        %676 = vmatprep.mubr.f32.mxu0 0.0
        %677 = vmatmul.mubr.f32.gmra.mxu0 %v503
        %v678 = vpop.f32.mrf.mxu0
        %v679 = vadd.f32 0.0, %v678
        %v680 = vpop.f32.mrf.mxu0
        %681 = vmatprep.mubr.f32.mxu0 0.0
        %682 = vmatmul.mubr.f32.gmra.mxu0 %v506
        %v683 = vpop.f32.mrf.mxu0
        %v684 = vadd.f32 0.0, %v683
        %v685 = vpop.f32.mrf.mxu0
        %686 = vmatprep.mubr.f32.mxu0 0.0
        %687 = vmatmul.mubr.f32.gmra.mxu0 %v509
        %v688 = vpop.f32.mrf.mxu0
        %v689 = vadd.f32 0.0, %v688
        %v690 = vpop.f32.mrf.mxu0
        %691 = vmatprep.mubr.f32.mxu0 0.0
        %692 = vmatmul.mubr.f32.gmra.mxu0 %v512
        %v693 = vpop.f32.mrf.mxu0
        %v694 = vadd.f32 0.0, %v693
        %v695 = vpop.f32.mrf.mxu0
        %696 = vmatprep.mubr.f32.mxu0 0.0
        %697 = vmatmul.mubr.f32.gmra.mxu0 %v515
        %v698 = vpop.f32.mrf.mxu0
        %v699 = vadd.f32 0.0, %v698
        %v700 = vpop.f32.mrf.mxu0
        %701 = vmatprep.mubr.f32.mxu0 0.0
        %702 = vmatmul.mubr.f32.gmra.mxu0 %v518
        %v703 = vpop.f32.mrf.mxu0
        %v704 = vadd.f32 0.0, %v703
        %v705 = vpop.f32.mrf.mxu0
        %706 = vmatprep.mubr.f32.mxu0 0.0
        %707 = vmatmul.mubr.f32.gmra.mxu0 %v521
        %v708 = vpop.f32.mrf.mxu0
        %v709 = vadd.f32 0.0, %v708
        %v710 = vpop.f32.mrf.mxu0
        %711 = vmatprep.mubr.f32.mxu0 0.0
        %712 = vmatmul.mubr.f32.gmra.mxu0 %v524
        %v713 = vpop.f32.mrf.mxu0
        %v714 = vadd.f32 0.0, %v713
        %v715 = vpop.f32.mrf.mxu0
        %716 = vmatprep.mubr.f32.mxu0 0.0
        %717 = vmatmul.mubr.f32.gmra.mxu0 %v527
        %v718 = vpop.f32.mrf.mxu0
        %v719 = vadd.f32 0.0, %v718
        %v720 = vpop.f32.mrf.mxu0
        %721 = vmatprep.mubr.f32.mxu0 0.0
        %722 = vmatmul.mubr.f32.gmra.mxu0 %v530
        %v723 = vpop.f32.mrf.mxu0
        %v724 = vadd.f32 0.0, %v723
        %v725 = vpop.f32.mrf.mxu0
        %726 = vmatprep.mubr.f32.mxu0 0.0
        %727 = vmatmul.mubr.f32.gmra.mxu0 %v533
        %v728 = vpop.f32.mrf.mxu0
        %v729 = vadd.f32 0.0, %v728
        %v730 = vpop.f32.mrf.mxu0
        %731 = vmatprep.mubr.f32.mxu0 0.0
        %732 = vmatmul.mubr.f32.gmra.mxu0 %v536
        %v733 = vpop.f32.mrf.mxu0
        %v734 = vadd.f32 0.0, %v733
        %v735 = vpop.f32.mrf.mxu0
        %736 = vmatprep.mubr.f32.mxu0 0.0
        %737 = vmatmul.mubr.f32.gmra.mxu0 %v539
        %v738 = vpop.f32.mrf.mxu0
        %v739 = vadd.f32 0.0, %v738
        %v740 = vpop.f32.mrf.mxu0
        %741 = vmatprep.mubr.f32.mxu0 0.0
        %742 = vmatmul.mubr.f32.gmra.mxu0 %v542
        %v743 = vpop.f32.mrf.mxu0
        %v744 = vadd.f32 0.0, %v743
        %v745 = vpop.f32.mrf.mxu0
        %746 = vmatprep.mubr.f32.mxu0 0.0
        %747 = vmatmul.mubr.f32.gmra.mxu0 %v545
        %v748 = vpop.f32.mrf.mxu0
        %v749 = vadd.f32 0.0, %v748
        %v750 = vpop.f32.mrf.mxu0
        %751 = vmatprep.mubr.f32.mxu0 0.0
        %752 = vmatmul.mubr.f32.gmra.mxu0 %v548
        %v753 = vpop.f32.mrf.mxu0
        %v754 = vadd.f32 0.0, %v753
        %v755 = vpop.f32.mrf.mxu0
        %756 = vmatprep.mubr.f32.mxu0 0.0
        %757 = vmatmul.mubr.f32.gmra.mxu0 %v551
        %v758 = vpop.f32.mrf.mxu0
        %v759 = vadd.f32 0.0, %v758
        %v760 = vpop.f32.mrf.mxu0
        %761 = vmatprep.mubr.f32.mxu0 0.0
        %762 = vmatmul.mubr.f32.gmra.mxu0 %v554
        %v763 = vpop.f32.mrf.mxu0
        %v764 = vadd.f32 0.0, %v763
        %v765 = vpop.f32.mrf.mxu0
        %766 = vmatprep.mubr.f32.mxu0 0.0
        %767 = vmatmul.mubr.f32.gmra.mxu0 %v557
        %v768 = vpop.f32.mrf.mxu0
        %v769 = vadd.f32 0.0, %v768
        %v770 = vpop.f32.mrf.mxu0
        %771 = vmatprep.mubr.f32.mxu0 0.0
        %772 = vmatmul.mubr.f32.gmra.mxu0 %v560
        %v773 = vpop.f32.mrf.mxu0
        %v774 = vadd.f32 0.0, %v773
        %v775 = vpop.f32.mrf.mxu0
        %776 = vmatprep.mubr.f32.mxu0 0.0
        %777 = vmatmul.mubr.f32.gmra.mxu0 %v563
        %v778 = vpop.f32.mrf.mxu0
        %v779 = vadd.f32 0.0, %v778
        %v780 = vpop.f32.mrf.mxu0
        %781 = vmatprep.mubr.f32.mxu0 0.0
        %782 = vmatmul.mubr.f32.gmra.mxu0 %v566
        %v783 = vpop.f32.mrf.mxu0
        %v784 = vadd.f32 0.0, %v783
        %v785 = vpop.f32.mrf.mxu0
        %786 = vmatprep.mubr.f32.mxu0 0.0
        %787 = vmatmul.mubr.f32.gmra.mxu0 %v569
        %v788 = vpop.f32.mrf.mxu0
        %v789 = vadd.f32 0.0, %v788
        %v790 = vpop.f32.mrf.mxu0
        %791 = vmatprep.mubr.f32.mxu0 0.0
        %792 = vmatmul.mubr.f32.gmra.mxu0 %v572
        %v793 = vpop.f32.mrf.mxu0
        %v794 = vadd.f32 0.0, %v793
        %v795 = vpop.f32.mrf.mxu0
        %796 = vmatprep.mubr.f32.mxu0 0.0
        %797 = vmatmul.mubr.f32.gmra.mxu0 %v575
        %v798 = vpop.f32.mrf.mxu0
        %v799 = vadd.f32 0.0, %v798
        %v800 = vpop.f32.mrf.mxu0
        %801 = vdwg.mxu0
        %v802 = vld [vmem:[%s2] sm:$0x1]
        %v804 = vlaneseq
        %v805 = vshrl.u32 %v804, 7
        %v806 = vsub.s32 0, %v805
        %v807 = vrot.slane %v802, %v806
        %v809 = vmul.f32 %v644, %v807
        %v810 = vmul.f32 %v649, %v807
        %v811 = vmul.f32 %v654, %v807
        %v812 = vmul.f32 %v659, %v807
        %v813 = vmul.f32 %v664, %v807
        %v814 = vmul.f32 %v669, %v807
        %v815 = vmul.f32 %v674, %v807
        %v816 = vmul.f32 %v679, %v807
        %v817 = vmul.f32 %v684, %v807
        %v818 = vmul.f32 %v689, %v807
        %v819 = vmul.f32 %v694, %v807
        %v820 = vmul.f32 %v699, %v807
        %v821 = vmul.f32 %v704, %v807
        %v822 = vmul.f32 %v709, %v807
        %v823 = vmul.f32 %v714, %v807
        %v824 = vmul.f32 %v719, %v807
        %v825 = vmul.f32 %v724, %v807
        %v826 = vmul.f32 %v729, %v807
        %v827 = vmul.f32 %v734, %v807
        %v828 = vmul.f32 %v739, %v807
        %v829 = vmul.f32 %v744, %v807
        %v830 = vmul.f32 %v749, %v807
        %v831 = vmul.f32 %v754, %v807
        %v832 = vmul.f32 %v759, %v807
        %v833 = vmul.f32 %v764, %v807
        %v834 = vmul.f32 %v769, %v807
        %v835 = vmul.f32 %v774, %v807
        %v836 = vmul.f32 %v779, %v807
        %v837 = vmul.f32 %v784, %v807
        %v838 = vmul.f32 %v789, %v807
        %v839 = vmul.f32 %v794, %v807
        %v840 = vmul.f32 %v799, %v807
        %v841 = vld [vmem:[%s3] sm:$0x1]
        %v843 = vlaneseq
        %v844 = vshrl.u32 %v843, 7
        %v845 = vsub.s32 0, %v844
        %v846 = vrot.slane %v841, %v845
        %v848 = vadd.f32 %v809, %v846
        %v849 = vadd.f32 %v810, %v846
        %v850 = vadd.f32 %v811, %v846
        %v851 = vadd.f32 %v812, %v846
        %v852 = vadd.f32 %v813, %v846
        %v853 = vadd.f32 %v814, %v846
        %v854 = vadd.f32 %v815, %v846
        %v855 = vadd.f32 %v816, %v846
        %v856 = vadd.f32 %v817, %v846
        %v857 = vadd.f32 %v818, %v846
        %v858 = vadd.f32 %v819, %v846
        %v859 = vadd.f32 %v820, %v846
        %v860 = vadd.f32 %v821, %v846
        %v861 = vadd.f32 %v822, %v846
        %v862 = vadd.f32 %v823, %v846
        %v863 = vadd.f32 %v824, %v846
        %v864 = vadd.f32 %v825, %v846
        %v865 = vadd.f32 %v826, %v846
        %v866 = vadd.f32 %v827, %v846
        %v867 = vadd.f32 %v828, %v846
        %v868 = vadd.f32 %v829, %v846
        %v869 = vadd.f32 %v830, %v846
        %v870 = vadd.f32 %v831, %v846
        %v871 = vadd.f32 %v832, %v846
        %v872 = vadd.f32 %v833, %v846
        %v873 = vadd.f32 %v834, %v846
        %v874 = vadd.f32 %v835, %v846
        %v875 = vadd.f32 %v836, %v846
        %v876 = vadd.f32 %v837, %v846
        %v877 = vadd.f32 %v838, %v846
        %v878 = vadd.f32 %v839, %v846
        %v879 = vadd.f32 %v840, %v846
        %v880 = vmax.f32 %v848, 0.0
        %v881 = vmax.f32 %v849, 0.0
        %v882 = vmax.f32 %v850, 0.0
        %v883 = vmax.f32 %v851, 0.0
        %v884 = vmax.f32 %v852, 0.0
        %v885 = vmax.f32 %v853, 0.0
        %v886 = vmax.f32 %v854, 0.0
        %v887 = vmax.f32 %v855, 0.0
        %v888 = vmax.f32 %v856, 0.0
        %v889 = vmax.f32 %v857, 0.0
        %v890 = vmax.f32 %v858, 0.0
        %v891 = vmax.f32 %v859, 0.0
        %v892 = vmax.f32 %v860, 0.0
        %v893 = vmax.f32 %v861, 0.0
        %v894 = vmax.f32 %v862, 0.0
        %v895 = vmax.f32 %v863, 0.0
        %v896 = vmax.f32 %v864, 0.0
        %v897 = vmax.f32 %v865, 0.0
        %v898 = vmax.f32 %v866, 0.0
        %v899 = vmax.f32 %v867, 0.0
        %v900 = vmax.f32 %v868, 0.0
        %v901 = vmax.f32 %v869, 0.0
        %v902 = vmax.f32 %v870, 0.0
        %v903 = vmax.f32 %v871, 0.0
        %v904 = vmax.f32 %v872, 0.0
        %v905 = vmax.f32 %v873, 0.0
        %v906 = vmax.f32 %v874, 0.0
        %v907 = vmax.f32 %v875, 0.0
        %v908 = vmax.f32 %v876, 0.0
        %v909 = vmax.f32 %v877, 0.0
        %v910 = vmax.f32 %v878, 0.0
        %v911 = vmax.f32 %v879, 0.0
        %s912 = scalar_lea.vmem [#allocation2], 96
        %913 = vst.msk [vmem:[%s912 + $0x8] sm:$0xff] %vm277, %v880
        %914 = vst.msk [vmem:[%s912 + $0x10] sm:$0xff] %vm277, %v881
        %915 = vst.msk [vmem:[%s912 + $0x28] sm:$0xff] %vm277, %v882
        %916 = vst.msk [vmem:[%s912 + $0x30] sm:$0xff] %vm277, %v883
        %917 = vst.msk [vmem:[%s912 + $0x48] sm:$0xff] %vm277, %v884
        %918 = vst.msk [vmem:[%s912 + $0x50] sm:$0xff] %vm277, %v885
        %919 = vst.msk [vmem:[%s912 + $0x68] sm:$0xff] %vm277, %v886
        %920 = vst.msk [vmem:[%s912 + $0x70] sm:$0xff] %vm277, %v887
        %921 = vst.msk [vmem:[%s912 + $0x88] sm:$0xff] %vm277, %v888
        %922 = vst.msk [vmem:[%s912 + $0x90] sm:$0xff] %vm277, %v889
        %923 = vst.msk [vmem:[%s912 + $0xa8] sm:$0xff] %vm277, %v890
        %924 = vst.msk [vmem:[%s912 + $0xb0] sm:$0xff] %vm277, %v891
        %925 = vst.msk [vmem:[%s912 + $0xc8] sm:$0xff] %vm277, %v892
        %926 = vst.msk [vmem:[%s912 + $0xd0] sm:$0xff] %vm277, %v893
        %927 = vst.msk [vmem:[%s912 + $0xe8] sm:$0xff] %vm277, %v894
        %928 = vst.msk [vmem:[%s912 + $0xf0] sm:$0xff] %vm277, %v895
        %929 = vst.msk [vmem:[%s912 + $0x108] sm:$0xff] %vm277, %v896
        %930 = vst.msk [vmem:[%s912 + $0x110] sm:$0xff] %vm277, %v897
        %931 = vst.msk [vmem:[%s912 + $0x128] sm:$0xff] %vm277, %v898
        %932 = vst.msk [vmem:[%s912 + $0x130] sm:$0xff] %vm277, %v899
        %933 = vst.msk [vmem:[%s912 + $0x148] sm:$0xff] %vm277, %v900
        %934 = vst.msk [vmem:[%s912 + $0x150] sm:$0xff] %vm277, %v901
        %935 = vst.msk [vmem:[%s912 + $0x168] sm:$0xff] %vm277, %v902
        %936 = vst.msk [vmem:[%s912 + $0x170] sm:$0xff] %vm277, %v903
        %937 = vst.msk [vmem:[%s912 + $0x188] sm:$0xff] %vm277, %v904
        %938 = vst.msk [vmem:[%s912 + $0x190] sm:$0xff] %vm277, %v905
        %939 = vst.msk [vmem:[%s912 + $0x1a8] sm:$0xff] %vm277, %v906
        %940 = vst.msk [vmem:[%s912 + $0x1b0] sm:$0xff] %vm277, %v907
        %941 = vst.msk [vmem:[%s912 + $0x1c8] sm:$0xff] %vm277, %v908
        %942 = vst.msk [vmem:[%s912 + $0x1d0] sm:$0xff] %vm277, %v909
        %943 = vst.msk [vmem:[%s912 + $0x1e8] sm:$0xff] %vm277, %v910
        %944 = vst.msk [vmem:[%s912 + $0x1f0] sm:$0xff] %vm277, %v911
        %v945 = vld [vmem:[#allocation2 + $0x5] sm:$0xff]
        %v946 = vld [vmem:[#allocation2 + $0xd] sm:$0xff]
        %v947 = vld [vmem:[#allocation2 + $0x25] sm:$0xff]
        %v948 = vld [vmem:[#allocation2 + $0x2d] sm:$0xff]
        %v949 = vld [vmem:[#allocation2 + $0x45] sm:$0xff]
        %v950 = vld [vmem:[#allocation2 + $0x4d] sm:$0xff]
        %v951 = vld [vmem:[#allocation2 + $0x65] sm:$0xff]
        %v952 = vld [vmem:[#allocation2 + $0x6d] sm:$0xff]
        %v953 = vld [vmem:[#allocation2 + $0x85] sm:$0xff]
        %v954 = vld [vmem:[#allocation2 + $0x8d] sm:$0xff]
        %v955 = vld [vmem:[#allocation2 + $0xa5] sm:$0xff]
        %v956 = vld [vmem:[#allocation2 + $0xad] sm:$0xff]
        %v957 = vld [vmem:[#allocation2 + $0xc5] sm:$0xff]
        %v958 = vld [vmem:[#allocation2 + $0xcd] sm:$0xff]
        %v959 = vld [vmem:[#allocation2 + $0xe5] sm:$0xff]
        %v960 = vld [vmem:[#allocation2 + $0xed] sm:$0xff]
        %v961 = vld [vmem:[#allocation2 + $0x105] sm:$0xff]
        %v962 = vld [vmem:[#allocation2 + $0x10d] sm:$0xff]
        %v963 = vld [vmem:[#allocation2 + $0x125] sm:$0xff]
        %v964 = vld [vmem:[#allocation2 + $0x12d] sm:$0xff]
        %v965 = vld [vmem:[#allocation2 + $0x145] sm:$0xff]
        %v966 = vld [vmem:[#allocation2 + $0x14d] sm:$0xff]
        %v967 = vld [vmem:[#allocation2 + $0x165] sm:$0xff]
        %v968 = vld [vmem:[#allocation2 + $0x16d] sm:$0xff]
        %v969 = vld [vmem:[#allocation2 + $0x185] sm:$0xff]
        %v970 = vld [vmem:[#allocation2 + $0x18d] sm:$0xff]
        %v971 = vld [vmem:[#allocation2 + $0x1a5] sm:$0xff]
        %v972 = vld [vmem:[#allocation2 + $0x1ad] sm:$0xff]
        %v973 = vld [vmem:[#allocation2 + $0x1c5] sm:$0xff]
        %v974 = vld [vmem:[#allocation2 + $0x1cd] sm:$0xff]
        %v975 = vld [vmem:[#allocation2 + $0x1e5] sm:$0xff]
        %v976 = vld [vmem:[#allocation2 + $0x1ed] sm:$0xff]
        %v977 = vld [vmem:[#allocation2 + $0x205] sm:$0xff]
        %v978 = vld [vmem:[#allocation2 + $0x20d] sm:$0xff]
        %v979 = vld [vmem:[#allocation2 + $0x225] sm:$0xff]
        %v980 = vld [vmem:[#allocation2 + $0x22d] sm:$0xff]
        %v981 = vld [vmem:[#allocation2 + $0x245] sm:$0xff]
        %v982 = vld [vmem:[#allocation2 + $0x24d] sm:$0xff]
        %v983 = vld [vmem:[#allocation2 + $0x265] sm:$0xff]
        %v984 = vld [vmem:[#allocation2 + $0x26d] sm:$0xff]
        %v985 = vld [vmem:[#allocation2 + $0x285] sm:$0xff]
        %v986 = vld [vmem:[#allocation2 + $0x28d] sm:$0xff]
        %v987 = vld [vmem:[#allocation2 + $0x2a5] sm:$0xff]
        %v988 = vld [vmem:[#allocation2 + $0x2ad] sm:$0xff]
        %v989 = vld [vmem:[#allocation2 + $0x6] sm:$0xff]
        %v990 = vld [vmem:[#allocation2 + $0xe] sm:$0xff]
        %v991 = vld [vmem:[#allocation2 + $0x26] sm:$0xff]
        %v992 = vld [vmem:[#allocation2 + $0x2e] sm:$0xff]
        %v993 = vld [vmem:[#allocation2 + $0x46] sm:$0xff]
        %v994 = vld [vmem:[#allocation2 + $0x4e] sm:$0xff]
        %v995 = vld [vmem:[#allocation2 + $0x66] sm:$0xff]
        %v996 = vld [vmem:[#allocation2 + $0x6e] sm:$0xff]
        %v997 = vld [vmem:[#allocation2 + $0x86] sm:$0xff]
        %v998 = vld [vmem:[#allocation2 + $0x8e] sm:$0xff]
        %v999 = vld [vmem:[#allocation2 + $0xa6] sm:$0xff]
        %v1000 = vld [vmem:[#allocation2 + $0xae] sm:$0xff]
        %v1001 = vld [vmem:[#allocation2 + $0xc6] sm:$0xff]
        %v1002 = vld [vmem:[#allocation2 + $0xce] sm:$0xff]
        %v1003 = vld [vmem:[#allocation2 + $0xe6] sm:$0xff]
        %v1004 = vld [vmem:[#allocation2 + $0xee] sm:$0xff]
        %v1005 = vld [vmem:[#allocation2 + $0x106] sm:$0xff]
        %v1006 = vld [vmem:[#allocation2 + $0x10e] sm:$0xff]
        %v1007 = vld [vmem:[#allocation2 + $0x126] sm:$0xff]
        %v1008 = vld [vmem:[#allocation2 + $0x12e] sm:$0xff]
        %v1009 = vld [vmem:[#allocation2 + $0x146] sm:$0xff]
        %v1010 = vld [vmem:[#allocation2 + $0x14e] sm:$0xff]
        %v1011 = vld [vmem:[#allocation2 + $0x166] sm:$0xff]
        %v1012 = vld [vmem:[#allocation2 + $0x16e] sm:$0xff]
        %v1013 = vld [vmem:[#allocation2 + $0x186] sm:$0xff]
        %v1014 = vld [vmem:[#allocation2 + $0x18e] sm:$0xff]
        %v1015 = vld [vmem:[#allocation2 + $0x1a6] sm:$0xff]
        %v1016 = vld [vmem:[#allocation2 + $0x1ae] sm:$0xff]
        %v1017 = vld [vmem:[#allocation2 + $0x1c6] sm:$0xff]
        %v1018 = vld [vmem:[#allocation2 + $0x1ce] sm:$0xff]
        %v1019 = vld [vmem:[#allocation2 + $0x1e6] sm:$0xff]
        %v1020 = vld [vmem:[#allocation2 + $0x1ee] sm:$0xff]
        %v1021 = vld [vmem:[#allocation2 + $0x206] sm:$0xff]
        %v1022 = vld [vmem:[#allocation2 + $0x20e] sm:$0xff]
        %v1023 = vld [vmem:[#allocation2 + $0x226] sm:$0xff]
        %v1024 = vld [vmem:[#allocation2 + $0x22e] sm:$0xff]
        %v1025 = vld [vmem:[#allocation2 + $0x246] sm:$0xff]
        %v1026 = vld [vmem:[#allocation2 + $0x24e] sm:$0xff]
        %v1027 = vld [vmem:[#allocation2 + $0x266] sm:$0xff]
        %v1028 = vld [vmem:[#allocation2 + $0x26e] sm:$0xff]
        %v1029 = vld [vmem:[#allocation2 + $0x286] sm:$0xff]
        %v1030 = vld [vmem:[#allocation2 + $0x28e] sm:$0xff]
        %v1031 = vld [vmem:[#allocation2 + $0x2a6] sm:$0xff]
        %v1032 = vld [vmem:[#allocation2 + $0x2ae] sm:$0xff]
        %v1033 = vld [vmem:[#allocation2 + $0x7] sm:$0xff]
        %v1034 = vld [vmem:[#allocation2 + $0xf] sm:$0xff]
        %v1035 = vld [vmem:[#allocation2 + $0x27] sm:$0xff]
        %v1036 = vld [vmem:[#allocation2 + $0x2f] sm:$0xff]
        %v1037 = vld [vmem:[#allocation2 + $0x47] sm:$0xff]
        %v1038 = vld [vmem:[#allocation2 + $0x4f] sm:$0xff]
        %v1039 = vld [vmem:[#allocation2 + $0x67] sm:$0xff]
        %v1040 = vld [vmem:[#allocation2 + $0x6f] sm:$0xff]
        %v1041 = vld [vmem:[#allocation2 + $0x87] sm:$0xff]
        %v1042 = vld [vmem:[#allocation2 + $0x8f] sm:$0xff]
        %v1043 = vld [vmem:[#allocation2 + $0xa7] sm:$0xff]
        %v1044 = vld [vmem:[#allocation2 + $0xaf] sm:$0xff]
        %v1045 = vld [vmem:[#allocation2 + $0xc7] sm:$0xff]
        %v1046 = vld [vmem:[#allocation2 + $0xcf] sm:$0xff]
        %v1047 = vld [vmem:[#allocation2 + $0xe7] sm:$0xff]
        %v1048 = vld [vmem:[#allocation2 + $0xef] sm:$0xff]
        %v1049 = vld [vmem:[#allocation2 + $0x107] sm:$0xff]
        %v1050 = vld [vmem:[#allocation2 + $0x10f] sm:$0xff]
        %v1051 = vld [vmem:[#allocation2 + $0x127] sm:$0xff]
        %v1052 = vld [vmem:[#allocation2 + $0x12f] sm:$0xff]
        %v1053 = vld [vmem:[#allocation2 + $0x147] sm:$0xff]
        %v1054 = vld [vmem:[#allocation2 + $0x14f] sm:$0xff]
        %v1055 = vld [vmem:[#allocation2 + $0x167] sm:$0xff]
        %v1056 = vld [vmem:[#allocation2 + $0x16f] sm:$0xff]
        %v1057 = vld [vmem:[#allocation2 + $0x187] sm:$0xff]
        %v1058 = vld [vmem:[#allocation2 + $0x18f] sm:$0xff]
        %v1059 = vld [vmem:[#allocation2 + $0x1a7] sm:$0xff]
        %v1060 = vld [vmem:[#allocation2 + $0x1af] sm:$0xff]
        %v1061 = vld [vmem:[#allocation2 + $0x1c7] sm:$0xff]
        %v1062 = vld [vmem:[#allocation2 + $0x1cf] sm:$0xff]
        %v1063 = vld [vmem:[#allocation2 + $0x1e7] sm:$0xff]
        %v1064 = vld [vmem:[#allocation2 + $0x1ef] sm:$0xff]
        %v1065 = vld [vmem:[#allocation2 + $0x207] sm:$0xff]
        %v1066 = vld [vmem:[#allocation2 + $0x20f] sm:$0xff]
        %v1067 = vld [vmem:[#allocation2 + $0x227] sm:$0xff]
        %v1068 = vld [vmem:[#allocation2 + $0x22f] sm:$0xff]
        %v1069 = vld [vmem:[#allocation2 + $0x247] sm:$0xff]
        %v1070 = vld [vmem:[#allocation2 + $0x24f] sm:$0xff]
        %v1071 = vld [vmem:[#allocation2 + $0x267] sm:$0xff]
        %v1072 = vld [vmem:[#allocation2 + $0x26f] sm:$0xff]
        %v1073 = vld [vmem:[#allocation2 + $0x287] sm:$0xff]
        %v1074 = vld [vmem:[#allocation2 + $0x28f] sm:$0xff]
        %v1075 = vld [vmem:[#allocation2 + $0x2a7] sm:$0xff]
        %v1076 = vld [vmem:[#allocation2 + $0x2af] sm:$0xff]
        %v1077 = vld [vmem:[#allocation2 + $0x8] sm:$0xff]
        %v1078 = vld [vmem:[#allocation2 + $0x10] sm:$0xff]
        %v1079 = vld [vmem:[#allocation2 + $0x28] sm:$0xff]
        %v1080 = vld [vmem:[#allocation2 + $0x30] sm:$0xff]
        %v1081 = vld [vmem:[#allocation2 + $0x48] sm:$0xff]
        %v1082 = vld [vmem:[#allocation2 + $0x50] sm:$0xff]
        %v1083 = vld [vmem:[#allocation2 + $0x68] sm:$0xff]
        %v1084 = vld [vmem:[#allocation2 + $0x70] sm:$0xff]
        %v1085 = vld [vmem:[#allocation2 + $0x88] sm:$0xff]
        %v1086 = vld [vmem:[#allocation2 + $0x90] sm:$0xff]
        %v1087 = vld [vmem:[#allocation2 + $0xa8] sm:$0xff]
        %v1088 = vld [vmem:[#allocation2 + $0xb0] sm:$0xff]
        %v1089 = vld [vmem:[#allocation2 + $0xc8] sm:$0xff]
        %v1090 = vld [vmem:[#allocation2 + $0xd0] sm:$0xff]
        %v1091 = vld [vmem:[#allocation2 + $0xe8] sm:$0xff]
        %v1092 = vld [vmem:[#allocation2 + $0xf0] sm:$0xff]
        %v1093 = vld [vmem:[#allocation2 + $0x108] sm:$0xff]
        %v1094 = vld [vmem:[#allocation2 + $0x110] sm:$0xff]
        %v1095 = vld [vmem:[#allocation2 + $0x128] sm:$0xff]
        %v1096 = vld [vmem:[#allocation2 + $0x130] sm:$0xff]
        %v1097 = vld [vmem:[#allocation2 + $0x148] sm:$0xff]
        %v1098 = vld [vmem:[#allocation2 + $0x150] sm:$0xff]
        %v1099 = vld [vmem:[#allocation2 + $0x168] sm:$0xff]
        %v1100 = vld [vmem:[#allocation2 + $0x170] sm:$0xff]
        %v1101 = vld [vmem:[#allocation2 + $0x188] sm:$0xff]
        %v1102 = vld [vmem:[#allocation2 + $0x190] sm:$0xff]
        %v1103 = vld [vmem:[#allocation2 + $0x1a8] sm:$0xff]
        %v1104 = vld [vmem:[#allocation2 + $0x1b0] sm:$0xff]
        %v1105 = vld [vmem:[#allocation2 + $0x1c8] sm:$0xff]
        %v1106 = vld [vmem:[#allocation2 + $0x1d0] sm:$0xff]
        %v1107 = vld [vmem:[#allocation2 + $0x1e8] sm:$0xff]
        %v1108 = vld [vmem:[#allocation2 + $0x1f0] sm:$0xff]
        %v1109 = vld [vmem:[#allocation2 + $0x208] sm:$0xff]
        %v1110 = vld [vmem:[#allocation2 + $0x210] sm:$0xff]
        %v1111 = vld [vmem:[#allocation2 + $0x228] sm:$0xff]
        %v1112 = vld [vmem:[#allocation2 + $0x230] sm:$0xff]
        %v1113 = vld [vmem:[#allocation2 + $0x248] sm:$0xff]
        %v1114 = vld [vmem:[#allocation2 + $0x250] sm:$0xff]
        %v1115 = vld [vmem:[#allocation2 + $0x268] sm:$0xff]
        %v1116 = vld [vmem:[#allocation2 + $0x270] sm:$0xff]
        %v1117 = vld [vmem:[#allocation2 + $0x288] sm:$0xff]
        %v1118 = vld [vmem:[#allocation2 + $0x290] sm:$0xff]
        %v1119 = vld [vmem:[#allocation2 + $0x2a8] sm:$0xff]
        %v1120 = vld [vmem:[#allocation2 + $0x2b0] sm:$0xff]
        %v1121 = vld [vmem:[#allocation2 + $0x9] sm:$0xff]
        %v1122 = vld [vmem:[#allocation2 + $0x11] sm:$0xff]
        %v1123 = vld [vmem:[#allocation2 + $0x29] sm:$0xff]
        %v1124 = vld [vmem:[#allocation2 + $0x31] sm:$0xff]
        %v1125 = vld [vmem:[#allocation2 + $0x49] sm:$0xff]
        %v1126 = vld [vmem:[#allocation2 + $0x51] sm:$0xff]
        %v1127 = vld [vmem:[#allocation2 + $0x69] sm:$0xff]
        %v1128 = vld [vmem:[#allocation2 + $0x71] sm:$0xff]
        %v1129 = vld [vmem:[#allocation2 + $0x89] sm:$0xff]
        %v1130 = vld [vmem:[#allocation2 + $0x91] sm:$0xff]
        %v1131 = vld [vmem:[#allocation2 + $0xa9] sm:$0xff]
        %v1132 = vld [vmem:[#allocation2 + $0xb1] sm:$0xff]
        %v1133 = vld [vmem:[#allocation2 + $0xc9] sm:$0xff]
        %v1134 = vld [vmem:[#allocation2 + $0xd1] sm:$0xff]
        %v1135 = vld [vmem:[#allocation2 + $0xe9] sm:$0xff]
        %v1136 = vld [vmem:[#allocation2 + $0xf1] sm:$0xff]
        %v1137 = vld [vmem:[#allocation2 + $0x109] sm:$0xff]
        %v1138 = vld [vmem:[#allocation2 + $0x111] sm:$0xff]
        %v1139 = vld [vmem:[#allocation2 + $0x129] sm:$0xff]
        %v1140 = vld [vmem:[#allocation2 + $0x131] sm:$0xff]
        %v1141 = vld [vmem:[#allocation2 + $0x149] sm:$0xff]
        %v1142 = vld [vmem:[#allocation2 + $0x151] sm:$0xff]
        %v1143 = vld [vmem:[#allocation2 + $0x169] sm:$0xff]
        %v1144 = vld [vmem:[#allocation2 + $0x171] sm:$0xff]
        %v1145 = vld [vmem:[#allocation2 + $0x189] sm:$0xff]
        %v1146 = vld [vmem:[#allocation2 + $0x191] sm:$0xff]
        %v1147 = vld [vmem:[#allocation2 + $0x1a9] sm:$0xff]
        %v1148 = vld [vmem:[#allocation2 + $0x1b1] sm:$0xff]
        %v1149 = vld [vmem:[#allocation2 + $0x1c9] sm:$0xff]
        %v1150 = vld [vmem:[#allocation2 + $0x1d1] sm:$0xff]
        %v1151 = vld [vmem:[#allocation2 + $0x1e9] sm:$0xff]
        %v1152 = vld [vmem:[#allocation2 + $0x1f1] sm:$0xff]
        %v1153 = vld [vmem:[#allocation2 + $0x209] sm:$0xff]
        %v1154 = vld [vmem:[#allocation2 + $0x211] sm:$0xff]
        %v1155 = vld [vmem:[#allocation2 + $0x229] sm:$0xff]
        %v1156 = vld [vmem:[#allocation2 + $0x231] sm:$0xff]
        %v1157 = vld [vmem:[#allocation2 + $0x249] sm:$0xff]
        %v1158 = vld [vmem:[#allocation2 + $0x251] sm:$0xff]
        %v1159 = vld [vmem:[#allocation2 + $0x269] sm:$0xff]
        %v1160 = vld [vmem:[#allocation2 + $0x271] sm:$0xff]
        %v1161 = vld [vmem:[#allocation2 + $0x289] sm:$0xff]
        %v1162 = vld [vmem:[#allocation2 + $0x291] sm:$0xff]
        %v1163 = vld [vmem:[#allocation2 + $0x2a9] sm:$0xff]
        %v1164 = vld [vmem:[#allocation2 + $0x2b1] sm:$0xff]
        %v1165 = vld [vmem:[#allocation2 + $0xa] sm:$0xff]
        %v1166 = vld [vmem:[#allocation2 + $0x12] sm:$0xff]
        %v1167 = vld [vmem:[#allocation2 + $0x2a] sm:$0xff]
        %v1168 = vld [vmem:[#allocation2 + $0x32] sm:$0xff]
        %v1169 = vld [vmem:[#allocation2 + $0x4a] sm:$0xff]
        %v1170 = vld [vmem:[#allocation2 + $0x52] sm:$0xff]
        %v1171 = vld [vmem:[#allocation2 + $0x6a] sm:$0xff]
        %v1172 = vld [vmem:[#allocation2 + $0x72] sm:$0xff]
        %v1173 = vld [vmem:[#allocation2 + $0x8a] sm:$0xff]
        %v1174 = vld [vmem:[#allocation2 + $0x92] sm:$0xff]
        %v1175 = vld [vmem:[#allocation2 + $0xaa] sm:$0xff]
        %v1176 = vld [vmem:[#allocation2 + $0xb2] sm:$0xff]
        %v1177 = vld [vmem:[#allocation2 + $0xca] sm:$0xff]
        %v1178 = vld [vmem:[#allocation2 + $0xd2] sm:$0xff]
        %v1179 = vld [vmem:[#allocation2 + $0xea] sm:$0xff]
        %v1180 = vld [vmem:[#allocation2 + $0xf2] sm:$0xff]
        %v1181 = vld [vmem:[#allocation2 + $0x10a] sm:$0xff]
        %v1182 = vld [vmem:[#allocation2 + $0x112] sm:$0xff]
        %v1183 = vld [vmem:[#allocation2 + $0x12a] sm:$0xff]
        %v1184 = vld [vmem:[#allocation2 + $0x132] sm:$0xff]
        %v1185 = vld [vmem:[#allocation2 + $0x14a] sm:$0xff]
        %v1186 = vld [vmem:[#allocation2 + $0x152] sm:$0xff]
        %v1187 = vld [vmem:[#allocation2 + $0x16a] sm:$0xff]
        %v1188 = vld [vmem:[#allocation2 + $0x172] sm:$0xff]
        %v1189 = vld [vmem:[#allocation2 + $0x18a] sm:$0xff]
        %v1190 = vld [vmem:[#allocation2 + $0x192] sm:$0xff]
        %v1191 = vld [vmem:[#allocation2 + $0x1aa] sm:$0xff]
        %v1192 = vld [vmem:[#allocation2 + $0x1b2] sm:$0xff]
        %v1193 = vld [vmem:[#allocation2 + $0x1ca] sm:$0xff]
        %v1194 = vld [vmem:[#allocation2 + $0x1d2] sm:$0xff]
        %v1195 = vld [vmem:[#allocation2 + $0x1ea] sm:$0xff]
        %v1196 = vld [vmem:[#allocation2 + $0x1f2] sm:$0xff]
        %v1197 = vld [vmem:[#allocation2 + $0x20a] sm:$0xff]
        %v1198 = vld [vmem:[#allocation2 + $0x212] sm:$0xff]
        %v1199 = vld [vmem:[#allocation2 + $0x22a] sm:$0xff]
        %v1200 = vld [vmem:[#allocation2 + $0x232] sm:$0xff]
        %v1201 = vld [vmem:[#allocation2 + $0x24a] sm:$0xff]
        %v1202 = vld [vmem:[#allocation2 + $0x252] sm:$0xff]
        %v1203 = vld [vmem:[#allocation2 + $0x26a] sm:$0xff]
        %v1204 = vld [vmem:[#allocation2 + $0x272] sm:$0xff]
        %v1205 = vld [vmem:[#allocation2 + $0x28a] sm:$0xff]
        %v1206 = vld [vmem:[#allocation2 + $0x292] sm:$0xff]
        %v1207 = vld [vmem:[#allocation2 + $0x2aa] sm:$0xff]
        %v1208 = vld [vmem:[#allocation2 + $0x2b2] sm:$0xff]
        %v1209 = vld [vmem:[#allocation2 + $0xb] sm:$0xff]
        %v1210 = vld [vmem:[#allocation2 + $0x13] sm:$0xff]
        %v1211 = vld [vmem:[#allocation2 + $0x2b] sm:$0xff]
        %v1212 = vld [vmem:[#allocation2 + $0x33] sm:$0xff]
        %v1213 = vld [vmem:[#allocation2 + $0x4b] sm:$0xff]
        %v1214 = vld [vmem:[#allocation2 + $0x53] sm:$0xff]
        %v1215 = vld [vmem:[#allocation2 + $0x6b] sm:$0xff]
        %v1216 = vld [vmem:[#allocation2 + $0x73] sm:$0xff]
        %v1217 = vld [vmem:[#allocation2 + $0x8b] sm:$0xff]
        %v1218 = vld [vmem:[#allocation2 + $0x93] sm:$0xff]
        %v1219 = vld [vmem:[#allocation2 + $0xab] sm:$0xff]
        %v1220 = vld [vmem:[#allocation2 + $0xb3] sm:$0xff]
        %v1221 = vld [vmem:[#allocation2 + $0xcb] sm:$0xff]
        %v1222 = vld [vmem:[#allocation2 + $0xd3] sm:$0xff]
        %v1223 = vld [vmem:[#allocation2 + $0xeb] sm:$0xff]
        %v1224 = vld [vmem:[#allocation2 + $0xf3] sm:$0xff]
        %v1225 = vld [vmem:[#allocation2 + $0x10b] sm:$0xff]
        %v1226 = vld [vmem:[#allocation2 + $0x113] sm:$0xff]
        %v1227 = vld [vmem:[#allocation2 + $0x12b] sm:$0xff]
        %v1228 = vld [vmem:[#allocation2 + $0x133] sm:$0xff]
        %v1229 = vld [vmem:[#allocation2 + $0x14b] sm:$0xff]
        %v1230 = vld [vmem:[#allocation2 + $0x153] sm:$0xff]
        %v1231 = vld [vmem:[#allocation2 + $0x16b] sm:$0xff]
        %v1232 = vld [vmem:[#allocation2 + $0x173] sm:$0xff]
        %v1233 = vld [vmem:[#allocation2 + $0x18b] sm:$0xff]
        %v1234 = vld [vmem:[#allocation2 + $0x193] sm:$0xff]
        %v1235 = vld [vmem:[#allocation2 + $0x1ab] sm:$0xff]
        %v1236 = vld [vmem:[#allocation2 + $0x1b3] sm:$0xff]
        %v1237 = vld [vmem:[#allocation2 + $0x1cb] sm:$0xff]
        %v1238 = vld [vmem:[#allocation2 + $0x1d3] sm:$0xff]
        %v1239 = vld [vmem:[#allocation2 + $0x1eb] sm:$0xff]
        %v1240 = vld [vmem:[#allocation2 + $0x1f3] sm:$0xff]
        %v1241 = vld [vmem:[#allocation2 + $0x20b] sm:$0xff]
        %v1242 = vld [vmem:[#allocation2 + $0x213] sm:$0xff]
        %v1243 = vld [vmem:[#allocation2 + $0x22b] sm:$0xff]
        %v1244 = vld [vmem:[#allocation2 + $0x233] sm:$0xff]
        %v1245 = vld [vmem:[#allocation2 + $0x24b] sm:$0xff]
        %v1246 = vld [vmem:[#allocation2 + $0x253] sm:$0xff]
        %v1247 = vld [vmem:[#allocation2 + $0x26b] sm:$0xff]
        %v1248 = vld [vmem:[#allocation2 + $0x273] sm:$0xff]
        %v1249 = vld [vmem:[#allocation2 + $0x28b] sm:$0xff]
        %v1250 = vld [vmem:[#allocation2 + $0x293] sm:$0xff]
        %v1251 = vld [vmem:[#allocation2 + $0x2ab] sm:$0xff]
        %v1252 = vld [vmem:[#allocation2 + $0x2b3] sm:$0xff]
        %1297 = vrot.lane.b32.xlu0 %v989, 4
        %v1298 = vpop.permute.xlu0 %1297
        %1299 = vrot.lane.b32.xlu0 %v990, 4
        %v1300 = vpop.permute.xlu0 %1299
        %1301 = vrot.lane.b32.xlu0 %v991, 4
        %v1302 = vpop.permute.xlu0 %1301
        %1303 = vrot.lane.b32.xlu0 %v992, 4
        %v1304 = vpop.permute.xlu0 %1303
        %1305 = vrot.lane.b32.xlu0 %v993, 4
        %v1306 = vpop.permute.xlu0 %1305
        %1307 = vrot.lane.b32.xlu0 %v994, 4
        %v1308 = vpop.permute.xlu0 %1307
        %1309 = vrot.lane.b32.xlu0 %v995, 4
        %v1310 = vpop.permute.xlu0 %1309
        %1311 = vrot.lane.b32.xlu0 %v996, 4
        %v1312 = vpop.permute.xlu0 %1311
        %1313 = vrot.lane.b32.xlu0 %v997, 4
        %v1314 = vpop.permute.xlu0 %1313
        %1315 = vrot.lane.b32.xlu0 %v998, 4
        %v1316 = vpop.permute.xlu0 %1315
        %1317 = vrot.lane.b32.xlu0 %v999, 4
        %v1318 = vpop.permute.xlu0 %1317
        %1319 = vrot.lane.b32.xlu0 %v1000, 4
        %v1320 = vpop.permute.xlu0 %1319
        %1321 = vrot.lane.b32.xlu0 %v1001, 4
        %v1322 = vpop.permute.xlu0 %1321
        %1323 = vrot.lane.b32.xlu0 %v1002, 4
        %v1324 = vpop.permute.xlu0 %1323
        %1325 = vrot.lane.b32.xlu0 %v1003, 4
        %v1326 = vpop.permute.xlu0 %1325
        %1327 = vrot.lane.b32.xlu0 %v1004, 4
        %v1328 = vpop.permute.xlu0 %1327
        %1329 = vrot.lane.b32.xlu0 %v1005, 4
        %v1330 = vpop.permute.xlu0 %1329
        %1331 = vrot.lane.b32.xlu0 %v1006, 4
        %v1332 = vpop.permute.xlu0 %1331
        %1333 = vrot.lane.b32.xlu0 %v1007, 4
        %v1334 = vpop.permute.xlu0 %1333
        %1335 = vrot.lane.b32.xlu0 %v1008, 4
        %v1336 = vpop.permute.xlu0 %1335
        %1337 = vrot.lane.b32.xlu0 %v1009, 4
        %v1338 = vpop.permute.xlu0 %1337
        %1339 = vrot.lane.b32.xlu0 %v1010, 4
        %v1340 = vpop.permute.xlu0 %1339
        %1341 = vrot.lane.b32.xlu0 %v1011, 4
        %v1342 = vpop.permute.xlu0 %1341
        %1343 = vrot.lane.b32.xlu0 %v1012, 4
        %v1344 = vpop.permute.xlu0 %1343
        %1345 = vrot.lane.b32.xlu0 %v1013, 4
        %v1346 = vpop.permute.xlu0 %1345
        %1347 = vrot.lane.b32.xlu0 %v1014, 4
        %v1348 = vpop.permute.xlu0 %1347
        %1349 = vrot.lane.b32.xlu0 %v1015, 4
        %v1350 = vpop.permute.xlu0 %1349
        %1351 = vrot.lane.b32.xlu0 %v1016, 4
        %v1352 = vpop.permute.xlu0 %1351
        %1353 = vrot.lane.b32.xlu0 %v1017, 4
        %v1354 = vpop.permute.xlu0 %1353
        %1355 = vrot.lane.b32.xlu0 %v1018, 4
        %v1356 = vpop.permute.xlu0 %1355
        %1357 = vrot.lane.b32.xlu0 %v1019, 4
        %v1358 = vpop.permute.xlu0 %1357
        %1359 = vrot.lane.b32.xlu0 %v1020, 4
        %v1360 = vpop.permute.xlu0 %1359
        %1361 = vrot.lane.b32.xlu0 %v1021, 4
        %v1362 = vpop.permute.xlu0 %1361
        %1363 = vrot.lane.b32.xlu0 %v1022, 4
        %v1364 = vpop.permute.xlu0 %1363
        %1365 = vrot.lane.b32.xlu0 %v1023, 4
        %v1366 = vpop.permute.xlu0 %1365
        %1367 = vrot.lane.b32.xlu0 %v1024, 4
        %v1368 = vpop.permute.xlu0 %1367
        %1369 = vrot.lane.b32.xlu0 %v1025, 4
        %v1370 = vpop.permute.xlu0 %1369
        %1371 = vrot.lane.b32.xlu0 %v1026, 4
        %v1372 = vpop.permute.xlu0 %1371
        %1373 = vrot.lane.b32.xlu0 %v1027, 4
        %v1374 = vpop.permute.xlu0 %1373
        %1375 = vrot.lane.b32.xlu0 %v1028, 4
        %v1376 = vpop.permute.xlu0 %1375
        %1377 = vrot.lane.b32.xlu0 %v1029, 4
        %v1378 = vpop.permute.xlu0 %1377
        %1379 = vrot.lane.b32.xlu0 %v1030, 4
        %v1380 = vpop.permute.xlu0 %1379
        %1381 = vrot.lane.b32.xlu0 %v1031, 4
        %v1382 = vpop.permute.xlu0 %1381
        %1383 = vrot.lane.b32.xlu0 %v1032, 4
        %v1384 = vpop.permute.xlu0 %1383
        %1473 = vrot.lane.b32.xlu0 %v1033, 8
        %v1474 = vpop.permute.xlu0 %1473
        %1475 = vrot.lane.b32.xlu0 %v1034, 8
        %v1476 = vpop.permute.xlu0 %1475
        %1477 = vrot.lane.b32.xlu0 %v1035, 8
        %v1478 = vpop.permute.xlu0 %1477
        %1479 = vrot.lane.b32.xlu0 %v1036, 8
        %v1480 = vpop.permute.xlu0 %1479
        %1481 = vrot.lane.b32.xlu0 %v1037, 8
        %v1482 = vpop.permute.xlu0 %1481
        %1483 = vrot.lane.b32.xlu0 %v1038, 8
        %v1484 = vpop.permute.xlu0 %1483
        %1485 = vrot.lane.b32.xlu0 %v1039, 8
        %v1486 = vpop.permute.xlu0 %1485
        %1487 = vrot.lane.b32.xlu0 %v1040, 8
        %v1488 = vpop.permute.xlu0 %1487
        %1489 = vrot.lane.b32.xlu0 %v1041, 8
        %v1490 = vpop.permute.xlu0 %1489
        %1491 = vrot.lane.b32.xlu0 %v1042, 8
        %v1492 = vpop.permute.xlu0 %1491
        %1493 = vrot.lane.b32.xlu0 %v1043, 8
        %v1494 = vpop.permute.xlu0 %1493
        %1495 = vrot.lane.b32.xlu0 %v1044, 8
        %v1496 = vpop.permute.xlu0 %1495
        %1497 = vrot.lane.b32.xlu0 %v1045, 8
        %v1498 = vpop.permute.xlu0 %1497
        %1499 = vrot.lane.b32.xlu0 %v1046, 8
        %v1500 = vpop.permute.xlu0 %1499
        %1501 = vrot.lane.b32.xlu0 %v1047, 8
        %v1502 = vpop.permute.xlu0 %1501
        %1503 = vrot.lane.b32.xlu0 %v1048, 8
        %v1504 = vpop.permute.xlu0 %1503
        %1505 = vrot.lane.b32.xlu0 %v1049, 8
        %v1506 = vpop.permute.xlu0 %1505
        %1507 = vrot.lane.b32.xlu0 %v1050, 8
        %v1508 = vpop.permute.xlu0 %1507
        %1509 = vrot.lane.b32.xlu0 %v1051, 8
        %v1510 = vpop.permute.xlu0 %1509
        %1511 = vrot.lane.b32.xlu0 %v1052, 8
        %v1512 = vpop.permute.xlu0 %1511
        %1513 = vrot.lane.b32.xlu0 %v1053, 8
        %v1514 = vpop.permute.xlu0 %1513
        %1515 = vrot.lane.b32.xlu0 %v1054, 8
        %v1516 = vpop.permute.xlu0 %1515
        %1517 = vrot.lane.b32.xlu0 %v1055, 8
        %v1518 = vpop.permute.xlu0 %1517
        %1519 = vrot.lane.b32.xlu0 %v1056, 8
        %v1520 = vpop.permute.xlu0 %1519
        %1521 = vrot.lane.b32.xlu0 %v1057, 8
        %v1522 = vpop.permute.xlu0 %1521
        %1523 = vrot.lane.b32.xlu0 %v1058, 8
        %v1524 = vpop.permute.xlu0 %1523
        %1525 = vrot.lane.b32.xlu0 %v1059, 8
        %v1526 = vpop.permute.xlu0 %1525
        %1527 = vrot.lane.b32.xlu0 %v1060, 8
        %v1528 = vpop.permute.xlu0 %1527
        %1529 = vrot.lane.b32.xlu0 %v1061, 8
        %v1530 = vpop.permute.xlu0 %1529
        %1531 = vrot.lane.b32.xlu0 %v1062, 8
        %v1532 = vpop.permute.xlu0 %1531
        %1533 = vrot.lane.b32.xlu0 %v1063, 8
        %v1534 = vpop.permute.xlu0 %1533
        %1535 = vrot.lane.b32.xlu0 %v1064, 8
        %v1536 = vpop.permute.xlu0 %1535
        %1537 = vrot.lane.b32.xlu0 %v1065, 8
        %v1538 = vpop.permute.xlu0 %1537
        %1539 = vrot.lane.b32.xlu0 %v1066, 8
        %v1540 = vpop.permute.xlu0 %1539
        %1541 = vrot.lane.b32.xlu0 %v1067, 8
        %v1542 = vpop.permute.xlu0 %1541
        %1543 = vrot.lane.b32.xlu0 %v1068, 8
        %v1544 = vpop.permute.xlu0 %1543
        %1545 = vrot.lane.b32.xlu0 %v1069, 8
        %v1546 = vpop.permute.xlu0 %1545
        %1547 = vrot.lane.b32.xlu0 %v1070, 8
        %v1548 = vpop.permute.xlu0 %1547
        %1549 = vrot.lane.b32.xlu0 %v1071, 8
        %v1550 = vpop.permute.xlu0 %1549
        %1551 = vrot.lane.b32.xlu0 %v1072, 8
        %v1552 = vpop.permute.xlu0 %1551
        %1553 = vrot.lane.b32.xlu0 %v1073, 8
        %v1554 = vpop.permute.xlu0 %1553
        %1555 = vrot.lane.b32.xlu0 %v1074, 8
        %v1556 = vpop.permute.xlu0 %1555
        %1557 = vrot.lane.b32.xlu0 %v1075, 8
        %v1558 = vpop.permute.xlu0 %1557
        %1559 = vrot.lane.b32.xlu0 %v1076, 8
        %v1560 = vpop.permute.xlu0 %1559
        %1649 = vrot.lane.b32.xlu0 %v1077, 12
        %v1650 = vpop.permute.xlu0 %1649
        %1651 = vrot.lane.b32.xlu0 %v1078, 12
        %v1652 = vpop.permute.xlu0 %1651
        %1653 = vrot.lane.b32.xlu0 %v1079, 12
        %v1654 = vpop.permute.xlu0 %1653
        %1655 = vrot.lane.b32.xlu0 %v1080, 12
        %v1656 = vpop.permute.xlu0 %1655
        %1657 = vrot.lane.b32.xlu0 %v1081, 12
        %v1658 = vpop.permute.xlu0 %1657
        %1659 = vrot.lane.b32.xlu0 %v1082, 12
        %v1660 = vpop.permute.xlu0 %1659
        %1661 = vrot.lane.b32.xlu0 %v1083, 12
        %v1662 = vpop.permute.xlu0 %1661
        %1663 = vrot.lane.b32.xlu0 %v1084, 12
        %v1664 = vpop.permute.xlu0 %1663
        %1665 = vrot.lane.b32.xlu0 %v1085, 12
        %v1666 = vpop.permute.xlu0 %1665
        %1667 = vrot.lane.b32.xlu0 %v1086, 12
        %v1668 = vpop.permute.xlu0 %1667
        %1669 = vrot.lane.b32.xlu0 %v1087, 12
        %v1670 = vpop.permute.xlu0 %1669
        %1671 = vrot.lane.b32.xlu0 %v1088, 12
        %v1672 = vpop.permute.xlu0 %1671
        %1673 = vrot.lane.b32.xlu0 %v1089, 12
        %v1674 = vpop.permute.xlu0 %1673
        %1675 = vrot.lane.b32.xlu0 %v1090, 12
        %v1676 = vpop.permute.xlu0 %1675
        %1677 = vrot.lane.b32.xlu0 %v1091, 12
        %v1678 = vpop.permute.xlu0 %1677
        %1679 = vrot.lane.b32.xlu0 %v1092, 12
        %v1680 = vpop.permute.xlu0 %1679
        %1681 = vrot.lane.b32.xlu0 %v1093, 12
        %v1682 = vpop.permute.xlu0 %1681
        %1683 = vrot.lane.b32.xlu0 %v1094, 12
        %v1684 = vpop.permute.xlu0 %1683
        %1685 = vrot.lane.b32.xlu0 %v1095, 12
        %v1686 = vpop.permute.xlu0 %1685
        %1687 = vrot.lane.b32.xlu0 %v1096, 12
        %v1688 = vpop.permute.xlu0 %1687
        %1689 = vrot.lane.b32.xlu0 %v1097, 12
        %v1690 = vpop.permute.xlu0 %1689
        %1691 = vrot.lane.b32.xlu0 %v1098, 12
        %v1692 = vpop.permute.xlu0 %1691
        %1693 = vrot.lane.b32.xlu0 %v1099, 12
        %v1694 = vpop.permute.xlu0 %1693
        %1695 = vrot.lane.b32.xlu0 %v1100, 12
        %v1696 = vpop.permute.xlu0 %1695
        %1697 = vrot.lane.b32.xlu0 %v1101, 12
        %v1698 = vpop.permute.xlu0 %1697
        %1699 = vrot.lane.b32.xlu0 %v1102, 12
        %v1700 = vpop.permute.xlu0 %1699
        %1701 = vrot.lane.b32.xlu0 %v1103, 12
        %v1702 = vpop.permute.xlu0 %1701
        %1703 = vrot.lane.b32.xlu0 %v1104, 12
        %v1704 = vpop.permute.xlu0 %1703
        %1705 = vrot.lane.b32.xlu0 %v1105, 12
        %v1706 = vpop.permute.xlu0 %1705
        %1707 = vrot.lane.b32.xlu0 %v1106, 12
        %v1708 = vpop.permute.xlu0 %1707
        %1709 = vrot.lane.b32.xlu0 %v1107, 12
        %v1710 = vpop.permute.xlu0 %1709
        %1711 = vrot.lane.b32.xlu0 %v1108, 12
        %v1712 = vpop.permute.xlu0 %1711
        %1713 = vrot.lane.b32.xlu0 %v1109, 12
        %v1714 = vpop.permute.xlu0 %1713
        %1715 = vrot.lane.b32.xlu0 %v1110, 12
        %v1716 = vpop.permute.xlu0 %1715
        %1717 = vrot.lane.b32.xlu0 %v1111, 12
        %v1718 = vpop.permute.xlu0 %1717
        %1719 = vrot.lane.b32.xlu0 %v1112, 12
        %v1720 = vpop.permute.xlu0 %1719
        %1721 = vrot.lane.b32.xlu0 %v1113, 12
        %v1722 = vpop.permute.xlu0 %1721
        %1723 = vrot.lane.b32.xlu0 %v1114, 12
        %v1724 = vpop.permute.xlu0 %1723
        %1725 = vrot.lane.b32.xlu0 %v1115, 12
        %v1726 = vpop.permute.xlu0 %1725
        %1727 = vrot.lane.b32.xlu0 %v1116, 12
        %v1728 = vpop.permute.xlu0 %1727
        %1729 = vrot.lane.b32.xlu0 %v1117, 12
        %v1730 = vpop.permute.xlu0 %1729
        %1731 = vrot.lane.b32.xlu0 %v1118, 12
        %v1732 = vpop.permute.xlu0 %1731
        %1733 = vrot.lane.b32.xlu0 %v1119, 12
        %v1734 = vpop.permute.xlu0 %1733
        %1735 = vrot.lane.b32.xlu0 %v1120, 12
        %v1736 = vpop.permute.xlu0 %1735
        %1825 = vrot.lane.b32.xlu0 %v1121, 16
        %v1826 = vpop.permute.xlu0 %1825
        %1827 = vrot.lane.b32.xlu0 %v1122, 16
        %v1828 = vpop.permute.xlu0 %1827
        %1829 = vrot.lane.b32.xlu0 %v1123, 16
        %v1830 = vpop.permute.xlu0 %1829
        %1831 = vrot.lane.b32.xlu0 %v1124, 16
        %v1832 = vpop.permute.xlu0 %1831
        %1833 = vrot.lane.b32.xlu0 %v1125, 16
        %v1834 = vpop.permute.xlu0 %1833
        %1835 = vrot.lane.b32.xlu0 %v1126, 16
        %v1836 = vpop.permute.xlu0 %1835
        %1837 = vrot.lane.b32.xlu0 %v1127, 16
        %v1838 = vpop.permute.xlu0 %1837
        %1839 = vrot.lane.b32.xlu0 %v1128, 16
        %v1840 = vpop.permute.xlu0 %1839
        %1841 = vrot.lane.b32.xlu0 %v1129, 16
        %v1842 = vpop.permute.xlu0 %1841
        %1843 = vrot.lane.b32.xlu0 %v1130, 16
        %v1844 = vpop.permute.xlu0 %1843
        %1845 = vrot.lane.b32.xlu0 %v1131, 16
        %v1846 = vpop.permute.xlu0 %1845
        %1847 = vrot.lane.b32.xlu0 %v1132, 16
        %v1848 = vpop.permute.xlu0 %1847
        %1849 = vrot.lane.b32.xlu0 %v1133, 16
        %v1850 = vpop.permute.xlu0 %1849
        %1851 = vrot.lane.b32.xlu0 %v1134, 16
        %v1852 = vpop.permute.xlu0 %1851
        %1853 = vrot.lane.b32.xlu0 %v1135, 16
        %v1854 = vpop.permute.xlu0 %1853
        %1855 = vrot.lane.b32.xlu0 %v1136, 16
        %v1856 = vpop.permute.xlu0 %1855
        %1857 = vrot.lane.b32.xlu0 %v1137, 16
        %v1858 = vpop.permute.xlu0 %1857
        %1859 = vrot.lane.b32.xlu0 %v1138, 16
        %v1860 = vpop.permute.xlu0 %1859
        %1861 = vrot.lane.b32.xlu0 %v1139, 16
        %v1862 = vpop.permute.xlu0 %1861
        %1863 = vrot.lane.b32.xlu0 %v1140, 16
        %v1864 = vpop.permute.xlu0 %1863
        %1865 = vrot.lane.b32.xlu0 %v1141, 16
        %v1866 = vpop.permute.xlu0 %1865
        %1867 = vrot.lane.b32.xlu0 %v1142, 16
        %v1868 = vpop.permute.xlu0 %1867
        %1869 = vrot.lane.b32.xlu0 %v1143, 16
        %v1870 = vpop.permute.xlu0 %1869
        %1871 = vrot.lane.b32.xlu0 %v1144, 16
        %v1872 = vpop.permute.xlu0 %1871
        %1873 = vrot.lane.b32.xlu0 %v1145, 16
        %v1874 = vpop.permute.xlu0 %1873
        %1875 = vrot.lane.b32.xlu0 %v1146, 16
        %v1876 = vpop.permute.xlu0 %1875
        %1877 = vrot.lane.b32.xlu0 %v1147, 16
        %v1878 = vpop.permute.xlu0 %1877
        %1879 = vrot.lane.b32.xlu0 %v1148, 16
        %v1880 = vpop.permute.xlu0 %1879
        %1881 = vrot.lane.b32.xlu0 %v1149, 16
        %v1882 = vpop.permute.xlu0 %1881
        %1883 = vrot.lane.b32.xlu0 %v1150, 16
        %v1884 = vpop.permute.xlu0 %1883
        %1885 = vrot.lane.b32.xlu0 %v1151, 16
        %v1886 = vpop.permute.xlu0 %1885
        %1887 = vrot.lane.b32.xlu0 %v1152, 16
        %v1888 = vpop.permute.xlu0 %1887
        %1889 = vrot.lane.b32.xlu0 %v1153, 16
        %v1890 = vpop.permute.xlu0 %1889
        %1891 = vrot.lane.b32.xlu0 %v1154, 16
        %v1892 = vpop.permute.xlu0 %1891
        %1893 = vrot.lane.b32.xlu0 %v1155, 16
        %v1894 = vpop.permute.xlu0 %1893
        %1895 = vrot.lane.b32.xlu0 %v1156, 16
        %v1896 = vpop.permute.xlu0 %1895
        %1897 = vrot.lane.b32.xlu0 %v1157, 16
        %v1898 = vpop.permute.xlu0 %1897
        %1899 = vrot.lane.b32.xlu0 %v1158, 16
        %v1900 = vpop.permute.xlu0 %1899
        %1901 = vrot.lane.b32.xlu0 %v1159, 16
        %v1902 = vpop.permute.xlu0 %1901
        %1903 = vrot.lane.b32.xlu0 %v1160, 16
        %v1904 = vpop.permute.xlu0 %1903
        %1905 = vrot.lane.b32.xlu0 %v1161, 16
        %v1906 = vpop.permute.xlu0 %1905
        %1907 = vrot.lane.b32.xlu0 %v1162, 16
        %v1908 = vpop.permute.xlu0 %1907
        %1909 = vrot.lane.b32.xlu0 %v1163, 16
        %v1910 = vpop.permute.xlu0 %1909
        %1911 = vrot.lane.b32.xlu0 %v1164, 16
        %v1912 = vpop.permute.xlu0 %1911
        %2001 = vrot.lane.b32.xlu0 %v1165, 20
        %v2002 = vpop.permute.xlu0 %2001
        %2003 = vrot.lane.b32.xlu0 %v1166, 20
        %v2004 = vpop.permute.xlu0 %2003
        %2005 = vrot.lane.b32.xlu0 %v1167, 20
        %v2006 = vpop.permute.xlu0 %2005
        %2007 = vrot.lane.b32.xlu0 %v1168, 20
        %v2008 = vpop.permute.xlu0 %2007
        %2009 = vrot.lane.b32.xlu0 %v1169, 20
        %v2010 = vpop.permute.xlu0 %2009
        %2011 = vrot.lane.b32.xlu0 %v1170, 20
        %v2012 = vpop.permute.xlu0 %2011
        %2013 = vrot.lane.b32.xlu0 %v1171, 20
        %v2014 = vpop.permute.xlu0 %2013
        %2015 = vrot.lane.b32.xlu0 %v1172, 20
        %v2016 = vpop.permute.xlu0 %2015
        %2017 = vrot.lane.b32.xlu0 %v1173, 20
        %v2018 = vpop.permute.xlu0 %2017
        %2019 = vrot.lane.b32.xlu0 %v1174, 20
        %v2020 = vpop.permute.xlu0 %2019
        %2021 = vrot.lane.b32.xlu0 %v1175, 20
        %v2022 = vpop.permute.xlu0 %2021
        %2023 = vrot.lane.b32.xlu0 %v1176, 20
        %v2024 = vpop.permute.xlu0 %2023
        %2025 = vrot.lane.b32.xlu0 %v1177, 20
        %v2026 = vpop.permute.xlu0 %2025
        %2027 = vrot.lane.b32.xlu0 %v1178, 20
        %v2028 = vpop.permute.xlu0 %2027
        %2029 = vrot.lane.b32.xlu0 %v1179, 20
        %v2030 = vpop.permute.xlu0 %2029
        %2031 = vrot.lane.b32.xlu0 %v1180, 20
        %v2032 = vpop.permute.xlu0 %2031
        %2033 = vrot.lane.b32.xlu0 %v1181, 20
        %v2034 = vpop.permute.xlu0 %2033
        %2035 = vrot.lane.b32.xlu0 %v1182, 20
        %v2036 = vpop.permute.xlu0 %2035
        %2037 = vrot.lane.b32.xlu0 %v1183, 20
        %v2038 = vpop.permute.xlu0 %2037
        %2039 = vrot.lane.b32.xlu0 %v1184, 20
        %v2040 = vpop.permute.xlu0 %2039
        %2041 = vrot.lane.b32.xlu0 %v1185, 20
        %v2042 = vpop.permute.xlu0 %2041
        %2043 = vrot.lane.b32.xlu0 %v1186, 20
        %v2044 = vpop.permute.xlu0 %2043
        %2045 = vrot.lane.b32.xlu0 %v1187, 20
        %v2046 = vpop.permute.xlu0 %2045
        %2047 = vrot.lane.b32.xlu0 %v1188, 20
        %v2048 = vpop.permute.xlu0 %2047
        %2049 = vrot.lane.b32.xlu0 %v1189, 20
        %v2050 = vpop.permute.xlu0 %2049
        %2051 = vrot.lane.b32.xlu0 %v1190, 20
        %v2052 = vpop.permute.xlu0 %2051
        %2053 = vrot.lane.b32.xlu0 %v1191, 20
        %v2054 = vpop.permute.xlu0 %2053
        %2055 = vrot.lane.b32.xlu0 %v1192, 20
        %v2056 = vpop.permute.xlu0 %2055
        %2057 = vrot.lane.b32.xlu0 %v1193, 20
        %v2058 = vpop.permute.xlu0 %2057
        %2059 = vrot.lane.b32.xlu0 %v1194, 20
        %v2060 = vpop.permute.xlu0 %2059
        %2061 = vrot.lane.b32.xlu0 %v1195, 20
        %v2062 = vpop.permute.xlu0 %2061
        %2063 = vrot.lane.b32.xlu0 %v1196, 20
        %v2064 = vpop.permute.xlu0 %2063
        %2065 = vrot.lane.b32.xlu0 %v1197, 20
        %v2066 = vpop.permute.xlu0 %2065
        %2067 = vrot.lane.b32.xlu0 %v1198, 20
        %v2068 = vpop.permute.xlu0 %2067
        %2069 = vrot.lane.b32.xlu0 %v1199, 20
        %v2070 = vpop.permute.xlu0 %2069
        %2071 = vrot.lane.b32.xlu0 %v1200, 20
        %v2072 = vpop.permute.xlu0 %2071
        %2073 = vrot.lane.b32.xlu0 %v1201, 20
        %v2074 = vpop.permute.xlu0 %2073
        %2075 = vrot.lane.b32.xlu0 %v1202, 20
        %v2076 = vpop.permute.xlu0 %2075
        %2077 = vrot.lane.b32.xlu0 %v1203, 20
        %v2078 = vpop.permute.xlu0 %2077
        %2079 = vrot.lane.b32.xlu0 %v1204, 20
        %v2080 = vpop.permute.xlu0 %2079
        %2081 = vrot.lane.b32.xlu0 %v1205, 20
        %v2082 = vpop.permute.xlu0 %2081
        %2083 = vrot.lane.b32.xlu0 %v1206, 20
        %v2084 = vpop.permute.xlu0 %2083
        %2085 = vrot.lane.b32.xlu0 %v1207, 20
        %v2086 = vpop.permute.xlu0 %2085
        %2087 = vrot.lane.b32.xlu0 %v1208, 20
        %v2088 = vpop.permute.xlu0 %2087
        %2177 = vrot.lane.b32.xlu0 %v1209, 24
        %v2178 = vpop.permute.xlu0 %2177
        %2179 = vrot.lane.b32.xlu0 %v1210, 24
        %v2180 = vpop.permute.xlu0 %2179
        %2181 = vrot.lane.b32.xlu0 %v1211, 24
        %v2182 = vpop.permute.xlu0 %2181
        %2183 = vrot.lane.b32.xlu0 %v1212, 24
        %v2184 = vpop.permute.xlu0 %2183
        %2185 = vrot.lane.b32.xlu0 %v1213, 24
        %v2186 = vpop.permute.xlu0 %2185
        %2187 = vrot.lane.b32.xlu0 %v1214, 24
        %v2188 = vpop.permute.xlu0 %2187
        %2189 = vrot.lane.b32.xlu0 %v1215, 24
        %v2190 = vpop.permute.xlu0 %2189
        %2191 = vrot.lane.b32.xlu0 %v1216, 24
        %v2192 = vpop.permute.xlu0 %2191
        %2193 = vrot.lane.b32.xlu0 %v1217, 24
        %v2194 = vpop.permute.xlu0 %2193
        %2195 = vrot.lane.b32.xlu0 %v1218, 24
        %v2196 = vpop.permute.xlu0 %2195
        %2197 = vrot.lane.b32.xlu0 %v1219, 24
        %v2198 = vpop.permute.xlu0 %2197
        %2199 = vrot.lane.b32.xlu0 %v1220, 24
        %v2200 = vpop.permute.xlu0 %2199
        %2201 = vrot.lane.b32.xlu0 %v1221, 24
        %v2202 = vpop.permute.xlu0 %2201
        %2203 = vrot.lane.b32.xlu0 %v1222, 24
        %v2204 = vpop.permute.xlu0 %2203
        %2205 = vrot.lane.b32.xlu0 %v1223, 24
        %v2206 = vpop.permute.xlu0 %2205
        %2207 = vrot.lane.b32.xlu0 %v1224, 24
        %v2208 = vpop.permute.xlu0 %2207
        %2209 = vrot.lane.b32.xlu0 %v1225, 24
        %v2210 = vpop.permute.xlu0 %2209
        %2211 = vrot.lane.b32.xlu0 %v1226, 24
        %v2212 = vpop.permute.xlu0 %2211
        %2213 = vrot.lane.b32.xlu0 %v1227, 24
        %v2214 = vpop.permute.xlu0 %2213
        %2215 = vrot.lane.b32.xlu0 %v1228, 24
        %v2216 = vpop.permute.xlu0 %2215
        %2217 = vrot.lane.b32.xlu0 %v1229, 24
        %v2218 = vpop.permute.xlu0 %2217
        %2219 = vrot.lane.b32.xlu0 %v1230, 24
        %v2220 = vpop.permute.xlu0 %2219
        %2221 = vrot.lane.b32.xlu0 %v1231, 24
        %v2222 = vpop.permute.xlu0 %2221
        %2223 = vrot.lane.b32.xlu0 %v1232, 24
        %v2224 = vpop.permute.xlu0 %2223
        %2225 = vrot.lane.b32.xlu0 %v1233, 24
        %v2226 = vpop.permute.xlu0 %2225
        %2227 = vrot.lane.b32.xlu0 %v1234, 24
        %v2228 = vpop.permute.xlu0 %2227
        %2229 = vrot.lane.b32.xlu0 %v1235, 24
        %v2230 = vpop.permute.xlu0 %2229
        %2231 = vrot.lane.b32.xlu0 %v1236, 24
        %v2232 = vpop.permute.xlu0 %2231
        %2233 = vrot.lane.b32.xlu0 %v1237, 24
        %v2234 = vpop.permute.xlu0 %2233
        %2235 = vrot.lane.b32.xlu0 %v1238, 24
        %v2236 = vpop.permute.xlu0 %2235
        %2237 = vrot.lane.b32.xlu0 %v1239, 24
        %v2238 = vpop.permute.xlu0 %2237
        %2239 = vrot.lane.b32.xlu0 %v1240, 24
        %v2240 = vpop.permute.xlu0 %2239
        %2241 = vrot.lane.b32.xlu0 %v1241, 24
        %v2242 = vpop.permute.xlu0 %2241
        %2243 = vrot.lane.b32.xlu0 %v1242, 24
        %v2244 = vpop.permute.xlu0 %2243
        %2245 = vrot.lane.b32.xlu0 %v1243, 24
        %v2246 = vpop.permute.xlu0 %2245
        %2247 = vrot.lane.b32.xlu0 %v1244, 24
        %v2248 = vpop.permute.xlu0 %2247
        %2249 = vrot.lane.b32.xlu0 %v1245, 24
        %v2250 = vpop.permute.xlu0 %2249
        %2251 = vrot.lane.b32.xlu0 %v1246, 24
        %v2252 = vpop.permute.xlu0 %2251
        %2253 = vrot.lane.b32.xlu0 %v1247, 24
        %v2254 = vpop.permute.xlu0 %2253
        %2255 = vrot.lane.b32.xlu0 %v1248, 24
        %v2256 = vpop.permute.xlu0 %2255
        %2257 = vrot.lane.b32.xlu0 %v1249, 24
        %v2258 = vpop.permute.xlu0 %2257
        %2259 = vrot.lane.b32.xlu0 %v1250, 24
        %v2260 = vpop.permute.xlu0 %2259
        %2261 = vrot.lane.b32.xlu0 %v1251, 24
        %v2262 = vpop.permute.xlu0 %2261
        %2263 = vrot.lane.b32.xlu0 %v1252, 24
        %v2264 = vpop.permute.xlu0 %2263
        %v2309 = vsel %vm277, %v945, %v1298
        %v2310 = vsel %vm277, %v946, %v1300
        %v2311 = vsel %vm277, %v947, %v1302
        %v2312 = vsel %vm277, %v948, %v1304
        %v2313 = vsel %vm277, %v949, %v1306
        %v2314 = vsel %vm277, %v950, %v1308
        %v2315 = vsel %vm277, %v951, %v1310
        %v2316 = vsel %vm277, %v952, %v1312
        %v2317 = vsel %vm277, %v953, %v1314
        %v2318 = vsel %vm277, %v954, %v1316
        %v2319 = vsel %vm277, %v955, %v1318
        %v2320 = vsel %vm277, %v956, %v1320
        %v2321 = vsel %vm277, %v957, %v1322
        %v2322 = vsel %vm277, %v958, %v1324
        %v2323 = vsel %vm277, %v959, %v1326
        %v2324 = vsel %vm277, %v960, %v1328
        %v2325 = vsel %vm277, %v961, %v1330
        %v2326 = vsel %vm277, %v962, %v1332
        %v2327 = vsel %vm277, %v963, %v1334
        %v2328 = vsel %vm277, %v964, %v1336
        %v2329 = vsel %vm277, %v965, %v1338
        %v2330 = vsel %vm277, %v966, %v1340
        %v2331 = vsel %vm277, %v967, %v1342
        %v2332 = vsel %vm277, %v968, %v1344
        %v2333 = vsel %vm277, %v969, %v1346
        %v2334 = vsel %vm277, %v970, %v1348
        %v2335 = vsel %vm277, %v971, %v1350
        %v2336 = vsel %vm277, %v972, %v1352
        %v2337 = vsel %vm277, %v973, %v1354
        %v2338 = vsel %vm277, %v974, %v1356
        %v2339 = vsel %vm277, %v975, %v1358
        %v2340 = vsel %vm277, %v976, %v1360
        %v2341 = vsel %vm277, %v977, %v1362
        %v2342 = vsel %vm277, %v978, %v1364
        %v2343 = vsel %vm277, %v979, %v1366
        %v2344 = vsel %vm277, %v980, %v1368
        %v2345 = vsel %vm277, %v981, %v1370
        %v2346 = vsel %vm277, %v982, %v1372
        %v2347 = vsel %vm277, %v983, %v1374
        %v2348 = vsel %vm277, %v984, %v1376
        %v2349 = vsel %vm277, %v985, %v1378
        %v2350 = vsel %vm277, %v986, %v1380
        %v2351 = vsel %vm277, %v987, %v1382
        %v2352 = vsel %vm277, %v988, %v1384
        %vm2353 = vcmask 64512
        %v2354 = vsel %vm2353, %v2309, %v1474
        %v2355 = vsel %vm2353, %v2310, %v1476
        %v2356 = vsel %vm2353, %v2311, %v1478
        %v2357 = vsel %vm2353, %v2312, %v1480
        %v2358 = vsel %vm2353, %v2313, %v1482
        %v2359 = vsel %vm2353, %v2314, %v1484
        %v2360 = vsel %vm2353, %v2315, %v1486
        %v2361 = vsel %vm2353, %v2316, %v1488
        %v2362 = vsel %vm2353, %v2317, %v1490
        %v2363 = vsel %vm2353, %v2318, %v1492
        %v2364 = vsel %vm2353, %v2319, %v1494
        %v2365 = vsel %vm2353, %v2320, %v1496
        %v2366 = vsel %vm2353, %v2321, %v1498
        %v2367 = vsel %vm2353, %v2322, %v1500
        %v2368 = vsel %vm2353, %v2323, %v1502
        %v2369 = vsel %vm2353, %v2324, %v1504
        %v2370 = vsel %vm2353, %v2325, %v1506
        %v2371 = vsel %vm2353, %v2326, %v1508
        %v2372 = vsel %vm2353, %v2327, %v1510
        %v2373 = vsel %vm2353, %v2328, %v1512
        %v2374 = vsel %vm2353, %v2329, %v1514
        %v2375 = vsel %vm2353, %v2330, %v1516
        %v2376 = vsel %vm2353, %v2331, %v1518
        %v2377 = vsel %vm2353, %v2332, %v1520
        %v2378 = vsel %vm2353, %v2333, %v1522
        %v2379 = vsel %vm2353, %v2334, %v1524
        %v2380 = vsel %vm2353, %v2335, %v1526
        %v2381 = vsel %vm2353, %v2336, %v1528
        %v2382 = vsel %vm2353, %v2337, %v1530
        %v2383 = vsel %vm2353, %v2338, %v1532
        %v2384 = vsel %vm2353, %v2339, %v1534
        %v2385 = vsel %vm2353, %v2340, %v1536
        %v2386 = vsel %vm2353, %v2341, %v1538
        %v2387 = vsel %vm2353, %v2342, %v1540
        %v2388 = vsel %vm2353, %v2343, %v1542
        %v2389 = vsel %vm2353, %v2344, %v1544
        %v2390 = vsel %vm2353, %v2345, %v1546
        %v2391 = vsel %vm2353, %v2346, %v1548
        %v2392 = vsel %vm2353, %v2347, %v1550
        %v2393 = vsel %vm2353, %v2348, %v1552
        %v2394 = vsel %vm2353, %v2349, %v1554
        %v2395 = vsel %vm2353, %v2350, %v1556
        %v2396 = vsel %vm2353, %v2351, %v1558
        %v2397 = vsel %vm2353, %v2352, %v1560
        %vm2398 = vcmask 97280
        %v2399 = vsel %vm2398, %v2354, %v1650
        %v2400 = vsel %vm2398, %v2355, %v1652
        %v2401 = vsel %vm2398, %v2356, %v1654
        %v2402 = vsel %vm2398, %v2357, %v1656
        %v2403 = vsel %vm2398, %v2358, %v1658
        %v2404 = vsel %vm2398, %v2359, %v1660
        %v2405 = vsel %vm2398, %v2360, %v1662
        %v2406 = vsel %vm2398, %v2361, %v1664
        %v2407 = vsel %vm2398, %v2362, %v1666
        %v2408 = vsel %vm2398, %v2363, %v1668
        %v2409 = vsel %vm2398, %v2364, %v1670
        %v2410 = vsel %vm2398, %v2365, %v1672
        %v2411 = vsel %vm2398, %v2366, %v1674
        %v2412 = vsel %vm2398, %v2367, %v1676
        %v2413 = vsel %vm2398, %v2368, %v1678
        %v2414 = vsel %vm2398, %v2369, %v1680
        %v2415 = vsel %vm2398, %v2370, %v1682
        %v2416 = vsel %vm2398, %v2371, %v1684
        %v2417 = vsel %vm2398, %v2372, %v1686
        %v2418 = vsel %vm2398, %v2373, %v1688
        %v2419 = vsel %vm2398, %v2374, %v1690
        %v2420 = vsel %vm2398, %v2375, %v1692
        %v2421 = vsel %vm2398, %v2376, %v1694
        %v2422 = vsel %vm2398, %v2377, %v1696
        %v2423 = vsel %vm2398, %v2378, %v1698
        %v2424 = vsel %vm2398, %v2379, %v1700
        %v2425 = vsel %vm2398, %v2380, %v1702
        %v2426 = vsel %vm2398, %v2381, %v1704
        %v2427 = vsel %vm2398, %v2382, %v1706
        %v2428 = vsel %vm2398, %v2383, %v1708
        %v2429 = vsel %vm2398, %v2384, %v1710
        %v2430 = vsel %vm2398, %v2385, %v1712
        %v2431 = vsel %vm2398, %v2386, %v1714
        %v2432 = vsel %vm2398, %v2387, %v1716
        %v2433 = vsel %vm2398, %v2388, %v1718
        %v2434 = vsel %vm2398, %v2389, %v1720
        %v2435 = vsel %vm2398, %v2390, %v1722
        %v2436 = vsel %vm2398, %v2391, %v1724
        %v2437 = vsel %vm2398, %v2392, %v1726
        %v2438 = vsel %vm2398, %v2393, %v1728
        %v2439 = vsel %vm2398, %v2394, %v1730
        %v2440 = vsel %vm2398, %v2395, %v1732
        %v2441 = vsel %vm2398, %v2396, %v1734
        %v2442 = vsel %vm2398, %v2397, %v1736
        %v2443 = vsel %vm366, %v2399, %v1826
        %v2444 = vsel %vm366, %v2400, %v1828
        %v2445 = vsel %vm366, %v2401, %v1830
        %v2446 = vsel %vm366, %v2402, %v1832
        %v2447 = vsel %vm366, %v2403, %v1834
        %v2448 = vsel %vm366, %v2404, %v1836
        %v2449 = vsel %vm366, %v2405, %v1838
        %v2450 = vsel %vm366, %v2406, %v1840
        %v2451 = vsel %vm366, %v2407, %v1842
        %v2452 = vsel %vm366, %v2408, %v1844
        %v2453 = vsel %vm366, %v2409, %v1846
        %v2454 = vsel %vm366, %v2410, %v1848
        %v2455 = vsel %vm366, %v2411, %v1850
        %v2456 = vsel %vm366, %v2412, %v1852
        %v2457 = vsel %vm366, %v2413, %v1854
        %v2458 = vsel %vm366, %v2414, %v1856
        %v2459 = vsel %vm366, %v2415, %v1858
        %v2460 = vsel %vm366, %v2416, %v1860
        %v2461 = vsel %vm366, %v2417, %v1862
        %v2462 = vsel %vm366, %v2418, %v1864
        %v2463 = vsel %vm366, %v2419, %v1866
        %v2464 = vsel %vm366, %v2420, %v1868
        %v2465 = vsel %vm366, %v2421, %v1870
        %v2466 = vsel %vm366, %v2422, %v1872
        %v2467 = vsel %vm366, %v2423, %v1874
        %v2468 = vsel %vm366, %v2424, %v1876
        %v2469 = vsel %vm366, %v2425, %v1878
        %v2470 = vsel %vm366, %v2426, %v1880
        %v2471 = vsel %vm366, %v2427, %v1882
        %v2472 = vsel %vm366, %v2428, %v1884
        %v2473 = vsel %vm366, %v2429, %v1886
        %v2474 = vsel %vm366, %v2430, %v1888
        %v2475 = vsel %vm366, %v2431, %v1890
        %v2476 = vsel %vm366, %v2432, %v1892
        %v2477 = vsel %vm366, %v2433, %v1894
        %v2478 = vsel %vm366, %v2434, %v1896
        %v2479 = vsel %vm366, %v2435, %v1898
        %v2480 = vsel %vm366, %v2436, %v1900
        %v2481 = vsel %vm366, %v2437, %v1902
        %v2482 = vsel %vm366, %v2438, %v1904
        %v2483 = vsel %vm366, %v2439, %v1906
        %v2484 = vsel %vm366, %v2440, %v1908
        %v2485 = vsel %vm366, %v2441, %v1910
        %v2486 = vsel %vm366, %v2442, %v1912
        %vm2487 = vcmask 162816
        %v2488 = vsel %vm2487, %v2443, %v2002
        %v2489 = vsel %vm2487, %v2444, %v2004
        %v2490 = vsel %vm2487, %v2445, %v2006
        %v2491 = vsel %vm2487, %v2446, %v2008
        %v2492 = vsel %vm2487, %v2447, %v2010
        %v2493 = vsel %vm2487, %v2448, %v2012
        %v2494 = vsel %vm2487, %v2449, %v2014
        %v2495 = vsel %vm2487, %v2450, %v2016
        %v2496 = vsel %vm2487, %v2451, %v2018
        %v2497 = vsel %vm2487, %v2452, %v2020
        %v2498 = vsel %vm2487, %v2453, %v2022
        %v2499 = vsel %vm2487, %v2454, %v2024
        %v2500 = vsel %vm2487, %v2455, %v2026
        %v2501 = vsel %vm2487, %v2456, %v2028
        %v2502 = vsel %vm2487, %v2457, %v2030
        %v2503 = vsel %vm2487, %v2458, %v2032
        %v2504 = vsel %vm2487, %v2459, %v2034
        %v2505 = vsel %vm2487, %v2460, %v2036
        %v2506 = vsel %vm2487, %v2461, %v2038
        %v2507 = vsel %vm2487, %v2462, %v2040
        %v2508 = vsel %vm2487, %v2463, %v2042
        %v2509 = vsel %vm2487, %v2464, %v2044
        %v2510 = vsel %vm2487, %v2465, %v2046
        %v2511 = vsel %vm2487, %v2466, %v2048
        %v2512 = vsel %vm2487, %v2467, %v2050
        %v2513 = vsel %vm2487, %v2468, %v2052
        %v2514 = vsel %vm2487, %v2469, %v2054
        %v2515 = vsel %vm2487, %v2470, %v2056
        %v2516 = vsel %vm2487, %v2471, %v2058
        %v2517 = vsel %vm2487, %v2472, %v2060
        %v2518 = vsel %vm2487, %v2473, %v2062
        %v2519 = vsel %vm2487, %v2474, %v2064
        %v2520 = vsel %vm2487, %v2475, %v2066
        %v2521 = vsel %vm2487, %v2476, %v2068
        %v2522 = vsel %vm2487, %v2477, %v2070
        %v2523 = vsel %vm2487, %v2478, %v2072
        %v2524 = vsel %vm2487, %v2479, %v2074
        %v2525 = vsel %vm2487, %v2480, %v2076
        %v2526 = vsel %vm2487, %v2481, %v2078
        %v2527 = vsel %vm2487, %v2482, %v2080
        %v2528 = vsel %vm2487, %v2483, %v2082
        %v2529 = vsel %vm2487, %v2484, %v2084
        %v2530 = vsel %vm2487, %v2485, %v2086
        %v2531 = vsel %vm2487, %v2486, %v2088
        %vm2532 = vcmask 195584
        %v2533 = vsel %vm2532, %v2488, %v2178
        %v2534 = vsel %vm2532, %v2489, %v2180
        %v2535 = vsel %vm2532, %v2490, %v2182
        %v2536 = vsel %vm2532, %v2491, %v2184
        %v2537 = vsel %vm2532, %v2492, %v2186
        %v2538 = vsel %vm2532, %v2493, %v2188
        %v2539 = vsel %vm2532, %v2494, %v2190
        %v2540 = vsel %vm2532, %v2495, %v2192
        %v2541 = vsel %vm2532, %v2496, %v2194
        %v2542 = vsel %vm2532, %v2497, %v2196
        %v2543 = vsel %vm2532, %v2498, %v2198
        %v2544 = vsel %vm2532, %v2499, %v2200
        %v2545 = vsel %vm2532, %v2500, %v2202
        %v2546 = vsel %vm2532, %v2501, %v2204
        %v2547 = vsel %vm2532, %v2502, %v2206
        %v2548 = vsel %vm2532, %v2503, %v2208
        %v2549 = vsel %vm2532, %v2504, %v2210
        %v2550 = vsel %vm2532, %v2505, %v2212
        %v2551 = vsel %vm2532, %v2506, %v2214
        %v2552 = vsel %vm2532, %v2507, %v2216
        %v2553 = vsel %vm2532, %v2508, %v2218
        %v2554 = vsel %vm2532, %v2509, %v2220
        %v2555 = vsel %vm2532, %v2510, %v2222
        %v2556 = vsel %vm2532, %v2511, %v2224
        %v2557 = vsel %vm2532, %v2512, %v2226
        %v2558 = vsel %vm2532, %v2513, %v2228
        %v2559 = vsel %vm2532, %v2514, %v2230
        %v2560 = vsel %vm2532, %v2515, %v2232
        %v2561 = vsel %vm2532, %v2516, %v2234
        %v2562 = vsel %vm2532, %v2517, %v2236
        %v2563 = vsel %vm2532, %v2518, %v2238
        %v2564 = vsel %vm2532, %v2519, %v2240
        %v2565 = vsel %vm2532, %v2520, %v2242
        %v2566 = vsel %vm2532, %v2521, %v2244
        %v2567 = vsel %vm2532, %v2522, %v2246
        %v2568 = vsel %vm2532, %v2523, %v2248
        %v2569 = vsel %vm2532, %v2524, %v2250
        %v2570 = vsel %vm2532, %v2525, %v2252
        %v2571 = vsel %vm2532, %v2526, %v2254
        %v2572 = vsel %vm2532, %v2527, %v2256
        %v2573 = vsel %vm2532, %v2528, %v2258
        %v2574 = vsel %vm2532, %v2529, %v2260
        %v2575 = vsel %vm2532, %v2530, %v2262
        %v2576 = vsel %vm2532, %v2531, %v2264
        %2609 = vrot.lane.b32.xlu0 %v2535, 28
        %v2610 = vpop.permute.xlu0 %2609
        %2611 = vrot.lane.b32.xlu0 %v2536, 28
        %v2612 = vpop.permute.xlu0 %2611
        %2613 = vrot.lane.b32.xlu0 %v2537, 28
        %v2614 = vpop.permute.xlu0 %2613
        %2615 = vrot.lane.b32.xlu0 %v2538, 28
        %v2616 = vpop.permute.xlu0 %2615
        %2617 = vrot.lane.b32.xlu0 %v2539, 28
        %v2618 = vpop.permute.xlu0 %2617
        %2619 = vrot.lane.b32.xlu0 %v2540, 28
        %v2620 = vpop.permute.xlu0 %2619
        %2621 = vrot.lane.b32.xlu0 %v2541, 28
        %v2622 = vpop.permute.xlu0 %2621
        %2623 = vrot.lane.b32.xlu0 %v2542, 28
        %v2624 = vpop.permute.xlu0 %2623
        %2625 = vrot.lane.b32.xlu0 %v2543, 28
        %v2626 = vpop.permute.xlu0 %2625
        %2627 = vrot.lane.b32.xlu0 %v2544, 28
        %v2628 = vpop.permute.xlu0 %2627
        %2629 = vrot.lane.b32.xlu0 %v2545, 28
        %v2630 = vpop.permute.xlu0 %2629
        %2631 = vrot.lane.b32.xlu0 %v2546, 28
        %v2632 = vpop.permute.xlu0 %2631
        %2633 = vrot.lane.b32.xlu0 %v2547, 28
        %v2634 = vpop.permute.xlu0 %2633
        %2635 = vrot.lane.b32.xlu0 %v2548, 28
        %v2636 = vpop.permute.xlu0 %2635
        %2637 = vrot.lane.b32.xlu0 %v2549, 28
        %v2638 = vpop.permute.xlu0 %2637
        %2639 = vrot.lane.b32.xlu0 %v2550, 28
        %v2640 = vpop.permute.xlu0 %2639
        %2641 = vrot.lane.b32.xlu0 %v2551, 28
        %v2642 = vpop.permute.xlu0 %2641
        %2643 = vrot.lane.b32.xlu0 %v2552, 28
        %v2644 = vpop.permute.xlu0 %2643
        %2645 = vrot.lane.b32.xlu0 %v2553, 28
        %v2646 = vpop.permute.xlu0 %2645
        %2647 = vrot.lane.b32.xlu0 %v2554, 28
        %v2648 = vpop.permute.xlu0 %2647
        %2649 = vrot.lane.b32.xlu0 %v2555, 28
        %v2650 = vpop.permute.xlu0 %2649
        %2651 = vrot.lane.b32.xlu0 %v2556, 28
        %v2652 = vpop.permute.xlu0 %2651
        %2653 = vrot.lane.b32.xlu0 %v2557, 28
        %v2654 = vpop.permute.xlu0 %2653
        %2655 = vrot.lane.b32.xlu0 %v2558, 28
        %v2656 = vpop.permute.xlu0 %2655
        %2657 = vrot.lane.b32.xlu0 %v2559, 28
        %v2658 = vpop.permute.xlu0 %2657
        %2659 = vrot.lane.b32.xlu0 %v2560, 28
        %v2660 = vpop.permute.xlu0 %2659
        %2661 = vrot.lane.b32.xlu0 %v2561, 28
        %v2662 = vpop.permute.xlu0 %2661
        %2663 = vrot.lane.b32.xlu0 %v2562, 28
        %v2664 = vpop.permute.xlu0 %2663
        %2665 = vrot.lane.b32.xlu0 %v2563, 28
        %v2666 = vpop.permute.xlu0 %2665
        %2667 = vrot.lane.b32.xlu0 %v2564, 28
        %v2668 = vpop.permute.xlu0 %2667
        %2669 = vrot.lane.b32.xlu0 %v2565, 28
        %v2670 = vpop.permute.xlu0 %2669
        %2671 = vrot.lane.b32.xlu0 %v2566, 28
        %v2672 = vpop.permute.xlu0 %2671
        %2707 = vrot.lane.b32.xlu0 %v2537, 56
        %v2708 = vpop.permute.xlu0 %2707
        %2709 = vrot.lane.b32.xlu0 %v2538, 56
        %v2710 = vpop.permute.xlu0 %2709
        %2711 = vrot.lane.b32.xlu0 %v2539, 56
        %v2712 = vpop.permute.xlu0 %2711
        %2713 = vrot.lane.b32.xlu0 %v2540, 56
        %v2714 = vpop.permute.xlu0 %2713
        %2715 = vrot.lane.b32.xlu0 %v2541, 56
        %v2716 = vpop.permute.xlu0 %2715
        %2717 = vrot.lane.b32.xlu0 %v2542, 56
        %v2718 = vpop.permute.xlu0 %2717
        %2719 = vrot.lane.b32.xlu0 %v2543, 56
        %v2720 = vpop.permute.xlu0 %2719
        %2721 = vrot.lane.b32.xlu0 %v2544, 56
        %v2722 = vpop.permute.xlu0 %2721
        %2723 = vrot.lane.b32.xlu0 %v2545, 56
        %v2724 = vpop.permute.xlu0 %2723
        %2725 = vrot.lane.b32.xlu0 %v2546, 56
        %v2726 = vpop.permute.xlu0 %2725
        %2727 = vrot.lane.b32.xlu0 %v2547, 56
        %v2728 = vpop.permute.xlu0 %2727
        %2729 = vrot.lane.b32.xlu0 %v2548, 56
        %v2730 = vpop.permute.xlu0 %2729
        %2731 = vrot.lane.b32.xlu0 %v2549, 56
        %v2732 = vpop.permute.xlu0 %2731
        %2733 = vrot.lane.b32.xlu0 %v2550, 56
        %v2734 = vpop.permute.xlu0 %2733
        %2735 = vrot.lane.b32.xlu0 %v2551, 56
        %v2736 = vpop.permute.xlu0 %2735
        %2737 = vrot.lane.b32.xlu0 %v2552, 56
        %v2738 = vpop.permute.xlu0 %2737
        %2739 = vrot.lane.b32.xlu0 %v2553, 56
        %v2740 = vpop.permute.xlu0 %2739
        %2741 = vrot.lane.b32.xlu0 %v2554, 56
        %v2742 = vpop.permute.xlu0 %2741
        %2743 = vrot.lane.b32.xlu0 %v2555, 56
        %v2744 = vpop.permute.xlu0 %2743
        %2745 = vrot.lane.b32.xlu0 %v2556, 56
        %v2746 = vpop.permute.xlu0 %2745
        %2747 = vrot.lane.b32.xlu0 %v2557, 56
        %v2748 = vpop.permute.xlu0 %2747
        %2749 = vrot.lane.b32.xlu0 %v2558, 56
        %v2750 = vpop.permute.xlu0 %2749
        %2751 = vrot.lane.b32.xlu0 %v2559, 56
        %v2752 = vpop.permute.xlu0 %2751
        %2753 = vrot.lane.b32.xlu0 %v2560, 56
        %v2754 = vpop.permute.xlu0 %2753
        %2755 = vrot.lane.b32.xlu0 %v2561, 56
        %v2756 = vpop.permute.xlu0 %2755
        %2757 = vrot.lane.b32.xlu0 %v2562, 56
        %v2758 = vpop.permute.xlu0 %2757
        %2759 = vrot.lane.b32.xlu0 %v2563, 56
        %v2760 = vpop.permute.xlu0 %2759
        %2761 = vrot.lane.b32.xlu0 %v2564, 56
        %v2762 = vpop.permute.xlu0 %2761
        %2763 = vrot.lane.b32.xlu0 %v2565, 56
        %v2764 = vpop.permute.xlu0 %2763
        %2765 = vrot.lane.b32.xlu0 %v2566, 56
        %v2766 = vpop.permute.xlu0 %2765
        %2767 = vrot.lane.b32.xlu0 %v2567, 56
        %v2768 = vpop.permute.xlu0 %2767
        %2769 = vrot.lane.b32.xlu0 %v2568, 56
        %v2770 = vpop.permute.xlu0 %2769
        %2805 = vrot.lane.b32.xlu0 %v2539, 84
        %v2806 = vpop.permute.xlu0 %2805
        %2807 = vrot.lane.b32.xlu0 %v2540, 84
        %v2808 = vpop.permute.xlu0 %2807
        %2809 = vrot.lane.b32.xlu0 %v2541, 84
        %v2810 = vpop.permute.xlu0 %2809
        %2811 = vrot.lane.b32.xlu0 %v2542, 84
        %v2812 = vpop.permute.xlu0 %2811
        %2813 = vrot.lane.b32.xlu0 %v2543, 84
        %v2814 = vpop.permute.xlu0 %2813
        %2815 = vrot.lane.b32.xlu0 %v2544, 84
        %v2816 = vpop.permute.xlu0 %2815
        %2817 = vrot.lane.b32.xlu0 %v2545, 84
        %v2818 = vpop.permute.xlu0 %2817
        %2819 = vrot.lane.b32.xlu0 %v2546, 84
        %v2820 = vpop.permute.xlu0 %2819
        %2821 = vrot.lane.b32.xlu0 %v2547, 84
        %v2822 = vpop.permute.xlu0 %2821
        %2823 = vrot.lane.b32.xlu0 %v2548, 84
        %v2824 = vpop.permute.xlu0 %2823
        %2825 = vrot.lane.b32.xlu0 %v2549, 84
        %v2826 = vpop.permute.xlu0 %2825
        %2827 = vrot.lane.b32.xlu0 %v2550, 84
        %v2828 = vpop.permute.xlu0 %2827
        %2829 = vrot.lane.b32.xlu0 %v2551, 84
        %v2830 = vpop.permute.xlu0 %2829
        %2831 = vrot.lane.b32.xlu0 %v2552, 84
        %v2832 = vpop.permute.xlu0 %2831
        %2833 = vrot.lane.b32.xlu0 %v2553, 84
        %v2834 = vpop.permute.xlu0 %2833
        %2835 = vrot.lane.b32.xlu0 %v2554, 84
        %v2836 = vpop.permute.xlu0 %2835
        %2837 = vrot.lane.b32.xlu0 %v2555, 84
        %v2838 = vpop.permute.xlu0 %2837
        %2839 = vrot.lane.b32.xlu0 %v2556, 84
        %v2840 = vpop.permute.xlu0 %2839
        %2841 = vrot.lane.b32.xlu0 %v2557, 84
        %v2842 = vpop.permute.xlu0 %2841
        %2843 = vrot.lane.b32.xlu0 %v2558, 84
        %v2844 = vpop.permute.xlu0 %2843
        %2845 = vrot.lane.b32.xlu0 %v2559, 84
        %v2846 = vpop.permute.xlu0 %2845
        %2847 = vrot.lane.b32.xlu0 %v2560, 84
        %v2848 = vpop.permute.xlu0 %2847
        %2849 = vrot.lane.b32.xlu0 %v2561, 84
        %v2850 = vpop.permute.xlu0 %2849
        %2851 = vrot.lane.b32.xlu0 %v2562, 84
        %v2852 = vpop.permute.xlu0 %2851
        %2853 = vrot.lane.b32.xlu0 %v2563, 84
        %v2854 = vpop.permute.xlu0 %2853
        %2855 = vrot.lane.b32.xlu0 %v2564, 84
        %v2856 = vpop.permute.xlu0 %2855
        %2857 = vrot.lane.b32.xlu0 %v2565, 84
        %v2858 = vpop.permute.xlu0 %2857
        %2859 = vrot.lane.b32.xlu0 %v2566, 84
        %v2860 = vpop.permute.xlu0 %2859
        %2861 = vrot.lane.b32.xlu0 %v2567, 84
        %v2862 = vpop.permute.xlu0 %2861
        %2863 = vrot.lane.b32.xlu0 %v2568, 84
        %v2864 = vpop.permute.xlu0 %2863
        %2865 = vrot.lane.b32.xlu0 %v2569, 84
        %v2866 = vpop.permute.xlu0 %2865
        %2867 = vrot.lane.b32.xlu0 %v2570, 84
        %v2868 = vpop.permute.xlu0 %2867
        %2903 = vrot.lane.b32.xlu0 %v2541, 112
        %v2904 = vpop.permute.xlu0 %2903
        %2905 = vrot.lane.b32.xlu0 %v2542, 112
        %v2906 = vpop.permute.xlu0 %2905
        %2907 = vrot.lane.b32.xlu0 %v2543, 112
        %v2908 = vpop.permute.xlu0 %2907
        %2909 = vrot.lane.b32.xlu0 %v2544, 112
        %v2910 = vpop.permute.xlu0 %2909
        %2911 = vrot.lane.b32.xlu0 %v2545, 112
        %v2912 = vpop.permute.xlu0 %2911
        %2913 = vrot.lane.b32.xlu0 %v2546, 112
        %v2914 = vpop.permute.xlu0 %2913
        %2915 = vrot.lane.b32.xlu0 %v2547, 112
        %v2916 = vpop.permute.xlu0 %2915
        %2917 = vrot.lane.b32.xlu0 %v2548, 112
        %v2918 = vpop.permute.xlu0 %2917
        %2919 = vrot.lane.b32.xlu0 %v2549, 112
        %v2920 = vpop.permute.xlu0 %2919
        %2921 = vrot.lane.b32.xlu0 %v2550, 112
        %v2922 = vpop.permute.xlu0 %2921
        %2923 = vrot.lane.b32.xlu0 %v2551, 112
        %v2924 = vpop.permute.xlu0 %2923
        %2925 = vrot.lane.b32.xlu0 %v2552, 112
        %v2926 = vpop.permute.xlu0 %2925
        %2927 = vrot.lane.b32.xlu0 %v2553, 112
        %v2928 = vpop.permute.xlu0 %2927
        %2929 = vrot.lane.b32.xlu0 %v2554, 112
        %v2930 = vpop.permute.xlu0 %2929
        %2931 = vrot.lane.b32.xlu0 %v2555, 112
        %v2932 = vpop.permute.xlu0 %2931
        %2933 = vrot.lane.b32.xlu0 %v2556, 112
        %v2934 = vpop.permute.xlu0 %2933
        %2935 = vrot.lane.b32.xlu0 %v2557, 112
        %v2936 = vpop.permute.xlu0 %2935
        %2937 = vrot.lane.b32.xlu0 %v2558, 112
        %v2938 = vpop.permute.xlu0 %2937
        %2939 = vrot.lane.b32.xlu0 %v2559, 112
        %v2940 = vpop.permute.xlu0 %2939
        %2941 = vrot.lane.b32.xlu0 %v2560, 112
        %v2942 = vpop.permute.xlu0 %2941
        %2943 = vrot.lane.b32.xlu0 %v2561, 112
        %v2944 = vpop.permute.xlu0 %2943
        %2945 = vrot.lane.b32.xlu0 %v2562, 112
        %v2946 = vpop.permute.xlu0 %2945
        %2947 = vrot.lane.b32.xlu0 %v2563, 112
        %v2948 = vpop.permute.xlu0 %2947
        %2949 = vrot.lane.b32.xlu0 %v2564, 112
        %v2950 = vpop.permute.xlu0 %2949
        %2951 = vrot.lane.b32.xlu0 %v2565, 112
        %v2952 = vpop.permute.xlu0 %2951
        %2953 = vrot.lane.b32.xlu0 %v2566, 112
        %v2954 = vpop.permute.xlu0 %2953
        %2955 = vrot.lane.b32.xlu0 %v2567, 112
        %v2956 = vpop.permute.xlu0 %2955
        %2957 = vrot.lane.b32.xlu0 %v2568, 112
        %v2958 = vpop.permute.xlu0 %2957
        %2959 = vrot.lane.b32.xlu0 %v2569, 112
        %v2960 = vpop.permute.xlu0 %2959
        %2961 = vrot.lane.b32.xlu0 %v2570, 112
        %v2962 = vpop.permute.xlu0 %2961
        %2963 = vrot.lane.b32.xlu0 %v2571, 112
        %v2964 = vpop.permute.xlu0 %2963
        %2965 = vrot.lane.b32.xlu0 %v2572, 112
        %v2966 = vpop.permute.xlu0 %2965
        %3001 = vrot.lane.b32.xlu0 %v2543, 12
        %v3002 = vpop.permute.xlu0 %3001
        %3003 = vrot.lane.b32.xlu0 %v2544, 12
        %v3004 = vpop.permute.xlu0 %3003
        %3005 = vrot.lane.b32.xlu0 %v2545, 12
        %v3006 = vpop.permute.xlu0 %3005
        %3007 = vrot.lane.b32.xlu0 %v2546, 12
        %v3008 = vpop.permute.xlu0 %3007
        %3009 = vrot.lane.b32.xlu0 %v2547, 12
        %v3010 = vpop.permute.xlu0 %3009
        %3011 = vrot.lane.b32.xlu0 %v2548, 12
        %v3012 = vpop.permute.xlu0 %3011
        %3013 = vrot.lane.b32.xlu0 %v2549, 12
        %v3014 = vpop.permute.xlu0 %3013
        %3015 = vrot.lane.b32.xlu0 %v2550, 12
        %v3016 = vpop.permute.xlu0 %3015
        %3017 = vrot.lane.b32.xlu0 %v2551, 12
        %v3018 = vpop.permute.xlu0 %3017
        %3019 = vrot.lane.b32.xlu0 %v2552, 12
        %v3020 = vpop.permute.xlu0 %3019
        %3021 = vrot.lane.b32.xlu0 %v2553, 12
        %v3022 = vpop.permute.xlu0 %3021
        %3023 = vrot.lane.b32.xlu0 %v2554, 12
        %v3024 = vpop.permute.xlu0 %3023
        %3025 = vrot.lane.b32.xlu0 %v2555, 12
        %v3026 = vpop.permute.xlu0 %3025
        %3027 = vrot.lane.b32.xlu0 %v2556, 12
        %v3028 = vpop.permute.xlu0 %3027
        %3029 = vrot.lane.b32.xlu0 %v2557, 12
        %v3030 = vpop.permute.xlu0 %3029
        %3031 = vrot.lane.b32.xlu0 %v2558, 12
        %v3032 = vpop.permute.xlu0 %3031
        %3033 = vrot.lane.b32.xlu0 %v2559, 12
        %v3034 = vpop.permute.xlu0 %3033
        %3035 = vrot.lane.b32.xlu0 %v2560, 12
        %v3036 = vpop.permute.xlu0 %3035
        %3037 = vrot.lane.b32.xlu0 %v2561, 12
        %v3038 = vpop.permute.xlu0 %3037
        %3039 = vrot.lane.b32.xlu0 %v2562, 12
        %v3040 = vpop.permute.xlu0 %3039
        %3041 = vrot.lane.b32.xlu0 %v2563, 12
        %v3042 = vpop.permute.xlu0 %3041
        %3043 = vrot.lane.b32.xlu0 %v2564, 12
        %v3044 = vpop.permute.xlu0 %3043
        %3045 = vrot.lane.b32.xlu0 %v2565, 12
        %v3046 = vpop.permute.xlu0 %3045
        %3047 = vrot.lane.b32.xlu0 %v2566, 12
        %v3048 = vpop.permute.xlu0 %3047
        %3049 = vrot.lane.b32.xlu0 %v2567, 12
        %v3050 = vpop.permute.xlu0 %3049
        %3051 = vrot.lane.b32.xlu0 %v2568, 12
        %v3052 = vpop.permute.xlu0 %3051
        %3053 = vrot.lane.b32.xlu0 %v2569, 12
        %v3054 = vpop.permute.xlu0 %3053
        %3055 = vrot.lane.b32.xlu0 %v2570, 12
        %v3056 = vpop.permute.xlu0 %3055
        %3057 = vrot.lane.b32.xlu0 %v2571, 12
        %v3058 = vpop.permute.xlu0 %3057
        %3059 = vrot.lane.b32.xlu0 %v2572, 12
        %v3060 = vpop.permute.xlu0 %3059
        %3061 = vrot.lane.b32.xlu0 %v2573, 12
        %v3062 = vpop.permute.xlu0 %3061
        %3063 = vrot.lane.b32.xlu0 %v2574, 12
        %v3064 = vpop.permute.xlu0 %3063
        %3099 = vrot.lane.b32.xlu0 %v2545, 40
        %v3100 = vpop.permute.xlu0 %3099
        %3101 = vrot.lane.b32.xlu0 %v2546, 40
        %v3102 = vpop.permute.xlu0 %3101
        %3103 = vrot.lane.b32.xlu0 %v2547, 40
        %v3104 = vpop.permute.xlu0 %3103
        %3105 = vrot.lane.b32.xlu0 %v2548, 40
        %v3106 = vpop.permute.xlu0 %3105
        %3107 = vrot.lane.b32.xlu0 %v2549, 40
        %v3108 = vpop.permute.xlu0 %3107
        %3109 = vrot.lane.b32.xlu0 %v2550, 40
        %v3110 = vpop.permute.xlu0 %3109
        %3111 = vrot.lane.b32.xlu0 %v2551, 40
        %v3112 = vpop.permute.xlu0 %3111
        %3113 = vrot.lane.b32.xlu0 %v2552, 40
        %v3114 = vpop.permute.xlu0 %3113
        %3115 = vrot.lane.b32.xlu0 %v2553, 40
        %v3116 = vpop.permute.xlu0 %3115
        %3117 = vrot.lane.b32.xlu0 %v2554, 40
        %v3118 = vpop.permute.xlu0 %3117
        %3119 = vrot.lane.b32.xlu0 %v2555, 40
        %v3120 = vpop.permute.xlu0 %3119
        %3121 = vrot.lane.b32.xlu0 %v2556, 40
        %v3122 = vpop.permute.xlu0 %3121
        %3123 = vrot.lane.b32.xlu0 %v2557, 40
        %v3124 = vpop.permute.xlu0 %3123
        %3125 = vrot.lane.b32.xlu0 %v2558, 40
        %v3126 = vpop.permute.xlu0 %3125
        %3127 = vrot.lane.b32.xlu0 %v2559, 40
        %v3128 = vpop.permute.xlu0 %3127
        %3129 = vrot.lane.b32.xlu0 %v2560, 40
        %v3130 = vpop.permute.xlu0 %3129
        %3131 = vrot.lane.b32.xlu0 %v2561, 40
        %v3132 = vpop.permute.xlu0 %3131
        %3133 = vrot.lane.b32.xlu0 %v2562, 40
        %v3134 = vpop.permute.xlu0 %3133
        %3135 = vrot.lane.b32.xlu0 %v2563, 40
        %v3136 = vpop.permute.xlu0 %3135
        %3137 = vrot.lane.b32.xlu0 %v2564, 40
        %v3138 = vpop.permute.xlu0 %3137
        %3139 = vrot.lane.b32.xlu0 %v2565, 40
        %v3140 = vpop.permute.xlu0 %3139
        %3141 = vrot.lane.b32.xlu0 %v2566, 40
        %v3142 = vpop.permute.xlu0 %3141
        %3143 = vrot.lane.b32.xlu0 %v2567, 40
        %v3144 = vpop.permute.xlu0 %3143
        %3145 = vrot.lane.b32.xlu0 %v2568, 40
        %v3146 = vpop.permute.xlu0 %3145
        %3147 = vrot.lane.b32.xlu0 %v2569, 40
        %v3148 = vpop.permute.xlu0 %3147
        %3149 = vrot.lane.b32.xlu0 %v2570, 40
        %v3150 = vpop.permute.xlu0 %3149
        %3151 = vrot.lane.b32.xlu0 %v2571, 40
        %v3152 = vpop.permute.xlu0 %3151
        %3153 = vrot.lane.b32.xlu0 %v2572, 40
        %v3154 = vpop.permute.xlu0 %3153
        %3155 = vrot.lane.b32.xlu0 %v2573, 40
        %v3156 = vpop.permute.xlu0 %3155
        %3157 = vrot.lane.b32.xlu0 %v2574, 40
        %v3158 = vpop.permute.xlu0 %3157
        %3159 = vrot.lane.b32.xlu0 %v2575, 40
        %v3160 = vpop.permute.xlu0 %3159
        %3161 = vrot.lane.b32.xlu0 %v2576, 40
        %v3162 = vpop.permute.xlu0 %3161
        %vm3195 = vcmask 228352
        %v3196 = vsel %vm3195, %v2533, %v2610
        %v3197 = vsel %vm3195, %v2534, %v2612
        %v3198 = vsel %vm3195, %v2535, %v2614
        %v3199 = vsel %vm3195, %v2536, %v2616
        %v3200 = vsel %vm3195, %v2537, %v2618
        %v3201 = vsel %vm3195, %v2538, %v2620
        %v3202 = vsel %vm3195, %v2539, %v2622
        %v3203 = vsel %vm3195, %v2540, %v2624
        %v3204 = vsel %vm3195, %v2541, %v2626
        %v3205 = vsel %vm3195, %v2542, %v2628
        %v3206 = vsel %vm3195, %v2543, %v2630
        %v3207 = vsel %vm3195, %v2544, %v2632
        %v3208 = vsel %vm3195, %v2545, %v2634
        %v3209 = vsel %vm3195, %v2546, %v2636
        %v3210 = vsel %vm3195, %v2547, %v2638
        %v3211 = vsel %vm3195, %v2548, %v2640
        %v3212 = vsel %vm3195, %v2549, %v2642
        %v3213 = vsel %vm3195, %v2550, %v2644
        %v3214 = vsel %vm3195, %v2551, %v2646
        %v3215 = vsel %vm3195, %v2552, %v2648
        %v3216 = vsel %vm3195, %v2553, %v2650
        %v3217 = vsel %vm3195, %v2554, %v2652
        %v3218 = vsel %vm3195, %v2555, %v2654
        %v3219 = vsel %vm3195, %v2556, %v2656
        %v3220 = vsel %vm3195, %v2557, %v2658
        %v3221 = vsel %vm3195, %v2558, %v2660
        %v3222 = vsel %vm3195, %v2559, %v2662
        %v3223 = vsel %vm3195, %v2560, %v2664
        %v3224 = vsel %vm3195, %v2561, %v2666
        %v3225 = vsel %vm3195, %v2562, %v2668
        %v3226 = vsel %vm3195, %v2563, %v2670
        %v3227 = vsel %vm3195, %v2564, %v2672
        %vm3228 = vcmask 457728
        %v3229 = vsel %vm3228, %v3196, %v2708
        %v3230 = vsel %vm3228, %v3197, %v2710
        %v3231 = vsel %vm3228, %v3198, %v2712
        %v3232 = vsel %vm3228, %v3199, %v2714
        %v3233 = vsel %vm3228, %v3200, %v2716
        %v3234 = vsel %vm3228, %v3201, %v2718
        %v3235 = vsel %vm3228, %v3202, %v2720
        %v3236 = vsel %vm3228, %v3203, %v2722
        %v3237 = vsel %vm3228, %v3204, %v2724
        %v3238 = vsel %vm3228, %v3205, %v2726
        %v3239 = vsel %vm3228, %v3206, %v2728
        %v3240 = vsel %vm3228, %v3207, %v2730
        %v3241 = vsel %vm3228, %v3208, %v2732
        %v3242 = vsel %vm3228, %v3209, %v2734
        %v3243 = vsel %vm3228, %v3210, %v2736
        %v3244 = vsel %vm3228, %v3211, %v2738
        %v3245 = vsel %vm3228, %v3212, %v2740
        %v3246 = vsel %vm3228, %v3213, %v2742
        %v3247 = vsel %vm3228, %v3214, %v2744
        %v3248 = vsel %vm3228, %v3215, %v2746
        %v3249 = vsel %vm3228, %v3216, %v2748
        %v3250 = vsel %vm3228, %v3217, %v2750
        %v3251 = vsel %vm3228, %v3218, %v2752
        %v3252 = vsel %vm3228, %v3219, %v2754
        %v3253 = vsel %vm3228, %v3220, %v2756
        %v3254 = vsel %vm3228, %v3221, %v2758
        %v3255 = vsel %vm3228, %v3222, %v2760
        %v3256 = vsel %vm3228, %v3223, %v2762
        %v3257 = vsel %vm3228, %v3224, %v2764
        %v3258 = vsel %vm3228, %v3225, %v2766
        %v3259 = vsel %vm3228, %v3226, %v2768
        %v3260 = vsel %vm3228, %v3227, %v2770
        %vm3261 = vcmask 687104
        %v3262 = vsel %vm3261, %v3229, %v2806
        %v3263 = vsel %vm3261, %v3230, %v2808
        %v3264 = vsel %vm3261, %v3231, %v2810
        %v3265 = vsel %vm3261, %v3232, %v2812
        %v3266 = vsel %vm3261, %v3233, %v2814
        %v3267 = vsel %vm3261, %v3234, %v2816
        %v3268 = vsel %vm3261, %v3235, %v2818
        %v3269 = vsel %vm3261, %v3236, %v2820
        %v3270 = vsel %vm3261, %v3237, %v2822
        %v3271 = vsel %vm3261, %v3238, %v2824
        %v3272 = vsel %vm3261, %v3239, %v2826
        %v3273 = vsel %vm3261, %v3240, %v2828
        %v3274 = vsel %vm3261, %v3241, %v2830
        %v3275 = vsel %vm3261, %v3242, %v2832
        %v3276 = vsel %vm3261, %v3243, %v2834
        %v3277 = vsel %vm3261, %v3244, %v2836
        %v3278 = vsel %vm3261, %v3245, %v2838
        %v3279 = vsel %vm3261, %v3246, %v2840
        %v3280 = vsel %vm3261, %v3247, %v2842
        %v3281 = vsel %vm3261, %v3248, %v2844
        %v3282 = vsel %vm3261, %v3249, %v2846
        %v3283 = vsel %vm3261, %v3250, %v2848
        %v3284 = vsel %vm3261, %v3251, %v2850
        %v3285 = vsel %vm3261, %v3252, %v2852
        %v3286 = vsel %vm3261, %v3253, %v2854
        %v3287 = vsel %vm3261, %v3254, %v2856
        %v3288 = vsel %vm3261, %v3255, %v2858
        %v3289 = vsel %vm3261, %v3256, %v2860
        %v3290 = vsel %vm3261, %v3257, %v2862
        %v3291 = vsel %vm3261, %v3258, %v2864
        %v3292 = vsel %vm3261, %v3259, %v2866
        %v3293 = vsel %vm3261, %v3260, %v2868
        %vm3294 = vcmask 916480
        %v3295 = vsel %vm3294, %v3262, %v2904
        %v3296 = vsel %vm3294, %v3263, %v2906
        %v3297 = vsel %vm3294, %v3264, %v2908
        %v3298 = vsel %vm3294, %v3265, %v2910
        %v3299 = vsel %vm3294, %v3266, %v2912
        %v3300 = vsel %vm3294, %v3267, %v2914
        %v3301 = vsel %vm3294, %v3268, %v2916
        %v3302 = vsel %vm3294, %v3269, %v2918
        %v3303 = vsel %vm3294, %v3270, %v2920
        %v3304 = vsel %vm3294, %v3271, %v2922
        %v3305 = vsel %vm3294, %v3272, %v2924
        %v3306 = vsel %vm3294, %v3273, %v2926
        %v3307 = vsel %vm3294, %v3274, %v2928
        %v3308 = vsel %vm3294, %v3275, %v2930
        %v3309 = vsel %vm3294, %v3276, %v2932
        %v3310 = vsel %vm3294, %v3277, %v2934
        %v3311 = vsel %vm3294, %v3278, %v2936
        %v3312 = vsel %vm3294, %v3279, %v2938
        %v3313 = vsel %vm3294, %v3280, %v2940
        %v3314 = vsel %vm3294, %v3281, %v2942
        %v3315 = vsel %vm3294, %v3282, %v2944
        %v3316 = vsel %vm3294, %v3283, %v2946
        %v3317 = vsel %vm3294, %v3284, %v2948
        %v3318 = vsel %vm3294, %v3285, %v2950
        %v3319 = vsel %vm3294, %v3286, %v2952
        %v3320 = vsel %vm3294, %v3287, %v2954
        %v3321 = vsel %vm3294, %v3288, %v2956
        %v3322 = vsel %vm3294, %v3289, %v2958
        %v3323 = vsel %vm3294, %v3290, %v2960
        %v3324 = vsel %vm3294, %v3291, %v2962
        %v3325 = vsel %vm3294, %v3292, %v2964
        %v3326 = vsel %vm3294, %v3293, %v2966
        %v3327 = vsel %vm2398, %v2904, %v3002
        %v3328 = vsel %vm2398, %v2906, %v3004
        %v3329 = vsel %vm2398, %v2908, %v3006
        %v3330 = vsel %vm2398, %v2910, %v3008
        %v3331 = vsel %vm2398, %v2912, %v3010
        %v3332 = vsel %vm2398, %v2914, %v3012
        %v3333 = vsel %vm2398, %v2916, %v3014
        %v3334 = vsel %vm2398, %v2918, %v3016
        %v3335 = vsel %vm2398, %v2920, %v3018
        %v3336 = vsel %vm2398, %v2922, %v3020
        %v3337 = vsel %vm2398, %v2924, %v3022
        %v3338 = vsel %vm2398, %v2926, %v3024
        %v3339 = vsel %vm2398, %v2928, %v3026
        %v3340 = vsel %vm2398, %v2930, %v3028
        %v3341 = vsel %vm2398, %v2932, %v3030
        %v3342 = vsel %vm2398, %v2934, %v3032
        %v3343 = vsel %vm2398, %v2936, %v3034
        %v3344 = vsel %vm2398, %v2938, %v3036
        %v3345 = vsel %vm2398, %v2940, %v3038
        %v3346 = vsel %vm2398, %v2942, %v3040
        %v3347 = vsel %vm2398, %v2944, %v3042
        %v3348 = vsel %vm2398, %v2946, %v3044
        %v3349 = vsel %vm2398, %v2948, %v3046
        %v3350 = vsel %vm2398, %v2950, %v3048
        %v3351 = vsel %vm2398, %v2952, %v3050
        %v3352 = vsel %vm2398, %v2954, %v3052
        %v3353 = vsel %vm2398, %v2956, %v3054
        %v3354 = vsel %vm2398, %v2958, %v3056
        %v3355 = vsel %vm2398, %v2960, %v3058
        %v3356 = vsel %vm2398, %v2962, %v3060
        %v3357 = vsel %vm2398, %v2964, %v3062
        %v3358 = vsel %vm2398, %v2966, %v3064
        %vm3359 = vcmask 326656
        %v3360 = vsel %vm3359, %v3327, %v3100
        %v3361 = vsel %vm3359, %v3328, %v3102
        %v3362 = vsel %vm3359, %v3329, %v3104
        %v3363 = vsel %vm3359, %v3330, %v3106
        %v3364 = vsel %vm3359, %v3331, %v3108
        %v3365 = vsel %vm3359, %v3332, %v3110
        %v3366 = vsel %vm3359, %v3333, %v3112
        %v3367 = vsel %vm3359, %v3334, %v3114
        %v3368 = vsel %vm3359, %v3335, %v3116
        %v3369 = vsel %vm3359, %v3336, %v3118
        %v3370 = vsel %vm3359, %v3337, %v3120
        %v3371 = vsel %vm3359, %v3338, %v3122
        %v3372 = vsel %vm3359, %v3339, %v3124
        %v3373 = vsel %vm3359, %v3340, %v3126
        %v3374 = vsel %vm3359, %v3341, %v3128
        %v3375 = vsel %vm3359, %v3342, %v3130
        %v3376 = vsel %vm3359, %v3343, %v3132
        %v3377 = vsel %vm3359, %v3344, %v3134
        %v3378 = vsel %vm3359, %v3345, %v3136
        %v3379 = vsel %vm3359, %v3346, %v3138
        %v3380 = vsel %vm3359, %v3347, %v3140
        %v3381 = vsel %vm3359, %v3348, %v3142
        %v3382 = vsel %vm3359, %v3349, %v3144
        %v3383 = vsel %vm3359, %v3350, %v3146
        %v3384 = vsel %vm3359, %v3351, %v3148
        %v3385 = vsel %vm3359, %v3352, %v3150
        %v3386 = vsel %vm3359, %v3353, %v3152
        %v3387 = vsel %vm3359, %v3354, %v3154
        %v3388 = vsel %vm3359, %v3355, %v3156
        %v3389 = vsel %vm3359, %v3356, %v3158
        %v3390 = vsel %vm3359, %v3357, %v3160
        %v3391 = vsel %vm3359, %v3358, %v3162
        %v3392 = vld [vmem:[%s4] sm:$0xff]
        %v3393 = vld [vmem:[%s4 + $0x8] sm:$0xff]
        %v3394 = vld [vmem:[%s4 + $0x10] sm:$0xff]
        %v3395 = vld [vmem:[%s4 + $0x18] sm:$0xff]
        %v3396 = vld [vmem:[%s4 + $0x20] sm:$0xff]
        %v3397 = vld [vmem:[%s4 + $0x28] sm:$0xff]
        %v3398 = vld [vmem:[%s4 + $0x30] sm:$0xff]
        %v3399 = vld [vmem:[%s4 + $0x38] sm:$0xff]
        %v3400 = vld [vmem:[%s4 + $0x40] sm:$0xff]
        %v3401 = vld [vmem:[%s4 + $0x48] sm:$0xff]
        %v3402 = vld [vmem:[%s4 + $0x50] sm:$0xff]
        %v3403 = vld [vmem:[%s4 + $0x58] sm:$0xff]
        %v3404 = vld [vmem:[%s4 + $0x60] sm:$0xff]
        %v3405 = vld [vmem:[%s4 + $0x68] sm:$0xff]
        %v3406 = vld [vmem:[%s4 + $0x70] sm:$0xff]
        %v3407 = vld [vmem:[%s4 + $0x78] sm:$0xff]
        %v3408 = vld [vmem:[%s4 + $0x80] sm:$0xff]
        %v3409 = vld [vmem:[%s4 + $0x88] sm:$0xff]
        %v3410 = vld [vmem:[%s4 + $0x90] sm:$0xff]
        %v3411 = vld [vmem:[%s4 + $0x98] sm:$0xff]
        %v3412 = vld [vmem:[%s4 + $0xa0] sm:$0xff]
        %v3413 = vld [vmem:[%s4 + $0xa8] sm:$0xff]
        %v3414 = vld [vmem:[%s4 + $0xb0] sm:$0xff]
        %v3415 = vld [vmem:[%s4 + $0xb8] sm:$0xff]
        %v3416 = vld [vmem:[%s4 + $0xc0] sm:$0xf]
        %vm3417 = vcmask 556032
        %v3419 = vsel %vm3417, %v3360, 0
        %v3422 = vsel %vm3417, %v3361, 0
        %v3425 = vsel %vm3417, %v3362, 0
        %v3428 = vsel %vm3417, %v3363, 0
        %v3431 = vsel %vm3417, %v3364, 0
        %v3434 = vsel %vm3417, %v3365, 0
        %v3437 = vsel %vm3417, %v3366, 0
        %v3440 = vsel %vm3417, %v3367, 0
        %v3443 = vsel %vm3417, %v3368, 0
        %v3446 = vsel %vm3417, %v3369, 0
        %v3449 = vsel %vm3417, %v3370, 0
        %v3452 = vsel %vm3417, %v3371, 0
        %v3455 = vsel %vm3417, %v3372, 0
        %v3458 = vsel %vm3417, %v3373, 0
        %v3461 = vsel %vm3417, %v3374, 0
        %v3464 = vsel %vm3417, %v3375, 0
        %v3467 = vsel %vm3417, %v3376, 0
        %v3470 = vsel %vm3417, %v3377, 0
        %v3473 = vsel %vm3417, %v3378, 0
        %v3476 = vsel %vm3417, %v3379, 0
        %v3479 = vsel %vm3417, %v3380, 0
        %v3482 = vsel %vm3417, %v3381, 0
        %v3485 = vsel %vm3417, %v3382, 0
        %v3488 = vsel %vm3417, %v3383, 0
        %v3491 = vsel %vm3417, %v3384, 0
        %v3494 = vsel %vm3417, %v3385, 0
        %v3497 = vsel %vm3417, %v3386, 0
        %v3500 = vsel %vm3417, %v3387, 0
        %v3503 = vsel %vm3417, %v3388, 0
        %v3506 = vsel %vm3417, %v3389, 0
        %v3509 = vsel %vm3417, %v3390, 0
        %v3512 = vsel %vm3417, %v3391, 0
        %vm3514 = vcmask 1043456
        %v3516 = vsel %vm3514, %v3416, 0
        %3518 = vmatprep.subr.mxu0 0.0
        %3519 = vmatpush1.msra.mxu0 %v3407
        %3520 = vmatprep.subr.mxu0 0.0
        %3521 = vmatpush1.msra.mxu0 %v3406
        %3522 = vmatprep.subr.mxu0 0.0
        %3523 = vmatpush1.msra.mxu0 %v3405
        %3524 = vmatprep.subr.mxu0 0.0
        %3525 = vmatpush1.msra.mxu0 %v3404
        %3526 = vmatprep.subr.mxu0 0.0
        %3527 = vmatpush1.msra.mxu0 %v3403
        %3528 = vmatprep.subr.mxu0 0.0
        %3529 = vmatpush1.msra.mxu0 %v3402
        %3530 = vmatprep.subr.mxu0 0.0
        %3531 = vmatpush1.msra.mxu0 %v3401
        %3532 = vmatprep.subr.mxu0 0.0
        %3533 = vmatpush1.msra.mxu0 %v3400
        %3534 = vmatprep.subr.mxu0 0.0
        %3535 = vmatpush1.msra.mxu0 %v3399
        %3536 = vmatprep.subr.mxu0 0.0
        %3537 = vmatpush1.msra.mxu0 %v3398
        %3538 = vmatprep.subr.mxu0 0.0
        %3539 = vmatpush1.msra.mxu0 %v3397
        %3540 = vmatprep.subr.mxu0 0.0
        %3541 = vmatpush1.msra.mxu0 %v3396
        %3542 = vmatprep.subr.mxu0 0.0
        %3543 = vmatpush1.msra.mxu0 %v3395
        %3544 = vmatprep.subr.mxu0 0.0
        %3545 = vmatpush1.msra.mxu0 %v3394
        %3546 = vmatprep.subr.mxu0 0.0
        %3547 = vmatpush1.msra.mxu0 %v3393
        %3548 = vmatprep.subr.mxu0 0.0
        %3549 = vmatpush1.msra.mxu0 %v3392
        %3550 = vmatprep.subr.mxu0 0.0
        %3551 = vmatpush2.msra.mxu0 0.0
        %3552 = vmatprep.subr.mxu0 0.0
        %3553 = vmatpush2.msra.mxu0 0.0
        %3554 = vmatprep.subr.mxu0 0.0
        %3555 = vmatpush2.msra.mxu0 0.0
        %3556 = vmatprep.subr.mxu0 0.0
        %3557 = vmatpush2.msra.mxu0 0.0
        %3558 = vmatprep.subr.mxu0 0.0
        %3559 = vmatpush2.msra.mxu0 0.0
        %3560 = vmatprep.subr.mxu0 0.0
        %3561 = vmatpush2.msra.mxu0 0.0
        %3562 = vmatprep.subr.mxu0 0.0
        %3563 = vmatpush2.msra.mxu0 0.0
        %3564 = vmatprep.subr.mxu0 0.0
        %3565 = vmatpush2.msra.mxu0 %v3516
        %3566 = vmatprep.subr.mxu0 0.0
        %3567 = vmatpush2.msra.mxu0 %v3415
        %3568 = vmatprep.subr.mxu0 0.0
        %3569 = vmatpush2.msra.mxu0 %v3414
        %3570 = vmatprep.subr.mxu0 0.0
        %3571 = vmatpush2.msra.mxu0 %v3413
        %3572 = vmatprep.subr.mxu0 0.0
        %3573 = vmatpush2.msra.mxu0 %v3412
        %3574 = vmatprep.subr.mxu0 0.0
        %3575 = vmatpush2.msra.mxu0 %v3411
        %3576 = vmatprep.subr.mxu0 0.0
        %3577 = vmatpush2.msra.mxu0 %v3410
        %3578 = vmatprep.subr.mxu0 0.0
        %3579 = vmatpush2.msra.mxu0 %v3409
        %3580 = vmatprep.subr.mxu0 0.0
        %3581 = vmatpush2.msra.mxu0 %v3408
        %3582 = vmatprep.mubr.f32.mxu0 %v3419
        %3583 = vmatmul.mubr.f32.gmra.mxu0 %v3295
        %v3584 = vpop.f32.mrf.mxu0
        %v3585 = vadd.f32 0.0, %v3584
        %v3586 = vpop.f32.mrf.mxu0
        %3587 = vmatprep.mubr.f32.mxu0 %v3422
        %3588 = vmatmul.mubr.f32.gmra.mxu0 %v3296
        %v3589 = vpop.f32.mrf.mxu0
        %v3590 = vadd.f32 0.0, %v3589
        %v3591 = vpop.f32.mrf.mxu0
        %3592 = vmatprep.mubr.f32.mxu0 %v3425
        %3593 = vmatmul.mubr.f32.gmra.mxu0 %v3297
        %v3594 = vpop.f32.mrf.mxu0
        %v3595 = vadd.f32 0.0, %v3594
        %v3596 = vpop.f32.mrf.mxu0
        %3597 = vmatprep.mubr.f32.mxu0 %v3428
        %3598 = vmatmul.mubr.f32.gmra.mxu0 %v3298
        %v3599 = vpop.f32.mrf.mxu0
        %v3600 = vadd.f32 0.0, %v3599
        %v3601 = vpop.f32.mrf.mxu0
        %3602 = vmatprep.mubr.f32.mxu0 %v3431
        %3603 = vmatmul.mubr.f32.gmra.mxu0 %v3299
        %v3604 = vpop.f32.mrf.mxu0
        %v3605 = vadd.f32 0.0, %v3604
        %v3606 = vpop.f32.mrf.mxu0
        %3607 = vmatprep.mubr.f32.mxu0 %v3434
        %3608 = vmatmul.mubr.f32.gmra.mxu0 %v3300
        %v3609 = vpop.f32.mrf.mxu0
        %v3610 = vadd.f32 0.0, %v3609
        %v3611 = vpop.f32.mrf.mxu0
        %3612 = vmatprep.mubr.f32.mxu0 %v3437
        %3613 = vmatmul.mubr.f32.gmra.mxu0 %v3301
        %v3614 = vpop.f32.mrf.mxu0
        %v3615 = vadd.f32 0.0, %v3614
        %v3616 = vpop.f32.mrf.mxu0
        %3617 = vmatprep.mubr.f32.mxu0 %v3440
        %3618 = vmatmul.mubr.f32.gmra.mxu0 %v3302
        %v3619 = vpop.f32.mrf.mxu0
        %v3620 = vadd.f32 0.0, %v3619
        %v3621 = vpop.f32.mrf.mxu0
        %3622 = vmatprep.mubr.f32.mxu0 %v3443
        %3623 = vmatmul.mubr.f32.gmra.mxu0 %v3303
        %v3624 = vpop.f32.mrf.mxu0
        %v3625 = vadd.f32 0.0, %v3624
        %v3626 = vpop.f32.mrf.mxu0
        %3627 = vmatprep.mubr.f32.mxu0 %v3446
        %3628 = vmatmul.mubr.f32.gmra.mxu0 %v3304
        %v3629 = vpop.f32.mrf.mxu0
        %v3630 = vadd.f32 0.0, %v3629
        %v3631 = vpop.f32.mrf.mxu0
        %3632 = vmatprep.mubr.f32.mxu0 %v3449
        %3633 = vmatmul.mubr.f32.gmra.mxu0 %v3305
        %v3634 = vpop.f32.mrf.mxu0
        %v3635 = vadd.f32 0.0, %v3634
        %v3636 = vpop.f32.mrf.mxu0
        %3637 = vmatprep.mubr.f32.mxu0 %v3452
        %3638 = vmatmul.mubr.f32.gmra.mxu0 %v3306
        %v3639 = vpop.f32.mrf.mxu0
        %v3640 = vadd.f32 0.0, %v3639
        %v3641 = vpop.f32.mrf.mxu0
        %3642 = vmatprep.mubr.f32.mxu0 %v3455
        %3643 = vmatmul.mubr.f32.gmra.mxu0 %v3307
        %v3644 = vpop.f32.mrf.mxu0
        %v3645 = vadd.f32 0.0, %v3644
        %v3646 = vpop.f32.mrf.mxu0
        %3647 = vmatprep.mubr.f32.mxu0 %v3458
        %3648 = vmatmul.mubr.f32.gmra.mxu0 %v3308
        %v3649 = vpop.f32.mrf.mxu0
        %v3650 = vadd.f32 0.0, %v3649
        %v3651 = vpop.f32.mrf.mxu0
        %3652 = vmatprep.mubr.f32.mxu0 %v3461
        %3653 = vmatmul.mubr.f32.gmra.mxu0 %v3309
        %v3654 = vpop.f32.mrf.mxu0
        %v3655 = vadd.f32 0.0, %v3654
        %v3656 = vpop.f32.mrf.mxu0
        %3657 = vmatprep.mubr.f32.mxu0 %v3464
        %3658 = vmatmul.mubr.f32.gmra.mxu0 %v3310
        %v3659 = vpop.f32.mrf.mxu0
        %v3660 = vadd.f32 0.0, %v3659
        %v3661 = vpop.f32.mrf.mxu0
        %3662 = vmatprep.mubr.f32.mxu0 %v3467
        %3663 = vmatmul.mubr.f32.gmra.mxu0 %v3311
        %v3664 = vpop.f32.mrf.mxu0
        %v3665 = vadd.f32 0.0, %v3664
        %v3666 = vpop.f32.mrf.mxu0
        %3667 = vmatprep.mubr.f32.mxu0 %v3470
        %3668 = vmatmul.mubr.f32.gmra.mxu0 %v3312
        %v3669 = vpop.f32.mrf.mxu0
        %v3670 = vadd.f32 0.0, %v3669
        %v3671 = vpop.f32.mrf.mxu0
        %3672 = vmatprep.mubr.f32.mxu0 %v3473
        %3673 = vmatmul.mubr.f32.gmra.mxu0 %v3313
        %v3674 = vpop.f32.mrf.mxu0
        %v3675 = vadd.f32 0.0, %v3674
        %v3676 = vpop.f32.mrf.mxu0
        %3677 = vmatprep.mubr.f32.mxu0 %v3476
        %3678 = vmatmul.mubr.f32.gmra.mxu0 %v3314
        %v3679 = vpop.f32.mrf.mxu0
        %v3680 = vadd.f32 0.0, %v3679
        %v3681 = vpop.f32.mrf.mxu0
        %3682 = vmatprep.mubr.f32.mxu0 %v3479
        %3683 = vmatmul.mubr.f32.gmra.mxu0 %v3315
        %v3684 = vpop.f32.mrf.mxu0
        %v3685 = vadd.f32 0.0, %v3684
        %v3686 = vpop.f32.mrf.mxu0
        %3687 = vmatprep.mubr.f32.mxu0 %v3482
        %3688 = vmatmul.mubr.f32.gmra.mxu0 %v3316
        %v3689 = vpop.f32.mrf.mxu0
        %v3690 = vadd.f32 0.0, %v3689
        %v3691 = vpop.f32.mrf.mxu0
        %3692 = vmatprep.mubr.f32.mxu0 %v3485
        %3693 = vmatmul.mubr.f32.gmra.mxu0 %v3317
        %v3694 = vpop.f32.mrf.mxu0
        %v3695 = vadd.f32 0.0, %v3694
        %v3696 = vpop.f32.mrf.mxu0
        %3697 = vmatprep.mubr.f32.mxu0 %v3488
        %3698 = vmatmul.mubr.f32.gmra.mxu0 %v3318
        %v3699 = vpop.f32.mrf.mxu0
        %v3700 = vadd.f32 0.0, %v3699
        %v3701 = vpop.f32.mrf.mxu0
        %3702 = vmatprep.mubr.f32.mxu0 %v3491
        %3703 = vmatmul.mubr.f32.gmra.mxu0 %v3319
        %v3704 = vpop.f32.mrf.mxu0
        %v3705 = vadd.f32 0.0, %v3704
        %v3706 = vpop.f32.mrf.mxu0
        %3707 = vmatprep.mubr.f32.mxu0 %v3494
        %3708 = vmatmul.mubr.f32.gmra.mxu0 %v3320
        %v3709 = vpop.f32.mrf.mxu0
        %v3710 = vadd.f32 0.0, %v3709
        %v3711 = vpop.f32.mrf.mxu0
        %3712 = vmatprep.mubr.f32.mxu0 %v3497
        %3713 = vmatmul.mubr.f32.gmra.mxu0 %v3321
        %v3714 = vpop.f32.mrf.mxu0
        %v3715 = vadd.f32 0.0, %v3714
        %v3716 = vpop.f32.mrf.mxu0
        %3717 = vmatprep.mubr.f32.mxu0 %v3500
        %3718 = vmatmul.mubr.f32.gmra.mxu0 %v3322
        %v3719 = vpop.f32.mrf.mxu0
        %v3720 = vadd.f32 0.0, %v3719
        %v3721 = vpop.f32.mrf.mxu0
        %3722 = vmatprep.mubr.f32.mxu0 %v3503
        %3723 = vmatmul.mubr.f32.gmra.mxu0 %v3323
        %v3724 = vpop.f32.mrf.mxu0
        %v3725 = vadd.f32 0.0, %v3724
        %v3726 = vpop.f32.mrf.mxu0
        %3727 = vmatprep.mubr.f32.mxu0 %v3506
        %3728 = vmatmul.mubr.f32.gmra.mxu0 %v3324
        %v3729 = vpop.f32.mrf.mxu0
        %v3730 = vadd.f32 0.0, %v3729
        %v3731 = vpop.f32.mrf.mxu0
        %3732 = vmatprep.mubr.f32.mxu0 %v3509
        %3733 = vmatmul.mubr.f32.gmra.mxu0 %v3325
        %v3734 = vpop.f32.mrf.mxu0
        %v3735 = vadd.f32 0.0, %v3734
        %v3736 = vpop.f32.mrf.mxu0
        %3737 = vmatprep.mubr.f32.mxu0 %v3512
        %3738 = vmatmul.mubr.f32.gmra.mxu0 %v3326
        %v3739 = vpop.f32.mrf.mxu0
        %v3740 = vadd.f32 0.0, %v3739
        %v3741 = vpop.f32.mrf.mxu0
        %3742 = vdwg.mxu0
        %v3743 = vld [vmem:[%s5] sm:$0x1]
        %v3745 = vlaneseq
        %v3746 = vshrl.u32 %v3745, 7
        %v3747 = vsub.s32 0, %v3746
        %v3748 = vrot.slane %v3743, %v3747
        %v3750 = vmul.f32 %v3585, %v3748
        %v3751 = vmul.f32 %v3590, %v3748
        %v3752 = vmul.f32 %v3595, %v3748
        %v3753 = vmul.f32 %v3600, %v3748
        %v3754 = vmul.f32 %v3605, %v3748
        %v3755 = vmul.f32 %v3610, %v3748
        %v3756 = vmul.f32 %v3615, %v3748
        %v3757 = vmul.f32 %v3620, %v3748
        %v3758 = vmul.f32 %v3625, %v3748
        %v3759 = vmul.f32 %v3630, %v3748
        %v3760 = vmul.f32 %v3635, %v3748
        %v3761 = vmul.f32 %v3640, %v3748
        %v3762 = vmul.f32 %v3645, %v3748
        %v3763 = vmul.f32 %v3650, %v3748
        %v3764 = vmul.f32 %v3655, %v3748
        %v3765 = vmul.f32 %v3660, %v3748
        %v3766 = vmul.f32 %v3665, %v3748
        %v3767 = vmul.f32 %v3670, %v3748
        %v3768 = vmul.f32 %v3675, %v3748
        %v3769 = vmul.f32 %v3680, %v3748
        %v3770 = vmul.f32 %v3685, %v3748
        %v3771 = vmul.f32 %v3690, %v3748
        %v3772 = vmul.f32 %v3695, %v3748
        %v3773 = vmul.f32 %v3700, %v3748
        %v3774 = vmul.f32 %v3705, %v3748
        %v3775 = vmul.f32 %v3710, %v3748
        %v3776 = vmul.f32 %v3715, %v3748
        %v3777 = vmul.f32 %v3720, %v3748
        %v3778 = vmul.f32 %v3725, %v3748
        %v3779 = vmul.f32 %v3730, %v3748
        %v3780 = vmul.f32 %v3735, %v3748
        %v3781 = vmul.f32 %v3740, %v3748
        %v3782 = vld [vmem:[%s6] sm:$0x1]
        %v3784 = vlaneseq
        %v3785 = vshrl.u32 %v3784, 7
        %v3786 = vsub.s32 0, %v3785
        %v3787 = vrot.slane %v3782, %v3786
        %v3789 = vadd.f32 %v3750, %v3787
        %v3790 = vadd.f32 %v3751, %v3787
        %v3791 = vadd.f32 %v3752, %v3787
        %v3792 = vadd.f32 %v3753, %v3787
        %v3793 = vadd.f32 %v3754, %v3787
        %v3794 = vadd.f32 %v3755, %v3787
        %v3795 = vadd.f32 %v3756, %v3787
        %v3796 = vadd.f32 %v3757, %v3787
        %v3797 = vadd.f32 %v3758, %v3787
        %v3798 = vadd.f32 %v3759, %v3787
        %v3799 = vadd.f32 %v3760, %v3787
        %v3800 = vadd.f32 %v3761, %v3787
        %v3801 = vadd.f32 %v3762, %v3787
        %v3802 = vadd.f32 %v3763, %v3787
        %v3803 = vadd.f32 %v3764, %v3787
        %v3804 = vadd.f32 %v3765, %v3787
        %v3805 = vadd.f32 %v3766, %v3787
        %v3806 = vadd.f32 %v3767, %v3787
        %v3807 = vadd.f32 %v3768, %v3787
        %v3808 = vadd.f32 %v3769, %v3787
        %v3809 = vadd.f32 %v3770, %v3787
        %v3810 = vadd.f32 %v3771, %v3787
        %v3811 = vadd.f32 %v3772, %v3787
        %v3812 = vadd.f32 %v3773, %v3787
        %v3813 = vadd.f32 %v3774, %v3787
        %v3814 = vadd.f32 %v3775, %v3787
        %v3815 = vadd.f32 %v3776, %v3787
        %v3816 = vadd.f32 %v3777, %v3787
        %v3817 = vadd.f32 %v3778, %v3787
        %v3818 = vadd.f32 %v3779, %v3787
        %v3819 = vadd.f32 %v3780, %v3787
        %v3820 = vadd.f32 %v3781, %v3787
        %v3821 = vmax.f32 %v3789, 0.0
        %v3822 = vmax.f32 %v3790, 0.0
        %v3823 = vmax.f32 %v3791, 0.0
        %v3824 = vmax.f32 %v3792, 0.0
        %v3825 = vmax.f32 %v3793, 0.0
        %v3826 = vmax.f32 %v3794, 0.0
        %v3827 = vmax.f32 %v3795, 0.0
        %v3828 = vmax.f32 %v3796, 0.0
        %v3829 = vmax.f32 %v3797, 0.0
        %v3830 = vmax.f32 %v3798, 0.0
        %v3831 = vmax.f32 %v3799, 0.0
        %v3832 = vmax.f32 %v3800, 0.0
        %v3833 = vmax.f32 %v3801, 0.0
        %v3834 = vmax.f32 %v3802, 0.0
        %v3835 = vmax.f32 %v3803, 0.0
        %v3836 = vmax.f32 %v3804, 0.0
        %v3837 = vmax.f32 %v3805, 0.0
        %v3838 = vmax.f32 %v3806, 0.0
        %v3839 = vmax.f32 %v3807, 0.0
        %v3840 = vmax.f32 %v3808, 0.0
        %v3841 = vmax.f32 %v3809, 0.0
        %v3842 = vmax.f32 %v3810, 0.0
        %v3843 = vmax.f32 %v3811, 0.0
        %v3844 = vmax.f32 %v3812, 0.0
        %v3845 = vmax.f32 %v3813, 0.0
        %v3846 = vmax.f32 %v3814, 0.0
        %v3847 = vmax.f32 %v3815, 0.0
        %v3848 = vmax.f32 %v3816, 0.0
        %v3849 = vmax.f32 %v3817, 0.0
        %v3850 = vmax.f32 %v3818, 0.0
        %v3851 = vmax.f32 %v3819, 0.0
        %v3852 = vmax.f32 %v3820, 0.0
        %3885 = vrot.lane.b32.xlu0 %v3821, 112
        %v3886 = vpop.permute.xlu0 %3885
        %3887 = vrot.lane.b32.xlu0 %v3822, 112
        %v3888 = vpop.permute.xlu0 %3887
        %3889 = vrot.lane.b32.xlu0 %v3823, 112
        %v3890 = vpop.permute.xlu0 %3889
        %3891 = vrot.lane.b32.xlu0 %v3824, 112
        %v3892 = vpop.permute.xlu0 %3891
        %3893 = vrot.lane.b32.xlu0 %v3825, 112
        %v3894 = vpop.permute.xlu0 %3893
        %3895 = vrot.lane.b32.xlu0 %v3826, 112
        %v3896 = vpop.permute.xlu0 %3895
        %3897 = vrot.lane.b32.xlu0 %v3827, 112
        %v3898 = vpop.permute.xlu0 %3897
        %3899 = vrot.lane.b32.xlu0 %v3828, 112
        %v3900 = vpop.permute.xlu0 %3899
        %3901 = vrot.lane.b32.xlu0 %v3829, 112
        %v3902 = vpop.permute.xlu0 %3901
        %3903 = vrot.lane.b32.xlu0 %v3830, 112
        %v3904 = vpop.permute.xlu0 %3903
        %3905 = vrot.lane.b32.xlu0 %v3831, 112
        %v3906 = vpop.permute.xlu0 %3905
        %3907 = vrot.lane.b32.xlu0 %v3832, 112
        %v3908 = vpop.permute.xlu0 %3907
        %3909 = vrot.lane.b32.xlu0 %v3833, 112
        %v3910 = vpop.permute.xlu0 %3909
        %3911 = vrot.lane.b32.xlu0 %v3834, 112
        %v3912 = vpop.permute.xlu0 %3911
        %3913 = vrot.lane.b32.xlu0 %v3835, 112
        %v3914 = vpop.permute.xlu0 %3913
        %3915 = vrot.lane.b32.xlu0 %v3836, 112
        %v3916 = vpop.permute.xlu0 %3915
        %3917 = vrot.lane.b32.xlu0 %v3837, 112
        %v3918 = vpop.permute.xlu0 %3917
        %3919 = vrot.lane.b32.xlu0 %v3838, 112
        %v3920 = vpop.permute.xlu0 %3919
        %3921 = vrot.lane.b32.xlu0 %v3839, 112
        %v3922 = vpop.permute.xlu0 %3921
        %3923 = vrot.lane.b32.xlu0 %v3840, 112
        %v3924 = vpop.permute.xlu0 %3923
        %3925 = vrot.lane.b32.xlu0 %v3841, 112
        %v3926 = vpop.permute.xlu0 %3925
        %3927 = vrot.lane.b32.xlu0 %v3842, 112
        %v3928 = vpop.permute.xlu0 %3927
        %3929 = vrot.lane.b32.xlu0 %v3843, 112
        %v3930 = vpop.permute.xlu0 %3929
        %3931 = vrot.lane.b32.xlu0 %v3844, 112
        %v3932 = vpop.permute.xlu0 %3931
        %3933 = vrot.lane.b32.xlu0 %v3845, 112
        %v3934 = vpop.permute.xlu0 %3933
        %3935 = vrot.lane.b32.xlu0 %v3846, 112
        %v3936 = vpop.permute.xlu0 %3935
        %3937 = vrot.lane.b32.xlu0 %v3847, 112
        %v3938 = vpop.permute.xlu0 %3937
        %3939 = vrot.lane.b32.xlu0 %v3848, 112
        %v3940 = vpop.permute.xlu0 %3939
        %3941 = vrot.lane.b32.xlu0 %v3849, 112
        %v3942 = vpop.permute.xlu0 %3941
        %3943 = vrot.lane.b32.xlu0 %v3850, 112
        %v3944 = vpop.permute.xlu0 %3943
        %3945 = vrot.lane.b32.xlu0 %v3851, 112
        %v3946 = vpop.permute.xlu0 %3945
        %3947 = vrot.lane.b32.xlu0 %v3852, 112
        %v3948 = vpop.permute.xlu0 %3947
        %v3981 = vadd.f32 %v3821, %v3886
        %v3982 = vadd.f32 %v3822, %v3888
        %v3983 = vadd.f32 %v3823, %v3890
        %v3984 = vadd.f32 %v3824, %v3892
        %v3985 = vadd.f32 %v3825, %v3894
        %v3986 = vadd.f32 %v3826, %v3896
        %v3987 = vadd.f32 %v3827, %v3898
        %v3988 = vadd.f32 %v3828, %v3900
        %v3989 = vadd.f32 %v3829, %v3902
        %v3990 = vadd.f32 %v3830, %v3904
        %v3991 = vadd.f32 %v3831, %v3906
        %v3992 = vadd.f32 %v3832, %v3908
        %v3993 = vadd.f32 %v3833, %v3910
        %v3994 = vadd.f32 %v3834, %v3912
        %v3995 = vadd.f32 %v3835, %v3914
        %v3996 = vadd.f32 %v3836, %v3916
        %v3997 = vadd.f32 %v3837, %v3918
        %v3998 = vadd.f32 %v3838, %v3920
        %v3999 = vadd.f32 %v3839, %v3922
        %v4000 = vadd.f32 %v3840, %v3924
        %v4001 = vadd.f32 %v3841, %v3926
        %v4002 = vadd.f32 %v3842, %v3928
        %v4003 = vadd.f32 %v3843, %v3930
        %v4004 = vadd.f32 %v3844, %v3932
        %v4005 = vadd.f32 %v3845, %v3934
        %v4006 = vadd.f32 %v3846, %v3936
        %v4007 = vadd.f32 %v3847, %v3938
        %v4008 = vadd.f32 %v3848, %v3940
        %v4009 = vadd.f32 %v3849, %v3942
        %v4010 = vadd.f32 %v3850, %v3944
        %v4011 = vadd.f32 %v3851, %v3946
        %v4012 = vadd.f32 %v3852, %v3948
        %4013 = vrot.lane.b32.xlu0 %v3821, 96
        %v4014 = vpop.permute.xlu0 %4013
        %4015 = vrot.lane.b32.xlu0 %v3822, 96
        %v4016 = vpop.permute.xlu0 %4015
        %4017 = vrot.lane.b32.xlu0 %v3823, 96
        %v4018 = vpop.permute.xlu0 %4017
        %4019 = vrot.lane.b32.xlu0 %v3824, 96
        %v4020 = vpop.permute.xlu0 %4019
        %4021 = vrot.lane.b32.xlu0 %v3825, 96
        %v4022 = vpop.permute.xlu0 %4021
        %4023 = vrot.lane.b32.xlu0 %v3826, 96
        %v4024 = vpop.permute.xlu0 %4023
        %4025 = vrot.lane.b32.xlu0 %v3827, 96
        %v4026 = vpop.permute.xlu0 %4025
        %4027 = vrot.lane.b32.xlu0 %v3828, 96
        %v4028 = vpop.permute.xlu0 %4027
        %4029 = vrot.lane.b32.xlu0 %v3829, 96
        %v4030 = vpop.permute.xlu0 %4029
        %4031 = vrot.lane.b32.xlu0 %v3830, 96
        %v4032 = vpop.permute.xlu0 %4031
        %4033 = vrot.lane.b32.xlu0 %v3831, 96
        %v4034 = vpop.permute.xlu0 %4033
        %4035 = vrot.lane.b32.xlu0 %v3832, 96
        %v4036 = vpop.permute.xlu0 %4035
        %4037 = vrot.lane.b32.xlu0 %v3833, 96
        %v4038 = vpop.permute.xlu0 %4037
        %4039 = vrot.lane.b32.xlu0 %v3834, 96
        %v4040 = vpop.permute.xlu0 %4039
        %4041 = vrot.lane.b32.xlu0 %v3835, 96
        %v4042 = vpop.permute.xlu0 %4041
        %4043 = vrot.lane.b32.xlu0 %v3836, 96
        %v4044 = vpop.permute.xlu0 %4043
        %4045 = vrot.lane.b32.xlu0 %v3837, 96
        %v4046 = vpop.permute.xlu0 %4045
        %4047 = vrot.lane.b32.xlu0 %v3838, 96
        %v4048 = vpop.permute.xlu0 %4047
        %4049 = vrot.lane.b32.xlu0 %v3839, 96
        %v4050 = vpop.permute.xlu0 %4049
        %4051 = vrot.lane.b32.xlu0 %v3840, 96
        %v4052 = vpop.permute.xlu0 %4051
        %4053 = vrot.lane.b32.xlu0 %v3841, 96
        %v4054 = vpop.permute.xlu0 %4053
        %4055 = vrot.lane.b32.xlu0 %v3842, 96
        %v4056 = vpop.permute.xlu0 %4055
        %4057 = vrot.lane.b32.xlu0 %v3843, 96
        %v4058 = vpop.permute.xlu0 %4057
        %4059 = vrot.lane.b32.xlu0 %v3844, 96
        %v4060 = vpop.permute.xlu0 %4059
        %4061 = vrot.lane.b32.xlu0 %v3845, 96
        %v4062 = vpop.permute.xlu0 %4061
        %4063 = vrot.lane.b32.xlu0 %v3846, 96
        %v4064 = vpop.permute.xlu0 %4063
        %4065 = vrot.lane.b32.xlu0 %v3847, 96
        %v4066 = vpop.permute.xlu0 %4065
        %4067 = vrot.lane.b32.xlu0 %v3848, 96
        %v4068 = vpop.permute.xlu0 %4067
        %4069 = vrot.lane.b32.xlu0 %v3849, 96
        %v4070 = vpop.permute.xlu0 %4069
        %4071 = vrot.lane.b32.xlu0 %v3850, 96
        %v4072 = vpop.permute.xlu0 %4071
        %4073 = vrot.lane.b32.xlu0 %v3851, 96
        %v4074 = vpop.permute.xlu0 %4073
        %4075 = vrot.lane.b32.xlu0 %v3852, 96
        %v4076 = vpop.permute.xlu0 %4075
        %v4109 = vadd.f32 %v3981, %v4014
        %v4110 = vadd.f32 %v3982, %v4016
        %v4111 = vadd.f32 %v3983, %v4018
        %v4112 = vadd.f32 %v3984, %v4020
        %v4113 = vadd.f32 %v3985, %v4022
        %v4114 = vadd.f32 %v3986, %v4024
        %v4115 = vadd.f32 %v3987, %v4026
        %v4116 = vadd.f32 %v3988, %v4028
        %v4117 = vadd.f32 %v3989, %v4030
        %v4118 = vadd.f32 %v3990, %v4032
        %v4119 = vadd.f32 %v3991, %v4034
        %v4120 = vadd.f32 %v3992, %v4036
        %v4121 = vadd.f32 %v3993, %v4038
        %v4122 = vadd.f32 %v3994, %v4040
        %v4123 = vadd.f32 %v3995, %v4042
        %v4124 = vadd.f32 %v3996, %v4044
        %v4125 = vadd.f32 %v3997, %v4046
        %v4126 = vadd.f32 %v3998, %v4048
        %v4127 = vadd.f32 %v3999, %v4050
        %v4128 = vadd.f32 %v4000, %v4052
        %v4129 = vadd.f32 %v4001, %v4054
        %v4130 = vadd.f32 %v4002, %v4056
        %v4131 = vadd.f32 %v4003, %v4058
        %v4132 = vadd.f32 %v4004, %v4060
        %v4133 = vadd.f32 %v4005, %v4062
        %v4134 = vadd.f32 %v4006, %v4064
        %v4135 = vadd.f32 %v4007, %v4066
        %v4136 = vadd.f32 %v4008, %v4068
        %v4137 = vadd.f32 %v4009, %v4070
        %v4138 = vadd.f32 %v4010, %v4072
        %v4139 = vadd.f32 %v4011, %v4074
        %v4140 = vadd.f32 %v4012, %v4076
        %4141 = vrot.lane.b32.xlu0 %v3821, 80
        %v4142 = vpop.permute.xlu0 %4141
        %4143 = vrot.lane.b32.xlu0 %v3822, 80
        %v4144 = vpop.permute.xlu0 %4143
        %4145 = vrot.lane.b32.xlu0 %v3823, 80
        %v4146 = vpop.permute.xlu0 %4145
        %4147 = vrot.lane.b32.xlu0 %v3824, 80
        %v4148 = vpop.permute.xlu0 %4147
        %4149 = vrot.lane.b32.xlu0 %v3825, 80
        %v4150 = vpop.permute.xlu0 %4149
        %4151 = vrot.lane.b32.xlu0 %v3826, 80
        %v4152 = vpop.permute.xlu0 %4151
        %4153 = vrot.lane.b32.xlu0 %v3827, 80
        %v4154 = vpop.permute.xlu0 %4153
        %4155 = vrot.lane.b32.xlu0 %v3828, 80
        %v4156 = vpop.permute.xlu0 %4155
        %4157 = vrot.lane.b32.xlu0 %v3829, 80
        %v4158 = vpop.permute.xlu0 %4157
        %4159 = vrot.lane.b32.xlu0 %v3830, 80
        %v4160 = vpop.permute.xlu0 %4159
        %4161 = vrot.lane.b32.xlu0 %v3831, 80
        %v4162 = vpop.permute.xlu0 %4161
        %4163 = vrot.lane.b32.xlu0 %v3832, 80
        %v4164 = vpop.permute.xlu0 %4163
        %4165 = vrot.lane.b32.xlu0 %v3833, 80
        %v4166 = vpop.permute.xlu0 %4165
        %4167 = vrot.lane.b32.xlu0 %v3834, 80
        %v4168 = vpop.permute.xlu0 %4167
        %4169 = vrot.lane.b32.xlu0 %v3835, 80
        %v4170 = vpop.permute.xlu0 %4169
        %4171 = vrot.lane.b32.xlu0 %v3836, 80
        %v4172 = vpop.permute.xlu0 %4171
        %4173 = vrot.lane.b32.xlu0 %v3837, 80
        %v4174 = vpop.permute.xlu0 %4173
        %4175 = vrot.lane.b32.xlu0 %v3838, 80
        %v4176 = vpop.permute.xlu0 %4175
        %4177 = vrot.lane.b32.xlu0 %v3839, 80
        %v4178 = vpop.permute.xlu0 %4177
        %4179 = vrot.lane.b32.xlu0 %v3840, 80
        %v4180 = vpop.permute.xlu0 %4179
        %4181 = vrot.lane.b32.xlu0 %v3841, 80
        %v4182 = vpop.permute.xlu0 %4181
        %4183 = vrot.lane.b32.xlu0 %v3842, 80
        %v4184 = vpop.permute.xlu0 %4183
        %4185 = vrot.lane.b32.xlu0 %v3843, 80
        %v4186 = vpop.permute.xlu0 %4185
        %4187 = vrot.lane.b32.xlu0 %v3844, 80
        %v4188 = vpop.permute.xlu0 %4187
        %4189 = vrot.lane.b32.xlu0 %v3845, 80
        %v4190 = vpop.permute.xlu0 %4189
        %4191 = vrot.lane.b32.xlu0 %v3846, 80
        %v4192 = vpop.permute.xlu0 %4191
        %4193 = vrot.lane.b32.xlu0 %v3847, 80
        %v4194 = vpop.permute.xlu0 %4193
        %4195 = vrot.lane.b32.xlu0 %v3848, 80
        %v4196 = vpop.permute.xlu0 %4195
        %4197 = vrot.lane.b32.xlu0 %v3849, 80
        %v4198 = vpop.permute.xlu0 %4197
        %4199 = vrot.lane.b32.xlu0 %v3850, 80
        %v4200 = vpop.permute.xlu0 %4199
        %4201 = vrot.lane.b32.xlu0 %v3851, 80
        %v4202 = vpop.permute.xlu0 %4201
        %4203 = vrot.lane.b32.xlu0 %v3852, 80
        %v4204 = vpop.permute.xlu0 %4203
        %v4237 = vadd.f32 %v4109, %v4142
        %v4238 = vadd.f32 %v4110, %v4144
        %v4239 = vadd.f32 %v4111, %v4146
        %v4240 = vadd.f32 %v4112, %v4148
        %v4241 = vadd.f32 %v4113, %v4150
        %v4242 = vadd.f32 %v4114, %v4152
        %v4243 = vadd.f32 %v4115, %v4154
        %v4244 = vadd.f32 %v4116, %v4156
        %v4245 = vadd.f32 %v4117, %v4158
        %v4246 = vadd.f32 %v4118, %v4160
        %v4247 = vadd.f32 %v4119, %v4162
        %v4248 = vadd.f32 %v4120, %v4164
        %v4249 = vadd.f32 %v4121, %v4166
        %v4250 = vadd.f32 %v4122, %v4168
        %v4251 = vadd.f32 %v4123, %v4170
        %v4252 = vadd.f32 %v4124, %v4172
        %v4253 = vadd.f32 %v4125, %v4174
        %v4254 = vadd.f32 %v4126, %v4176
        %v4255 = vadd.f32 %v4127, %v4178
        %v4256 = vadd.f32 %v4128, %v4180
        %v4257 = vadd.f32 %v4129, %v4182
        %v4258 = vadd.f32 %v4130, %v4184
        %v4259 = vadd.f32 %v4131, %v4186
        %v4260 = vadd.f32 %v4132, %v4188
        %v4261 = vadd.f32 %v4133, %v4190
        %v4262 = vadd.f32 %v4134, %v4192
        %v4263 = vadd.f32 %v4135, %v4194
        %v4264 = vadd.f32 %v4136, %v4196
        %v4265 = vadd.f32 %v4137, %v4198
        %v4266 = vadd.f32 %v4138, %v4200
        %v4267 = vadd.f32 %v4139, %v4202
        %v4268 = vadd.f32 %v4140, %v4204
        %s4269 = scalar_lea.vmem [#allocation3], 64
        %4270 = vst.msk [vmem:[%s4269 + $0x8] sm:$0xff] %vm366, %v447
        %4271 = vst.msk [vmem:[%s4269 + $0x10] sm:$0xff] %vm366, %v448
        %4272 = vst.msk [vmem:[%s4269 + $0x28] sm:$0xff] %vm366, %v449
        %4273 = vst.msk [vmem:[%s4269 + $0x30] sm:$0xff] %vm366, %v450
        %4274 = vst.msk [vmem:[%s4269 + $0x48] sm:$0xff] %vm366, %v451
        %4275 = vst.msk [vmem:[%s4269 + $0x50] sm:$0xff] %vm366, %v452
        %4276 = vst.msk [vmem:[%s4269 + $0x68] sm:$0xff] %vm366, %v453
        %4277 = vst.msk [vmem:[%s4269 + $0x70] sm:$0xff] %vm366, %v454
        %4278 = vst.msk [vmem:[%s4269 + $0x88] sm:$0xff] %vm366, %v455
        %4279 = vst.msk [vmem:[%s4269 + $0x90] sm:$0xff] %vm366, %v456
        %4280 = vst.msk [vmem:[%s4269 + $0xa8] sm:$0xff] %vm366, %v457
        %4281 = vst.msk [vmem:[%s4269 + $0xb0] sm:$0xff] %vm366, %v458
        %4282 = vst.msk [vmem:[%s4269 + $0xc8] sm:$0xff] %vm366, %v459
        %4283 = vst.msk [vmem:[%s4269 + $0xd0] sm:$0xff] %vm366, %v460
        %4284 = vst.msk [vmem:[%s4269 + $0xe8] sm:$0xff] %vm366, %v461
        %4285 = vst.msk [vmem:[%s4269 + $0xf0] sm:$0xff] %vm366, %v462
        %4286 = vst.msk [vmem:[%s4269 + $0x108] sm:$0xff] %vm366, %v463
        %4287 = vst.msk [vmem:[%s4269 + $0x110] sm:$0xff] %vm366, %v464
        %4288 = vst.msk [vmem:[%s4269 + $0x128] sm:$0xff] %vm366, %v465
        %4289 = vst.msk [vmem:[%s4269 + $0x130] sm:$0xff] %vm366, %v466
        %4290 = vst.msk [vmem:[%s4269 + $0x148] sm:$0xff] %vm366, %v467
        %4291 = vst.msk [vmem:[%s4269 + $0x150] sm:$0xff] %vm366, %v468
        %4292 = vst.msk [vmem:[%s4269 + $0x168] sm:$0xff] %vm366, %v469
        %4293 = vst.msk [vmem:[%s4269 + $0x170] sm:$0xff] %vm366, %v470
        %4294 = vst.msk [vmem:[%s4269 + $0x188] sm:$0xff] %vm366, %v471
        %4295 = vst.msk [vmem:[%s4269 + $0x190] sm:$0xff] %vm366, %v472
        %4296 = vst.msk [vmem:[%s4269 + $0x1a8] sm:$0xff] %vm366, %v473
        %4297 = vst.msk [vmem:[%s4269 + $0x1b0] sm:$0xff] %vm366, %v474
        %4298 = vst.msk [vmem:[%s4269 + $0x1c8] sm:$0xff] %vm366, %v475
        %4299 = vst.msk [vmem:[%s4269 + $0x1d0] sm:$0xff] %vm366, %v476
        %4300 = vst.msk [vmem:[%s4269 + $0x1e8] sm:$0xff] %vm366, %v477
        %4301 = vst.msk [vmem:[%s4269 + $0x1f0] sm:$0xff] %vm366, %v478
        %v4302 = vld [vmem:[#allocation3] sm:$0xff]
        %v4303 = vld [vmem:[#allocation3 + $0x8] sm:$0xff]
        %v4304 = vld [vmem:[#allocation3 + $0x10] sm:$0xff]
        %v4305 = vld [vmem:[#allocation3 + $0x18] sm:$0xff]
        %v4306 = vld [vmem:[#allocation3 + $0x20] sm:$0xff]
        %v4307 = vld [vmem:[#allocation3 + $0x28] sm:$0xff]
        %v4308 = vld [vmem:[#allocation3 + $0x30] sm:$0xff]
        %v4309 = vld [vmem:[#allocation3 + $0x38] sm:$0xff]
        %v4310 = vld [vmem:[#allocation3 + $0x40] sm:$0xff]
        %v4311 = vld [vmem:[#allocation3 + $0x48] sm:$0xff]
        %v4312 = vld [vmem:[#allocation3 + $0x50] sm:$0xff]
        %v4313 = vld [vmem:[#allocation3 + $0x58] sm:$0xff]
        %v4314 = vld [vmem:[#allocation3 + $0x60] sm:$0xff]
        %v4315 = vld [vmem:[#allocation3 + $0x68] sm:$0xff]
        %v4316 = vld [vmem:[#allocation3 + $0x70] sm:$0xff]
        %v4317 = vld [vmem:[#allocation3 + $0x78] sm:$0xff]
        %v4318 = vld [vmem:[#allocation3 + $0x80] sm:$0xff]
        %v4319 = vld [vmem:[#allocation3 + $0x88] sm:$0xff]
        %v4320 = vld [vmem:[#allocation3 + $0x90] sm:$0xff]
        %v4321 = vld [vmem:[#allocation3 + $0x98] sm:$0xff]
        %v4322 = vld [vmem:[#allocation3 + $0xa0] sm:$0xff]
        %v4323 = vld [vmem:[#allocation3 + $0xa8] sm:$0xff]
        %v4324 = vld [vmem:[#allocation3 + $0xb0] sm:$0xff]
        %v4325 = vld [vmem:[#allocation3 + $0xb8] sm:$0xff]
        %v4326 = vld [vmem:[#allocation3 + $0xc0] sm:$0xff]
        %v4327 = vld [vmem:[#allocation3 + $0xc8] sm:$0xff]
        %v4328 = vld [vmem:[#allocation3 + $0xd0] sm:$0xff]
        %v4329 = vld [vmem:[#allocation3 + $0xd8] sm:$0xff]
        %v4330 = vld [vmem:[#allocation3 + $0xe0] sm:$0xff]
        %v4331 = vld [vmem:[#allocation3 + $0xe8] sm:$0xff]
        %v4332 = vld [vmem:[#allocation3 + $0xf0] sm:$0xff]
        %v4333 = vld [vmem:[#allocation3 + $0xf8] sm:$0xff]
        %v4334 = vld [vmem:[#allocation3 + $0x100] sm:$0xff]
        %v4335 = vld [vmem:[#allocation3 + $0x108] sm:$0xff]
        %v4336 = vld [vmem:[#allocation3 + $0x110] sm:$0xff]
        %v4337 = vld [vmem:[#allocation3 + $0x118] sm:$0xff]
        %v4338 = vld [vmem:[#allocation3 + $0x120] sm:$0xff]
        %v4339 = vld [vmem:[#allocation3 + $0x128] sm:$0xff]
        %v4340 = vld [vmem:[#allocation3 + $0x130] sm:$0xff]
        %v4341 = vld [vmem:[#allocation3 + $0x138] sm:$0xff]
        %v4342 = vld [vmem:[#allocation3 + $0x140] sm:$0xff]
        %v4343 = vld [vmem:[#allocation3 + $0x148] sm:$0xff]
        %v4344 = vld [vmem:[#allocation3 + $0x150] sm:$0xff]
        %v4345 = vld [vmem:[#allocation3 + $0x158] sm:$0xff]
        %v4346 = vld [vmem:[#allocation3 + $0x160] sm:$0xff]
        %v4347 = vld [vmem:[#allocation3 + $0x168] sm:$0xff]
        %v4348 = vld [vmem:[#allocation3 + $0x170] sm:$0xff]
        %v4349 = vld [vmem:[#allocation3 + $0x178] sm:$0xff]
        %v4350 = vld [vmem:[#allocation3 + $0x180] sm:$0xff]
        %v4351 = vld [vmem:[#allocation3 + $0x188] sm:$0xff]
        %v4352 = vld [vmem:[#allocation3 + $0x190] sm:$0xff]
        %v4353 = vld [vmem:[#allocation3 + $0x198] sm:$0xff]
        %v4354 = vld [vmem:[#allocation3 + $0x1a0] sm:$0xff]
        %v4355 = vld [vmem:[#allocation3 + $0x1a8] sm:$0xff]
        %v4356 = vld [vmem:[#allocation3 + $0x1b0] sm:$0xff]
        %v4357 = vld [vmem:[#allocation3 + $0x1b8] sm:$0xff]
        %v4358 = vld [vmem:[#allocation3 + $0x1c0] sm:$0xff]
        %v4359 = vld [vmem:[#allocation3 + $0x1c8] sm:$0xff]
        %v4360 = vld [vmem:[#allocation3 + $0x1d0] sm:$0xff]
        %v4361 = vld [vmem:[#allocation3 + $0x1d8] sm:$0xff]
        %v4362 = vld [vmem:[#allocation3 + $0x1e0] sm:$0xff]
        %v4363 = vld [vmem:[#allocation3 + $0x1e8] sm:$0xff]
        %v4364 = vld [vmem:[#allocation3 + $0x1f0] sm:$0xff]
        %v4365 = vld [vmem:[#allocation3 + $0x1f8] sm:$0xff]
        %s4366 = scalar_lea.vmem [#allocation3], 32
        %v4367 = vld [vmem:[%s4366] sm:$0xff]
        %v4368 = vld [vmem:[%s4366 + $0x8] sm:$0xff]
        %v4369 = vld [vmem:[%s4366 + $0x10] sm:$0xff]
        %v4370 = vld [vmem:[%s4366 + $0x18] sm:$0xff]
        %v4371 = vld [vmem:[%s4366 + $0x20] sm:$0xff]
        %v4372 = vld [vmem:[%s4366 + $0x28] sm:$0xff]
        %v4373 = vld [vmem:[%s4366 + $0x30] sm:$0xff]
        %v4374 = vld [vmem:[%s4366 + $0x38] sm:$0xff]
        %v4375 = vld [vmem:[%s4366 + $0x40] sm:$0xff]
        %v4376 = vld [vmem:[%s4366 + $0x48] sm:$0xff]
        %v4377 = vld [vmem:[%s4366 + $0x50] sm:$0xff]
        %v4378 = vld [vmem:[%s4366 + $0x58] sm:$0xff]
        %v4379 = vld [vmem:[%s4366 + $0x60] sm:$0xff]
        %v4380 = vld [vmem:[%s4366 + $0x68] sm:$0xff]
        %v4381 = vld [vmem:[%s4366 + $0x70] sm:$0xff]
        %v4382 = vld [vmem:[%s4366 + $0x78] sm:$0xff]
        %v4383 = vld [vmem:[%s4366 + $0x80] sm:$0xff]
        %v4384 = vld [vmem:[%s4366 + $0x88] sm:$0xff]
        %v4385 = vld [vmem:[%s4366 + $0x90] sm:$0xff]
        %v4386 = vld [vmem:[%s4366 + $0x98] sm:$0xff]
        %v4387 = vld [vmem:[%s4366 + $0xa0] sm:$0xff]
        %v4388 = vld [vmem:[%s4366 + $0xa8] sm:$0xff]
        %v4389 = vld [vmem:[%s4366 + $0xb0] sm:$0xff]
        %v4390 = vld [vmem:[%s4366 + $0xb8] sm:$0xff]
        %v4391 = vld [vmem:[%s4366 + $0xc0] sm:$0xff]
        %v4392 = vld [vmem:[%s4366 + $0xc8] sm:$0xff]
        %v4393 = vld [vmem:[%s4366 + $0xd0] sm:$0xff]
        %v4394 = vld [vmem:[%s4366 + $0xd8] sm:$0xff]
        %v4395 = vld [vmem:[%s4366 + $0xe0] sm:$0xff]
        %v4396 = vld [vmem:[%s4366 + $0xe8] sm:$0xff]
        %v4397 = vld [vmem:[%s4366 + $0xf0] sm:$0xff]
        %v4398 = vld [vmem:[%s4366 + $0xf8] sm:$0xff]
        %v4399 = vld [vmem:[%s4366 + $0x100] sm:$0xff]
        %v4400 = vld [vmem:[%s4366 + $0x108] sm:$0xff]
        %v4401 = vld [vmem:[%s4366 + $0x110] sm:$0xff]
        %v4402 = vld [vmem:[%s4366 + $0x118] sm:$0xff]
        %v4403 = vld [vmem:[%s4366 + $0x120] sm:$0xff]
        %v4404 = vld [vmem:[%s4366 + $0x128] sm:$0xff]
        %v4405 = vld [vmem:[%s4366 + $0x130] sm:$0xff]
        %v4406 = vld [vmem:[%s4366 + $0x138] sm:$0xff]
        %v4407 = vld [vmem:[%s4366 + $0x140] sm:$0xff]
        %v4408 = vld [vmem:[%s4366 + $0x148] sm:$0xff]
        %v4409 = vld [vmem:[%s4366 + $0x150] sm:$0xff]
        %v4410 = vld [vmem:[%s4366 + $0x158] sm:$0xff]
        %v4411 = vld [vmem:[%s4366 + $0x160] sm:$0xff]
        %v4412 = vld [vmem:[%s4366 + $0x168] sm:$0xff]
        %v4413 = vld [vmem:[%s4366 + $0x170] sm:$0xff]
        %v4414 = vld [vmem:[%s4366 + $0x178] sm:$0xff]
        %v4415 = vld [vmem:[%s4366 + $0x180] sm:$0xff]
        %v4416 = vld [vmem:[%s4366 + $0x188] sm:$0xff]
        %v4417 = vld [vmem:[%s4366 + $0x190] sm:$0xff]
        %v4418 = vld [vmem:[%s4366 + $0x198] sm:$0xff]
        %v4419 = vld [vmem:[%s4366 + $0x1a0] sm:$0xff]
        %v4420 = vld [vmem:[%s4366 + $0x1a8] sm:$0xff]
        %v4421 = vld [vmem:[%s4366 + $0x1b0] sm:$0xff]
        %v4422 = vld [vmem:[%s4366 + $0x1b8] sm:$0xff]
        %v4423 = vld [vmem:[%s4366 + $0x1c0] sm:$0xff]
        %v4424 = vld [vmem:[%s4366 + $0x1c8] sm:$0xff]
        %v4425 = vld [vmem:[%s4366 + $0x1d0] sm:$0xff]
        %v4426 = vld [vmem:[%s4366 + $0x1d8] sm:$0xff]
        %v4427 = vld [vmem:[%s4366 + $0x1e0] sm:$0xff]
        %v4428 = vld [vmem:[%s4366 + $0x1e8] sm:$0xff]
        %v4429 = vld [vmem:[%s4366 + $0x1f0] sm:$0xff]
        %v4430 = vld [vmem:[%s4366 + $0x1f8] sm:$0xff]
        %v4431 = vld [vmem:[%s4269] sm:$0xff]
        %v4432 = vld [vmem:[%s4269 + $0x8] sm:$0xff]
        %v4433 = vld [vmem:[%s4269 + $0x10] sm:$0xff]
        %v4434 = vld [vmem:[%s4269 + $0x18] sm:$0xff]
        %v4435 = vld [vmem:[%s4269 + $0x20] sm:$0xff]
        %v4436 = vld [vmem:[%s4269 + $0x28] sm:$0xff]
        %v4437 = vld [vmem:[%s4269 + $0x30] sm:$0xff]
        %v4438 = vld [vmem:[%s4269 + $0x38] sm:$0xff]
        %v4439 = vld [vmem:[%s4269 + $0x40] sm:$0xff]
        %v4440 = vld [vmem:[%s4269 + $0x48] sm:$0xff]
        %v4441 = vld [vmem:[%s4269 + $0x50] sm:$0xff]
        %v4442 = vld [vmem:[%s4269 + $0x58] sm:$0xff]
        %v4443 = vld [vmem:[%s4269 + $0x60] sm:$0xff]
        %v4444 = vld [vmem:[%s4269 + $0x68] sm:$0xff]
        %v4445 = vld [vmem:[%s4269 + $0x70] sm:$0xff]
        %v4446 = vld [vmem:[%s4269 + $0x78] sm:$0xff]
        %v4447 = vld [vmem:[%s4269 + $0x80] sm:$0xff]
        %v4448 = vld [vmem:[%s4269 + $0x88] sm:$0xff]
        %v4449 = vld [vmem:[%s4269 + $0x90] sm:$0xff]
        %v4450 = vld [vmem:[%s4269 + $0x98] sm:$0xff]
        %v4451 = vld [vmem:[%s4269 + $0xa0] sm:$0xff]
        %v4452 = vld [vmem:[%s4269 + $0xa8] sm:$0xff]
        %v4453 = vld [vmem:[%s4269 + $0xb0] sm:$0xff]
        %v4454 = vld [vmem:[%s4269 + $0xb8] sm:$0xff]
        %v4455 = vld [vmem:[%s4269 + $0xc0] sm:$0xff]
        %v4456 = vld [vmem:[%s4269 + $0xc8] sm:$0xff]
        %v4457 = vld [vmem:[%s4269 + $0xd0] sm:$0xff]
        %v4458 = vld [vmem:[%s4269 + $0xd8] sm:$0xff]
        %v4459 = vld [vmem:[%s4269 + $0xe0] sm:$0xff]
        %v4460 = vld [vmem:[%s4269 + $0xe8] sm:$0xff]
        %v4461 = vld [vmem:[%s4269 + $0xf0] sm:$0xff]
        %v4462 = vld [vmem:[%s4269 + $0xf8] sm:$0xff]
        %v4463 = vld [vmem:[%s4269 + $0x100] sm:$0xff]
        %v4464 = vld [vmem:[%s4269 + $0x108] sm:$0xff]
        %v4465 = vld [vmem:[%s4269 + $0x110] sm:$0xff]
        %v4466 = vld [vmem:[%s4269 + $0x118] sm:$0xff]
        %v4467 = vld [vmem:[%s4269 + $0x120] sm:$0xff]
        %v4468 = vld [vmem:[%s4269 + $0x128] sm:$0xff]
        %v4469 = vld [vmem:[%s4269 + $0x130] sm:$0xff]
        %v4470 = vld [vmem:[%s4269 + $0x138] sm:$0xff]
        %v4471 = vld [vmem:[%s4269 + $0x140] sm:$0xff]
        %v4472 = vld [vmem:[%s4269 + $0x148] sm:$0xff]
        %v4473 = vld [vmem:[%s4269 + $0x150] sm:$0xff]
        %v4474 = vld [vmem:[%s4269 + $0x158] sm:$0xff]
        %v4475 = vld [vmem:[%s4269 + $0x160] sm:$0xff]
        %v4476 = vld [vmem:[%s4269 + $0x168] sm:$0xff]
        %v4477 = vld [vmem:[%s4269 + $0x170] sm:$0xff]
        %v4478 = vld [vmem:[%s4269 + $0x178] sm:$0xff]
        %v4479 = vld [vmem:[%s4269 + $0x180] sm:$0xff]
        %v4480 = vld [vmem:[%s4269 + $0x188] sm:$0xff]
        %v4481 = vld [vmem:[%s4269 + $0x190] sm:$0xff]
        %v4482 = vld [vmem:[%s4269 + $0x198] sm:$0xff]
        %v4483 = vld [vmem:[%s4269 + $0x1a0] sm:$0xff]
        %v4484 = vld [vmem:[%s4269 + $0x1a8] sm:$0xff]
        %v4485 = vld [vmem:[%s4269 + $0x1b0] sm:$0xff]
        %v4486 = vld [vmem:[%s4269 + $0x1b8] sm:$0xff]
        %v4487 = vld [vmem:[%s4269 + $0x1c0] sm:$0xff]
        %v4488 = vld [vmem:[%s4269 + $0x1c8] sm:$0xff]
        %v4489 = vld [vmem:[%s4269 + $0x1d0] sm:$0xff]
        %v4490 = vld [vmem:[%s4269 + $0x1d8] sm:$0xff]
        %v4491 = vld [vmem:[%s4269 + $0x1e0] sm:$0xff]
        %v4492 = vld [vmem:[%s4269 + $0x1e8] sm:$0xff]
        %v4493 = vld [vmem:[%s4269 + $0x1f0] sm:$0xff]
        %v4494 = vld [vmem:[%s4269 + $0x1f8] sm:$0xff]
        %s4495 = scalar_lea.vmem [#allocation3], 96
        %v4496 = vld [vmem:[%s4495] sm:$0xff]
        %v4497 = vld [vmem:[%s4495 + $0x8] sm:$0xff]
        %v4498 = vld [vmem:[%s4495 + $0x10] sm:$0xff]
        %v4499 = vld [vmem:[%s4495 + $0x18] sm:$0xff]
        %v4500 = vld [vmem:[%s4495 + $0x20] sm:$0xff]
        %v4501 = vld [vmem:[%s4495 + $0x28] sm:$0xff]
        %v4502 = vld [vmem:[%s4495 + $0x30] sm:$0xff]
        %v4503 = vld [vmem:[%s4495 + $0x38] sm:$0xff]
        %v4504 = vld [vmem:[%s4495 + $0x40] sm:$0xff]
        %v4505 = vld [vmem:[%s4495 + $0x48] sm:$0xff]
        %v4506 = vld [vmem:[%s4495 + $0x50] sm:$0xff]
        %v4507 = vld [vmem:[%s4495 + $0x58] sm:$0xff]
        %v4508 = vld [vmem:[%s4495 + $0x60] sm:$0xff]
        %v4509 = vld [vmem:[%s4495 + $0x68] sm:$0xff]
        %v4510 = vld [vmem:[%s4495 + $0x70] sm:$0xff]
        %v4511 = vld [vmem:[%s4495 + $0x78] sm:$0xff]
        %v4512 = vld [vmem:[%s4495 + $0x80] sm:$0xff]
        %v4513 = vld [vmem:[%s4495 + $0x88] sm:$0xff]
        %v4514 = vld [vmem:[%s4495 + $0x90] sm:$0xff]
        %v4515 = vld [vmem:[%s4495 + $0x98] sm:$0xff]
        %v4516 = vld [vmem:[%s4495 + $0xa0] sm:$0xff]
        %v4517 = vld [vmem:[%s4495 + $0xa8] sm:$0xff]
        %v4518 = vld [vmem:[%s4495 + $0xb0] sm:$0xff]
        %v4519 = vld [vmem:[%s4495 + $0xb8] sm:$0xff]
        %v4520 = vld [vmem:[%s4495 + $0xc0] sm:$0xff]
        %v4521 = vld [vmem:[%s4495 + $0xc8] sm:$0xff]
        %v4522 = vld [vmem:[%s4495 + $0xd0] sm:$0xff]
        %v4523 = vld [vmem:[%s4495 + $0xd8] sm:$0xff]
        %v4524 = vld [vmem:[%s4495 + $0xe0] sm:$0xff]
        %v4525 = vld [vmem:[%s4495 + $0xe8] sm:$0xff]
        %v4526 = vld [vmem:[%s4495 + $0xf0] sm:$0xff]
        %v4527 = vld [vmem:[%s4495 + $0xf8] sm:$0xff]
        %v4528 = vld [vmem:[%s4495 + $0x100] sm:$0xff]
        %v4529 = vld [vmem:[%s4495 + $0x108] sm:$0xff]
        %v4530 = vld [vmem:[%s4495 + $0x110] sm:$0xff]
        %v4531 = vld [vmem:[%s4495 + $0x118] sm:$0xff]
        %v4532 = vld [vmem:[%s4495 + $0x120] sm:$0xff]
        %v4533 = vld [vmem:[%s4495 + $0x128] sm:$0xff]
        %v4534 = vld [vmem:[%s4495 + $0x130] sm:$0xff]
        %v4535 = vld [vmem:[%s4495 + $0x138] sm:$0xff]
        %v4536 = vld [vmem:[%s4495 + $0x140] sm:$0xff]
        %v4537 = vld [vmem:[%s4495 + $0x148] sm:$0xff]
        %v4538 = vld [vmem:[%s4495 + $0x150] sm:$0xff]
        %v4539 = vld [vmem:[%s4495 + $0x158] sm:$0xff]
        %v4540 = vld [vmem:[%s4495 + $0x160] sm:$0xff]
        %v4541 = vld [vmem:[%s4495 + $0x168] sm:$0xff]
        %v4542 = vld [vmem:[%s4495 + $0x170] sm:$0xff]
        %v4543 = vld [vmem:[%s4495 + $0x178] sm:$0xff]
        %v4544 = vld [vmem:[%s4495 + $0x180] sm:$0xff]
        %v4545 = vld [vmem:[%s4495 + $0x188] sm:$0xff]
        %v4546 = vld [vmem:[%s4495 + $0x190] sm:$0xff]
        %v4547 = vld [vmem:[%s4495 + $0x198] sm:$0xff]
        %v4548 = vld [vmem:[%s4495 + $0x1a0] sm:$0xff]
        %v4549 = vld [vmem:[%s4495 + $0x1a8] sm:$0xff]
        %v4550 = vld [vmem:[%s4495 + $0x1b0] sm:$0xff]
        %v4551 = vld [vmem:[%s4495 + $0x1b8] sm:$0xff]
        %v4552 = vld [vmem:[%s4495 + $0x1c0] sm:$0xff]
        %v4553 = vld [vmem:[%s4495 + $0x1c8] sm:$0xff]
        %v4554 = vld [vmem:[%s4495 + $0x1d0] sm:$0xff]
        %v4555 = vld [vmem:[%s4495 + $0x1d8] sm:$0xff]
        %v4556 = vld [vmem:[%s4495 + $0x1e0] sm:$0xff]
        %v4557 = vld [vmem:[%s4495 + $0x1e8] sm:$0xff]
        %v4558 = vld [vmem:[%s4495 + $0x1f0] sm:$0xff]
        %v4559 = vld [vmem:[%s4495 + $0x1f8] sm:$0xff]
        %s4560 = scalar_lea.vmem [#allocation3], 128
        %v4561 = vld [vmem:[%s4560] sm:$0xff]
        %v4562 = vld [vmem:[%s4560 + $0x8] sm:$0xff]
        %v4563 = vld [vmem:[%s4560 + $0x10] sm:$0xff]
        %v4564 = vld [vmem:[%s4560 + $0x18] sm:$0xff]
        %v4565 = vld [vmem:[%s4560 + $0x20] sm:$0xff]
        %v4566 = vld [vmem:[%s4560 + $0x28] sm:$0xff]
        %v4567 = vld [vmem:[%s4560 + $0x30] sm:$0xff]
        %v4568 = vld [vmem:[%s4560 + $0x38] sm:$0xff]
        %v4569 = vld [vmem:[%s4560 + $0x40] sm:$0xff]
        %v4570 = vld [vmem:[%s4560 + $0x48] sm:$0xff]
        %v4571 = vld [vmem:[%s4560 + $0x50] sm:$0xff]
        %v4572 = vld [vmem:[%s4560 + $0x58] sm:$0xff]
        %v4573 = vld [vmem:[%s4560 + $0x60] sm:$0xff]
        %v4574 = vld [vmem:[%s4560 + $0x68] sm:$0xff]
        %v4575 = vld [vmem:[%s4560 + $0x70] sm:$0xff]
        %v4576 = vld [vmem:[%s4560 + $0x78] sm:$0xff]
        %v4577 = vld [vmem:[%s4560 + $0x80] sm:$0xff]
        %v4578 = vld [vmem:[%s4560 + $0x88] sm:$0xff]
        %v4579 = vld [vmem:[%s4560 + $0x90] sm:$0xff]
        %v4580 = vld [vmem:[%s4560 + $0x98] sm:$0xff]
        %v4581 = vld [vmem:[%s4560 + $0xa0] sm:$0xff]
        %v4582 = vld [vmem:[%s4560 + $0xa8] sm:$0xff]
        %v4583 = vld [vmem:[%s4560 + $0xb0] sm:$0xff]
        %v4584 = vld [vmem:[%s4560 + $0xb8] sm:$0xff]
        %v4585 = vld [vmem:[%s4560 + $0xc0] sm:$0xff]
        %v4586 = vld [vmem:[%s4560 + $0xc8] sm:$0xff]
        %v4587 = vld [vmem:[%s4560 + $0xd0] sm:$0xff]
        %v4588 = vld [vmem:[%s4560 + $0xd8] sm:$0xff]
        %v4589 = vld [vmem:[%s4560 + $0xe0] sm:$0xff]
        %v4590 = vld [vmem:[%s4560 + $0xe8] sm:$0xff]
        %v4591 = vld [vmem:[%s4560 + $0xf0] sm:$0xff]
        %v4592 = vld [vmem:[%s4560 + $0xf8] sm:$0xff]
        %v4593 = vld [vmem:[%s4560 + $0x100] sm:$0xff]
        %v4594 = vld [vmem:[%s4560 + $0x108] sm:$0xff]
        %v4595 = vld [vmem:[%s4560 + $0x110] sm:$0xff]
        %v4596 = vld [vmem:[%s4560 + $0x118] sm:$0xff]
        %v4597 = vld [vmem:[%s4560 + $0x120] sm:$0xff]
        %v4598 = vld [vmem:[%s4560 + $0x128] sm:$0xff]
        %v4599 = vld [vmem:[%s4560 + $0x130] sm:$0xff]
        %v4600 = vld [vmem:[%s4560 + $0x138] sm:$0xff]
        %v4601 = vld [vmem:[%s4560 + $0x140] sm:$0xff]
        %v4602 = vld [vmem:[%s4560 + $0x148] sm:$0xff]
        %v4603 = vld [vmem:[%s4560 + $0x150] sm:$0xff]
        %v4604 = vld [vmem:[%s4560 + $0x158] sm:$0xff]
        %v4605 = vld [vmem:[%s4560 + $0x160] sm:$0xff]
        %v4606 = vld [vmem:[%s4560 + $0x168] sm:$0xff]
        %v4607 = vld [vmem:[%s4560 + $0x170] sm:$0xff]
        %v4608 = vld [vmem:[%s4560 + $0x178] sm:$0xff]
        %v4609 = vld [vmem:[%s4560 + $0x180] sm:$0xff]
        %v4610 = vld [vmem:[%s4560 + $0x188] sm:$0xff]
        %v4611 = vld [vmem:[%s4560 + $0x190] sm:$0xff]
        %v4612 = vld [vmem:[%s4560 + $0x198] sm:$0xff]
        %v4613 = vld [vmem:[%s4560 + $0x1a0] sm:$0xff]
        %v4614 = vld [vmem:[%s4560 + $0x1a8] sm:$0xff]
        %v4615 = vld [vmem:[%s4560 + $0x1b0] sm:$0xff]
        %v4616 = vld [vmem:[%s4560 + $0x1b8] sm:$0xff]
        %v4617 = vld [vmem:[%s4560 + $0x1c0] sm:$0xff]
        %v4618 = vld [vmem:[%s4560 + $0x1c8] sm:$0xff]
        %v4619 = vld [vmem:[%s4560 + $0x1d0] sm:$0xff]
        %v4620 = vld [vmem:[%s4560 + $0x1d8] sm:$0xff]
        %v4621 = vld [vmem:[%s4560 + $0x1e0] sm:$0xff]
        %v4622 = vld [vmem:[%s4560 + $0x1e8] sm:$0xff]
        %v4623 = vld [vmem:[%s4560 + $0x1f0] sm:$0xff]
        %v4624 = vld [vmem:[%s4560 + $0x1f8] sm:$0xff]
        %v4625 = vmax.f32 %v4367, %v4431
        %v4626 = vmax.f32 %v4368, %v4432
        %v4627 = vmax.f32 %v4369, %v4433
        %v4628 = vmax.f32 %v4370, %v4434
        %v4629 = vmax.f32 %v4371, %v4435
        %v4630 = vmax.f32 %v4372, %v4436
        %v4631 = vmax.f32 %v4373, %v4437
        %v4632 = vmax.f32 %v4374, %v4438
        %v4633 = vmax.f32 %v4375, %v4439
        %v4634 = vmax.f32 %v4376, %v4440
        %v4635 = vmax.f32 %v4377, %v4441
        %v4636 = vmax.f32 %v4378, %v4442
        %v4637 = vmax.f32 %v4379, %v4443
        %v4638 = vmax.f32 %v4380, %v4444
        %v4639 = vmax.f32 %v4381, %v4445
        %v4640 = vmax.f32 %v4382, %v4446
        %v4641 = vmax.f32 %v4383, %v4447
        %v4642 = vmax.f32 %v4384, %v4448
        %v4643 = vmax.f32 %v4385, %v4449
        %v4644 = vmax.f32 %v4386, %v4450
        %v4645 = vmax.f32 %v4387, %v4451
        %v4646 = vmax.f32 %v4388, %v4452
        %v4647 = vmax.f32 %v4389, %v4453
        %v4648 = vmax.f32 %v4390, %v4454
        %v4649 = vmax.f32 %v4391, %v4455
        %v4650 = vmax.f32 %v4392, %v4456
        %v4651 = vmax.f32 %v4393, %v4457
        %v4652 = vmax.f32 %v4394, %v4458
        %v4653 = vmax.f32 %v4395, %v4459
        %v4654 = vmax.f32 %v4396, %v4460
        %v4655 = vmax.f32 %v4397, %v4461
        %v4656 = vmax.f32 %v4398, %v4462
        %v4657 = vmax.f32 %v4399, %v4463
        %v4658 = vmax.f32 %v4400, %v4464
        %v4659 = vmax.f32 %v4401, %v4465
        %v4660 = vmax.f32 %v4402, %v4466
        %v4661 = vmax.f32 %v4403, %v4467
        %v4662 = vmax.f32 %v4404, %v4468
        %v4663 = vmax.f32 %v4405, %v4469
        %v4664 = vmax.f32 %v4406, %v4470
        %v4665 = vmax.f32 %v4407, %v4471
        %v4666 = vmax.f32 %v4408, %v4472
        %v4667 = vmax.f32 %v4409, %v4473
        %v4668 = vmax.f32 %v4410, %v4474
        %v4669 = vmax.f32 %v4411, %v4475
        %v4670 = vmax.f32 %v4412, %v4476
        %v4671 = vmax.f32 %v4413, %v4477
        %v4672 = vmax.f32 %v4414, %v4478
        %v4673 = vmax.f32 %v4415, %v4479
        %v4674 = vmax.f32 %v4416, %v4480
        %v4675 = vmax.f32 %v4417, %v4481
        %v4676 = vmax.f32 %v4418, %v4482
        %v4677 = vmax.f32 %v4419, %v4483
        %v4678 = vmax.f32 %v4420, %v4484
        %v4679 = vmax.f32 %v4421, %v4485
        %v4680 = vmax.f32 %v4422, %v4486
        %v4681 = vmax.f32 %v4423, %v4487
        %v4682 = vmax.f32 %v4424, %v4488
        %v4683 = vmax.f32 %v4425, %v4489
        %v4684 = vmax.f32 %v4426, %v4490
        %v4685 = vmax.f32 %v4427, %v4491
        %v4686 = vmax.f32 %v4428, %v4492
        %v4687 = vmax.f32 %v4429, %v4493
        %v4688 = vmax.f32 %v4430, %v4494
        %v4689 = vmax.f32 %v4625, %v4496
        %v4690 = vmax.f32 %v4626, %v4497
        %v4691 = vmax.f32 %v4627, %v4498
        %v4692 = vmax.f32 %v4628, %v4499
        %v4693 = vmax.f32 %v4629, %v4500
        %v4694 = vmax.f32 %v4630, %v4501
        %v4695 = vmax.f32 %v4631, %v4502
        %v4696 = vmax.f32 %v4632, %v4503
        %v4697 = vmax.f32 %v4633, %v4504
        %v4698 = vmax.f32 %v4634, %v4505
        %v4699 = vmax.f32 %v4635, %v4506
        %v4700 = vmax.f32 %v4636, %v4507
        %v4701 = vmax.f32 %v4637, %v4508
        %v4702 = vmax.f32 %v4638, %v4509
        %v4703 = vmax.f32 %v4639, %v4510
        %v4704 = vmax.f32 %v4640, %v4511
        %v4705 = vmax.f32 %v4641, %v4512
        %v4706 = vmax.f32 %v4642, %v4513
        %v4707 = vmax.f32 %v4643, %v4514
        %v4708 = vmax.f32 %v4644, %v4515
        %v4709 = vmax.f32 %v4645, %v4516
        %v4710 = vmax.f32 %v4646, %v4517
        %v4711 = vmax.f32 %v4647, %v4518
        %v4712 = vmax.f32 %v4648, %v4519
        %v4713 = vmax.f32 %v4649, %v4520
        %v4714 = vmax.f32 %v4650, %v4521
        %v4715 = vmax.f32 %v4651, %v4522
        %v4716 = vmax.f32 %v4652, %v4523
        %v4717 = vmax.f32 %v4653, %v4524
        %v4718 = vmax.f32 %v4654, %v4525
        %v4719 = vmax.f32 %v4655, %v4526
        %v4720 = vmax.f32 %v4656, %v4527
        %v4721 = vmax.f32 %v4657, %v4528
        %v4722 = vmax.f32 %v4658, %v4529
        %v4723 = vmax.f32 %v4659, %v4530
        %v4724 = vmax.f32 %v4660, %v4531
        %v4725 = vmax.f32 %v4661, %v4532
        %v4726 = vmax.f32 %v4662, %v4533
        %v4727 = vmax.f32 %v4663, %v4534
        %v4728 = vmax.f32 %v4664, %v4535
        %v4729 = vmax.f32 %v4665, %v4536
        %v4730 = vmax.f32 %v4666, %v4537
        %v4731 = vmax.f32 %v4667, %v4538
        %v4732 = vmax.f32 %v4668, %v4539
        %v4733 = vmax.f32 %v4669, %v4540
        %v4734 = vmax.f32 %v4670, %v4541
        %v4735 = vmax.f32 %v4671, %v4542
        %v4736 = vmax.f32 %v4672, %v4543
        %v4737 = vmax.f32 %v4673, %v4544
        %v4738 = vmax.f32 %v4674, %v4545
        %v4739 = vmax.f32 %v4675, %v4546
        %v4740 = vmax.f32 %v4676, %v4547
        %v4741 = vmax.f32 %v4677, %v4548
        %v4742 = vmax.f32 %v4678, %v4549
        %v4743 = vmax.f32 %v4679, %v4550
        %v4744 = vmax.f32 %v4680, %v4551
        %v4745 = vmax.f32 %v4681, %v4552
        %v4746 = vmax.f32 %v4682, %v4553
        %v4747 = vmax.f32 %v4683, %v4554
        %v4748 = vmax.f32 %v4684, %v4555
        %v4749 = vmax.f32 %v4685, %v4556
        %v4750 = vmax.f32 %v4686, %v4557
        %v4751 = vmax.f32 %v4687, %v4558
        %v4752 = vmax.f32 %v4688, %v4559
        %v4753 = vmax.f32 %v4302, %v4689
        %v4754 = vmax.f32 %v4303, %v4690
        %v4755 = vmax.f32 %v4304, %v4691
        %v4756 = vmax.f32 %v4305, %v4692
        %v4757 = vmax.f32 %v4306, %v4693
        %v4758 = vmax.f32 %v4307, %v4694
        %v4759 = vmax.f32 %v4308, %v4695
        %v4760 = vmax.f32 %v4309, %v4696
        %v4761 = vmax.f32 %v4310, %v4697
        %v4762 = vmax.f32 %v4311, %v4698
        %v4763 = vmax.f32 %v4312, %v4699
        %v4764 = vmax.f32 %v4313, %v4700
        %v4765 = vmax.f32 %v4314, %v4701
        %v4766 = vmax.f32 %v4315, %v4702
        %v4767 = vmax.f32 %v4316, %v4703
        %v4768 = vmax.f32 %v4317, %v4704
        %v4769 = vmax.f32 %v4318, %v4705
        %v4770 = vmax.f32 %v4319, %v4706
        %v4771 = vmax.f32 %v4320, %v4707
        %v4772 = vmax.f32 %v4321, %v4708
        %v4773 = vmax.f32 %v4322, %v4709
        %v4774 = vmax.f32 %v4323, %v4710
        %v4775 = vmax.f32 %v4324, %v4711
        %v4776 = vmax.f32 %v4325, %v4712
        %v4777 = vmax.f32 %v4326, %v4713
        %v4778 = vmax.f32 %v4327, %v4714
        %v4779 = vmax.f32 %v4328, %v4715
        %v4780 = vmax.f32 %v4329, %v4716
        %v4781 = vmax.f32 %v4330, %v4717
        %v4782 = vmax.f32 %v4331, %v4718
        %v4783 = vmax.f32 %v4332, %v4719
        %v4784 = vmax.f32 %v4333, %v4720
        %v4785 = vmax.f32 %v4334, %v4721
        %v4786 = vmax.f32 %v4335, %v4722
        %v4787 = vmax.f32 %v4336, %v4723
        %v4788 = vmax.f32 %v4337, %v4724
        %v4789 = vmax.f32 %v4338, %v4725
        %v4790 = vmax.f32 %v4339, %v4726
        %v4791 = vmax.f32 %v4340, %v4727
        %v4792 = vmax.f32 %v4341, %v4728
        %v4793 = vmax.f32 %v4342, %v4729
        %v4794 = vmax.f32 %v4343, %v4730
        %v4795 = vmax.f32 %v4344, %v4731
        %v4796 = vmax.f32 %v4345, %v4732
        %v4797 = vmax.f32 %v4346, %v4733
        %v4798 = vmax.f32 %v4347, %v4734
        %v4799 = vmax.f32 %v4348, %v4735
        %v4800 = vmax.f32 %v4349, %v4736
        %v4801 = vmax.f32 %v4350, %v4737
        %v4802 = vmax.f32 %v4351, %v4738
        %v4803 = vmax.f32 %v4352, %v4739
        %v4804 = vmax.f32 %v4353, %v4740
        %v4805 = vmax.f32 %v4354, %v4741
        %v4806 = vmax.f32 %v4355, %v4742
        %v4807 = vmax.f32 %v4356, %v4743
        %v4808 = vmax.f32 %v4357, %v4744
        %v4809 = vmax.f32 %v4358, %v4745
        %v4810 = vmax.f32 %v4359, %v4746
        %v4811 = vmax.f32 %v4360, %v4747
        %v4812 = vmax.f32 %v4361, %v4748
        %v4813 = vmax.f32 %v4362, %v4749
        %v4814 = vmax.f32 %v4363, %v4750
        %v4815 = vmax.f32 %v4364, %v4751
        %v4816 = vmax.f32 %v4365, %v4752
        %v4817 = vmax.f32 %v4753, %v4561
        %v4818 = vmax.f32 %v4754, %v4562
        %v4819 = vmax.f32 %v4755, %v4563
        %v4820 = vmax.f32 %v4756, %v4564
        %v4821 = vmax.f32 %v4757, %v4565
        %v4822 = vmax.f32 %v4758, %v4566
        %v4823 = vmax.f32 %v4759, %v4567
        %v4824 = vmax.f32 %v4760, %v4568
        %v4825 = vmax.f32 %v4761, %v4569
        %v4826 = vmax.f32 %v4762, %v4570
        %v4827 = vmax.f32 %v4763, %v4571
        %v4828 = vmax.f32 %v4764, %v4572
        %v4829 = vmax.f32 %v4765, %v4573
        %v4830 = vmax.f32 %v4766, %v4574
        %v4831 = vmax.f32 %v4767, %v4575
        %v4832 = vmax.f32 %v4768, %v4576
        %v4833 = vmax.f32 %v4769, %v4577
        %v4834 = vmax.f32 %v4770, %v4578
        %v4835 = vmax.f32 %v4771, %v4579
        %v4836 = vmax.f32 %v4772, %v4580
        %v4837 = vmax.f32 %v4773, %v4581
        %v4838 = vmax.f32 %v4774, %v4582
        %v4839 = vmax.f32 %v4775, %v4583
        %v4840 = vmax.f32 %v4776, %v4584
        %v4841 = vmax.f32 %v4777, %v4585
        %v4842 = vmax.f32 %v4778, %v4586
        %v4843 = vmax.f32 %v4779, %v4587
        %v4844 = vmax.f32 %v4780, %v4588
        %v4845 = vmax.f32 %v4781, %v4589
        %v4846 = vmax.f32 %v4782, %v4590
        %v4847 = vmax.f32 %v4783, %v4591
        %v4848 = vmax.f32 %v4784, %v4592
        %v4849 = vmax.f32 %v4785, %v4593
        %v4850 = vmax.f32 %v4786, %v4594
        %v4851 = vmax.f32 %v4787, %v4595
        %v4852 = vmax.f32 %v4788, %v4596
        %v4853 = vmax.f32 %v4789, %v4597
        %v4854 = vmax.f32 %v4790, %v4598
        %v4855 = vmax.f32 %v4791, %v4599
        %v4856 = vmax.f32 %v4792, %v4600
        %v4857 = vmax.f32 %v4793, %v4601
        %v4858 = vmax.f32 %v4794, %v4602
        %v4859 = vmax.f32 %v4795, %v4603
        %v4860 = vmax.f32 %v4796, %v4604
        %v4861 = vmax.f32 %v4797, %v4605
        %v4862 = vmax.f32 %v4798, %v4606
        %v4863 = vmax.f32 %v4799, %v4607
        %v4864 = vmax.f32 %v4800, %v4608
        %v4865 = vmax.f32 %v4801, %v4609
        %v4866 = vmax.f32 %v4802, %v4610
        %v4867 = vmax.f32 %v4803, %v4611
        %v4868 = vmax.f32 %v4804, %v4612
        %v4869 = vmax.f32 %v4805, %v4613
        %v4870 = vmax.f32 %v4806, %v4614
        %v4871 = vmax.f32 %v4807, %v4615
        %v4872 = vmax.f32 %v4808, %v4616
        %v4873 = vmax.f32 %v4809, %v4617
        %v4874 = vmax.f32 %v4810, %v4618
        %v4875 = vmax.f32 %v4811, %v4619
        %v4876 = vmax.f32 %v4812, %v4620
        %v4877 = vmax.f32 %v4813, %v4621
        %v4878 = vmax.f32 %v4814, %v4622
        %v4879 = vmax.f32 %v4815, %v4623
        %v4880 = vmax.f32 %v4816, %v4624
        %vm4913 = vcmask 1046528
        %v4914 = vrot.slane %v4690, 1
        %v4915 = vrot.slane %v4691, 1
        %v4916 = vsel %vm4913, %v4914, %v4915
        %v4917 = vrot.slane %v4694, 1
        %v4918 = vrot.slane %v4695, 1
        %v4919 = vsel %vm4913, %v4917, %v4918
        %v4920 = vrot.slane %v4698, 1
        %v4921 = vrot.slane %v4699, 1
        %v4922 = vsel %vm4913, %v4920, %v4921
        %v4923 = vrot.slane %v4702, 1
        %v4924 = vrot.slane %v4703, 1
        %v4925 = vsel %vm4913, %v4923, %v4924
        %v4926 = vrot.slane %v4706, 1
        %v4927 = vrot.slane %v4707, 1
        %v4928 = vsel %vm4913, %v4926, %v4927
        %v4929 = vrot.slane %v4710, 1
        %v4930 = vrot.slane %v4711, 1
        %v4931 = vsel %vm4913, %v4929, %v4930
        %v4932 = vrot.slane %v4714, 1
        %v4933 = vrot.slane %v4715, 1
        %v4934 = vsel %vm4913, %v4932, %v4933
        %v4935 = vrot.slane %v4718, 1
        %v4936 = vrot.slane %v4719, 1
        %v4937 = vsel %vm4913, %v4935, %v4936
        %v4938 = vrot.slane %v4722, 1
        %v4939 = vrot.slane %v4723, 1
        %v4940 = vsel %vm4913, %v4938, %v4939
        %v4941 = vrot.slane %v4726, 1
        %v4942 = vrot.slane %v4727, 1
        %v4943 = vsel %vm4913, %v4941, %v4942
        %v4944 = vrot.slane %v4730, 1
        %v4945 = vrot.slane %v4731, 1
        %v4946 = vsel %vm4913, %v4944, %v4945
        %v4947 = vrot.slane %v4734, 1
        %v4948 = vrot.slane %v4735, 1
        %v4949 = vsel %vm4913, %v4947, %v4948
        %v4950 = vrot.slane %v4738, 1
        %v4951 = vrot.slane %v4739, 1
        %v4952 = vsel %vm4913, %v4950, %v4951
        %v4953 = vrot.slane %v4742, 1
        %v4954 = vrot.slane %v4743, 1
        %v4955 = vsel %vm4913, %v4953, %v4954
        %v4956 = vrot.slane %v4746, 1
        %v4957 = vrot.slane %v4747, 1
        %v4958 = vsel %vm4913, %v4956, %v4957
        %v4959 = vrot.slane %v4750, 1
        %v4960 = vrot.slane %v4751, 1
        %v4961 = vsel %vm4913, %v4959, %v4960
        %v5010 = vmax.f32 %v4689, %v4914
        %v5011 = vmax.f32 %v4690, %v4916
        %v5012 = vmax.f32 %v4691, %v4915
        %v5013 = vmax.f32 %v4693, %v4917
        %v5014 = vmax.f32 %v4694, %v4919
        %v5015 = vmax.f32 %v4695, %v4918
        %v5016 = vmax.f32 %v4697, %v4920
        %v5017 = vmax.f32 %v4698, %v4922
        %v5018 = vmax.f32 %v4699, %v4921
        %v5019 = vmax.f32 %v4701, %v4923
        %v5020 = vmax.f32 %v4702, %v4925
        %v5021 = vmax.f32 %v4703, %v4924
        %v5022 = vmax.f32 %v4705, %v4926
        %v5023 = vmax.f32 %v4706, %v4928
        %v5024 = vmax.f32 %v4707, %v4927
        %v5025 = vmax.f32 %v4709, %v4929
        %v5026 = vmax.f32 %v4710, %v4931
        %v5027 = vmax.f32 %v4711, %v4930
        %v5028 = vmax.f32 %v4713, %v4932
        %v5029 = vmax.f32 %v4714, %v4934
        %v5030 = vmax.f32 %v4715, %v4933
        %v5031 = vmax.f32 %v4717, %v4935
        %v5032 = vmax.f32 %v4718, %v4937
        %v5033 = vmax.f32 %v4719, %v4936
        %v5034 = vmax.f32 %v4721, %v4938
        %v5035 = vmax.f32 %v4722, %v4940
        %v5036 = vmax.f32 %v4723, %v4939
        %v5037 = vmax.f32 %v4725, %v4941
        %v5038 = vmax.f32 %v4726, %v4943
        %v5039 = vmax.f32 %v4727, %v4942
        %v5040 = vmax.f32 %v4729, %v4944
        %v5041 = vmax.f32 %v4730, %v4946
        %v5042 = vmax.f32 %v4731, %v4945
        %v5043 = vmax.f32 %v4733, %v4947
        %v5044 = vmax.f32 %v4734, %v4949
        %v5045 = vmax.f32 %v4735, %v4948
        %v5046 = vmax.f32 %v4737, %v4950
        %v5047 = vmax.f32 %v4738, %v4952
        %v5048 = vmax.f32 %v4739, %v4951
        %v5049 = vmax.f32 %v4741, %v4953
        %v5050 = vmax.f32 %v4742, %v4955
        %v5051 = vmax.f32 %v4743, %v4954
        %v5052 = vmax.f32 %v4745, %v4956
        %v5053 = vmax.f32 %v4746, %v4958
        %v5054 = vmax.f32 %v4747, %v4957
        %v5055 = vmax.f32 %v4749, %v4959
        %v5056 = vmax.f32 %v4750, %v4961
        %v5057 = vmax.f32 %v4751, %v4960
        %vm5074 = vcmask 1045504
        %v5075 = vrot.slane %v4690, 2
        %v5076 = vrot.slane %v4691, 2
        %v5077 = vsel %vm5074, %v5075, %v5076
        %v5078 = vrot.slane %v4692, 2
        %v5079 = vsel %vm5074, %v5076, %v5078
        %v5080 = vrot.slane %v4694, 2
        %v5081 = vrot.slane %v4695, 2
        %v5082 = vsel %vm5074, %v5080, %v5081
        %v5083 = vrot.slane %v4696, 2
        %v5084 = vsel %vm5074, %v5081, %v5083
        %v5085 = vrot.slane %v4698, 2
        %v5086 = vrot.slane %v4699, 2
        %v5087 = vsel %vm5074, %v5085, %v5086
        %v5088 = vrot.slane %v4700, 2
        %v5089 = vsel %vm5074, %v5086, %v5088
        %v5090 = vrot.slane %v4702, 2
        %v5091 = vrot.slane %v4703, 2
        %v5092 = vsel %vm5074, %v5090, %v5091
        %v5093 = vrot.slane %v4704, 2
        %v5094 = vsel %vm5074, %v5091, %v5093
        %v5095 = vrot.slane %v4706, 2
        %v5096 = vrot.slane %v4707, 2
        %v5097 = vsel %vm5074, %v5095, %v5096
        %v5098 = vrot.slane %v4708, 2
        %v5099 = vsel %vm5074, %v5096, %v5098
        %v5100 = vrot.slane %v4710, 2
        %v5101 = vrot.slane %v4711, 2
        %v5102 = vsel %vm5074, %v5100, %v5101
        %v5103 = vrot.slane %v4712, 2
        %v5104 = vsel %vm5074, %v5101, %v5103
        %v5105 = vrot.slane %v4714, 2
        %v5106 = vrot.slane %v4715, 2
        %v5107 = vsel %vm5074, %v5105, %v5106
        %v5108 = vrot.slane %v4716, 2
        %v5109 = vsel %vm5074, %v5106, %v5108
        %v5110 = vrot.slane %v4718, 2
        %v5111 = vrot.slane %v4719, 2
        %v5112 = vsel %vm5074, %v5110, %v5111
        %v5113 = vrot.slane %v4720, 2
        %v5114 = vsel %vm5074, %v5111, %v5113
        %v5115 = vrot.slane %v4722, 2
        %v5116 = vrot.slane %v4723, 2
        %v5117 = vsel %vm5074, %v5115, %v5116
        %v5118 = vrot.slane %v4724, 2
        %v5119 = vsel %vm5074, %v5116, %v5118
        %v5120 = vrot.slane %v4726, 2
        %v5121 = vrot.slane %v4727, 2
        %v5122 = vsel %vm5074, %v5120, %v5121
        %v5123 = vrot.slane %v4728, 2
        %v5124 = vsel %vm5074, %v5121, %v5123
        %v5125 = vrot.slane %v4730, 2
        %v5126 = vrot.slane %v4731, 2
        %v5127 = vsel %vm5074, %v5125, %v5126
        %v5128 = vrot.slane %v4732, 2
        %v5129 = vsel %vm5074, %v5126, %v5128
        %v5130 = vrot.slane %v4734, 2
        %v5131 = vrot.slane %v4735, 2
        %v5132 = vsel %vm5074, %v5130, %v5131
        %v5133 = vrot.slane %v4736, 2
        %v5134 = vsel %vm5074, %v5131, %v5133
        %v5135 = vrot.slane %v4738, 2
        %v5136 = vrot.slane %v4739, 2
        %v5137 = vsel %vm5074, %v5135, %v5136
        %v5138 = vrot.slane %v4740, 2
        %v5139 = vsel %vm5074, %v5136, %v5138
        %v5140 = vrot.slane %v4742, 2
        %v5141 = vrot.slane %v4743, 2
        %v5142 = vsel %vm5074, %v5140, %v5141
        %v5143 = vrot.slane %v4744, 2
        %v5144 = vsel %vm5074, %v5141, %v5143
        %v5145 = vrot.slane %v4746, 2
        %v5146 = vrot.slane %v4747, 2
        %v5147 = vsel %vm5074, %v5145, %v5146
        %v5148 = vrot.slane %v4748, 2
        %v5149 = vsel %vm5074, %v5146, %v5148
        %v5150 = vrot.slane %v4750, 2
        %v5151 = vrot.slane %v4751, 2
        %v5152 = vsel %vm5074, %v5150, %v5151
        %v5153 = vrot.slane %v4752, 2
        %v5154 = vsel %vm5074, %v5151, %v5153
        %v5203 = vmax.f32 %v5010, %v5075
        %v5204 = vmax.f32 %v5011, %v5077
        %v5205 = vmax.f32 %v5012, %v5079
        %v5206 = vmax.f32 %v5013, %v5080
        %v5207 = vmax.f32 %v5014, %v5082
        %v5208 = vmax.f32 %v5015, %v5084
        %v5209 = vmax.f32 %v5016, %v5085
        %v5210 = vmax.f32 %v5017, %v5087
        %v5211 = vmax.f32 %v5018, %v5089
        %v5212 = vmax.f32 %v5019, %v5090
        %v5213 = vmax.f32 %v5020, %v5092
        %v5214 = vmax.f32 %v5021, %v5094
        %v5215 = vmax.f32 %v5022, %v5095
        %v5216 = vmax.f32 %v5023, %v5097
        %v5217 = vmax.f32 %v5024, %v5099
        %v5218 = vmax.f32 %v5025, %v5100
        %v5219 = vmax.f32 %v5026, %v5102
        %v5220 = vmax.f32 %v5027, %v5104
        %v5221 = vmax.f32 %v5028, %v5105
        %v5222 = vmax.f32 %v5029, %v5107
        %v5223 = vmax.f32 %v5030, %v5109
        %v5224 = vmax.f32 %v5031, %v5110
        %v5225 = vmax.f32 %v5032, %v5112
        %v5226 = vmax.f32 %v5033, %v5114
        %v5227 = vmax.f32 %v5034, %v5115
        %v5228 = vmax.f32 %v5035, %v5117
        %v5229 = vmax.f32 %v5036, %v5119
        %v5230 = vmax.f32 %v5037, %v5120
        %v5231 = vmax.f32 %v5038, %v5122
        %v5232 = vmax.f32 %v5039, %v5124
        %v5233 = vmax.f32 %v5040, %v5125
        %v5234 = vmax.f32 %v5041, %v5127
        %v5235 = vmax.f32 %v5042, %v5129
        %v5236 = vmax.f32 %v5043, %v5130
        %v5237 = vmax.f32 %v5044, %v5132
        %v5238 = vmax.f32 %v5045, %v5134
        %v5239 = vmax.f32 %v5046, %v5135
        %v5240 = vmax.f32 %v5047, %v5137
        %v5241 = vmax.f32 %v5048, %v5139
        %v5242 = vmax.f32 %v5049, %v5140
        %v5243 = vmax.f32 %v5050, %v5142
        %v5244 = vmax.f32 %v5051, %v5144
        %v5245 = vmax.f32 %v5052, %v5145
        %v5246 = vmax.f32 %v5053, %v5147
        %v5247 = vmax.f32 %v5054, %v5149
        %v5248 = vmax.f32 %v5055, %v5150
        %v5249 = vmax.f32 %v5056, %v5152
        %v5250 = vmax.f32 %v5057, %v5154
        %v5299 = vrot.slane %v4817, 1
        %v5300 = vrot.slane %v4818, 1
        %v5301 = vsel %vm4913, %v5299, %v5300
        %v5302 = vrot.slane %v4819, 1
        %v5303 = vsel %vm4913, %v5300, %v5302
        %v5304 = vrot.slane %v4821, 1
        %v5305 = vrot.slane %v4822, 1
        %v5306 = vsel %vm4913, %v5304, %v5305
        %v5307 = vrot.slane %v4823, 1
        %v5308 = vsel %vm4913, %v5305, %v5307
        %v5309 = vrot.slane %v4825, 1
        %v5310 = vrot.slane %v4826, 1
        %v5311 = vsel %vm4913, %v5309, %v5310
        %v5312 = vrot.slane %v4827, 1
        %v5313 = vsel %vm4913, %v5310, %v5312
        %v5314 = vrot.slane %v4829, 1
        %v5315 = vrot.slane %v4830, 1
        %v5316 = vsel %vm4913, %v5314, %v5315
        %v5317 = vrot.slane %v4831, 1
        %v5318 = vsel %vm4913, %v5315, %v5317
        %v5319 = vrot.slane %v4833, 1
        %v5320 = vrot.slane %v4834, 1
        %v5321 = vsel %vm4913, %v5319, %v5320
        %v5322 = vrot.slane %v4835, 1
        %v5323 = vsel %vm4913, %v5320, %v5322
        %v5324 = vrot.slane %v4837, 1
        %v5325 = vrot.slane %v4838, 1
        %v5326 = vsel %vm4913, %v5324, %v5325
        %v5327 = vrot.slane %v4839, 1
        %v5328 = vsel %vm4913, %v5325, %v5327
        %v5329 = vrot.slane %v4841, 1
        %v5330 = vrot.slane %v4842, 1
        %v5331 = vsel %vm4913, %v5329, %v5330
        %v5332 = vrot.slane %v4843, 1
        %v5333 = vsel %vm4913, %v5330, %v5332
        %v5334 = vrot.slane %v4845, 1
        %v5335 = vrot.slane %v4846, 1
        %v5336 = vsel %vm4913, %v5334, %v5335
        %v5337 = vrot.slane %v4847, 1
        %v5338 = vsel %vm4913, %v5335, %v5337
        %v5339 = vrot.slane %v4849, 1
        %v5340 = vrot.slane %v4850, 1
        %v5341 = vsel %vm4913, %v5339, %v5340
        %v5342 = vrot.slane %v4851, 1
        %v5343 = vsel %vm4913, %v5340, %v5342
        %v5344 = vrot.slane %v4853, 1
        %v5345 = vrot.slane %v4854, 1
        %v5346 = vsel %vm4913, %v5344, %v5345
        %v5347 = vrot.slane %v4855, 1
        %v5348 = vsel %vm4913, %v5345, %v5347
        %v5349 = vrot.slane %v4857, 1
        %v5350 = vrot.slane %v4858, 1
        %v5351 = vsel %vm4913, %v5349, %v5350
        %v5352 = vrot.slane %v4859, 1
        %v5353 = vsel %vm4913, %v5350, %v5352
        %v5354 = vrot.slane %v4861, 1
        %v5355 = vrot.slane %v4862, 1
        %v5356 = vsel %vm4913, %v5354, %v5355
        %v5357 = vrot.slane %v4863, 1
        %v5358 = vsel %vm4913, %v5355, %v5357
        %v5359 = vrot.slane %v4865, 1
        %v5360 = vrot.slane %v4866, 1
        %v5361 = vsel %vm4913, %v5359, %v5360
        %v5362 = vrot.slane %v4867, 1
        %v5363 = vsel %vm4913, %v5360, %v5362
        %v5364 = vrot.slane %v4869, 1
        %v5365 = vrot.slane %v4870, 1
        %v5366 = vsel %vm4913, %v5364, %v5365
        %v5367 = vrot.slane %v4871, 1
        %v5368 = vsel %vm4913, %v5365, %v5367
        %v5369 = vrot.slane %v4873, 1
        %v5370 = vrot.slane %v4874, 1
        %v5371 = vsel %vm4913, %v5369, %v5370
        %v5372 = vrot.slane %v4875, 1
        %v5373 = vsel %vm4913, %v5370, %v5372
        %v5374 = vrot.slane %v4877, 1
        %v5375 = vrot.slane %v4878, 1
        %v5376 = vsel %vm4913, %v5374, %v5375
        %v5377 = vrot.slane %v4879, 1
        %v5378 = vsel %vm4913, %v5375, %v5377
        %v5427 = vmax.f32 %v4817, %v5301
        %v5428 = vmax.f32 %v4818, %v5303
        %v5429 = vmax.f32 %v4819, %v5302
        %v5430 = vmax.f32 %v4821, %v5306
        %v5431 = vmax.f32 %v4822, %v5308
        %v5432 = vmax.f32 %v4823, %v5307
        %v5433 = vmax.f32 %v4825, %v5311
        %v5434 = vmax.f32 %v4826, %v5313
        %v5435 = vmax.f32 %v4827, %v5312
        %v5436 = vmax.f32 %v4829, %v5316
        %v5437 = vmax.f32 %v4830, %v5318
        %v5438 = vmax.f32 %v4831, %v5317
        %v5439 = vmax.f32 %v4833, %v5321
        %v5440 = vmax.f32 %v4834, %v5323
        %v5441 = vmax.f32 %v4835, %v5322
        %v5442 = vmax.f32 %v4837, %v5326
        %v5443 = vmax.f32 %v4838, %v5328
        %v5444 = vmax.f32 %v4839, %v5327
        %v5445 = vmax.f32 %v4841, %v5331
        %v5446 = vmax.f32 %v4842, %v5333
        %v5447 = vmax.f32 %v4843, %v5332
        %v5448 = vmax.f32 %v4845, %v5336
        %v5449 = vmax.f32 %v4846, %v5338
        %v5450 = vmax.f32 %v4847, %v5337
        %v5451 = vmax.f32 %v4849, %v5341
        %v5452 = vmax.f32 %v4850, %v5343
        %v5453 = vmax.f32 %v4851, %v5342
        %v5454 = vmax.f32 %v4853, %v5346
        %v5455 = vmax.f32 %v4854, %v5348
        %v5456 = vmax.f32 %v4855, %v5347
        %v5457 = vmax.f32 %v4857, %v5351
        %v5458 = vmax.f32 %v4858, %v5353
        %v5459 = vmax.f32 %v4859, %v5352
        %v5460 = vmax.f32 %v4861, %v5356
        %v5461 = vmax.f32 %v4862, %v5358
        %v5462 = vmax.f32 %v4863, %v5357
        %v5463 = vmax.f32 %v4865, %v5361
        %v5464 = vmax.f32 %v4866, %v5363
        %v5465 = vmax.f32 %v4867, %v5362
        %v5466 = vmax.f32 %v4869, %v5366
        %v5467 = vmax.f32 %v4870, %v5368
        %v5468 = vmax.f32 %v4871, %v5367
        %v5469 = vmax.f32 %v4873, %v5371
        %v5470 = vmax.f32 %v4874, %v5373
        %v5471 = vmax.f32 %v4875, %v5372
        %v5472 = vmax.f32 %v4877, %v5376
        %v5473 = vmax.f32 %v4878, %v5378
        %v5474 = vmax.f32 %v4879, %v5377
        %v5491 = vrot.slane %v4820, 1
        %v5492 = vsel %vm4913, %v5302, %v5491
        %v5493 = vrot.slane %v4824, 1
        %v5494 = vsel %vm4913, %v5307, %v5493
        %v5495 = vrot.slane %v4828, 1
        %v5496 = vsel %vm4913, %v5312, %v5495
        %v5497 = vrot.slane %v4832, 1
        %v5498 = vsel %vm4913, %v5317, %v5497
        %v5499 = vrot.slane %v4836, 1
        %v5500 = vsel %vm4913, %v5322, %v5499
        %v5501 = vrot.slane %v4840, 1
        %v5502 = vsel %vm4913, %v5327, %v5501
        %v5503 = vrot.slane %v4844, 1
        %v5504 = vsel %vm4913, %v5332, %v5503
        %v5505 = vrot.slane %v4848, 1
        %v5506 = vsel %vm4913, %v5337, %v5505
        %v5507 = vrot.slane %v4852, 1
        %v5508 = vsel %vm4913, %v5342, %v5507
        %v5509 = vrot.slane %v4856, 1
        %v5510 = vsel %vm4913, %v5347, %v5509
        %v5511 = vrot.slane %v4860, 1
        %v5512 = vsel %vm4913, %v5352, %v5511
        %v5513 = vrot.slane %v4864, 1
        %v5514 = vsel %vm4913, %v5357, %v5513
        %v5515 = vrot.slane %v4868, 1
        %v5516 = vsel %vm4913, %v5362, %v5515
        %v5517 = vrot.slane %v4872, 1
        %v5518 = vsel %vm4913, %v5367, %v5517
        %v5519 = vrot.slane %v4876, 1
        %v5520 = vsel %vm4913, %v5372, %v5519
        %v5521 = vrot.slane %v4880, 1
        %v5522 = vsel %vm4913, %v5377, %v5521
        %v5539 = vmax.f32 %v4819, %v5492
        %v5540 = vmax.f32 %v4823, %v5494
        %v5541 = vmax.f32 %v4827, %v5496
        %v5542 = vmax.f32 %v4831, %v5498
        %v5543 = vmax.f32 %v4835, %v5500
        %v5544 = vmax.f32 %v4839, %v5502
        %v5545 = vmax.f32 %v4843, %v5504
        %v5546 = vmax.f32 %v4847, %v5506
        %v5547 = vmax.f32 %v4851, %v5508
        %v5548 = vmax.f32 %v4855, %v5510
        %v5549 = vmax.f32 %v4859, %v5512
        %v5550 = vmax.f32 %v4863, %v5514
        %v5551 = vmax.f32 %v4867, %v5516
        %v5552 = vmax.f32 %v4871, %v5518
        %v5553 = vmax.f32 %v4875, %v5520
        %v5554 = vmax.f32 %v4879, %v5522
        %v5587 = vrot.slane %v5428, 2
        %v5588 = vrot.slane %v5539, 2
        %v5589 = vsel %vm5074, %v5587, %v5588
        %v5590 = vrot.slane %v5431, 2
        %v5591 = vrot.slane %v5540, 2
        %v5592 = vsel %vm5074, %v5590, %v5591
        %v5593 = vrot.slane %v5434, 2
        %v5594 = vrot.slane %v5541, 2
        %v5595 = vsel %vm5074, %v5593, %v5594
        %v5596 = vrot.slane %v5437, 2
        %v5597 = vrot.slane %v5542, 2
        %v5598 = vsel %vm5074, %v5596, %v5597
        %v5599 = vrot.slane %v5440, 2
        %v5600 = vrot.slane %v5543, 2
        %v5601 = vsel %vm5074, %v5599, %v5600
        %v5602 = vrot.slane %v5443, 2
        %v5603 = vrot.slane %v5544, 2
        %v5604 = vsel %vm5074, %v5602, %v5603
        %v5605 = vrot.slane %v5446, 2
        %v5606 = vrot.slane %v5545, 2
        %v5607 = vsel %vm5074, %v5605, %v5606
        %v5608 = vrot.slane %v5449, 2
        %v5609 = vrot.slane %v5546, 2
        %v5610 = vsel %vm5074, %v5608, %v5609
        %v5611 = vrot.slane %v5452, 2
        %v5612 = vrot.slane %v5547, 2
        %v5613 = vsel %vm5074, %v5611, %v5612
        %v5614 = vrot.slane %v5455, 2
        %v5615 = vrot.slane %v5548, 2
        %v5616 = vsel %vm5074, %v5614, %v5615
        %v5617 = vrot.slane %v5458, 2
        %v5618 = vrot.slane %v5549, 2
        %v5619 = vsel %vm5074, %v5617, %v5618
        %v5620 = vrot.slane %v5461, 2
        %v5621 = vrot.slane %v5550, 2
        %v5622 = vsel %vm5074, %v5620, %v5621
        %v5623 = vrot.slane %v5464, 2
        %v5624 = vrot.slane %v5551, 2
        %v5625 = vsel %vm5074, %v5623, %v5624
        %v5626 = vrot.slane %v5467, 2
        %v5627 = vrot.slane %v5552, 2
        %v5628 = vsel %vm5074, %v5626, %v5627
        %v5629 = vrot.slane %v5470, 2
        %v5630 = vrot.slane %v5553, 2
        %v5631 = vsel %vm5074, %v5629, %v5630
        %v5632 = vrot.slane %v5473, 2
        %v5633 = vrot.slane %v5554, 2
        %v5634 = vsel %vm5074, %v5632, %v5633
        %v5683 = vmax.f32 %v5427, %v5587
        %v5684 = vmax.f32 %v5428, %v5589
        %v5685 = vmax.f32 %v5429, %v5588
        %v5686 = vmax.f32 %v5430, %v5590
        %v5687 = vmax.f32 %v5431, %v5592
        %v5688 = vmax.f32 %v5432, %v5591
        %v5689 = vmax.f32 %v5433, %v5593
        %v5690 = vmax.f32 %v5434, %v5595
        %v5691 = vmax.f32 %v5435, %v5594
        %v5692 = vmax.f32 %v5436, %v5596
        %v5693 = vmax.f32 %v5437, %v5598
        %v5694 = vmax.f32 %v5438, %v5597
        %v5695 = vmax.f32 %v5439, %v5599
        %v5696 = vmax.f32 %v5440, %v5601
        %v5697 = vmax.f32 %v5441, %v5600
        %v5698 = vmax.f32 %v5442, %v5602
        %v5699 = vmax.f32 %v5443, %v5604
        %v5700 = vmax.f32 %v5444, %v5603
        %v5701 = vmax.f32 %v5445, %v5605
        %v5702 = vmax.f32 %v5446, %v5607
        %v5703 = vmax.f32 %v5447, %v5606
        %v5704 = vmax.f32 %v5448, %v5608
        %v5705 = vmax.f32 %v5449, %v5610
        %v5706 = vmax.f32 %v5450, %v5609
        %v5707 = vmax.f32 %v5451, %v5611
        %v5708 = vmax.f32 %v5452, %v5613
        %v5709 = vmax.f32 %v5453, %v5612
        %v5710 = vmax.f32 %v5454, %v5614
        %v5711 = vmax.f32 %v5455, %v5616
        %v5712 = vmax.f32 %v5456, %v5615
        %v5713 = vmax.f32 %v5457, %v5617
        %v5714 = vmax.f32 %v5458, %v5619
        %v5715 = vmax.f32 %v5459, %v5618
        %v5716 = vmax.f32 %v5460, %v5620
        %v5717 = vmax.f32 %v5461, %v5622
        %v5718 = vmax.f32 %v5462, %v5621
        %v5719 = vmax.f32 %v5463, %v5623
        %v5720 = vmax.f32 %v5464, %v5625
        %v5721 = vmax.f32 %v5465, %v5624
        %v5722 = vmax.f32 %v5466, %v5626
        %v5723 = vmax.f32 %v5467, %v5628
        %v5724 = vmax.f32 %v5468, %v5627
        %v5725 = vmax.f32 %v5469, %v5629
        %v5726 = vmax.f32 %v5470, %v5631
        %v5727 = vmax.f32 %v5471, %v5630
        %v5728 = vmax.f32 %v5472, %v5632
        %v5729 = vmax.f32 %v5473, %v5634
        %v5730 = vmax.f32 %v5474, %v5633
        %v5731 = vrot.slane %v4818, 4
        %v5732 = vrot.slane %v4819, 4
        %v5733 = vsel %vm3514, %v5731, %v5732
        %v5734 = vrot.slane %v4820, 4
        %v5735 = vsel %vm3514, %v5732, %v5734
        %v5736 = vrot.slane %v4822, 4
        %v5737 = vrot.slane %v4823, 4
        %v5738 = vsel %vm3514, %v5736, %v5737
        %v5739 = vrot.slane %v4824, 4
        %v5740 = vsel %vm3514, %v5737, %v5739
        %v5741 = vrot.slane %v4826, 4
        %v5742 = vrot.slane %v4827, 4
        %v5743 = vsel %vm3514, %v5741, %v5742
        %v5744 = vrot.slane %v4828, 4
        %v5745 = vsel %vm3514, %v5742, %v5744
        %v5746 = vrot.slane %v4830, 4
        %v5747 = vrot.slane %v4831, 4
        %v5748 = vsel %vm3514, %v5746, %v5747
        %v5749 = vrot.slane %v4832, 4
        %v5750 = vsel %vm3514, %v5747, %v5749
        %v5751 = vrot.slane %v4834, 4
        %v5752 = vrot.slane %v4835, 4
        %v5753 = vsel %vm3514, %v5751, %v5752
        %v5754 = vrot.slane %v4836, 4
        %v5755 = vsel %vm3514, %v5752, %v5754
        %v5756 = vrot.slane %v4838, 4
        %v5757 = vrot.slane %v4839, 4
        %v5758 = vsel %vm3514, %v5756, %v5757
        %v5759 = vrot.slane %v4840, 4
        %v5760 = vsel %vm3514, %v5757, %v5759
        %v5761 = vrot.slane %v4842, 4
        %v5762 = vrot.slane %v4843, 4
        %v5763 = vsel %vm3514, %v5761, %v5762
        %v5764 = vrot.slane %v4844, 4
        %v5765 = vsel %vm3514, %v5762, %v5764
        %v5766 = vrot.slane %v4846, 4
        %v5767 = vrot.slane %v4847, 4
        %v5768 = vsel %vm3514, %v5766, %v5767
        %v5769 = vrot.slane %v4848, 4
        %v5770 = vsel %vm3514, %v5767, %v5769
        %v5771 = vrot.slane %v4850, 4
        %v5772 = vrot.slane %v4851, 4
        %v5773 = vsel %vm3514, %v5771, %v5772
        %v5774 = vrot.slane %v4852, 4
        %v5775 = vsel %vm3514, %v5772, %v5774
        %v5776 = vrot.slane %v4854, 4
        %v5777 = vrot.slane %v4855, 4
        %v5778 = vsel %vm3514, %v5776, %v5777
        %v5779 = vrot.slane %v4856, 4
        %v5780 = vsel %vm3514, %v5777, %v5779
        %v5781 = vrot.slane %v4858, 4
        %v5782 = vrot.slane %v4859, 4
        %v5783 = vsel %vm3514, %v5781, %v5782
        %v5784 = vrot.slane %v4860, 4
        %v5785 = vsel %vm3514, %v5782, %v5784
        %v5786 = vrot.slane %v4862, 4
        %v5787 = vrot.slane %v4863, 4
        %v5788 = vsel %vm3514, %v5786, %v5787
        %v5789 = vrot.slane %v4864, 4
        %v5790 = vsel %vm3514, %v5787, %v5789
        %v5791 = vrot.slane %v4866, 4
        %v5792 = vrot.slane %v4867, 4
        %v5793 = vsel %vm3514, %v5791, %v5792
        %v5794 = vrot.slane %v4868, 4
        %v5795 = vsel %vm3514, %v5792, %v5794
        %v5796 = vrot.slane %v4870, 4
        %v5797 = vrot.slane %v4871, 4
        %v5798 = vsel %vm3514, %v5796, %v5797
        %v5799 = vrot.slane %v4872, 4
        %v5800 = vsel %vm3514, %v5797, %v5799
        %v5801 = vrot.slane %v4874, 4
        %v5802 = vrot.slane %v4875, 4
        %v5803 = vsel %vm3514, %v5801, %v5802
        %v5804 = vrot.slane %v4876, 4
        %v5805 = vsel %vm3514, %v5802, %v5804
        %v5806 = vrot.slane %v4878, 4
        %v5807 = vrot.slane %v4879, 4
        %v5808 = vsel %vm3514, %v5806, %v5807
        %v5809 = vrot.slane %v4880, 4
        %v5810 = vsel %vm3514, %v5807, %v5809
        %v5859 = vmax.f32 %v5683, %v5731
        %v5860 = vmax.f32 %v5684, %v5733
        %v5861 = vmax.f32 %v5685, %v5735
        %v5862 = vmax.f32 %v5686, %v5736
        %v5863 = vmax.f32 %v5687, %v5738
        %v5864 = vmax.f32 %v5688, %v5740
        %v5865 = vmax.f32 %v5689, %v5741
        %v5866 = vmax.f32 %v5690, %v5743
        %v5867 = vmax.f32 %v5691, %v5745
        %v5868 = vmax.f32 %v5692, %v5746
        %v5869 = vmax.f32 %v5693, %v5748
        %v5870 = vmax.f32 %v5694, %v5750
        %v5871 = vmax.f32 %v5695, %v5751
        %v5872 = vmax.f32 %v5696, %v5753
        %v5873 = vmax.f32 %v5697, %v5755
        %v5874 = vmax.f32 %v5698, %v5756
        %v5875 = vmax.f32 %v5699, %v5758
        %v5876 = vmax.f32 %v5700, %v5760
        %v5877 = vmax.f32 %v5701, %v5761
        %v5878 = vmax.f32 %v5702, %v5763
        %v5879 = vmax.f32 %v5703, %v5765
        %v5880 = vmax.f32 %v5704, %v5766
        %v5881 = vmax.f32 %v5705, %v5768
        %v5882 = vmax.f32 %v5706, %v5770
        %v5883 = vmax.f32 %v5707, %v5771
        %v5884 = vmax.f32 %v5708, %v5773
        %v5885 = vmax.f32 %v5709, %v5775
        %v5886 = vmax.f32 %v5710, %v5776
        %v5887 = vmax.f32 %v5711, %v5778
        %v5888 = vmax.f32 %v5712, %v5780
        %v5889 = vmax.f32 %v5713, %v5781
        %v5890 = vmax.f32 %v5714, %v5783
        %v5891 = vmax.f32 %v5715, %v5785
        %v5892 = vmax.f32 %v5716, %v5786
        %v5893 = vmax.f32 %v5717, %v5788
        %v5894 = vmax.f32 %v5718, %v5790
        %v5895 = vmax.f32 %v5719, %v5791
        %v5896 = vmax.f32 %v5720, %v5793
        %v5897 = vmax.f32 %v5721, %v5795
        %v5898 = vmax.f32 %v5722, %v5796
        %v5899 = vmax.f32 %v5723, %v5798
        %v5900 = vmax.f32 %v5724, %v5800
        %v5901 = vmax.f32 %v5725, %v5801
        %v5902 = vmax.f32 %v5726, %v5803
        %v5903 = vmax.f32 %v5727, %v5805
        %v5904 = vmax.f32 %v5728, %v5806
        %v5905 = vmax.f32 %v5729, %v5808
        %v5906 = vmax.f32 %v5730, %v5810
        %vm5955 = vcmask 1040384
        %v5956 = vrot.slane %v5203, 7
        %v5957 = vrot.slane %v5204, 7
        %v5958 = vsel %vm5955, %v5956, %v5957
        %v5959 = vrot.slane %v5205, 7
        %v5960 = vsel %vm5955, %v5957, %v5959
        %v5961 = vrot.slane %v5206, 7
        %v5962 = vrot.slane %v5207, 7
        %v5963 = vsel %vm5955, %v5961, %v5962
        %v5964 = vrot.slane %v5208, 7
        %v5965 = vsel %vm5955, %v5962, %v5964
        %v5966 = vrot.slane %v5209, 7
        %v5967 = vrot.slane %v5210, 7
        %v5968 = vsel %vm5955, %v5966, %v5967
        %v5969 = vrot.slane %v5211, 7
        %v5970 = vsel %vm5955, %v5967, %v5969
        %v5971 = vrot.slane %v5212, 7
        %v5972 = vrot.slane %v5213, 7
        %v5973 = vsel %vm5955, %v5971, %v5972
        %v5974 = vrot.slane %v5214, 7
        %v5975 = vsel %vm5955, %v5972, %v5974
        %v5976 = vrot.slane %v5215, 7
        %v5977 = vrot.slane %v5216, 7
        %v5978 = vsel %vm5955, %v5976, %v5977
        %v5979 = vrot.slane %v5217, 7
        %v5980 = vsel %vm5955, %v5977, %v5979
        %v5981 = vrot.slane %v5218, 7
        %v5982 = vrot.slane %v5219, 7
        %v5983 = vsel %vm5955, %v5981, %v5982
        %v5984 = vrot.slane %v5220, 7
        %v5985 = vsel %vm5955, %v5982, %v5984
        %v5986 = vrot.slane %v5221, 7
        %v5987 = vrot.slane %v5222, 7
        %v5988 = vsel %vm5955, %v5986, %v5987
        %v5989 = vrot.slane %v5223, 7
        %v5990 = vsel %vm5955, %v5987, %v5989
        %v5991 = vrot.slane %v5224, 7
        %v5992 = vrot.slane %v5225, 7
        %v5993 = vsel %vm5955, %v5991, %v5992
        %v5994 = vrot.slane %v5226, 7
        %v5995 = vsel %vm5955, %v5992, %v5994
        %v5996 = vrot.slane %v5227, 7
        %v5997 = vrot.slane %v5228, 7
        %v5998 = vsel %vm5955, %v5996, %v5997
        %v5999 = vrot.slane %v5229, 7
        %v6000 = vsel %vm5955, %v5997, %v5999
        %v6001 = vrot.slane %v5230, 7
        %v6002 = vrot.slane %v5231, 7
        %v6003 = vsel %vm5955, %v6001, %v6002
        %v6004 = vrot.slane %v5232, 7
        %v6005 = vsel %vm5955, %v6002, %v6004
        %v6006 = vrot.slane %v5233, 7
        %v6007 = vrot.slane %v5234, 7
        %v6008 = vsel %vm5955, %v6006, %v6007
        %v6009 = vrot.slane %v5235, 7
        %v6010 = vsel %vm5955, %v6007, %v6009
        %v6011 = vrot.slane %v5236, 7
        %v6012 = vrot.slane %v5237, 7
        %v6013 = vsel %vm5955, %v6011, %v6012
        %v6014 = vrot.slane %v5238, 7
        %v6015 = vsel %vm5955, %v6012, %v6014
        %v6016 = vrot.slane %v5239, 7
        %v6017 = vrot.slane %v5240, 7
        %v6018 = vsel %vm5955, %v6016, %v6017
        %v6019 = vrot.slane %v5241, 7
        %v6020 = vsel %vm5955, %v6017, %v6019
        %v6021 = vrot.slane %v5242, 7
        %v6022 = vrot.slane %v5243, 7
        %v6023 = vsel %vm5955, %v6021, %v6022
        %v6024 = vrot.slane %v5244, 7
        %v6025 = vsel %vm5955, %v6022, %v6024
        %v6026 = vrot.slane %v5245, 7
        %v6027 = vrot.slane %v5246, 7
        %v6028 = vsel %vm5955, %v6026, %v6027
        %v6029 = vrot.slane %v5247, 7
        %v6030 = vsel %vm5955, %v6027, %v6029
        %v6031 = vrot.slane %v5248, 7
        %v6032 = vrot.slane %v5249, 7
        %v6033 = vsel %vm5955, %v6031, %v6032
        %v6034 = vrot.slane %v5250, 7
        %v6035 = vsel %vm5955, %v6032, %v6034
        %v6068 = vadd.f32 %v4237, %v5958
        %v6069 = vadd.f32 %v4238, %v5960
        %v6070 = vadd.f32 %v4239, %v5963
        %v6071 = vadd.f32 %v4240, %v5965
        %v6072 = vadd.f32 %v4241, %v5968
        %v6073 = vadd.f32 %v4242, %v5970
        %v6074 = vadd.f32 %v4243, %v5973
        %v6075 = vadd.f32 %v4244, %v5975
        %v6076 = vadd.f32 %v4245, %v5978
        %v6077 = vadd.f32 %v4246, %v5980
        %v6078 = vadd.f32 %v4247, %v5983
        %v6079 = vadd.f32 %v4248, %v5985
        %v6080 = vadd.f32 %v4249, %v5988
        %v6081 = vadd.f32 %v4250, %v5990
        %v6082 = vadd.f32 %v4251, %v5993
        %v6083 = vadd.f32 %v4252, %v5995
        %v6084 = vadd.f32 %v4253, %v5998
        %v6085 = vadd.f32 %v4254, %v6000
        %v6086 = vadd.f32 %v4255, %v6003
        %v6087 = vadd.f32 %v4256, %v6005
        %v6088 = vadd.f32 %v4257, %v6008
        %v6089 = vadd.f32 %v4258, %v6010
        %v6090 = vadd.f32 %v4259, %v6013
        %v6091 = vadd.f32 %v4260, %v6015
        %v6092 = vadd.f32 %v4261, %v6018
        %v6093 = vadd.f32 %v4262, %v6020
        %v6094 = vadd.f32 %v4263, %v6023
        %v6095 = vadd.f32 %v4264, %v6025
        %v6096 = vadd.f32 %v4265, %v6028
        %v6097 = vadd.f32 %v4266, %v6030
        %v6098 = vadd.f32 %v4267, %v6033
        %v6099 = vadd.f32 %v4268, %v6035
        %vm6148 = vcmask 1041408
        %v6149 = vrot.slane %v5859, 6
        %v6150 = vrot.slane %v5860, 6
        %v6151 = vsel %vm6148, %v6149, %v6150
        %v6152 = vrot.slane %v5861, 6
        %v6153 = vsel %vm6148, %v6150, %v6152
        %v6154 = vrot.slane %v5862, 6
        %v6155 = vrot.slane %v5863, 6
        %v6156 = vsel %vm6148, %v6154, %v6155
        %v6157 = vrot.slane %v5864, 6
        %v6158 = vsel %vm6148, %v6155, %v6157
        %v6159 = vrot.slane %v5865, 6
        %v6160 = vrot.slane %v5866, 6
        %v6161 = vsel %vm6148, %v6159, %v6160
        %v6162 = vrot.slane %v5867, 6
        %v6163 = vsel %vm6148, %v6160, %v6162
        %v6164 = vrot.slane %v5868, 6
        %v6165 = vrot.slane %v5869, 6
        %v6166 = vsel %vm6148, %v6164, %v6165
        %v6167 = vrot.slane %v5870, 6
        %v6168 = vsel %vm6148, %v6165, %v6167
        %v6169 = vrot.slane %v5871, 6
        %v6170 = vrot.slane %v5872, 6
        %v6171 = vsel %vm6148, %v6169, %v6170
        %v6172 = vrot.slane %v5873, 6
        %v6173 = vsel %vm6148, %v6170, %v6172
        %v6174 = vrot.slane %v5874, 6
        %v6175 = vrot.slane %v5875, 6
        %v6176 = vsel %vm6148, %v6174, %v6175
        %v6177 = vrot.slane %v5876, 6
        %v6178 = vsel %vm6148, %v6175, %v6177
        %v6179 = vrot.slane %v5877, 6
        %v6180 = vrot.slane %v5878, 6
        %v6181 = vsel %vm6148, %v6179, %v6180
        %v6182 = vrot.slane %v5879, 6
        %v6183 = vsel %vm6148, %v6180, %v6182
        %v6184 = vrot.slane %v5880, 6
        %v6185 = vrot.slane %v5881, 6
        %v6186 = vsel %vm6148, %v6184, %v6185
        %v6187 = vrot.slane %v5882, 6
        %v6188 = vsel %vm6148, %v6185, %v6187
        %v6189 = vrot.slane %v5883, 6
        %v6190 = vrot.slane %v5884, 6
        %v6191 = vsel %vm6148, %v6189, %v6190
        %v6192 = vrot.slane %v5885, 6
        %v6193 = vsel %vm6148, %v6190, %v6192
        %v6194 = vrot.slane %v5886, 6
        %v6195 = vrot.slane %v5887, 6
        %v6196 = vsel %vm6148, %v6194, %v6195
        %v6197 = vrot.slane %v5888, 6
        %v6198 = vsel %vm6148, %v6195, %v6197
        %v6199 = vrot.slane %v5889, 6
        %v6200 = vrot.slane %v5890, 6
        %v6201 = vsel %vm6148, %v6199, %v6200
        %v6202 = vrot.slane %v5891, 6
        %v6203 = vsel %vm6148, %v6200, %v6202
        %v6204 = vrot.slane %v5892, 6
        %v6205 = vrot.slane %v5893, 6
        %v6206 = vsel %vm6148, %v6204, %v6205
        %v6207 = vrot.slane %v5894, 6
        %v6208 = vsel %vm6148, %v6205, %v6207
        %v6209 = vrot.slane %v5895, 6
        %v6210 = vrot.slane %v5896, 6
        %v6211 = vsel %vm6148, %v6209, %v6210
        %v6212 = vrot.slane %v5897, 6
        %v6213 = vsel %vm6148, %v6210, %v6212
        %v6214 = vrot.slane %v5898, 6
        %v6215 = vrot.slane %v5899, 6
        %v6216 = vsel %vm6148, %v6214, %v6215
        %v6217 = vrot.slane %v5900, 6
        %v6218 = vsel %vm6148, %v6215, %v6217
        %v6219 = vrot.slane %v5901, 6
        %v6220 = vrot.slane %v5902, 6
        %v6221 = vsel %vm6148, %v6219, %v6220
        %v6222 = vrot.slane %v5903, 6
        %v6223 = vsel %vm6148, %v6220, %v6222
        %v6224 = vrot.slane %v5904, 6
        %v6225 = vrot.slane %v5905, 6
        %v6226 = vsel %vm6148, %v6224, %v6225
        %v6227 = vrot.slane %v5906, 6
        %v6228 = vsel %vm6148, %v6225, %v6227
        %v6261 = vadd.f32 %v6068, %v6151
        %v6262 = vadd.f32 %v6069, %v6153
        %v6263 = vadd.f32 %v6070, %v6156
        %v6264 = vadd.f32 %v6071, %v6158
        %v6265 = vadd.f32 %v6072, %v6161
        %v6266 = vadd.f32 %v6073, %v6163
        %v6267 = vadd.f32 %v6074, %v6166
        %v6268 = vadd.f32 %v6075, %v6168
        %v6269 = vadd.f32 %v6076, %v6171
        %v6270 = vadd.f32 %v6077, %v6173
        %v6271 = vadd.f32 %v6078, %v6176
        %v6272 = vadd.f32 %v6079, %v6178
        %v6273 = vadd.f32 %v6080, %v6181
        %v6274 = vadd.f32 %v6081, %v6183
        %v6275 = vadd.f32 %v6082, %v6186
        %v6276 = vadd.f32 %v6083, %v6188
        %v6277 = vadd.f32 %v6084, %v6191
        %v6278 = vadd.f32 %v6085, %v6193
        %v6279 = vadd.f32 %v6086, %v6196
        %v6280 = vadd.f32 %v6087, %v6198
        %v6281 = vadd.f32 %v6088, %v6201
        %v6282 = vadd.f32 %v6089, %v6203
        %v6283 = vadd.f32 %v6090, %v6206
        %v6284 = vadd.f32 %v6091, %v6208
        %v6285 = vadd.f32 %v6092, %v6211
        %v6286 = vadd.f32 %v6093, %v6213
        %v6287 = vadd.f32 %v6094, %v6216
        %v6288 = vadd.f32 %v6095, %v6218
        %v6289 = vadd.f32 %v6096, %v6221
        %v6290 = vadd.f32 %v6097, %v6223
        %v6291 = vadd.f32 %v6098, %v6226
        %v6292 = vadd.f32 %v6099, %v6228
        %s6293 = scalar_lea.vmem %s1, 16
        %v6294 = vld [vmem:[%s6293] sm:$0xff]
        %v6295 = vld [vmem:[%s6293 + $0x8] sm:$0xff]
        %v6297 = vsel %vm366, %v6261, 0
        %v6300 = vsel %vm366, %v6262, 0
        %v6303 = vsel %vm366, %v6263, 0
        %v6306 = vsel %vm366, %v6264, 0
        %v6309 = vsel %vm366, %v6265, 0
        %v6312 = vsel %vm366, %v6266, 0
        %v6315 = vsel %vm366, %v6267, 0
        %v6318 = vsel %vm366, %v6268, 0
        %v6321 = vsel %vm366, %v6269, 0
        %v6324 = vsel %vm366, %v6270, 0
        %v6327 = vsel %vm366, %v6271, 0
        %v6330 = vsel %vm366, %v6272, 0
        %v6333 = vsel %vm366, %v6273, 0
        %v6336 = vsel %vm366, %v6274, 0
        %v6339 = vsel %vm366, %v6275, 0
        %v6342 = vsel %vm366, %v6276, 0
        %v6345 = vsel %vm366, %v6277, 0
        %v6348 = vsel %vm366, %v6278, 0
        %v6351 = vsel %vm366, %v6279, 0
        %v6354 = vsel %vm366, %v6280, 0
        %v6357 = vsel %vm366, %v6281, 0
        %v6360 = vsel %vm366, %v6282, 0
        %v6363 = vsel %vm366, %v6283, 0
        %v6366 = vsel %vm366, %v6284, 0
        %v6369 = vsel %vm366, %v6285, 0
        %v6372 = vsel %vm366, %v6286, 0
        %v6375 = vsel %vm366, %v6287, 0
        %v6378 = vsel %vm366, %v6288, 0
        %v6381 = vsel %vm366, %v6289, 0
        %v6384 = vsel %vm366, %v6290, 0
        %v6387 = vsel %vm366, %v6291, 0
        %v6390 = vsel %vm366, %v6292, 0
        %6392 = vmatprep.subr.mxu0 0.0
        %6393 = vmatpush1.msra.mxu0 0.0
        %6394 = vmatprep.subr.mxu0 0.0
        %6395 = vmatpush1.msra.mxu0 0.0
        %6396 = vmatprep.subr.mxu0 0.0
        %6397 = vmatpush1.msra.mxu0 0.0
        %6398 = vmatprep.subr.mxu0 0.0
        %6399 = vmatpush1.msra.mxu0 0.0
        %6400 = vmatprep.subr.mxu0 0.0
        %6401 = vmatpush1.msra.mxu0 0.0
        %6402 = vmatprep.subr.mxu0 0.0
        %6403 = vmatpush1.msra.mxu0 0.0
        %6404 = vmatprep.subr.mxu0 0.0
        %6405 = vmatpush1.msra.mxu0 0.0
        %6406 = vmatprep.subr.mxu0 0.0
        %6407 = vmatpush1.msra.mxu0 0.0
        %6408 = vmatprep.subr.mxu0 0.0
        %6409 = vmatpush1.msra.mxu0 0.0
        %6410 = vmatprep.subr.mxu0 0.0
        %6411 = vmatpush1.msra.mxu0 0.0
        %6412 = vmatprep.subr.mxu0 0.0
        %6413 = vmatpush1.msra.mxu0 0.0
        %6414 = vmatprep.subr.mxu0 0.0
        %6415 = vmatpush1.msra.mxu0 0.0
        %6416 = vmatprep.subr.mxu0 0.0
        %6417 = vmatpush1.msra.mxu0 0.0
        %6418 = vmatprep.subr.mxu0 0.0
        %6419 = vmatpush1.msra.mxu0 0.0
        %6420 = vmatprep.subr.mxu0 0.0
        %6421 = vmatpush1.msra.mxu0 %v6295
        %6422 = vmatprep.subr.mxu0 0.0
        %6423 = vmatpush1.msra.mxu0 %v6294
        %6424 = vmatprep.subr.mxu0 0.0
        %6425 = vmatpush2.msra.mxu0 0.0
        %6426 = vmatprep.subr.mxu0 0.0
        %6427 = vmatpush2.msra.mxu0 0.0
        %6428 = vmatprep.subr.mxu0 0.0
        %6429 = vmatpush2.msra.mxu0 0.0
        %6430 = vmatprep.subr.mxu0 0.0
        %6431 = vmatpush2.msra.mxu0 0.0
        %6432 = vmatprep.subr.mxu0 0.0
        %6433 = vmatpush2.msra.mxu0 0.0
        %6434 = vmatprep.subr.mxu0 0.0
        %6435 = vmatpush2.msra.mxu0 0.0
        %6436 = vmatprep.subr.mxu0 0.0
        %6437 = vmatpush2.msra.mxu0 0.0
        %6438 = vmatprep.subr.mxu0 0.0
        %6439 = vmatpush2.msra.mxu0 0.0
        %6440 = vmatprep.subr.mxu0 0.0
        %6441 = vmatpush2.msra.mxu0 0.0
        %6442 = vmatprep.subr.mxu0 0.0
        %6443 = vmatpush2.msra.mxu0 0.0
        %6444 = vmatprep.subr.mxu0 0.0
        %6445 = vmatpush2.msra.mxu0 0.0
        %6446 = vmatprep.subr.mxu0 0.0
        %6447 = vmatpush2.msra.mxu0 0.0
        %6448 = vmatprep.subr.mxu0 0.0
        %6449 = vmatpush2.msra.mxu0 0.0
        %6450 = vmatprep.subr.mxu0 0.0
        %6451 = vmatpush2.msra.mxu0 0.0
        %6452 = vmatprep.subr.mxu0 0.0
        %6453 = vmatpush2.msra.mxu0 0.0
        %6454 = vmatprep.subr.mxu0 0.0
        %6455 = vmatpush2.msra.mxu0 0.0
        %6456 = vmatprep.mubr.f32.mxu0 0.0
        %6457 = vmatmul.mubr.f32.gmra.mxu0 %v6297
        %v6458 = vpop.f32.mrf.mxu0
        %v6459 = vadd.f32 0.0, %v6458
        %v6460 = vpop.f32.mrf.mxu0
        %6461 = vmatprep.mubr.f32.mxu0 0.0
        %6462 = vmatmul.mubr.f32.gmra.mxu0 %v6300
        %v6463 = vpop.f32.mrf.mxu0
        %v6464 = vadd.f32 0.0, %v6463
        %v6465 = vpop.f32.mrf.mxu0
        %6466 = vmatprep.mubr.f32.mxu0 0.0
        %6467 = vmatmul.mubr.f32.gmra.mxu0 %v6303
        %v6468 = vpop.f32.mrf.mxu0
        %v6469 = vadd.f32 0.0, %v6468
        %v6470 = vpop.f32.mrf.mxu0
        %6471 = vmatprep.mubr.f32.mxu0 0.0
        %6472 = vmatmul.mubr.f32.gmra.mxu0 %v6306
        %v6473 = vpop.f32.mrf.mxu0
        %v6474 = vadd.f32 0.0, %v6473
        %v6475 = vpop.f32.mrf.mxu0
        %6476 = vmatprep.mubr.f32.mxu0 0.0
        %6477 = vmatmul.mubr.f32.gmra.mxu0 %v6309
        %v6478 = vpop.f32.mrf.mxu0
        %v6479 = vadd.f32 0.0, %v6478
        %v6480 = vpop.f32.mrf.mxu0
        %6481 = vmatprep.mubr.f32.mxu0 0.0
        %6482 = vmatmul.mubr.f32.gmra.mxu0 %v6312
        %v6483 = vpop.f32.mrf.mxu0
        %v6484 = vadd.f32 0.0, %v6483
        %v6485 = vpop.f32.mrf.mxu0
        %6486 = vmatprep.mubr.f32.mxu0 0.0
        %6487 = vmatmul.mubr.f32.gmra.mxu0 %v6315
        %v6488 = vpop.f32.mrf.mxu0
        %v6489 = vadd.f32 0.0, %v6488
        %v6490 = vpop.f32.mrf.mxu0
        %6491 = vmatprep.mubr.f32.mxu0 0.0
        %6492 = vmatmul.mubr.f32.gmra.mxu0 %v6318
        %v6493 = vpop.f32.mrf.mxu0
        %v6494 = vadd.f32 0.0, %v6493
        %v6495 = vpop.f32.mrf.mxu0
        %6496 = vmatprep.mubr.f32.mxu0 0.0
        %6497 = vmatmul.mubr.f32.gmra.mxu0 %v6321
        %v6498 = vpop.f32.mrf.mxu0
        %v6499 = vadd.f32 0.0, %v6498
        %v6500 = vpop.f32.mrf.mxu0
        %6501 = vmatprep.mubr.f32.mxu0 0.0
        %6502 = vmatmul.mubr.f32.gmra.mxu0 %v6324
        %v6503 = vpop.f32.mrf.mxu0
        %v6504 = vadd.f32 0.0, %v6503
        %v6505 = vpop.f32.mrf.mxu0
        %6506 = vmatprep.mubr.f32.mxu0 0.0
        %6507 = vmatmul.mubr.f32.gmra.mxu0 %v6327
        %v6508 = vpop.f32.mrf.mxu0
        %v6509 = vadd.f32 0.0, %v6508
        %v6510 = vpop.f32.mrf.mxu0
        %6511 = vmatprep.mubr.f32.mxu0 0.0
        %6512 = vmatmul.mubr.f32.gmra.mxu0 %v6330
        %v6513 = vpop.f32.mrf.mxu0
        %v6514 = vadd.f32 0.0, %v6513
        %v6515 = vpop.f32.mrf.mxu0
        %6516 = vmatprep.mubr.f32.mxu0 0.0
        %6517 = vmatmul.mubr.f32.gmra.mxu0 %v6333
        %v6518 = vpop.f32.mrf.mxu0
        %v6519 = vadd.f32 0.0, %v6518
        %v6520 = vpop.f32.mrf.mxu0
        %6521 = vmatprep.mubr.f32.mxu0 0.0
        %6522 = vmatmul.mubr.f32.gmra.mxu0 %v6336
        %v6523 = vpop.f32.mrf.mxu0
        %v6524 = vadd.f32 0.0, %v6523
        %v6525 = vpop.f32.mrf.mxu0
        %6526 = vmatprep.mubr.f32.mxu0 0.0
        %6527 = vmatmul.mubr.f32.gmra.mxu0 %v6339
        %v6528 = vpop.f32.mrf.mxu0
        %v6529 = vadd.f32 0.0, %v6528
        %v6530 = vpop.f32.mrf.mxu0
        %6531 = vmatprep.mubr.f32.mxu0 0.0
        %6532 = vmatmul.mubr.f32.gmra.mxu0 %v6342
        %v6533 = vpop.f32.mrf.mxu0
        %v6534 = vadd.f32 0.0, %v6533
        %v6535 = vpop.f32.mrf.mxu0
        %6536 = vmatprep.mubr.f32.mxu0 0.0
        %6537 = vmatmul.mubr.f32.gmra.mxu0 %v6345
        %v6538 = vpop.f32.mrf.mxu0
        %v6539 = vadd.f32 0.0, %v6538
        %v6540 = vpop.f32.mrf.mxu0
        %6541 = vmatprep.mubr.f32.mxu0 0.0
        %6542 = vmatmul.mubr.f32.gmra.mxu0 %v6348
        %v6543 = vpop.f32.mrf.mxu0
        %v6544 = vadd.f32 0.0, %v6543
        %v6545 = vpop.f32.mrf.mxu0
        %6546 = vmatprep.mubr.f32.mxu0 0.0
        %6547 = vmatmul.mubr.f32.gmra.mxu0 %v6351
        %v6548 = vpop.f32.mrf.mxu0
        %v6549 = vadd.f32 0.0, %v6548
        %v6550 = vpop.f32.mrf.mxu0
        %6551 = vmatprep.mubr.f32.mxu0 0.0
        %6552 = vmatmul.mubr.f32.gmra.mxu0 %v6354
        %v6553 = vpop.f32.mrf.mxu0
        %v6554 = vadd.f32 0.0, %v6553
        %v6555 = vpop.f32.mrf.mxu0
        %6556 = vmatprep.mubr.f32.mxu0 0.0
        %6557 = vmatmul.mubr.f32.gmra.mxu0 %v6357
        %v6558 = vpop.f32.mrf.mxu0
        %v6559 = vadd.f32 0.0, %v6558
        %v6560 = vpop.f32.mrf.mxu0
        %6561 = vmatprep.mubr.f32.mxu0 0.0
        %6562 = vmatmul.mubr.f32.gmra.mxu0 %v6360
        %v6563 = vpop.f32.mrf.mxu0
        %v6564 = vadd.f32 0.0, %v6563
        %v6565 = vpop.f32.mrf.mxu0
        %6566 = vmatprep.mubr.f32.mxu0 0.0
        %6567 = vmatmul.mubr.f32.gmra.mxu0 %v6363
        %v6568 = vpop.f32.mrf.mxu0
        %v6569 = vadd.f32 0.0, %v6568
        %v6570 = vpop.f32.mrf.mxu0
        %6571 = vmatprep.mubr.f32.mxu0 0.0
        %6572 = vmatmul.mubr.f32.gmra.mxu0 %v6366
        %v6573 = vpop.f32.mrf.mxu0
        %v6574 = vadd.f32 0.0, %v6573
        %v6575 = vpop.f32.mrf.mxu0
        %6576 = vmatprep.mubr.f32.mxu0 0.0
        %6577 = vmatmul.mubr.f32.gmra.mxu0 %v6369
        %v6578 = vpop.f32.mrf.mxu0
        %v6579 = vadd.f32 0.0, %v6578
        %v6580 = vpop.f32.mrf.mxu0
        %6581 = vmatprep.mubr.f32.mxu0 0.0
        %6582 = vmatmul.mubr.f32.gmra.mxu0 %v6372
        %v6583 = vpop.f32.mrf.mxu0
        %v6584 = vadd.f32 0.0, %v6583
        %v6585 = vpop.f32.mrf.mxu0
        %6586 = vmatprep.mubr.f32.mxu0 0.0
        %6587 = vmatmul.mubr.f32.gmra.mxu0 %v6375
        %v6588 = vpop.f32.mrf.mxu0
        %v6589 = vadd.f32 0.0, %v6588
        %v6590 = vpop.f32.mrf.mxu0
        %6591 = vmatprep.mubr.f32.mxu0 0.0
        %6592 = vmatmul.mubr.f32.gmra.mxu0 %v6378
        %v6593 = vpop.f32.mrf.mxu0
        %v6594 = vadd.f32 0.0, %v6593
        %v6595 = vpop.f32.mrf.mxu0
        %6596 = vmatprep.mubr.f32.mxu0 0.0
        %6597 = vmatmul.mubr.f32.gmra.mxu0 %v6381
        %v6598 = vpop.f32.mrf.mxu0
        %v6599 = vadd.f32 0.0, %v6598
        %v6600 = vpop.f32.mrf.mxu0
        %6601 = vmatprep.mubr.f32.mxu0 0.0
        %6602 = vmatmul.mubr.f32.gmra.mxu0 %v6384
        %v6603 = vpop.f32.mrf.mxu0
        %v6604 = vadd.f32 0.0, %v6603
        %v6605 = vpop.f32.mrf.mxu0
        %6606 = vmatprep.mubr.f32.mxu0 0.0
        %6607 = vmatmul.mubr.f32.gmra.mxu0 %v6387
        %v6608 = vpop.f32.mrf.mxu0
        %v6609 = vadd.f32 0.0, %v6608
        %v6610 = vpop.f32.mrf.mxu0
        %6611 = vmatprep.mubr.f32.mxu0 0.0
        %6612 = vmatmul.mubr.f32.gmra.mxu0 %v6390
        %v6613 = vpop.f32.mrf.mxu0
        %v6614 = vadd.f32 0.0, %v6613
        %v6615 = vpop.f32.mrf.mxu0
        %6616 = vdwg.mxu0
        %s6617 = scalar_lea.vmem %s2, 1
        %v6618 = vld [vmem:[%s6617] sm:$0x1]
        %v6620 = vlaneseq
        %v6621 = vshrl.u32 %v6620, 7
        %v6622 = vsub.s32 0, %v6621
        %v6623 = vrot.slane %v6618, %v6622
        %v6625 = vmul.f32 %v6459, %v6623
        %v6626 = vmul.f32 %v6464, %v6623
        %v6627 = vmul.f32 %v6469, %v6623
        %v6628 = vmul.f32 %v6474, %v6623
        %v6629 = vmul.f32 %v6479, %v6623
        %v6630 = vmul.f32 %v6484, %v6623
        %v6631 = vmul.f32 %v6489, %v6623
        %v6632 = vmul.f32 %v6494, %v6623
        %v6633 = vmul.f32 %v6499, %v6623
        %v6634 = vmul.f32 %v6504, %v6623
        %v6635 = vmul.f32 %v6509, %v6623
        %v6636 = vmul.f32 %v6514, %v6623
        %v6637 = vmul.f32 %v6519, %v6623
        %v6638 = vmul.f32 %v6524, %v6623
        %v6639 = vmul.f32 %v6529, %v6623
        %v6640 = vmul.f32 %v6534, %v6623
        %v6641 = vmul.f32 %v6539, %v6623
        %v6642 = vmul.f32 %v6544, %v6623
        %v6643 = vmul.f32 %v6549, %v6623
        %v6644 = vmul.f32 %v6554, %v6623
        %v6645 = vmul.f32 %v6559, %v6623
        %v6646 = vmul.f32 %v6564, %v6623
        %v6647 = vmul.f32 %v6569, %v6623
        %v6648 = vmul.f32 %v6574, %v6623
        %v6649 = vmul.f32 %v6579, %v6623
        %v6650 = vmul.f32 %v6584, %v6623
        %v6651 = vmul.f32 %v6589, %v6623
        %v6652 = vmul.f32 %v6594, %v6623
        %v6653 = vmul.f32 %v6599, %v6623
        %v6654 = vmul.f32 %v6604, %v6623
        %v6655 = vmul.f32 %v6609, %v6623
        %v6656 = vmul.f32 %v6614, %v6623
        %s6657 = scalar_lea.vmem %s3, 1
        %v6658 = vld [vmem:[%s6657] sm:$0x1]
        %v6660 = vlaneseq
        %v6661 = vshrl.u32 %v6660, 7
        %v6662 = vsub.s32 0, %v6661
        %v6663 = vrot.slane %v6658, %v6662
        %v6665 = vadd.f32 %v6625, %v6663
        %v6666 = vadd.f32 %v6626, %v6663
        %v6667 = vadd.f32 %v6627, %v6663
        %v6668 = vadd.f32 %v6628, %v6663
        %v6669 = vadd.f32 %v6629, %v6663
        %v6670 = vadd.f32 %v6630, %v6663
        %v6671 = vadd.f32 %v6631, %v6663
        %v6672 = vadd.f32 %v6632, %v6663
        %v6673 = vadd.f32 %v6633, %v6663
        %v6674 = vadd.f32 %v6634, %v6663
        %v6675 = vadd.f32 %v6635, %v6663
        %v6676 = vadd.f32 %v6636, %v6663
        %v6677 = vadd.f32 %v6637, %v6663
        %v6678 = vadd.f32 %v6638, %v6663
        %v6679 = vadd.f32 %v6639, %v6663
        %v6680 = vadd.f32 %v6640, %v6663
        %v6681 = vadd.f32 %v6641, %v6663
        %v6682 = vadd.f32 %v6642, %v6663
        %v6683 = vadd.f32 %v6643, %v6663
        %v6684 = vadd.f32 %v6644, %v6663
        %v6685 = vadd.f32 %v6645, %v6663
        %v6686 = vadd.f32 %v6646, %v6663
        %v6687 = vadd.f32 %v6647, %v6663
        %v6688 = vadd.f32 %v6648, %v6663
        %v6689 = vadd.f32 %v6649, %v6663
        %v6690 = vadd.f32 %v6650, %v6663
        %v6691 = vadd.f32 %v6651, %v6663
        %v6692 = vadd.f32 %v6652, %v6663
        %v6693 = vadd.f32 %v6653, %v6663
        %v6694 = vadd.f32 %v6654, %v6663
        %v6695 = vadd.f32 %v6655, %v6663
        %v6696 = vadd.f32 %v6656, %v6663
        %v6697 = vmax.f32 %v6665, 0.0
        %v6698 = vmax.f32 %v6666, 0.0
        %v6699 = vmax.f32 %v6667, 0.0
        %v6700 = vmax.f32 %v6668, 0.0
        %v6701 = vmax.f32 %v6669, 0.0
        %v6702 = vmax.f32 %v6670, 0.0
        %v6703 = vmax.f32 %v6671, 0.0
        %v6704 = vmax.f32 %v6672, 0.0
        %v6705 = vmax.f32 %v6673, 0.0
        %v6706 = vmax.f32 %v6674, 0.0
        %v6707 = vmax.f32 %v6675, 0.0
        %v6708 = vmax.f32 %v6676, 0.0
        %v6709 = vmax.f32 %v6677, 0.0
        %v6710 = vmax.f32 %v6678, 0.0
        %v6711 = vmax.f32 %v6679, 0.0
        %v6712 = vmax.f32 %v6680, 0.0
        %v6713 = vmax.f32 %v6681, 0.0
        %v6714 = vmax.f32 %v6682, 0.0
        %v6715 = vmax.f32 %v6683, 0.0
        %v6716 = vmax.f32 %v6684, 0.0
        %v6717 = vmax.f32 %v6685, 0.0
        %v6718 = vmax.f32 %v6686, 0.0
        %v6719 = vmax.f32 %v6687, 0.0
        %v6720 = vmax.f32 %v6688, 0.0
        %v6721 = vmax.f32 %v6689, 0.0
        %v6722 = vmax.f32 %v6690, 0.0
        %v6723 = vmax.f32 %v6691, 0.0
        %v6724 = vmax.f32 %v6692, 0.0
        %v6725 = vmax.f32 %v6693, 0.0
        %v6726 = vmax.f32 %v6694, 0.0
        %v6727 = vmax.f32 %v6695, 0.0
        %v6728 = vmax.f32 %v6696, 0.0
        %6729 = vst.msk [vmem:[%s912 + $0x8] sm:$0xff] %vm277, %v6697
        %6730 = vst.msk [vmem:[%s912 + $0x10] sm:$0xff] %vm277, %v6698
        %6731 = vst.msk [vmem:[%s912 + $0x28] sm:$0xff] %vm277, %v6699
        %6732 = vst.msk [vmem:[%s912 + $0x30] sm:$0xff] %vm277, %v6700
        %6733 = vst.msk [vmem:[%s912 + $0x48] sm:$0xff] %vm277, %v6701
        %6734 = vst.msk [vmem:[%s912 + $0x50] sm:$0xff] %vm277, %v6702
        %6735 = vst.msk [vmem:[%s912 + $0x68] sm:$0xff] %vm277, %v6703
        %6736 = vst.msk [vmem:[%s912 + $0x70] sm:$0xff] %vm277, %v6704
        %6737 = vst.msk [vmem:[%s912 + $0x88] sm:$0xff] %vm277, %v6705
        %6738 = vst.msk [vmem:[%s912 + $0x90] sm:$0xff] %vm277, %v6706
        %6739 = vst.msk [vmem:[%s912 + $0xa8] sm:$0xff] %vm277, %v6707
        %6740 = vst.msk [vmem:[%s912 + $0xb0] sm:$0xff] %vm277, %v6708
        %6741 = vst.msk [vmem:[%s912 + $0xc8] sm:$0xff] %vm277, %v6709
        %6742 = vst.msk [vmem:[%s912 + $0xd0] sm:$0xff] %vm277, %v6710
        %6743 = vst.msk [vmem:[%s912 + $0xe8] sm:$0xff] %vm277, %v6711
        %6744 = vst.msk [vmem:[%s912 + $0xf0] sm:$0xff] %vm277, %v6712
        %6745 = vst.msk [vmem:[%s912 + $0x108] sm:$0xff] %vm277, %v6713
        %6746 = vst.msk [vmem:[%s912 + $0x110] sm:$0xff] %vm277, %v6714
        %6747 = vst.msk [vmem:[%s912 + $0x128] sm:$0xff] %vm277, %v6715
        %6748 = vst.msk [vmem:[%s912 + $0x130] sm:$0xff] %vm277, %v6716
        %6749 = vst.msk [vmem:[%s912 + $0x148] sm:$0xff] %vm277, %v6717
        %6750 = vst.msk [vmem:[%s912 + $0x150] sm:$0xff] %vm277, %v6718
        %6751 = vst.msk [vmem:[%s912 + $0x168] sm:$0xff] %vm277, %v6719
        %6752 = vst.msk [vmem:[%s912 + $0x170] sm:$0xff] %vm277, %v6720
        %6753 = vst.msk [vmem:[%s912 + $0x188] sm:$0xff] %vm277, %v6721
        %6754 = vst.msk [vmem:[%s912 + $0x190] sm:$0xff] %vm277, %v6722
        %6755 = vst.msk [vmem:[%s912 + $0x1a8] sm:$0xff] %vm277, %v6723
        %6756 = vst.msk [vmem:[%s912 + $0x1b0] sm:$0xff] %vm277, %v6724
        %6757 = vst.msk [vmem:[%s912 + $0x1c8] sm:$0xff] %vm277, %v6725
        %6758 = vst.msk [vmem:[%s912 + $0x1d0] sm:$0xff] %vm277, %v6726
        %6759 = vst.msk [vmem:[%s912 + $0x1e8] sm:$0xff] %vm277, %v6727
        %6760 = vst.msk [vmem:[%s912 + $0x1f0] sm:$0xff] %vm277, %v6728
        %v6761 = vld [vmem:[#allocation2 + $0x5] sm:$0xff]
        %v6762 = vld [vmem:[#allocation2 + $0xd] sm:$0xff]
        %v6763 = vld [vmem:[#allocation2 + $0x25] sm:$0xff]
        %v6764 = vld [vmem:[#allocation2 + $0x2d] sm:$0xff]
        %v6765 = vld [vmem:[#allocation2 + $0x45] sm:$0xff]
        %v6766 = vld [vmem:[#allocation2 + $0x4d] sm:$0xff]
        %v6767 = vld [vmem:[#allocation2 + $0x65] sm:$0xff]
        %v6768 = vld [vmem:[#allocation2 + $0x6d] sm:$0xff]
        %v6769 = vld [vmem:[#allocation2 + $0x85] sm:$0xff]
        %v6770 = vld [vmem:[#allocation2 + $0x8d] sm:$0xff]
        %v6771 = vld [vmem:[#allocation2 + $0xa5] sm:$0xff]
        %v6772 = vld [vmem:[#allocation2 + $0xad] sm:$0xff]
        %v6773 = vld [vmem:[#allocation2 + $0xc5] sm:$0xff]
        %v6774 = vld [vmem:[#allocation2 + $0xcd] sm:$0xff]
        %v6775 = vld [vmem:[#allocation2 + $0xe5] sm:$0xff]
        %v6776 = vld [vmem:[#allocation2 + $0xed] sm:$0xff]
        %v6777 = vld [vmem:[#allocation2 + $0x105] sm:$0xff]
        %v6778 = vld [vmem:[#allocation2 + $0x10d] sm:$0xff]
        %v6779 = vld [vmem:[#allocation2 + $0x125] sm:$0xff]
        %v6780 = vld [vmem:[#allocation2 + $0x12d] sm:$0xff]
        %v6781 = vld [vmem:[#allocation2 + $0x145] sm:$0xff]
        %v6782 = vld [vmem:[#allocation2 + $0x14d] sm:$0xff]
        %v6783 = vld [vmem:[#allocation2 + $0x165] sm:$0xff]
        %v6784 = vld [vmem:[#allocation2 + $0x16d] sm:$0xff]
        %v6785 = vld [vmem:[#allocation2 + $0x185] sm:$0xff]
        %v6786 = vld [vmem:[#allocation2 + $0x18d] sm:$0xff]
        %v6787 = vld [vmem:[#allocation2 + $0x1a5] sm:$0xff]
        %v6788 = vld [vmem:[#allocation2 + $0x1ad] sm:$0xff]
        %v6789 = vld [vmem:[#allocation2 + $0x1c5] sm:$0xff]
        %v6790 = vld [vmem:[#allocation2 + $0x1cd] sm:$0xff]
        %v6791 = vld [vmem:[#allocation2 + $0x1e5] sm:$0xff]
        %v6792 = vld [vmem:[#allocation2 + $0x1ed] sm:$0xff]
        %v6793 = vld [vmem:[#allocation2 + $0x205] sm:$0xff]
        %v6794 = vld [vmem:[#allocation2 + $0x20d] sm:$0xff]
        %v6795 = vld [vmem:[#allocation2 + $0x225] sm:$0xff]
        %v6796 = vld [vmem:[#allocation2 + $0x22d] sm:$0xff]
        %v6797 = vld [vmem:[#allocation2 + $0x245] sm:$0xff]
        %v6798 = vld [vmem:[#allocation2 + $0x24d] sm:$0xff]
        %v6799 = vld [vmem:[#allocation2 + $0x265] sm:$0xff]
        %v6800 = vld [vmem:[#allocation2 + $0x26d] sm:$0xff]
        %v6801 = vld [vmem:[#allocation2 + $0x285] sm:$0xff]
        %v6802 = vld [vmem:[#allocation2 + $0x28d] sm:$0xff]
        %v6803 = vld [vmem:[#allocation2 + $0x2a5] sm:$0xff]
        %v6804 = vld [vmem:[#allocation2 + $0x2ad] sm:$0xff]
        %v6805 = vld [vmem:[#allocation2 + $0x6] sm:$0xff]
        %v6806 = vld [vmem:[#allocation2 + $0xe] sm:$0xff]
        %v6807 = vld [vmem:[#allocation2 + $0x26] sm:$0xff]
        %v6808 = vld [vmem:[#allocation2 + $0x2e] sm:$0xff]
        %v6809 = vld [vmem:[#allocation2 + $0x46] sm:$0xff]
        %v6810 = vld [vmem:[#allocation2 + $0x4e] sm:$0xff]
        %v6811 = vld [vmem:[#allocation2 + $0x66] sm:$0xff]
        %v6812 = vld [vmem:[#allocation2 + $0x6e] sm:$0xff]
        %v6813 = vld [vmem:[#allocation2 + $0x86] sm:$0xff]
        %v6814 = vld [vmem:[#allocation2 + $0x8e] sm:$0xff]
        %v6815 = vld [vmem:[#allocation2 + $0xa6] sm:$0xff]
        %v6816 = vld [vmem:[#allocation2 + $0xae] sm:$0xff]
        %v6817 = vld [vmem:[#allocation2 + $0xc6] sm:$0xff]
        %v6818 = vld [vmem:[#allocation2 + $0xce] sm:$0xff]
        %v6819 = vld [vmem:[#allocation2 + $0xe6] sm:$0xff]
        %v6820 = vld [vmem:[#allocation2 + $0xee] sm:$0xff]
        %v6821 = vld [vmem:[#allocation2 + $0x106] sm:$0xff]
        %v6822 = vld [vmem:[#allocation2 + $0x10e] sm:$0xff]
        %v6823 = vld [vmem:[#allocation2 + $0x126] sm:$0xff]
        %v6824 = vld [vmem:[#allocation2 + $0x12e] sm:$0xff]
        %v6825 = vld [vmem:[#allocation2 + $0x146] sm:$0xff]
        %v6826 = vld [vmem:[#allocation2 + $0x14e] sm:$0xff]
        %v6827 = vld [vmem:[#allocation2 + $0x166] sm:$0xff]
        %v6828 = vld [vmem:[#allocation2 + $0x16e] sm:$0xff]
        %v6829 = vld [vmem:[#allocation2 + $0x186] sm:$0xff]
        %v6830 = vld [vmem:[#allocation2 + $0x18e] sm:$0xff]
        %v6831 = vld [vmem:[#allocation2 + $0x1a6] sm:$0xff]
        %v6832 = vld [vmem:[#allocation2 + $0x1ae] sm:$0xff]
        %v6833 = vld [vmem:[#allocation2 + $0x1c6] sm:$0xff]
        %v6834 = vld [vmem:[#allocation2 + $0x1ce] sm:$0xff]
        %v6835 = vld [vmem:[#allocation2 + $0x1e6] sm:$0xff]
        %v6836 = vld [vmem:[#allocation2 + $0x1ee] sm:$0xff]
        %v6837 = vld [vmem:[#allocation2 + $0x206] sm:$0xff]
        %v6838 = vld [vmem:[#allocation2 + $0x20e] sm:$0xff]
        %v6839 = vld [vmem:[#allocation2 + $0x226] sm:$0xff]
        %v6840 = vld [vmem:[#allocation2 + $0x22e] sm:$0xff]
        %v6841 = vld [vmem:[#allocation2 + $0x246] sm:$0xff]
        %v6842 = vld [vmem:[#allocation2 + $0x24e] sm:$0xff]
        %v6843 = vld [vmem:[#allocation2 + $0x266] sm:$0xff]
        %v6844 = vld [vmem:[#allocation2 + $0x26e] sm:$0xff]
        %v6845 = vld [vmem:[#allocation2 + $0x286] sm:$0xff]
        %v6846 = vld [vmem:[#allocation2 + $0x28e] sm:$0xff]
        %v6847 = vld [vmem:[#allocation2 + $0x2a6] sm:$0xff]
        %v6848 = vld [vmem:[#allocation2 + $0x2ae] sm:$0xff]
        %v6849 = vld [vmem:[#allocation2 + $0x7] sm:$0xff]
        %v6850 = vld [vmem:[#allocation2 + $0xf] sm:$0xff]
        %v6851 = vld [vmem:[#allocation2 + $0x27] sm:$0xff]
        %v6852 = vld [vmem:[#allocation2 + $0x2f] sm:$0xff]
        %v6853 = vld [vmem:[#allocation2 + $0x47] sm:$0xff]
        %v6854 = vld [vmem:[#allocation2 + $0x4f] sm:$0xff]
        %v6855 = vld [vmem:[#allocation2 + $0x67] sm:$0xff]
        %v6856 = vld [vmem:[#allocation2 + $0x6f] sm:$0xff]
        %v6857 = vld [vmem:[#allocation2 + $0x87] sm:$0xff]
        %v6858 = vld [vmem:[#allocation2 + $0x8f] sm:$0xff]
        %v6859 = vld [vmem:[#allocation2 + $0xa7] sm:$0xff]
        %v6860 = vld [vmem:[#allocation2 + $0xaf] sm:$0xff]
        %v6861 = vld [vmem:[#allocation2 + $0xc7] sm:$0xff]
        %v6862 = vld [vmem:[#allocation2 + $0xcf] sm:$0xff]
        %v6863 = vld [vmem:[#allocation2 + $0xe7] sm:$0xff]
        %v6864 = vld [vmem:[#allocation2 + $0xef] sm:$0xff]
        %v6865 = vld [vmem:[#allocation2 + $0x107] sm:$0xff]
        %v6866 = vld [vmem:[#allocation2 + $0x10f] sm:$0xff]
        %v6867 = vld [vmem:[#allocation2 + $0x127] sm:$0xff]
        %v6868 = vld [vmem:[#allocation2 + $0x12f] sm:$0xff]
        %v6869 = vld [vmem:[#allocation2 + $0x147] sm:$0xff]
        %v6870 = vld [vmem:[#allocation2 + $0x14f] sm:$0xff]
        %v6871 = vld [vmem:[#allocation2 + $0x167] sm:$0xff]
        %v6872 = vld [vmem:[#allocation2 + $0x16f] sm:$0xff]
        %v6873 = vld [vmem:[#allocation2 + $0x187] sm:$0xff]
        %v6874 = vld [vmem:[#allocation2 + $0x18f] sm:$0xff]
        %v6875 = vld [vmem:[#allocation2 + $0x1a7] sm:$0xff]
        %v6876 = vld [vmem:[#allocation2 + $0x1af] sm:$0xff]
        %v6877 = vld [vmem:[#allocation2 + $0x1c7] sm:$0xff]
        %v6878 = vld [vmem:[#allocation2 + $0x1cf] sm:$0xff]
        %v6879 = vld [vmem:[#allocation2 + $0x1e7] sm:$0xff]
        %v6880 = vld [vmem:[#allocation2 + $0x1ef] sm:$0xff]
        %v6881 = vld [vmem:[#allocation2 + $0x207] sm:$0xff]
        %v6882 = vld [vmem:[#allocation2 + $0x20f] sm:$0xff]
        %v6883 = vld [vmem:[#allocation2 + $0x227] sm:$0xff]
        %v6884 = vld [vmem:[#allocation2 + $0x22f] sm:$0xff]
        %v6885 = vld [vmem:[#allocation2 + $0x247] sm:$0xff]
        %v6886 = vld [vmem:[#allocation2 + $0x24f] sm:$0xff]
        %v6887 = vld [vmem:[#allocation2 + $0x267] sm:$0xff]
        %v6888 = vld [vmem:[#allocation2 + $0x26f] sm:$0xff]
        %v6889 = vld [vmem:[#allocation2 + $0x287] sm:$0xff]
        %v6890 = vld [vmem:[#allocation2 + $0x28f] sm:$0xff]
        %v6891 = vld [vmem:[#allocation2 + $0x2a7] sm:$0xff]
        %v6892 = vld [vmem:[#allocation2 + $0x2af] sm:$0xff]
        %v6893 = vld [vmem:[#allocation2 + $0x8] sm:$0xff]
        %v6894 = vld [vmem:[#allocation2 + $0x10] sm:$0xff]
        %v6895 = vld [vmem:[#allocation2 + $0x28] sm:$0xff]
        %v6896 = vld [vmem:[#allocation2 + $0x30] sm:$0xff]
        %v6897 = vld [vmem:[#allocation2 + $0x48] sm:$0xff]
        %v6898 = vld [vmem:[#allocation2 + $0x50] sm:$0xff]
        %v6899 = vld [vmem:[#allocation2 + $0x68] sm:$0xff]
        %v6900 = vld [vmem:[#allocation2 + $0x70] sm:$0xff]
        %v6901 = vld [vmem:[#allocation2 + $0x88] sm:$0xff]
        %v6902 = vld [vmem:[#allocation2 + $0x90] sm:$0xff]
        %v6903 = vld [vmem:[#allocation2 + $0xa8] sm:$0xff]
        %v6904 = vld [vmem:[#allocation2 + $0xb0] sm:$0xff]
        %v6905 = vld [vmem:[#allocation2 + $0xc8] sm:$0xff]
        %v6906 = vld [vmem:[#allocation2 + $0xd0] sm:$0xff]
        %v6907 = vld [vmem:[#allocation2 + $0xe8] sm:$0xff]
        %v6908 = vld [vmem:[#allocation2 + $0xf0] sm:$0xff]
        %v6909 = vld [vmem:[#allocation2 + $0x108] sm:$0xff]
        %v6910 = vld [vmem:[#allocation2 + $0x110] sm:$0xff]
        %v6911 = vld [vmem:[#allocation2 + $0x128] sm:$0xff]
        %v6912 = vld [vmem:[#allocation2 + $0x130] sm:$0xff]
        %v6913 = vld [vmem:[#allocation2 + $0x148] sm:$0xff]
        %v6914 = vld [vmem:[#allocation2 + $0x150] sm:$0xff]
        %v6915 = vld [vmem:[#allocation2 + $0x168] sm:$0xff]
        %v6916 = vld [vmem:[#allocation2 + $0x170] sm:$0xff]
        %v6917 = vld [vmem:[#allocation2 + $0x188] sm:$0xff]
        %v6918 = vld [vmem:[#allocation2 + $0x190] sm:$0xff]
        %v6919 = vld [vmem:[#allocation2 + $0x1a8] sm:$0xff]
        %v6920 = vld [vmem:[#allocation2 + $0x1b0] sm:$0xff]
        %v6921 = vld [vmem:[#allocation2 + $0x1c8] sm:$0xff]
        %v6922 = vld [vmem:[#allocation2 + $0x1d0] sm:$0xff]
        %v6923 = vld [vmem:[#allocation2 + $0x1e8] sm:$0xff]
        %v6924 = vld [vmem:[#allocation2 + $0x1f0] sm:$0xff]
        %v6925 = vld [vmem:[#allocation2 + $0x208] sm:$0xff]
        %v6926 = vld [vmem:[#allocation2 + $0x210] sm:$0xff]
        %v6927 = vld [vmem:[#allocation2 + $0x228] sm:$0xff]
        %v6928 = vld [vmem:[#allocation2 + $0x230] sm:$0xff]
        %v6929 = vld [vmem:[#allocation2 + $0x248] sm:$0xff]
        %v6930 = vld [vmem:[#allocation2 + $0x250] sm:$0xff]
        %v6931 = vld [vmem:[#allocation2 + $0x268] sm:$0xff]
        %v6932 = vld [vmem:[#allocation2 + $0x270] sm:$0xff]
        %v6933 = vld [vmem:[#allocation2 + $0x288] sm:$0xff]
        %v6934 = vld [vmem:[#allocation2 + $0x290] sm:$0xff]
        %v6935 = vld [vmem:[#allocation2 + $0x2a8] sm:$0xff]
        %v6936 = vld [vmem:[#allocation2 + $0x2b0] sm:$0xff]
        %v6937 = vld [vmem:[#allocation2 + $0x9] sm:$0xff]
        %v6938 = vld [vmem:[#allocation2 + $0x11] sm:$0xff]
        %v6939 = vld [vmem:[#allocation2 + $0x29] sm:$0xff]
        %v6940 = vld [vmem:[#allocation2 + $0x31] sm:$0xff]
        %v6941 = vld [vmem:[#allocation2 + $0x49] sm:$0xff]
        %v6942 = vld [vmem:[#allocation2 + $0x51] sm:$0xff]
        %v6943 = vld [vmem:[#allocation2 + $0x69] sm:$0xff]
        %v6944 = vld [vmem:[#allocation2 + $0x71] sm:$0xff]
        %v6945 = vld [vmem:[#allocation2 + $0x89] sm:$0xff]
        %v6946 = vld [vmem:[#allocation2 + $0x91] sm:$0xff]
        %v6947 = vld [vmem:[#allocation2 + $0xa9] sm:$0xff]
        %v6948 = vld [vmem:[#allocation2 + $0xb1] sm:$0xff]
        %v6949 = vld [vmem:[#allocation2 + $0xc9] sm:$0xff]
        %v6950 = vld [vmem:[#allocation2 + $0xd1] sm:$0xff]
        %v6951 = vld [vmem:[#allocation2 + $0xe9] sm:$0xff]
        %v6952 = vld [vmem:[#allocation2 + $0xf1] sm:$0xff]
        %v6953 = vld [vmem:[#allocation2 + $0x109] sm:$0xff]
        %v6954 = vld [vmem:[#allocation2 + $0x111] sm:$0xff]
        %v6955 = vld [vmem:[#allocation2 + $0x129] sm:$0xff]
        %v6956 = vld [vmem:[#allocation2 + $0x131] sm:$0xff]
        %v6957 = vld [vmem:[#allocation2 + $0x149] sm:$0xff]
        %v6958 = vld [vmem:[#allocation2 + $0x151] sm:$0xff]
        %v6959 = vld [vmem:[#allocation2 + $0x169] sm:$0xff]
        %v6960 = vld [vmem:[#allocation2 + $0x171] sm:$0xff]
        %v6961 = vld [vmem:[#allocation2 + $0x189] sm:$0xff]
        %v6962 = vld [vmem:[#allocation2 + $0x191] sm:$0xff]
        %v6963 = vld [vmem:[#allocation2 + $0x1a9] sm:$0xff]
        %v6964 = vld [vmem:[#allocation2 + $0x1b1] sm:$0xff]
        %v6965 = vld [vmem:[#allocation2 + $0x1c9] sm:$0xff]
        %v6966 = vld [vmem:[#allocation2 + $0x1d1] sm:$0xff]
        %v6967 = vld [vmem:[#allocation2 + $0x1e9] sm:$0xff]
        %v6968 = vld [vmem:[#allocation2 + $0x1f1] sm:$0xff]
        %v6969 = vld [vmem:[#allocation2 + $0x209] sm:$0xff]
        %v6970 = vld [vmem:[#allocation2 + $0x211] sm:$0xff]
        %v6971 = vld [vmem:[#allocation2 + $0x229] sm:$0xff]
        %v6972 = vld [vmem:[#allocation2 + $0x231] sm:$0xff]
        %v6973 = vld [vmem:[#allocation2 + $0x249] sm:$0xff]
        %v6974 = vld [vmem:[#allocation2 + $0x251] sm:$0xff]
        %v6975 = vld [vmem:[#allocation2 + $0x269] sm:$0xff]
        %v6976 = vld [vmem:[#allocation2 + $0x271] sm:$0xff]
        %v6977 = vld [vmem:[#allocation2 + $0x289] sm:$0xff]
        %v6978 = vld [vmem:[#allocation2 + $0x291] sm:$0xff]
        %v6979 = vld [vmem:[#allocation2 + $0x2a9] sm:$0xff]
        %v6980 = vld [vmem:[#allocation2 + $0x2b1] sm:$0xff]
        %v6981 = vld [vmem:[#allocation2 + $0xa] sm:$0xff]
        %v6982 = vld [vmem:[#allocation2 + $0x12] sm:$0xff]
        %v6983 = vld [vmem:[#allocation2 + $0x2a] sm:$0xff]
        %v6984 = vld [vmem:[#allocation2 + $0x32] sm:$0xff]
        %v6985 = vld [vmem:[#allocation2 + $0x4a] sm:$0xff]
        %v6986 = vld [vmem:[#allocation2 + $0x52] sm:$0xff]
        %v6987 = vld [vmem:[#allocation2 + $0x6a] sm:$0xff]
        %v6988 = vld [vmem:[#allocation2 + $0x72] sm:$0xff]
        %v6989 = vld [vmem:[#allocation2 + $0x8a] sm:$0xff]
        %v6990 = vld [vmem:[#allocation2 + $0x92] sm:$0xff]
        %v6991 = vld [vmem:[#allocation2 + $0xaa] sm:$0xff]
        %v6992 = vld [vmem:[#allocation2 + $0xb2] sm:$0xff]
        %v6993 = vld [vmem:[#allocation2 + $0xca] sm:$0xff]
        %v6994 = vld [vmem:[#allocation2 + $0xd2] sm:$0xff]
        %v6995 = vld [vmem:[#allocation2 + $0xea] sm:$0xff]
        %v6996 = vld [vmem:[#allocation2 + $0xf2] sm:$0xff]
        %v6997 = vld [vmem:[#allocation2 + $0x10a] sm:$0xff]
        %v6998 = vld [vmem:[#allocation2 + $0x112] sm:$0xff]
        %v6999 = vld [vmem:[#allocation2 + $0x12a] sm:$0xff]
        %v7000 = vld [vmem:[#allocation2 + $0x132] sm:$0xff]
        %v7001 = vld [vmem:[#allocation2 + $0x14a] sm:$0xff]
        %v7002 = vld [vmem:[#allocation2 + $0x152] sm:$0xff]
        %v7003 = vld [vmem:[#allocation2 + $0x16a] sm:$0xff]
        %v7004 = vld [vmem:[#allocation2 + $0x172] sm:$0xff]
        %v7005 = vld [vmem:[#allocation2 + $0x18a] sm:$0xff]
        %v7006 = vld [vmem:[#allocation2 + $0x192] sm:$0xff]
        %v7007 = vld [vmem:[#allocation2 + $0x1aa] sm:$0xff]
        %v7008 = vld [vmem:[#allocation2 + $0x1b2] sm:$0xff]
        %v7009 = vld [vmem:[#allocation2 + $0x1ca] sm:$0xff]
        %v7010 = vld [vmem:[#allocation2 + $0x1d2] sm:$0xff]
        %v7011 = vld [vmem:[#allocation2 + $0x1ea] sm:$0xff]
        %v7012 = vld [vmem:[#allocation2 + $0x1f2] sm:$0xff]
        %v7013 = vld [vmem:[#allocation2 + $0x20a] sm:$0xff]
        %v7014 = vld [vmem:[#allocation2 + $0x212] sm:$0xff]
        %v7015 = vld [vmem:[#allocation2 + $0x22a] sm:$0xff]
        %v7016 = vld [vmem:[#allocation2 + $0x232] sm:$0xff]
        %v7017 = vld [vmem:[#allocation2 + $0x24a] sm:$0xff]
        %v7018 = vld [vmem:[#allocation2 + $0x252] sm:$0xff]
        %v7019 = vld [vmem:[#allocation2 + $0x26a] sm:$0xff]
        %v7020 = vld [vmem:[#allocation2 + $0x272] sm:$0xff]
        %v7021 = vld [vmem:[#allocation2 + $0x28a] sm:$0xff]
        %v7022 = vld [vmem:[#allocation2 + $0x292] sm:$0xff]
        %v7023 = vld [vmem:[#allocation2 + $0x2aa] sm:$0xff]
        %v7024 = vld [vmem:[#allocation2 + $0x2b2] sm:$0xff]
        %v7025 = vld [vmem:[#allocation2 + $0xb] sm:$0xff]
        %v7026 = vld [vmem:[#allocation2 + $0x13] sm:$0xff]
        %v7027 = vld [vmem:[#allocation2 + $0x2b] sm:$0xff]
        %v7028 = vld [vmem:[#allocation2 + $0x33] sm:$0xff]
        %v7029 = vld [vmem:[#allocation2 + $0x4b] sm:$0xff]
        %v7030 = vld [vmem:[#allocation2 + $0x53] sm:$0xff]
        %v7031 = vld [vmem:[#allocation2 + $0x6b] sm:$0xff]
        %v7032 = vld [vmem:[#allocation2 + $0x73] sm:$0xff]
        %v7033 = vld [vmem:[#allocation2 + $0x8b] sm:$0xff]
        %v7034 = vld [vmem:[#allocation2 + $0x93] sm:$0xff]
        %v7035 = vld [vmem:[#allocation2 + $0xab] sm:$0xff]
        %v7036 = vld [vmem:[#allocation2 + $0xb3] sm:$0xff]
        %v7037 = vld [vmem:[#allocation2 + $0xcb] sm:$0xff]
        %v7038 = vld [vmem:[#allocation2 + $0xd3] sm:$0xff]
        %v7039 = vld [vmem:[#allocation2 + $0xeb] sm:$0xff]
        %v7040 = vld [vmem:[#allocation2 + $0xf3] sm:$0xff]
        %v7041 = vld [vmem:[#allocation2 + $0x10b] sm:$0xff]
        %v7042 = vld [vmem:[#allocation2 + $0x113] sm:$0xff]
        %v7043 = vld [vmem:[#allocation2 + $0x12b] sm:$0xff]
        %v7044 = vld [vmem:[#allocation2 + $0x133] sm:$0xff]
        %v7045 = vld [vmem:[#allocation2 + $0x14b] sm:$0xff]
        %v7046 = vld [vmem:[#allocation2 + $0x153] sm:$0xff]
        %v7047 = vld [vmem:[#allocation2 + $0x16b] sm:$0xff]
        %v7048 = vld [vmem:[#allocation2 + $0x173] sm:$0xff]
        %v7049 = vld [vmem:[#allocation2 + $0x18b] sm:$0xff]
        %v7050 = vld [vmem:[#allocation2 + $0x193] sm:$0xff]
        %v7051 = vld [vmem:[#allocation2 + $0x1ab] sm:$0xff]
        %v7052 = vld [vmem:[#allocation2 + $0x1b3] sm:$0xff]
        %v7053 = vld [vmem:[#allocation2 + $0x1cb] sm:$0xff]
        %v7054 = vld [vmem:[#allocation2 + $0x1d3] sm:$0xff]
        %v7055 = vld [vmem:[#allocation2 + $0x1eb] sm:$0xff]
        %v7056 = vld [vmem:[#allocation2 + $0x1f3] sm:$0xff]
        %v7057 = vld [vmem:[#allocation2 + $0x20b] sm:$0xff]
        %v7058 = vld [vmem:[#allocation2 + $0x213] sm:$0xff]
        %v7059 = vld [vmem:[#allocation2 + $0x22b] sm:$0xff]
        %v7060 = vld [vmem:[#allocation2 + $0x233] sm:$0xff]
        %v7061 = vld [vmem:[#allocation2 + $0x24b] sm:$0xff]
        %v7062 = vld [vmem:[#allocation2 + $0x253] sm:$0xff]
        %v7063 = vld [vmem:[#allocation2 + $0x26b] sm:$0xff]
        %v7064 = vld [vmem:[#allocation2 + $0x273] sm:$0xff]
        %v7065 = vld [vmem:[#allocation2 + $0x28b] sm:$0xff]
        %v7066 = vld [vmem:[#allocation2 + $0x293] sm:$0xff]
        %v7067 = vld [vmem:[#allocation2 + $0x2ab] sm:$0xff]
        %v7068 = vld [vmem:[#allocation2 + $0x2b3] sm:$0xff]
        %7113 = vrot.lane.b32.xlu0 %v6805, 4
        %v7114 = vpop.permute.xlu0 %7113
        %7115 = vrot.lane.b32.xlu0 %v6806, 4
        %v7116 = vpop.permute.xlu0 %7115
        %7117 = vrot.lane.b32.xlu0 %v6807, 4
        %v7118 = vpop.permute.xlu0 %7117
        %7119 = vrot.lane.b32.xlu0 %v6808, 4
        %v7120 = vpop.permute.xlu0 %7119
        %7121 = vrot.lane.b32.xlu0 %v6809, 4
        %v7122 = vpop.permute.xlu0 %7121
        %7123 = vrot.lane.b32.xlu0 %v6810, 4
        %v7124 = vpop.permute.xlu0 %7123
        %7125 = vrot.lane.b32.xlu0 %v6811, 4
        %v7126 = vpop.permute.xlu0 %7125
        %7127 = vrot.lane.b32.xlu0 %v6812, 4
        %v7128 = vpop.permute.xlu0 %7127
        %7129 = vrot.lane.b32.xlu0 %v6813, 4
        %v7130 = vpop.permute.xlu0 %7129
        %7131 = vrot.lane.b32.xlu0 %v6814, 4
        %v7132 = vpop.permute.xlu0 %7131
        %7133 = vrot.lane.b32.xlu0 %v6815, 4
        %v7134 = vpop.permute.xlu0 %7133
        %7135 = vrot.lane.b32.xlu0 %v6816, 4
        %v7136 = vpop.permute.xlu0 %7135
        %7137 = vrot.lane.b32.xlu0 %v6817, 4
        %v7138 = vpop.permute.xlu0 %7137
        %7139 = vrot.lane.b32.xlu0 %v6818, 4
        %v7140 = vpop.permute.xlu0 %7139
        %7141 = vrot.lane.b32.xlu0 %v6819, 4
        %v7142 = vpop.permute.xlu0 %7141
        %7143 = vrot.lane.b32.xlu0 %v6820, 4
        %v7144 = vpop.permute.xlu0 %7143
        %7145 = vrot.lane.b32.xlu0 %v6821, 4
        %v7146 = vpop.permute.xlu0 %7145
        %7147 = vrot.lane.b32.xlu0 %v6822, 4
        %v7148 = vpop.permute.xlu0 %7147
        %7149 = vrot.lane.b32.xlu0 %v6823, 4
        %v7150 = vpop.permute.xlu0 %7149
        %7151 = vrot.lane.b32.xlu0 %v6824, 4
        %v7152 = vpop.permute.xlu0 %7151
        %7153 = vrot.lane.b32.xlu0 %v6825, 4
        %v7154 = vpop.permute.xlu0 %7153
        %7155 = vrot.lane.b32.xlu0 %v6826, 4
        %v7156 = vpop.permute.xlu0 %7155
        %7157 = vrot.lane.b32.xlu0 %v6827, 4
        %v7158 = vpop.permute.xlu0 %7157
        %7159 = vrot.lane.b32.xlu0 %v6828, 4
        %v7160 = vpop.permute.xlu0 %7159
        %7161 = vrot.lane.b32.xlu0 %v6829, 4
        %v7162 = vpop.permute.xlu0 %7161
        %7163 = vrot.lane.b32.xlu0 %v6830, 4
        %v7164 = vpop.permute.xlu0 %7163
        %7165 = vrot.lane.b32.xlu0 %v6831, 4
        %v7166 = vpop.permute.xlu0 %7165
        %7167 = vrot.lane.b32.xlu0 %v6832, 4
        %v7168 = vpop.permute.xlu0 %7167
        %7169 = vrot.lane.b32.xlu0 %v6833, 4
        %v7170 = vpop.permute.xlu0 %7169
        %7171 = vrot.lane.b32.xlu0 %v6834, 4
        %v7172 = vpop.permute.xlu0 %7171
        %7173 = vrot.lane.b32.xlu0 %v6835, 4
        %v7174 = vpop.permute.xlu0 %7173
        %7175 = vrot.lane.b32.xlu0 %v6836, 4
        %v7176 = vpop.permute.xlu0 %7175
        %7177 = vrot.lane.b32.xlu0 %v6837, 4
        %v7178 = vpop.permute.xlu0 %7177
        %7179 = vrot.lane.b32.xlu0 %v6838, 4
        %v7180 = vpop.permute.xlu0 %7179
        %7181 = vrot.lane.b32.xlu0 %v6839, 4
        %v7182 = vpop.permute.xlu0 %7181
        %7183 = vrot.lane.b32.xlu0 %v6840, 4
        %v7184 = vpop.permute.xlu0 %7183
        %7185 = vrot.lane.b32.xlu0 %v6841, 4
        %v7186 = vpop.permute.xlu0 %7185
        %7187 = vrot.lane.b32.xlu0 %v6842, 4
        %v7188 = vpop.permute.xlu0 %7187
        %7189 = vrot.lane.b32.xlu0 %v6843, 4
        %v7190 = vpop.permute.xlu0 %7189
        %7191 = vrot.lane.b32.xlu0 %v6844, 4
        %v7192 = vpop.permute.xlu0 %7191
        %7193 = vrot.lane.b32.xlu0 %v6845, 4
        %v7194 = vpop.permute.xlu0 %7193
        %7195 = vrot.lane.b32.xlu0 %v6846, 4
        %v7196 = vpop.permute.xlu0 %7195
        %7197 = vrot.lane.b32.xlu0 %v6847, 4
        %v7198 = vpop.permute.xlu0 %7197
        %7199 = vrot.lane.b32.xlu0 %v6848, 4
        %v7200 = vpop.permute.xlu0 %7199
        %7289 = vrot.lane.b32.xlu0 %v6849, 8
        %v7290 = vpop.permute.xlu0 %7289
        %7291 = vrot.lane.b32.xlu0 %v6850, 8
        %v7292 = vpop.permute.xlu0 %7291
        %7293 = vrot.lane.b32.xlu0 %v6851, 8
        %v7294 = vpop.permute.xlu0 %7293
        %7295 = vrot.lane.b32.xlu0 %v6852, 8
        %v7296 = vpop.permute.xlu0 %7295
        %7297 = vrot.lane.b32.xlu0 %v6853, 8
        %v7298 = vpop.permute.xlu0 %7297
        %7299 = vrot.lane.b32.xlu0 %v6854, 8
        %v7300 = vpop.permute.xlu0 %7299
        %7301 = vrot.lane.b32.xlu0 %v6855, 8
        %v7302 = vpop.permute.xlu0 %7301
        %7303 = vrot.lane.b32.xlu0 %v6856, 8
        %v7304 = vpop.permute.xlu0 %7303
        %7305 = vrot.lane.b32.xlu0 %v6857, 8
        %v7306 = vpop.permute.xlu0 %7305
        %7307 = vrot.lane.b32.xlu0 %v6858, 8
        %v7308 = vpop.permute.xlu0 %7307
        %7309 = vrot.lane.b32.xlu0 %v6859, 8
        %v7310 = vpop.permute.xlu0 %7309
        %7311 = vrot.lane.b32.xlu0 %v6860, 8
        %v7312 = vpop.permute.xlu0 %7311
        %7313 = vrot.lane.b32.xlu0 %v6861, 8
        %v7314 = vpop.permute.xlu0 %7313
        %7315 = vrot.lane.b32.xlu0 %v6862, 8
        %v7316 = vpop.permute.xlu0 %7315
        %7317 = vrot.lane.b32.xlu0 %v6863, 8
        %v7318 = vpop.permute.xlu0 %7317
        %7319 = vrot.lane.b32.xlu0 %v6864, 8
        %v7320 = vpop.permute.xlu0 %7319
        %7321 = vrot.lane.b32.xlu0 %v6865, 8
        %v7322 = vpop.permute.xlu0 %7321
        %7323 = vrot.lane.b32.xlu0 %v6866, 8
        %v7324 = vpop.permute.xlu0 %7323
        %7325 = vrot.lane.b32.xlu0 %v6867, 8
        %v7326 = vpop.permute.xlu0 %7325
        %7327 = vrot.lane.b32.xlu0 %v6868, 8
        %v7328 = vpop.permute.xlu0 %7327
        %7329 = vrot.lane.b32.xlu0 %v6869, 8
        %v7330 = vpop.permute.xlu0 %7329
        %7331 = vrot.lane.b32.xlu0 %v6870, 8
        %v7332 = vpop.permute.xlu0 %7331
        %7333 = vrot.lane.b32.xlu0 %v6871, 8
        %v7334 = vpop.permute.xlu0 %7333
        %7335 = vrot.lane.b32.xlu0 %v6872, 8
        %v7336 = vpop.permute.xlu0 %7335
        %7337 = vrot.lane.b32.xlu0 %v6873, 8
        %v7338 = vpop.permute.xlu0 %7337
        %7339 = vrot.lane.b32.xlu0 %v6874, 8
        %v7340 = vpop.permute.xlu0 %7339
        %7341 = vrot.lane.b32.xlu0 %v6875, 8
        %v7342 = vpop.permute.xlu0 %7341
        %7343 = vrot.lane.b32.xlu0 %v6876, 8
        %v7344 = vpop.permute.xlu0 %7343
        %7345 = vrot.lane.b32.xlu0 %v6877, 8
        %v7346 = vpop.permute.xlu0 %7345
        %7347 = vrot.lane.b32.xlu0 %v6878, 8
        %v7348 = vpop.permute.xlu0 %7347
        %7349 = vrot.lane.b32.xlu0 %v6879, 8
        %v7350 = vpop.permute.xlu0 %7349
        %7351 = vrot.lane.b32.xlu0 %v6880, 8
        %v7352 = vpop.permute.xlu0 %7351
        %7353 = vrot.lane.b32.xlu0 %v6881, 8
        %v7354 = vpop.permute.xlu0 %7353
        %7355 = vrot.lane.b32.xlu0 %v6882, 8
        %v7356 = vpop.permute.xlu0 %7355
        %7357 = vrot.lane.b32.xlu0 %v6883, 8
        %v7358 = vpop.permute.xlu0 %7357
        %7359 = vrot.lane.b32.xlu0 %v6884, 8
        %v7360 = vpop.permute.xlu0 %7359
        %7361 = vrot.lane.b32.xlu0 %v6885, 8
        %v7362 = vpop.permute.xlu0 %7361
        %7363 = vrot.lane.b32.xlu0 %v6886, 8
        %v7364 = vpop.permute.xlu0 %7363
        %7365 = vrot.lane.b32.xlu0 %v6887, 8
        %v7366 = vpop.permute.xlu0 %7365
        %7367 = vrot.lane.b32.xlu0 %v6888, 8
        %v7368 = vpop.permute.xlu0 %7367
        %7369 = vrot.lane.b32.xlu0 %v6889, 8
        %v7370 = vpop.permute.xlu0 %7369
        %7371 = vrot.lane.b32.xlu0 %v6890, 8
        %v7372 = vpop.permute.xlu0 %7371
        %7373 = vrot.lane.b32.xlu0 %v6891, 8
        %v7374 = vpop.permute.xlu0 %7373
        %7375 = vrot.lane.b32.xlu0 %v6892, 8
        %v7376 = vpop.permute.xlu0 %7375
        %7465 = vrot.lane.b32.xlu0 %v6893, 12
        %v7466 = vpop.permute.xlu0 %7465
        %7467 = vrot.lane.b32.xlu0 %v6894, 12
        %v7468 = vpop.permute.xlu0 %7467
        %7469 = vrot.lane.b32.xlu0 %v6895, 12
        %v7470 = vpop.permute.xlu0 %7469
        %7471 = vrot.lane.b32.xlu0 %v6896, 12
        %v7472 = vpop.permute.xlu0 %7471
        %7473 = vrot.lane.b32.xlu0 %v6897, 12
        %v7474 = vpop.permute.xlu0 %7473
        %7475 = vrot.lane.b32.xlu0 %v6898, 12
        %v7476 = vpop.permute.xlu0 %7475
        %7477 = vrot.lane.b32.xlu0 %v6899, 12
        %v7478 = vpop.permute.xlu0 %7477
        %7479 = vrot.lane.b32.xlu0 %v6900, 12
        %v7480 = vpop.permute.xlu0 %7479
        %7481 = vrot.lane.b32.xlu0 %v6901, 12
        %v7482 = vpop.permute.xlu0 %7481
        %7483 = vrot.lane.b32.xlu0 %v6902, 12
        %v7484 = vpop.permute.xlu0 %7483
        %7485 = vrot.lane.b32.xlu0 %v6903, 12
        %v7486 = vpop.permute.xlu0 %7485
        %7487 = vrot.lane.b32.xlu0 %v6904, 12
        %v7488 = vpop.permute.xlu0 %7487
        %7489 = vrot.lane.b32.xlu0 %v6905, 12
        %v7490 = vpop.permute.xlu0 %7489
        %7491 = vrot.lane.b32.xlu0 %v6906, 12
        %v7492 = vpop.permute.xlu0 %7491
        %7493 = vrot.lane.b32.xlu0 %v6907, 12
        %v7494 = vpop.permute.xlu0 %7493
        %7495 = vrot.lane.b32.xlu0 %v6908, 12
        %v7496 = vpop.permute.xlu0 %7495
        %7497 = vrot.lane.b32.xlu0 %v6909, 12
        %v7498 = vpop.permute.xlu0 %7497
        %7499 = vrot.lane.b32.xlu0 %v6910, 12
        %v7500 = vpop.permute.xlu0 %7499
        %7501 = vrot.lane.b32.xlu0 %v6911, 12
        %v7502 = vpop.permute.xlu0 %7501
        %7503 = vrot.lane.b32.xlu0 %v6912, 12
        %v7504 = vpop.permute.xlu0 %7503
        %7505 = vrot.lane.b32.xlu0 %v6913, 12
        %v7506 = vpop.permute.xlu0 %7505
        %7507 = vrot.lane.b32.xlu0 %v6914, 12
        %v7508 = vpop.permute.xlu0 %7507
        %7509 = vrot.lane.b32.xlu0 %v6915, 12
        %v7510 = vpop.permute.xlu0 %7509
        %7511 = vrot.lane.b32.xlu0 %v6916, 12
        %v7512 = vpop.permute.xlu0 %7511
        %7513 = vrot.lane.b32.xlu0 %v6917, 12
        %v7514 = vpop.permute.xlu0 %7513
        %7515 = vrot.lane.b32.xlu0 %v6918, 12
        %v7516 = vpop.permute.xlu0 %7515
        %7517 = vrot.lane.b32.xlu0 %v6919, 12
        %v7518 = vpop.permute.xlu0 %7517
        %7519 = vrot.lane.b32.xlu0 %v6920, 12
        %v7520 = vpop.permute.xlu0 %7519
        %7521 = vrot.lane.b32.xlu0 %v6921, 12
        %v7522 = vpop.permute.xlu0 %7521
        %7523 = vrot.lane.b32.xlu0 %v6922, 12
        %v7524 = vpop.permute.xlu0 %7523
        %7525 = vrot.lane.b32.xlu0 %v6923, 12
        %v7526 = vpop.permute.xlu0 %7525
        %7527 = vrot.lane.b32.xlu0 %v6924, 12
        %v7528 = vpop.permute.xlu0 %7527
        %7529 = vrot.lane.b32.xlu0 %v6925, 12
        %v7530 = vpop.permute.xlu0 %7529
        %7531 = vrot.lane.b32.xlu0 %v6926, 12
        %v7532 = vpop.permute.xlu0 %7531
        %7533 = vrot.lane.b32.xlu0 %v6927, 12
        %v7534 = vpop.permute.xlu0 %7533
        %7535 = vrot.lane.b32.xlu0 %v6928, 12
        %v7536 = vpop.permute.xlu0 %7535
        %7537 = vrot.lane.b32.xlu0 %v6929, 12
        %v7538 = vpop.permute.xlu0 %7537
        %7539 = vrot.lane.b32.xlu0 %v6930, 12
        %v7540 = vpop.permute.xlu0 %7539
        %7541 = vrot.lane.b32.xlu0 %v6931, 12
        %v7542 = vpop.permute.xlu0 %7541
        %7543 = vrot.lane.b32.xlu0 %v6932, 12
        %v7544 = vpop.permute.xlu0 %7543
        %7545 = vrot.lane.b32.xlu0 %v6933, 12
        %v7546 = vpop.permute.xlu0 %7545
        %7547 = vrot.lane.b32.xlu0 %v6934, 12
        %v7548 = vpop.permute.xlu0 %7547
        %7549 = vrot.lane.b32.xlu0 %v6935, 12
        %v7550 = vpop.permute.xlu0 %7549
        %7551 = vrot.lane.b32.xlu0 %v6936, 12
        %v7552 = vpop.permute.xlu0 %7551
        %7641 = vrot.lane.b32.xlu0 %v6937, 16
        %v7642 = vpop.permute.xlu0 %7641
        %7643 = vrot.lane.b32.xlu0 %v6938, 16
        %v7644 = vpop.permute.xlu0 %7643
        %7645 = vrot.lane.b32.xlu0 %v6939, 16
        %v7646 = vpop.permute.xlu0 %7645
        %7647 = vrot.lane.b32.xlu0 %v6940, 16
        %v7648 = vpop.permute.xlu0 %7647
        %7649 = vrot.lane.b32.xlu0 %v6941, 16
        %v7650 = vpop.permute.xlu0 %7649
        %7651 = vrot.lane.b32.xlu0 %v6942, 16
        %v7652 = vpop.permute.xlu0 %7651
        %7653 = vrot.lane.b32.xlu0 %v6943, 16
        %v7654 = vpop.permute.xlu0 %7653
        %7655 = vrot.lane.b32.xlu0 %v6944, 16
        %v7656 = vpop.permute.xlu0 %7655
        %7657 = vrot.lane.b32.xlu0 %v6945, 16
        %v7658 = vpop.permute.xlu0 %7657
        %7659 = vrot.lane.b32.xlu0 %v6946, 16
        %v7660 = vpop.permute.xlu0 %7659
        %7661 = vrot.lane.b32.xlu0 %v6947, 16
        %v7662 = vpop.permute.xlu0 %7661
        %7663 = vrot.lane.b32.xlu0 %v6948, 16
        %v7664 = vpop.permute.xlu0 %7663
        %7665 = vrot.lane.b32.xlu0 %v6949, 16
        %v7666 = vpop.permute.xlu0 %7665
        %7667 = vrot.lane.b32.xlu0 %v6950, 16
        %v7668 = vpop.permute.xlu0 %7667
        %7669 = vrot.lane.b32.xlu0 %v6951, 16
        %v7670 = vpop.permute.xlu0 %7669
        %7671 = vrot.lane.b32.xlu0 %v6952, 16
        %v7672 = vpop.permute.xlu0 %7671
        %7673 = vrot.lane.b32.xlu0 %v6953, 16
        %v7674 = vpop.permute.xlu0 %7673
        %7675 = vrot.lane.b32.xlu0 %v6954, 16
        %v7676 = vpop.permute.xlu0 %7675
        %7677 = vrot.lane.b32.xlu0 %v6955, 16
        %v7678 = vpop.permute.xlu0 %7677
        %7679 = vrot.lane.b32.xlu0 %v6956, 16
        %v7680 = vpop.permute.xlu0 %7679
        %7681 = vrot.lane.b32.xlu0 %v6957, 16
        %v7682 = vpop.permute.xlu0 %7681
        %7683 = vrot.lane.b32.xlu0 %v6958, 16
        %v7684 = vpop.permute.xlu0 %7683
        %7685 = vrot.lane.b32.xlu0 %v6959, 16
        %v7686 = vpop.permute.xlu0 %7685
        %7687 = vrot.lane.b32.xlu0 %v6960, 16
        %v7688 = vpop.permute.xlu0 %7687
        %7689 = vrot.lane.b32.xlu0 %v6961, 16
        %v7690 = vpop.permute.xlu0 %7689
        %7691 = vrot.lane.b32.xlu0 %v6962, 16
        %v7692 = vpop.permute.xlu0 %7691
        %7693 = vrot.lane.b32.xlu0 %v6963, 16
        %v7694 = vpop.permute.xlu0 %7693
        %7695 = vrot.lane.b32.xlu0 %v6964, 16
        %v7696 = vpop.permute.xlu0 %7695
        %7697 = vrot.lane.b32.xlu0 %v6965, 16
        %v7698 = vpop.permute.xlu0 %7697
        %7699 = vrot.lane.b32.xlu0 %v6966, 16
        %v7700 = vpop.permute.xlu0 %7699
        %7701 = vrot.lane.b32.xlu0 %v6967, 16
        %v7702 = vpop.permute.xlu0 %7701
        %7703 = vrot.lane.b32.xlu0 %v6968, 16
        %v7704 = vpop.permute.xlu0 %7703
        %7705 = vrot.lane.b32.xlu0 %v6969, 16
        %v7706 = vpop.permute.xlu0 %7705
        %7707 = vrot.lane.b32.xlu0 %v6970, 16
        %v7708 = vpop.permute.xlu0 %7707
        %7709 = vrot.lane.b32.xlu0 %v6971, 16
        %v7710 = vpop.permute.xlu0 %7709
        %7711 = vrot.lane.b32.xlu0 %v6972, 16
        %v7712 = vpop.permute.xlu0 %7711
        %7713 = vrot.lane.b32.xlu0 %v6973, 16
        %v7714 = vpop.permute.xlu0 %7713
        %7715 = vrot.lane.b32.xlu0 %v6974, 16
        %v7716 = vpop.permute.xlu0 %7715
        %7717 = vrot.lane.b32.xlu0 %v6975, 16
        %v7718 = vpop.permute.xlu0 %7717
        %7719 = vrot.lane.b32.xlu0 %v6976, 16
        %v7720 = vpop.permute.xlu0 %7719
        %7721 = vrot.lane.b32.xlu0 %v6977, 16
        %v7722 = vpop.permute.xlu0 %7721
        %7723 = vrot.lane.b32.xlu0 %v6978, 16
        %v7724 = vpop.permute.xlu0 %7723
        %7725 = vrot.lane.b32.xlu0 %v6979, 16
        %v7726 = vpop.permute.xlu0 %7725
        %7727 = vrot.lane.b32.xlu0 %v6980, 16
        %v7728 = vpop.permute.xlu0 %7727
        %7817 = vrot.lane.b32.xlu0 %v6981, 20
        %v7818 = vpop.permute.xlu0 %7817
        %7819 = vrot.lane.b32.xlu0 %v6982, 20
        %v7820 = vpop.permute.xlu0 %7819
        %7821 = vrot.lane.b32.xlu0 %v6983, 20
        %v7822 = vpop.permute.xlu0 %7821
        %7823 = vrot.lane.b32.xlu0 %v6984, 20
        %v7824 = vpop.permute.xlu0 %7823
        %7825 = vrot.lane.b32.xlu0 %v6985, 20
        %v7826 = vpop.permute.xlu0 %7825
        %7827 = vrot.lane.b32.xlu0 %v6986, 20
        %v7828 = vpop.permute.xlu0 %7827
        %7829 = vrot.lane.b32.xlu0 %v6987, 20
        %v7830 = vpop.permute.xlu0 %7829
        %7831 = vrot.lane.b32.xlu0 %v6988, 20
        %v7832 = vpop.permute.xlu0 %7831
        %7833 = vrot.lane.b32.xlu0 %v6989, 20
        %v7834 = vpop.permute.xlu0 %7833
        %7835 = vrot.lane.b32.xlu0 %v6990, 20
        %v7836 = vpop.permute.xlu0 %7835
        %7837 = vrot.lane.b32.xlu0 %v6991, 20
        %v7838 = vpop.permute.xlu0 %7837
        %7839 = vrot.lane.b32.xlu0 %v6992, 20
        %v7840 = vpop.permute.xlu0 %7839
        %7841 = vrot.lane.b32.xlu0 %v6993, 20
        %v7842 = vpop.permute.xlu0 %7841
        %7843 = vrot.lane.b32.xlu0 %v6994, 20
        %v7844 = vpop.permute.xlu0 %7843
        %7845 = vrot.lane.b32.xlu0 %v6995, 20
        %v7846 = vpop.permute.xlu0 %7845
        %7847 = vrot.lane.b32.xlu0 %v6996, 20
        %v7848 = vpop.permute.xlu0 %7847
        %7849 = vrot.lane.b32.xlu0 %v6997, 20
        %v7850 = vpop.permute.xlu0 %7849
        %7851 = vrot.lane.b32.xlu0 %v6998, 20
        %v7852 = vpop.permute.xlu0 %7851
        %7853 = vrot.lane.b32.xlu0 %v6999, 20
        %v7854 = vpop.permute.xlu0 %7853
        %7855 = vrot.lane.b32.xlu0 %v7000, 20
        %v7856 = vpop.permute.xlu0 %7855
        %7857 = vrot.lane.b32.xlu0 %v7001, 20
        %v7858 = vpop.permute.xlu0 %7857
        %7859 = vrot.lane.b32.xlu0 %v7002, 20
        %v7860 = vpop.permute.xlu0 %7859
        %7861 = vrot.lane.b32.xlu0 %v7003, 20
        %v7862 = vpop.permute.xlu0 %7861
        %7863 = vrot.lane.b32.xlu0 %v7004, 20
        %v7864 = vpop.permute.xlu0 %7863
        %7865 = vrot.lane.b32.xlu0 %v7005, 20
        %v7866 = vpop.permute.xlu0 %7865
        %7867 = vrot.lane.b32.xlu0 %v7006, 20
        %v7868 = vpop.permute.xlu0 %7867
        %7869 = vrot.lane.b32.xlu0 %v7007, 20
        %v7870 = vpop.permute.xlu0 %7869
        %7871 = vrot.lane.b32.xlu0 %v7008, 20
        %v7872 = vpop.permute.xlu0 %7871
        %7873 = vrot.lane.b32.xlu0 %v7009, 20
        %v7874 = vpop.permute.xlu0 %7873
        %7875 = vrot.lane.b32.xlu0 %v7010, 20
        %v7876 = vpop.permute.xlu0 %7875
        %7877 = vrot.lane.b32.xlu0 %v7011, 20
        %v7878 = vpop.permute.xlu0 %7877
        %7879 = vrot.lane.b32.xlu0 %v7012, 20
        %v7880 = vpop.permute.xlu0 %7879
        %7881 = vrot.lane.b32.xlu0 %v7013, 20
        %v7882 = vpop.permute.xlu0 %7881
        %7883 = vrot.lane.b32.xlu0 %v7014, 20
        %v7884 = vpop.permute.xlu0 %7883
        %7885 = vrot.lane.b32.xlu0 %v7015, 20
        %v7886 = vpop.permute.xlu0 %7885
        %7887 = vrot.lane.b32.xlu0 %v7016, 20
        %v7888 = vpop.permute.xlu0 %7887
        %7889 = vrot.lane.b32.xlu0 %v7017, 20
        %v7890 = vpop.permute.xlu0 %7889
        %7891 = vrot.lane.b32.xlu0 %v7018, 20
        %v7892 = vpop.permute.xlu0 %7891
        %7893 = vrot.lane.b32.xlu0 %v7019, 20
        %v7894 = vpop.permute.xlu0 %7893
        %7895 = vrot.lane.b32.xlu0 %v7020, 20
        %v7896 = vpop.permute.xlu0 %7895
        %7897 = vrot.lane.b32.xlu0 %v7021, 20
        %v7898 = vpop.permute.xlu0 %7897
        %7899 = vrot.lane.b32.xlu0 %v7022, 20
        %v7900 = vpop.permute.xlu0 %7899
        %7901 = vrot.lane.b32.xlu0 %v7023, 20
        %v7902 = vpop.permute.xlu0 %7901
        %7903 = vrot.lane.b32.xlu0 %v7024, 20
        %v7904 = vpop.permute.xlu0 %7903
        %7993 = vrot.lane.b32.xlu0 %v7025, 24
        %v7994 = vpop.permute.xlu0 %7993
        %7995 = vrot.lane.b32.xlu0 %v7026, 24
        %v7996 = vpop.permute.xlu0 %7995
        %7997 = vrot.lane.b32.xlu0 %v7027, 24
        %v7998 = vpop.permute.xlu0 %7997
        %7999 = vrot.lane.b32.xlu0 %v7028, 24
        %v8000 = vpop.permute.xlu0 %7999
        %8001 = vrot.lane.b32.xlu0 %v7029, 24
        %v8002 = vpop.permute.xlu0 %8001
        %8003 = vrot.lane.b32.xlu0 %v7030, 24
        %v8004 = vpop.permute.xlu0 %8003
        %8005 = vrot.lane.b32.xlu0 %v7031, 24
        %v8006 = vpop.permute.xlu0 %8005
        %8007 = vrot.lane.b32.xlu0 %v7032, 24
        %v8008 = vpop.permute.xlu0 %8007
        %8009 = vrot.lane.b32.xlu0 %v7033, 24
        %v8010 = vpop.permute.xlu0 %8009
        %8011 = vrot.lane.b32.xlu0 %v7034, 24
        %v8012 = vpop.permute.xlu0 %8011
        %8013 = vrot.lane.b32.xlu0 %v7035, 24
        %v8014 = vpop.permute.xlu0 %8013
        %8015 = vrot.lane.b32.xlu0 %v7036, 24
        %v8016 = vpop.permute.xlu0 %8015
        %8017 = vrot.lane.b32.xlu0 %v7037, 24
        %v8018 = vpop.permute.xlu0 %8017
        %8019 = vrot.lane.b32.xlu0 %v7038, 24
        %v8020 = vpop.permute.xlu0 %8019
        %8021 = vrot.lane.b32.xlu0 %v7039, 24
        %v8022 = vpop.permute.xlu0 %8021
        %8023 = vrot.lane.b32.xlu0 %v7040, 24
        %v8024 = vpop.permute.xlu0 %8023
        %8025 = vrot.lane.b32.xlu0 %v7041, 24
        %v8026 = vpop.permute.xlu0 %8025
        %8027 = vrot.lane.b32.xlu0 %v7042, 24
        %v8028 = vpop.permute.xlu0 %8027
        %8029 = vrot.lane.b32.xlu0 %v7043, 24
        %v8030 = vpop.permute.xlu0 %8029
        %8031 = vrot.lane.b32.xlu0 %v7044, 24
        %v8032 = vpop.permute.xlu0 %8031
        %8033 = vrot.lane.b32.xlu0 %v7045, 24
        %v8034 = vpop.permute.xlu0 %8033
        %8035 = vrot.lane.b32.xlu0 %v7046, 24
        %v8036 = vpop.permute.xlu0 %8035
        %8037 = vrot.lane.b32.xlu0 %v7047, 24
        %v8038 = vpop.permute.xlu0 %8037
        %8039 = vrot.lane.b32.xlu0 %v7048, 24
        %v8040 = vpop.permute.xlu0 %8039
        %8041 = vrot.lane.b32.xlu0 %v7049, 24
        %v8042 = vpop.permute.xlu0 %8041
        %8043 = vrot.lane.b32.xlu0 %v7050, 24
        %v8044 = vpop.permute.xlu0 %8043
        %8045 = vrot.lane.b32.xlu0 %v7051, 24
        %v8046 = vpop.permute.xlu0 %8045
        %8047 = vrot.lane.b32.xlu0 %v7052, 24
        %v8048 = vpop.permute.xlu0 %8047
        %8049 = vrot.lane.b32.xlu0 %v7053, 24
        %v8050 = vpop.permute.xlu0 %8049
        %8051 = vrot.lane.b32.xlu0 %v7054, 24
        %v8052 = vpop.permute.xlu0 %8051
        %8053 = vrot.lane.b32.xlu0 %v7055, 24
        %v8054 = vpop.permute.xlu0 %8053
        %8055 = vrot.lane.b32.xlu0 %v7056, 24
        %v8056 = vpop.permute.xlu0 %8055
        %8057 = vrot.lane.b32.xlu0 %v7057, 24
        %v8058 = vpop.permute.xlu0 %8057
        %8059 = vrot.lane.b32.xlu0 %v7058, 24
        %v8060 = vpop.permute.xlu0 %8059
        %8061 = vrot.lane.b32.xlu0 %v7059, 24
        %v8062 = vpop.permute.xlu0 %8061
        %8063 = vrot.lane.b32.xlu0 %v7060, 24
        %v8064 = vpop.permute.xlu0 %8063
        %8065 = vrot.lane.b32.xlu0 %v7061, 24
        %v8066 = vpop.permute.xlu0 %8065
        %8067 = vrot.lane.b32.xlu0 %v7062, 24
        %v8068 = vpop.permute.xlu0 %8067
        %8069 = vrot.lane.b32.xlu0 %v7063, 24
        %v8070 = vpop.permute.xlu0 %8069
        %8071 = vrot.lane.b32.xlu0 %v7064, 24
        %v8072 = vpop.permute.xlu0 %8071
        %8073 = vrot.lane.b32.xlu0 %v7065, 24
        %v8074 = vpop.permute.xlu0 %8073
        %8075 = vrot.lane.b32.xlu0 %v7066, 24
        %v8076 = vpop.permute.xlu0 %8075
        %8077 = vrot.lane.b32.xlu0 %v7067, 24
        %v8078 = vpop.permute.xlu0 %8077
        %8079 = vrot.lane.b32.xlu0 %v7068, 24
        %v8080 = vpop.permute.xlu0 %8079
        %v8125 = vsel %vm277, %v6761, %v7114
        %v8126 = vsel %vm277, %v6762, %v7116
        %v8127 = vsel %vm277, %v6763, %v7118
        %v8128 = vsel %vm277, %v6764, %v7120
        %v8129 = vsel %vm277, %v6765, %v7122
        %v8130 = vsel %vm277, %v6766, %v7124
        %v8131 = vsel %vm277, %v6767, %v7126
        %v8132 = vsel %vm277, %v6768, %v7128
        %v8133 = vsel %vm277, %v6769, %v7130
        %v8134 = vsel %vm277, %v6770, %v7132
        %v8135 = vsel %vm277, %v6771, %v7134
        %v8136 = vsel %vm277, %v6772, %v7136
        %v8137 = vsel %vm277, %v6773, %v7138
        %v8138 = vsel %vm277, %v6774, %v7140
        %v8139 = vsel %vm277, %v6775, %v7142
        %v8140 = vsel %vm277, %v6776, %v7144
        %v8141 = vsel %vm277, %v6777, %v7146
        %v8142 = vsel %vm277, %v6778, %v7148
        %v8143 = vsel %vm277, %v6779, %v7150
        %v8144 = vsel %vm277, %v6780, %v7152
        %v8145 = vsel %vm277, %v6781, %v7154
        %v8146 = vsel %vm277, %v6782, %v7156
        %v8147 = vsel %vm277, %v6783, %v7158
        %v8148 = vsel %vm277, %v6784, %v7160
        %v8149 = vsel %vm277, %v6785, %v7162
        %v8150 = vsel %vm277, %v6786, %v7164
        %v8151 = vsel %vm277, %v6787, %v7166
        %v8152 = vsel %vm277, %v6788, %v7168
        %v8153 = vsel %vm277, %v6789, %v7170
        %v8154 = vsel %vm277, %v6790, %v7172
        %v8155 = vsel %vm277, %v6791, %v7174
        %v8156 = vsel %vm277, %v6792, %v7176
        %v8157 = vsel %vm277, %v6793, %v7178
        %v8158 = vsel %vm277, %v6794, %v7180
        %v8159 = vsel %vm277, %v6795, %v7182
        %v8160 = vsel %vm277, %v6796, %v7184
        %v8161 = vsel %vm277, %v6797, %v7186
        %v8162 = vsel %vm277, %v6798, %v7188
        %v8163 = vsel %vm277, %v6799, %v7190
        %v8164 = vsel %vm277, %v6800, %v7192
        %v8165 = vsel %vm277, %v6801, %v7194
        %v8166 = vsel %vm277, %v6802, %v7196
        %v8167 = vsel %vm277, %v6803, %v7198
        %v8168 = vsel %vm277, %v6804, %v7200
        %v8169 = vsel %vm2353, %v8125, %v7290
        %v8170 = vsel %vm2353, %v8126, %v7292
        %v8171 = vsel %vm2353, %v8127, %v7294
        %v8172 = vsel %vm2353, %v8128, %v7296
        %v8173 = vsel %vm2353, %v8129, %v7298
        %v8174 = vsel %vm2353, %v8130, %v7300
        %v8175 = vsel %vm2353, %v8131, %v7302
        %v8176 = vsel %vm2353, %v8132, %v7304
        %v8177 = vsel %vm2353, %v8133, %v7306
        %v8178 = vsel %vm2353, %v8134, %v7308
        %v8179 = vsel %vm2353, %v8135, %v7310
        %v8180 = vsel %vm2353, %v8136, %v7312
        %v8181 = vsel %vm2353, %v8137, %v7314
        %v8182 = vsel %vm2353, %v8138, %v7316
        %v8183 = vsel %vm2353, %v8139, %v7318
        %v8184 = vsel %vm2353, %v8140, %v7320
        %v8185 = vsel %vm2353, %v8141, %v7322
        %v8186 = vsel %vm2353, %v8142, %v7324
        %v8187 = vsel %vm2353, %v8143, %v7326
        %v8188 = vsel %vm2353, %v8144, %v7328
        %v8189 = vsel %vm2353, %v8145, %v7330
        %v8190 = vsel %vm2353, %v8146, %v7332
        %v8191 = vsel %vm2353, %v8147, %v7334
        %v8192 = vsel %vm2353, %v8148, %v7336
        %v8193 = vsel %vm2353, %v8149, %v7338
        %v8194 = vsel %vm2353, %v8150, %v7340
        %v8195 = vsel %vm2353, %v8151, %v7342
        %v8196 = vsel %vm2353, %v8152, %v7344
        %v8197 = vsel %vm2353, %v8153, %v7346
        %v8198 = vsel %vm2353, %v8154, %v7348
        %v8199 = vsel %vm2353, %v8155, %v7350
        %v8200 = vsel %vm2353, %v8156, %v7352
        %v8201 = vsel %vm2353, %v8157, %v7354
        %v8202 = vsel %vm2353, %v8158, %v7356
        %v8203 = vsel %vm2353, %v8159, %v7358
        %v8204 = vsel %vm2353, %v8160, %v7360
        %v8205 = vsel %vm2353, %v8161, %v7362
        %v8206 = vsel %vm2353, %v8162, %v7364
        %v8207 = vsel %vm2353, %v8163, %v7366
        %v8208 = vsel %vm2353, %v8164, %v7368
        %v8209 = vsel %vm2353, %v8165, %v7370
        %v8210 = vsel %vm2353, %v8166, %v7372
        %v8211 = vsel %vm2353, %v8167, %v7374
        %v8212 = vsel %vm2353, %v8168, %v7376
        %v8213 = vsel %vm2398, %v8169, %v7466
        %v8214 = vsel %vm2398, %v8170, %v7468
        %v8215 = vsel %vm2398, %v8171, %v7470
        %v8216 = vsel %vm2398, %v8172, %v7472
        %v8217 = vsel %vm2398, %v8173, %v7474
        %v8218 = vsel %vm2398, %v8174, %v7476
        %v8219 = vsel %vm2398, %v8175, %v7478
        %v8220 = vsel %vm2398, %v8176, %v7480
        %v8221 = vsel %vm2398, %v8177, %v7482
        %v8222 = vsel %vm2398, %v8178, %v7484
        %v8223 = vsel %vm2398, %v8179, %v7486
        %v8224 = vsel %vm2398, %v8180, %v7488
        %v8225 = vsel %vm2398, %v8181, %v7490
        %v8226 = vsel %vm2398, %v8182, %v7492
        %v8227 = vsel %vm2398, %v8183, %v7494
        %v8228 = vsel %vm2398, %v8184, %v7496
        %v8229 = vsel %vm2398, %v8185, %v7498
        %v8230 = vsel %vm2398, %v8186, %v7500
        %v8231 = vsel %vm2398, %v8187, %v7502
        %v8232 = vsel %vm2398, %v8188, %v7504
        %v8233 = vsel %vm2398, %v8189, %v7506
        %v8234 = vsel %vm2398, %v8190, %v7508
        %v8235 = vsel %vm2398, %v8191, %v7510
        %v8236 = vsel %vm2398, %v8192, %v7512
        %v8237 = vsel %vm2398, %v8193, %v7514
        %v8238 = vsel %vm2398, %v8194, %v7516
        %v8239 = vsel %vm2398, %v8195, %v7518
        %v8240 = vsel %vm2398, %v8196, %v7520
        %v8241 = vsel %vm2398, %v8197, %v7522
        %v8242 = vsel %vm2398, %v8198, %v7524
        %v8243 = vsel %vm2398, %v8199, %v7526
        %v8244 = vsel %vm2398, %v8200, %v7528
        %v8245 = vsel %vm2398, %v8201, %v7530
        %v8246 = vsel %vm2398, %v8202, %v7532
        %v8247 = vsel %vm2398, %v8203, %v7534
        %v8248 = vsel %vm2398, %v8204, %v7536
        %v8249 = vsel %vm2398, %v8205, %v7538
        %v8250 = vsel %vm2398, %v8206, %v7540
        %v8251 = vsel %vm2398, %v8207, %v7542
        %v8252 = vsel %vm2398, %v8208, %v7544
        %v8253 = vsel %vm2398, %v8209, %v7546
        %v8254 = vsel %vm2398, %v8210, %v7548
        %v8255 = vsel %vm2398, %v8211, %v7550
        %v8256 = vsel %vm2398, %v8212, %v7552
        %v8257 = vsel %vm366, %v8213, %v7642
        %v8258 = vsel %vm366, %v8214, %v7644
        %v8259 = vsel %vm366, %v8215, %v7646
        %v8260 = vsel %vm366, %v8216, %v7648
        %v8261 = vsel %vm366, %v8217, %v7650
        %v8262 = vsel %vm366, %v8218, %v7652
        %v8263 = vsel %vm366, %v8219, %v7654
        %v8264 = vsel %vm366, %v8220, %v7656
        %v8265 = vsel %vm366, %v8221, %v7658
        %v8266 = vsel %vm366, %v8222, %v7660
        %v8267 = vsel %vm366, %v8223, %v7662
        %v8268 = vsel %vm366, %v8224, %v7664
        %v8269 = vsel %vm366, %v8225, %v7666
        %v8270 = vsel %vm366, %v8226, %v7668
        %v8271 = vsel %vm366, %v8227, %v7670
        %v8272 = vsel %vm366, %v8228, %v7672
        %v8273 = vsel %vm366, %v8229, %v7674
        %v8274 = vsel %vm366, %v8230, %v7676
        %v8275 = vsel %vm366, %v8231, %v7678
        %v8276 = vsel %vm366, %v8232, %v7680
        %v8277 = vsel %vm366, %v8233, %v7682
        %v8278 = vsel %vm366, %v8234, %v7684
        %v8279 = vsel %vm366, %v8235, %v7686
        %v8280 = vsel %vm366, %v8236, %v7688
        %v8281 = vsel %vm366, %v8237, %v7690
        %v8282 = vsel %vm366, %v8238, %v7692
        %v8283 = vsel %vm366, %v8239, %v7694
        %v8284 = vsel %vm366, %v8240, %v7696
        %v8285 = vsel %vm366, %v8241, %v7698
        %v8286 = vsel %vm366, %v8242, %v7700
        %v8287 = vsel %vm366, %v8243, %v7702
        %v8288 = vsel %vm366, %v8244, %v7704
        %v8289 = vsel %vm366, %v8245, %v7706
        %v8290 = vsel %vm366, %v8246, %v7708
        %v8291 = vsel %vm366, %v8247, %v7710
        %v8292 = vsel %vm366, %v8248, %v7712
        %v8293 = vsel %vm366, %v8249, %v7714
        %v8294 = vsel %vm366, %v8250, %v7716
        %v8295 = vsel %vm366, %v8251, %v7718
        %v8296 = vsel %vm366, %v8252, %v7720
        %v8297 = vsel %vm366, %v8253, %v7722
        %v8298 = vsel %vm366, %v8254, %v7724
        %v8299 = vsel %vm366, %v8255, %v7726
        %v8300 = vsel %vm366, %v8256, %v7728
        %v8301 = vsel %vm2487, %v8257, %v7818
        %v8302 = vsel %vm2487, %v8258, %v7820
        %v8303 = vsel %vm2487, %v8259, %v7822
        %v8304 = vsel %vm2487, %v8260, %v7824
        %v8305 = vsel %vm2487, %v8261, %v7826
        %v8306 = vsel %vm2487, %v8262, %v7828
        %v8307 = vsel %vm2487, %v8263, %v7830
        %v8308 = vsel %vm2487, %v8264, %v7832
        %v8309 = vsel %vm2487, %v8265, %v7834
        %v8310 = vsel %vm2487, %v8266, %v7836
        %v8311 = vsel %vm2487, %v8267, %v7838
        %v8312 = vsel %vm2487, %v8268, %v7840
        %v8313 = vsel %vm2487, %v8269, %v7842
        %v8314 = vsel %vm2487, %v8270, %v7844
        %v8315 = vsel %vm2487, %v8271, %v7846
        %v8316 = vsel %vm2487, %v8272, %v7848
        %v8317 = vsel %vm2487, %v8273, %v7850
        %v8318 = vsel %vm2487, %v8274, %v7852
        %v8319 = vsel %vm2487, %v8275, %v7854
        %v8320 = vsel %vm2487, %v8276, %v7856
        %v8321 = vsel %vm2487, %v8277, %v7858
        %v8322 = vsel %vm2487, %v8278, %v7860
        %v8323 = vsel %vm2487, %v8279, %v7862
        %v8324 = vsel %vm2487, %v8280, %v7864
        %v8325 = vsel %vm2487, %v8281, %v7866
        %v8326 = vsel %vm2487, %v8282, %v7868
        %v8327 = vsel %vm2487, %v8283, %v7870
        %v8328 = vsel %vm2487, %v8284, %v7872
        %v8329 = vsel %vm2487, %v8285, %v7874
        %v8330 = vsel %vm2487, %v8286, %v7876
        %v8331 = vsel %vm2487, %v8287, %v7878
        %v8332 = vsel %vm2487, %v8288, %v7880
        %v8333 = vsel %vm2487, %v8289, %v7882
        %v8334 = vsel %vm2487, %v8290, %v7884
        %v8335 = vsel %vm2487, %v8291, %v7886
        %v8336 = vsel %vm2487, %v8292, %v7888
        %v8337 = vsel %vm2487, %v8293, %v7890
        %v8338 = vsel %vm2487, %v8294, %v7892
        %v8339 = vsel %vm2487, %v8295, %v7894
        %v8340 = vsel %vm2487, %v8296, %v7896
        %v8341 = vsel %vm2487, %v8297, %v7898
        %v8342 = vsel %vm2487, %v8298, %v7900
        %v8343 = vsel %vm2487, %v8299, %v7902
        %v8344 = vsel %vm2487, %v8300, %v7904
        %v8345 = vsel %vm2532, %v8301, %v7994
        %v8346 = vsel %vm2532, %v8302, %v7996
        %v8347 = vsel %vm2532, %v8303, %v7998
        %v8348 = vsel %vm2532, %v8304, %v8000
        %v8349 = vsel %vm2532, %v8305, %v8002
        %v8350 = vsel %vm2532, %v8306, %v8004
        %v8351 = vsel %vm2532, %v8307, %v8006
        %v8352 = vsel %vm2532, %v8308, %v8008
        %v8353 = vsel %vm2532, %v8309, %v8010
        %v8354 = vsel %vm2532, %v8310, %v8012
        %v8355 = vsel %vm2532, %v8311, %v8014
        %v8356 = vsel %vm2532, %v8312, %v8016
        %v8357 = vsel %vm2532, %v8313, %v8018
        %v8358 = vsel %vm2532, %v8314, %v8020
        %v8359 = vsel %vm2532, %v8315, %v8022
        %v8360 = vsel %vm2532, %v8316, %v8024
        %v8361 = vsel %vm2532, %v8317, %v8026
        %v8362 = vsel %vm2532, %v8318, %v8028
        %v8363 = vsel %vm2532, %v8319, %v8030
        %v8364 = vsel %vm2532, %v8320, %v8032
        %v8365 = vsel %vm2532, %v8321, %v8034
        %v8366 = vsel %vm2532, %v8322, %v8036
        %v8367 = vsel %vm2532, %v8323, %v8038
        %v8368 = vsel %vm2532, %v8324, %v8040
        %v8369 = vsel %vm2532, %v8325, %v8042
        %v8370 = vsel %vm2532, %v8326, %v8044
        %v8371 = vsel %vm2532, %v8327, %v8046
        %v8372 = vsel %vm2532, %v8328, %v8048
        %v8373 = vsel %vm2532, %v8329, %v8050
        %v8374 = vsel %vm2532, %v8330, %v8052
        %v8375 = vsel %vm2532, %v8331, %v8054
        %v8376 = vsel %vm2532, %v8332, %v8056
        %v8377 = vsel %vm2532, %v8333, %v8058
        %v8378 = vsel %vm2532, %v8334, %v8060
        %v8379 = vsel %vm2532, %v8335, %v8062
        %v8380 = vsel %vm2532, %v8336, %v8064
        %v8381 = vsel %vm2532, %v8337, %v8066
        %v8382 = vsel %vm2532, %v8338, %v8068
        %v8383 = vsel %vm2532, %v8339, %v8070
        %v8384 = vsel %vm2532, %v8340, %v8072
        %v8385 = vsel %vm2532, %v8341, %v8074
        %v8386 = vsel %vm2532, %v8342, %v8076
        %v8387 = vsel %vm2532, %v8343, %v8078
        %v8388 = vsel %vm2532, %v8344, %v8080
        %8421 = vrot.lane.b32.xlu0 %v8347, 28
        %v8422 = vpop.permute.xlu0 %8421
        %8423 = vrot.lane.b32.xlu0 %v8348, 28
        %v8424 = vpop.permute.xlu0 %8423
        %8425 = vrot.lane.b32.xlu0 %v8349, 28
        %v8426 = vpop.permute.xlu0 %8425
        %8427 = vrot.lane.b32.xlu0 %v8350, 28
        %v8428 = vpop.permute.xlu0 %8427
        %8429 = vrot.lane.b32.xlu0 %v8351, 28
        %v8430 = vpop.permute.xlu0 %8429
        %8431 = vrot.lane.b32.xlu0 %v8352, 28
        %v8432 = vpop.permute.xlu0 %8431
        %8433 = vrot.lane.b32.xlu0 %v8353, 28
        %v8434 = vpop.permute.xlu0 %8433
        %8435 = vrot.lane.b32.xlu0 %v8354, 28
        %v8436 = vpop.permute.xlu0 %8435
        %8437 = vrot.lane.b32.xlu0 %v8355, 28
        %v8438 = vpop.permute.xlu0 %8437
        %8439 = vrot.lane.b32.xlu0 %v8356, 28
        %v8440 = vpop.permute.xlu0 %8439
        %8441 = vrot.lane.b32.xlu0 %v8357, 28
        %v8442 = vpop.permute.xlu0 %8441
        %8443 = vrot.lane.b32.xlu0 %v8358, 28
        %v8444 = vpop.permute.xlu0 %8443
        %8445 = vrot.lane.b32.xlu0 %v8359, 28
        %v8446 = vpop.permute.xlu0 %8445
        %8447 = vrot.lane.b32.xlu0 %v8360, 28
        %v8448 = vpop.permute.xlu0 %8447
        %8449 = vrot.lane.b32.xlu0 %v8361, 28
        %v8450 = vpop.permute.xlu0 %8449
        %8451 = vrot.lane.b32.xlu0 %v8362, 28
        %v8452 = vpop.permute.xlu0 %8451
        %8453 = vrot.lane.b32.xlu0 %v8363, 28
        %v8454 = vpop.permute.xlu0 %8453
        %8455 = vrot.lane.b32.xlu0 %v8364, 28
        %v8456 = vpop.permute.xlu0 %8455
        %8457 = vrot.lane.b32.xlu0 %v8365, 28
        %v8458 = vpop.permute.xlu0 %8457
        %8459 = vrot.lane.b32.xlu0 %v8366, 28
        %v8460 = vpop.permute.xlu0 %8459
        %8461 = vrot.lane.b32.xlu0 %v8367, 28
        %v8462 = vpop.permute.xlu0 %8461
        %8463 = vrot.lane.b32.xlu0 %v8368, 28
        %v8464 = vpop.permute.xlu0 %8463
        %8465 = vrot.lane.b32.xlu0 %v8369, 28
        %v8466 = vpop.permute.xlu0 %8465
        %8467 = vrot.lane.b32.xlu0 %v8370, 28
        %v8468 = vpop.permute.xlu0 %8467
        %8469 = vrot.lane.b32.xlu0 %v8371, 28
        %v8470 = vpop.permute.xlu0 %8469
        %8471 = vrot.lane.b32.xlu0 %v8372, 28
        %v8472 = vpop.permute.xlu0 %8471
        %8473 = vrot.lane.b32.xlu0 %v8373, 28
        %v8474 = vpop.permute.xlu0 %8473
        %8475 = vrot.lane.b32.xlu0 %v8374, 28
        %v8476 = vpop.permute.xlu0 %8475
        %8477 = vrot.lane.b32.xlu0 %v8375, 28
        %v8478 = vpop.permute.xlu0 %8477
        %8479 = vrot.lane.b32.xlu0 %v8376, 28
        %v8480 = vpop.permute.xlu0 %8479
        %8481 = vrot.lane.b32.xlu0 %v8377, 28
        %v8482 = vpop.permute.xlu0 %8481
        %8483 = vrot.lane.b32.xlu0 %v8378, 28
        %v8484 = vpop.permute.xlu0 %8483
        %8519 = vrot.lane.b32.xlu0 %v8349, 56
        %v8520 = vpop.permute.xlu0 %8519
        %8521 = vrot.lane.b32.xlu0 %v8350, 56
        %v8522 = vpop.permute.xlu0 %8521
        %8523 = vrot.lane.b32.xlu0 %v8351, 56
        %v8524 = vpop.permute.xlu0 %8523
        %8525 = vrot.lane.b32.xlu0 %v8352, 56
        %v8526 = vpop.permute.xlu0 %8525
        %8527 = vrot.lane.b32.xlu0 %v8353, 56
        %v8528 = vpop.permute.xlu0 %8527
        %8529 = vrot.lane.b32.xlu0 %v8354, 56
        %v8530 = vpop.permute.xlu0 %8529
        %8531 = vrot.lane.b32.xlu0 %v8355, 56
        %v8532 = vpop.permute.xlu0 %8531
        %8533 = vrot.lane.b32.xlu0 %v8356, 56
        %v8534 = vpop.permute.xlu0 %8533
        %8535 = vrot.lane.b32.xlu0 %v8357, 56
        %v8536 = vpop.permute.xlu0 %8535
        %8537 = vrot.lane.b32.xlu0 %v8358, 56
        %v8538 = vpop.permute.xlu0 %8537
        %8539 = vrot.lane.b32.xlu0 %v8359, 56
        %v8540 = vpop.permute.xlu0 %8539
        %8541 = vrot.lane.b32.xlu0 %v8360, 56
        %v8542 = vpop.permute.xlu0 %8541
        %8543 = vrot.lane.b32.xlu0 %v8361, 56
        %v8544 = vpop.permute.xlu0 %8543
        %8545 = vrot.lane.b32.xlu0 %v8362, 56
        %v8546 = vpop.permute.xlu0 %8545
        %8547 = vrot.lane.b32.xlu0 %v8363, 56
        %v8548 = vpop.permute.xlu0 %8547
        %8549 = vrot.lane.b32.xlu0 %v8364, 56
        %v8550 = vpop.permute.xlu0 %8549
        %8551 = vrot.lane.b32.xlu0 %v8365, 56
        %v8552 = vpop.permute.xlu0 %8551
        %8553 = vrot.lane.b32.xlu0 %v8366, 56
        %v8554 = vpop.permute.xlu0 %8553
        %8555 = vrot.lane.b32.xlu0 %v8367, 56
        %v8556 = vpop.permute.xlu0 %8555
        %8557 = vrot.lane.b32.xlu0 %v8368, 56
        %v8558 = vpop.permute.xlu0 %8557
        %8559 = vrot.lane.b32.xlu0 %v8369, 56
        %v8560 = vpop.permute.xlu0 %8559
        %8561 = vrot.lane.b32.xlu0 %v8370, 56
        %v8562 = vpop.permute.xlu0 %8561
        %8563 = vrot.lane.b32.xlu0 %v8371, 56
        %v8564 = vpop.permute.xlu0 %8563
        %8565 = vrot.lane.b32.xlu0 %v8372, 56
        %v8566 = vpop.permute.xlu0 %8565
        %8567 = vrot.lane.b32.xlu0 %v8373, 56
        %v8568 = vpop.permute.xlu0 %8567
        %8569 = vrot.lane.b32.xlu0 %v8374, 56
        %v8570 = vpop.permute.xlu0 %8569
        %8571 = vrot.lane.b32.xlu0 %v8375, 56
        %v8572 = vpop.permute.xlu0 %8571
        %8573 = vrot.lane.b32.xlu0 %v8376, 56
        %v8574 = vpop.permute.xlu0 %8573
        %8575 = vrot.lane.b32.xlu0 %v8377, 56
        %v8576 = vpop.permute.xlu0 %8575
        %8577 = vrot.lane.b32.xlu0 %v8378, 56
        %v8578 = vpop.permute.xlu0 %8577
        %8579 = vrot.lane.b32.xlu0 %v8379, 56
        %v8580 = vpop.permute.xlu0 %8579
        %8581 = vrot.lane.b32.xlu0 %v8380, 56
        %v8582 = vpop.permute.xlu0 %8581
        %8617 = vrot.lane.b32.xlu0 %v8351, 84
        %v8618 = vpop.permute.xlu0 %8617
        %8619 = vrot.lane.b32.xlu0 %v8352, 84
        %v8620 = vpop.permute.xlu0 %8619
        %8621 = vrot.lane.b32.xlu0 %v8353, 84
        %v8622 = vpop.permute.xlu0 %8621
        %8623 = vrot.lane.b32.xlu0 %v8354, 84
        %v8624 = vpop.permute.xlu0 %8623
        %8625 = vrot.lane.b32.xlu0 %v8355, 84
        %v8626 = vpop.permute.xlu0 %8625
        %8627 = vrot.lane.b32.xlu0 %v8356, 84
        %v8628 = vpop.permute.xlu0 %8627
        %8629 = vrot.lane.b32.xlu0 %v8357, 84
        %v8630 = vpop.permute.xlu0 %8629
        %8631 = vrot.lane.b32.xlu0 %v8358, 84
        %v8632 = vpop.permute.xlu0 %8631
        %8633 = vrot.lane.b32.xlu0 %v8359, 84
        %v8634 = vpop.permute.xlu0 %8633
        %8635 = vrot.lane.b32.xlu0 %v8360, 84
        %v8636 = vpop.permute.xlu0 %8635
        %8637 = vrot.lane.b32.xlu0 %v8361, 84
        %v8638 = vpop.permute.xlu0 %8637
        %8639 = vrot.lane.b32.xlu0 %v8362, 84
        %v8640 = vpop.permute.xlu0 %8639
        %8641 = vrot.lane.b32.xlu0 %v8363, 84
        %v8642 = vpop.permute.xlu0 %8641
        %8643 = vrot.lane.b32.xlu0 %v8364, 84
        %v8644 = vpop.permute.xlu0 %8643
        %8645 = vrot.lane.b32.xlu0 %v8365, 84
        %v8646 = vpop.permute.xlu0 %8645
        %8647 = vrot.lane.b32.xlu0 %v8366, 84
        %v8648 = vpop.permute.xlu0 %8647
        %8649 = vrot.lane.b32.xlu0 %v8367, 84
        %v8650 = vpop.permute.xlu0 %8649
        %8651 = vrot.lane.b32.xlu0 %v8368, 84
        %v8652 = vpop.permute.xlu0 %8651
        %8653 = vrot.lane.b32.xlu0 %v8369, 84
        %v8654 = vpop.permute.xlu0 %8653
        %8655 = vrot.lane.b32.xlu0 %v8370, 84
        %v8656 = vpop.permute.xlu0 %8655
        %8657 = vrot.lane.b32.xlu0 %v8371, 84
        %v8658 = vpop.permute.xlu0 %8657
        %8659 = vrot.lane.b32.xlu0 %v8372, 84
        %v8660 = vpop.permute.xlu0 %8659
        %8661 = vrot.lane.b32.xlu0 %v8373, 84
        %v8662 = vpop.permute.xlu0 %8661
        %8663 = vrot.lane.b32.xlu0 %v8374, 84
        %v8664 = vpop.permute.xlu0 %8663
        %8665 = vrot.lane.b32.xlu0 %v8375, 84
        %v8666 = vpop.permute.xlu0 %8665
        %8667 = vrot.lane.b32.xlu0 %v8376, 84
        %v8668 = vpop.permute.xlu0 %8667
        %8669 = vrot.lane.b32.xlu0 %v8377, 84
        %v8670 = vpop.permute.xlu0 %8669
        %8671 = vrot.lane.b32.xlu0 %v8378, 84
        %v8672 = vpop.permute.xlu0 %8671
        %8673 = vrot.lane.b32.xlu0 %v8379, 84
        %v8674 = vpop.permute.xlu0 %8673
        %8675 = vrot.lane.b32.xlu0 %v8380, 84
        %v8676 = vpop.permute.xlu0 %8675
        %8677 = vrot.lane.b32.xlu0 %v8381, 84
        %v8678 = vpop.permute.xlu0 %8677
        %8679 = vrot.lane.b32.xlu0 %v8382, 84
        %v8680 = vpop.permute.xlu0 %8679
        %8715 = vrot.lane.b32.xlu0 %v8353, 112
        %v8716 = vpop.permute.xlu0 %8715
        %8717 = vrot.lane.b32.xlu0 %v8354, 112
        %v8718 = vpop.permute.xlu0 %8717
        %8719 = vrot.lane.b32.xlu0 %v8355, 112
        %v8720 = vpop.permute.xlu0 %8719
        %8721 = vrot.lane.b32.xlu0 %v8356, 112
        %v8722 = vpop.permute.xlu0 %8721
        %8723 = vrot.lane.b32.xlu0 %v8357, 112
        %v8724 = vpop.permute.xlu0 %8723
        %8725 = vrot.lane.b32.xlu0 %v8358, 112
        %v8726 = vpop.permute.xlu0 %8725
        %8727 = vrot.lane.b32.xlu0 %v8359, 112
        %v8728 = vpop.permute.xlu0 %8727
        %8729 = vrot.lane.b32.xlu0 %v8360, 112
        %v8730 = vpop.permute.xlu0 %8729
        %8731 = vrot.lane.b32.xlu0 %v8361, 112
        %v8732 = vpop.permute.xlu0 %8731
        %8733 = vrot.lane.b32.xlu0 %v8362, 112
        %v8734 = vpop.permute.xlu0 %8733
        %8735 = vrot.lane.b32.xlu0 %v8363, 112
        %v8736 = vpop.permute.xlu0 %8735
        %8737 = vrot.lane.b32.xlu0 %v8364, 112
        %v8738 = vpop.permute.xlu0 %8737
        %8739 = vrot.lane.b32.xlu0 %v8365, 112
        %v8740 = vpop.permute.xlu0 %8739
        %8741 = vrot.lane.b32.xlu0 %v8366, 112
        %v8742 = vpop.permute.xlu0 %8741
        %8743 = vrot.lane.b32.xlu0 %v8367, 112
        %v8744 = vpop.permute.xlu0 %8743
        %8745 = vrot.lane.b32.xlu0 %v8368, 112
        %v8746 = vpop.permute.xlu0 %8745
        %8747 = vrot.lane.b32.xlu0 %v8369, 112
        %v8748 = vpop.permute.xlu0 %8747
        %8749 = vrot.lane.b32.xlu0 %v8370, 112
        %v8750 = vpop.permute.xlu0 %8749
        %8751 = vrot.lane.b32.xlu0 %v8371, 112
        %v8752 = vpop.permute.xlu0 %8751
        %8753 = vrot.lane.b32.xlu0 %v8372, 112
        %v8754 = vpop.permute.xlu0 %8753
        %8755 = vrot.lane.b32.xlu0 %v8373, 112
        %v8756 = vpop.permute.xlu0 %8755
        %8757 = vrot.lane.b32.xlu0 %v8374, 112
        %v8758 = vpop.permute.xlu0 %8757
        %8759 = vrot.lane.b32.xlu0 %v8375, 112
        %v8760 = vpop.permute.xlu0 %8759
        %8761 = vrot.lane.b32.xlu0 %v8376, 112
        %v8762 = vpop.permute.xlu0 %8761
        %8763 = vrot.lane.b32.xlu0 %v8377, 112
        %v8764 = vpop.permute.xlu0 %8763
        %8765 = vrot.lane.b32.xlu0 %v8378, 112
        %v8766 = vpop.permute.xlu0 %8765
        %8767 = vrot.lane.b32.xlu0 %v8379, 112
        %v8768 = vpop.permute.xlu0 %8767
        %8769 = vrot.lane.b32.xlu0 %v8380, 112
        %v8770 = vpop.permute.xlu0 %8769
        %8771 = vrot.lane.b32.xlu0 %v8381, 112
        %v8772 = vpop.permute.xlu0 %8771
        %8773 = vrot.lane.b32.xlu0 %v8382, 112
        %v8774 = vpop.permute.xlu0 %8773
        %8775 = vrot.lane.b32.xlu0 %v8383, 112
        %v8776 = vpop.permute.xlu0 %8775
        %8777 = vrot.lane.b32.xlu0 %v8384, 112
        %v8778 = vpop.permute.xlu0 %8777
        %8813 = vrot.lane.b32.xlu0 %v8355, 12
        %v8814 = vpop.permute.xlu0 %8813
        %8815 = vrot.lane.b32.xlu0 %v8356, 12
        %v8816 = vpop.permute.xlu0 %8815
        %8817 = vrot.lane.b32.xlu0 %v8357, 12
        %v8818 = vpop.permute.xlu0 %8817
        %8819 = vrot.lane.b32.xlu0 %v8358, 12
        %v8820 = vpop.permute.xlu0 %8819
        %8821 = vrot.lane.b32.xlu0 %v8359, 12
        %v8822 = vpop.permute.xlu0 %8821
        %8823 = vrot.lane.b32.xlu0 %v8360, 12
        %v8824 = vpop.permute.xlu0 %8823
        %8825 = vrot.lane.b32.xlu0 %v8361, 12
        %v8826 = vpop.permute.xlu0 %8825
        %8827 = vrot.lane.b32.xlu0 %v8362, 12
        %v8828 = vpop.permute.xlu0 %8827
        %8829 = vrot.lane.b32.xlu0 %v8363, 12
        %v8830 = vpop.permute.xlu0 %8829
        %8831 = vrot.lane.b32.xlu0 %v8364, 12
        %v8832 = vpop.permute.xlu0 %8831
        %8833 = vrot.lane.b32.xlu0 %v8365, 12
        %v8834 = vpop.permute.xlu0 %8833
        %8835 = vrot.lane.b32.xlu0 %v8366, 12
        %v8836 = vpop.permute.xlu0 %8835
        %8837 = vrot.lane.b32.xlu0 %v8367, 12
        %v8838 = vpop.permute.xlu0 %8837
        %8839 = vrot.lane.b32.xlu0 %v8368, 12
        %v8840 = vpop.permute.xlu0 %8839
        %8841 = vrot.lane.b32.xlu0 %v8369, 12
        %v8842 = vpop.permute.xlu0 %8841
        %8843 = vrot.lane.b32.xlu0 %v8370, 12
        %v8844 = vpop.permute.xlu0 %8843
        %8845 = vrot.lane.b32.xlu0 %v8371, 12
        %v8846 = vpop.permute.xlu0 %8845
        %8847 = vrot.lane.b32.xlu0 %v8372, 12
        %v8848 = vpop.permute.xlu0 %8847
        %8849 = vrot.lane.b32.xlu0 %v8373, 12
        %v8850 = vpop.permute.xlu0 %8849
        %8851 = vrot.lane.b32.xlu0 %v8374, 12
        %v8852 = vpop.permute.xlu0 %8851
        %8853 = vrot.lane.b32.xlu0 %v8375, 12
        %v8854 = vpop.permute.xlu0 %8853
        %8855 = vrot.lane.b32.xlu0 %v8376, 12
        %v8856 = vpop.permute.xlu0 %8855
        %8857 = vrot.lane.b32.xlu0 %v8377, 12
        %v8858 = vpop.permute.xlu0 %8857
        %8859 = vrot.lane.b32.xlu0 %v8378, 12
        %v8860 = vpop.permute.xlu0 %8859
        %8861 = vrot.lane.b32.xlu0 %v8379, 12
        %v8862 = vpop.permute.xlu0 %8861
        %8863 = vrot.lane.b32.xlu0 %v8380, 12
        %v8864 = vpop.permute.xlu0 %8863
        %8865 = vrot.lane.b32.xlu0 %v8381, 12
        %v8866 = vpop.permute.xlu0 %8865
        %8867 = vrot.lane.b32.xlu0 %v8382, 12
        %v8868 = vpop.permute.xlu0 %8867
        %8869 = vrot.lane.b32.xlu0 %v8383, 12
        %v8870 = vpop.permute.xlu0 %8869
        %8871 = vrot.lane.b32.xlu0 %v8384, 12
        %v8872 = vpop.permute.xlu0 %8871
        %8873 = vrot.lane.b32.xlu0 %v8385, 12
        %v8874 = vpop.permute.xlu0 %8873
        %8875 = vrot.lane.b32.xlu0 %v8386, 12
        %v8876 = vpop.permute.xlu0 %8875
        %8911 = vrot.lane.b32.xlu0 %v8357, 40
        %v8912 = vpop.permute.xlu0 %8911
        %8913 = vrot.lane.b32.xlu0 %v8358, 40
        %v8914 = vpop.permute.xlu0 %8913
        %8915 = vrot.lane.b32.xlu0 %v8359, 40
        %v8916 = vpop.permute.xlu0 %8915
        %8917 = vrot.lane.b32.xlu0 %v8360, 40
        %v8918 = vpop.permute.xlu0 %8917
        %8919 = vrot.lane.b32.xlu0 %v8361, 40
        %v8920 = vpop.permute.xlu0 %8919
        %8921 = vrot.lane.b32.xlu0 %v8362, 40
        %v8922 = vpop.permute.xlu0 %8921
        %8923 = vrot.lane.b32.xlu0 %v8363, 40
        %v8924 = vpop.permute.xlu0 %8923
        %8925 = vrot.lane.b32.xlu0 %v8364, 40
        %v8926 = vpop.permute.xlu0 %8925
        %8927 = vrot.lane.b32.xlu0 %v8365, 40
        %v8928 = vpop.permute.xlu0 %8927
        %8929 = vrot.lane.b32.xlu0 %v8366, 40
        %v8930 = vpop.permute.xlu0 %8929
        %8931 = vrot.lane.b32.xlu0 %v8367, 40
        %v8932 = vpop.permute.xlu0 %8931
        %8933 = vrot.lane.b32.xlu0 %v8368, 40
        %v8934 = vpop.permute.xlu0 %8933
        %8935 = vrot.lane.b32.xlu0 %v8369, 40
        %v8936 = vpop.permute.xlu0 %8935
        %8937 = vrot.lane.b32.xlu0 %v8370, 40
        %v8938 = vpop.permute.xlu0 %8937
        %8939 = vrot.lane.b32.xlu0 %v8371, 40
        %v8940 = vpop.permute.xlu0 %8939
        %8941 = vrot.lane.b32.xlu0 %v8372, 40
        %v8942 = vpop.permute.xlu0 %8941
        %8943 = vrot.lane.b32.xlu0 %v8373, 40
        %v8944 = vpop.permute.xlu0 %8943
        %8945 = vrot.lane.b32.xlu0 %v8374, 40
        %v8946 = vpop.permute.xlu0 %8945
        %8947 = vrot.lane.b32.xlu0 %v8375, 40
        %v8948 = vpop.permute.xlu0 %8947
        %8949 = vrot.lane.b32.xlu0 %v8376, 40
        %v8950 = vpop.permute.xlu0 %8949
        %8951 = vrot.lane.b32.xlu0 %v8377, 40
        %v8952 = vpop.permute.xlu0 %8951
        %8953 = vrot.lane.b32.xlu0 %v8378, 40
        %v8954 = vpop.permute.xlu0 %8953
        %8955 = vrot.lane.b32.xlu0 %v8379, 40
        %v8956 = vpop.permute.xlu0 %8955
        %8957 = vrot.lane.b32.xlu0 %v8380, 40
        %v8958 = vpop.permute.xlu0 %8957
        %8959 = vrot.lane.b32.xlu0 %v8381, 40
        %v8960 = vpop.permute.xlu0 %8959
        %8961 = vrot.lane.b32.xlu0 %v8382, 40
        %v8962 = vpop.permute.xlu0 %8961
        %8963 = vrot.lane.b32.xlu0 %v8383, 40
        %v8964 = vpop.permute.xlu0 %8963
        %8965 = vrot.lane.b32.xlu0 %v8384, 40
        %v8966 = vpop.permute.xlu0 %8965
        %8967 = vrot.lane.b32.xlu0 %v8385, 40
        %v8968 = vpop.permute.xlu0 %8967
        %8969 = vrot.lane.b32.xlu0 %v8386, 40
        %v8970 = vpop.permute.xlu0 %8969
        %8971 = vrot.lane.b32.xlu0 %v8387, 40
        %v8972 = vpop.permute.xlu0 %8971
        %8973 = vrot.lane.b32.xlu0 %v8388, 40
        %v8974 = vpop.permute.xlu0 %8973
        %v9007 = vsel %vm3195, %v8345, %v8422
        %v9008 = vsel %vm3195, %v8346, %v8424
        %v9009 = vsel %vm3195, %v8347, %v8426
        %v9010 = vsel %vm3195, %v8348, %v8428
        %v9011 = vsel %vm3195, %v8349, %v8430
        %v9012 = vsel %vm3195, %v8350, %v8432
        %v9013 = vsel %vm3195, %v8351, %v8434
        %v9014 = vsel %vm3195, %v8352, %v8436
        %v9015 = vsel %vm3195, %v8353, %v8438
        %v9016 = vsel %vm3195, %v8354, %v8440
        %v9017 = vsel %vm3195, %v8355, %v8442
        %v9018 = vsel %vm3195, %v8356, %v8444
        %v9019 = vsel %vm3195, %v8357, %v8446
        %v9020 = vsel %vm3195, %v8358, %v8448
        %v9021 = vsel %vm3195, %v8359, %v8450
        %v9022 = vsel %vm3195, %v8360, %v8452
        %v9023 = vsel %vm3195, %v8361, %v8454
        %v9024 = vsel %vm3195, %v8362, %v8456
        %v9025 = vsel %vm3195, %v8363, %v8458
        %v9026 = vsel %vm3195, %v8364, %v8460
        %v9027 = vsel %vm3195, %v8365, %v8462
        %v9028 = vsel %vm3195, %v8366, %v8464
        %v9029 = vsel %vm3195, %v8367, %v8466
        %v9030 = vsel %vm3195, %v8368, %v8468
        %v9031 = vsel %vm3195, %v8369, %v8470
        %v9032 = vsel %vm3195, %v8370, %v8472
        %v9033 = vsel %vm3195, %v8371, %v8474
        %v9034 = vsel %vm3195, %v8372, %v8476
        %v9035 = vsel %vm3195, %v8373, %v8478
        %v9036 = vsel %vm3195, %v8374, %v8480
        %v9037 = vsel %vm3195, %v8375, %v8482
        %v9038 = vsel %vm3195, %v8376, %v8484
        %v9039 = vsel %vm3228, %v9007, %v8520
        %v9040 = vsel %vm3228, %v9008, %v8522
        %v9041 = vsel %vm3228, %v9009, %v8524
        %v9042 = vsel %vm3228, %v9010, %v8526
        %v9043 = vsel %vm3228, %v9011, %v8528
        %v9044 = vsel %vm3228, %v9012, %v8530
        %v9045 = vsel %vm3228, %v9013, %v8532
        %v9046 = vsel %vm3228, %v9014, %v8534
        %v9047 = vsel %vm3228, %v9015, %v8536
        %v9048 = vsel %vm3228, %v9016, %v8538
        %v9049 = vsel %vm3228, %v9017, %v8540
        %v9050 = vsel %vm3228, %v9018, %v8542
        %v9051 = vsel %vm3228, %v9019, %v8544
        %v9052 = vsel %vm3228, %v9020, %v8546
        %v9053 = vsel %vm3228, %v9021, %v8548
        %v9054 = vsel %vm3228, %v9022, %v8550
        %v9055 = vsel %vm3228, %v9023, %v8552
        %v9056 = vsel %vm3228, %v9024, %v8554
        %v9057 = vsel %vm3228, %v9025, %v8556
        %v9058 = vsel %vm3228, %v9026, %v8558
        %v9059 = vsel %vm3228, %v9027, %v8560
        %v9060 = vsel %vm3228, %v9028, %v8562
        %v9061 = vsel %vm3228, %v9029, %v8564
        %v9062 = vsel %vm3228, %v9030, %v8566
        %v9063 = vsel %vm3228, %v9031, %v8568
        %v9064 = vsel %vm3228, %v9032, %v8570
        %v9065 = vsel %vm3228, %v9033, %v8572
        %v9066 = vsel %vm3228, %v9034, %v8574
        %v9067 = vsel %vm3228, %v9035, %v8576
        %v9068 = vsel %vm3228, %v9036, %v8578
        %v9069 = vsel %vm3228, %v9037, %v8580
        %v9070 = vsel %vm3228, %v9038, %v8582
        %v9071 = vsel %vm3261, %v9039, %v8618
        %v9072 = vsel %vm3261, %v9040, %v8620
        %v9073 = vsel %vm3261, %v9041, %v8622
        %v9074 = vsel %vm3261, %v9042, %v8624
        %v9075 = vsel %vm3261, %v9043, %v8626
        %v9076 = vsel %vm3261, %v9044, %v8628
        %v9077 = vsel %vm3261, %v9045, %v8630
        %v9078 = vsel %vm3261, %v9046, %v8632
        %v9079 = vsel %vm3261, %v9047, %v8634
        %v9080 = vsel %vm3261, %v9048, %v8636
        %v9081 = vsel %vm3261, %v9049, %v8638
        %v9082 = vsel %vm3261, %v9050, %v8640
        %v9083 = vsel %vm3261, %v9051, %v8642
        %v9084 = vsel %vm3261, %v9052, %v8644
        %v9085 = vsel %vm3261, %v9053, %v8646
        %v9086 = vsel %vm3261, %v9054, %v8648
        %v9087 = vsel %vm3261, %v9055, %v8650
        %v9088 = vsel %vm3261, %v9056, %v8652
        %v9089 = vsel %vm3261, %v9057, %v8654
        %v9090 = vsel %vm3261, %v9058, %v8656
        %v9091 = vsel %vm3261, %v9059, %v8658
        %v9092 = vsel %vm3261, %v9060, %v8660
        %v9093 = vsel %vm3261, %v9061, %v8662
        %v9094 = vsel %vm3261, %v9062, %v8664
        %v9095 = vsel %vm3261, %v9063, %v8666
        %v9096 = vsel %vm3261, %v9064, %v8668
        %v9097 = vsel %vm3261, %v9065, %v8670
        %v9098 = vsel %vm3261, %v9066, %v8672
        %v9099 = vsel %vm3261, %v9067, %v8674
        %v9100 = vsel %vm3261, %v9068, %v8676
        %v9101 = vsel %vm3261, %v9069, %v8678
        %v9102 = vsel %vm3261, %v9070, %v8680
        %v9103 = vsel %vm3294, %v9071, %v8716
        %v9104 = vsel %vm3294, %v9072, %v8718
        %v9105 = vsel %vm3294, %v9073, %v8720
        %v9106 = vsel %vm3294, %v9074, %v8722
        %v9107 = vsel %vm3294, %v9075, %v8724
        %v9108 = vsel %vm3294, %v9076, %v8726
        %v9109 = vsel %vm3294, %v9077, %v8728
        %v9110 = vsel %vm3294, %v9078, %v8730
        %v9111 = vsel %vm3294, %v9079, %v8732
        %v9112 = vsel %vm3294, %v9080, %v8734
        %v9113 = vsel %vm3294, %v9081, %v8736
        %v9114 = vsel %vm3294, %v9082, %v8738
        %v9115 = vsel %vm3294, %v9083, %v8740
        %v9116 = vsel %vm3294, %v9084, %v8742
        %v9117 = vsel %vm3294, %v9085, %v8744
        %v9118 = vsel %vm3294, %v9086, %v8746
        %v9119 = vsel %vm3294, %v9087, %v8748
        %v9120 = vsel %vm3294, %v9088, %v8750
        %v9121 = vsel %vm3294, %v9089, %v8752
        %v9122 = vsel %vm3294, %v9090, %v8754
        %v9123 = vsel %vm3294, %v9091, %v8756
        %v9124 = vsel %vm3294, %v9092, %v8758
        %v9125 = vsel %vm3294, %v9093, %v8760
        %v9126 = vsel %vm3294, %v9094, %v8762
        %v9127 = vsel %vm3294, %v9095, %v8764
        %v9128 = vsel %vm3294, %v9096, %v8766
        %v9129 = vsel %vm3294, %v9097, %v8768
        %v9130 = vsel %vm3294, %v9098, %v8770
        %v9131 = vsel %vm3294, %v9099, %v8772
        %v9132 = vsel %vm3294, %v9100, %v8774
        %v9133 = vsel %vm3294, %v9101, %v8776
        %v9134 = vsel %vm3294, %v9102, %v8778
        %v9135 = vsel %vm2398, %v8716, %v8814
        %v9136 = vsel %vm2398, %v8718, %v8816
        %v9137 = vsel %vm2398, %v8720, %v8818
        %v9138 = vsel %vm2398, %v8722, %v8820
        %v9139 = vsel %vm2398, %v8724, %v8822
        %v9140 = vsel %vm2398, %v8726, %v8824
        %v9141 = vsel %vm2398, %v8728, %v8826
        %v9142 = vsel %vm2398, %v8730, %v8828
        %v9143 = vsel %vm2398, %v8732, %v8830
        %v9144 = vsel %vm2398, %v8734, %v8832
        %v9145 = vsel %vm2398, %v8736, %v8834
        %v9146 = vsel %vm2398, %v8738, %v8836
        %v9147 = vsel %vm2398, %v8740, %v8838
        %v9148 = vsel %vm2398, %v8742, %v8840
        %v9149 = vsel %vm2398, %v8744, %v8842
        %v9150 = vsel %vm2398, %v8746, %v8844
        %v9151 = vsel %vm2398, %v8748, %v8846
        %v9152 = vsel %vm2398, %v8750, %v8848
        %v9153 = vsel %vm2398, %v8752, %v8850
        %v9154 = vsel %vm2398, %v8754, %v8852
        %v9155 = vsel %vm2398, %v8756, %v8854
        %v9156 = vsel %vm2398, %v8758, %v8856
        %v9157 = vsel %vm2398, %v8760, %v8858
        %v9158 = vsel %vm2398, %v8762, %v8860
        %v9159 = vsel %vm2398, %v8764, %v8862
        %v9160 = vsel %vm2398, %v8766, %v8864
        %v9161 = vsel %vm2398, %v8768, %v8866
        %v9162 = vsel %vm2398, %v8770, %v8868
        %v9163 = vsel %vm2398, %v8772, %v8870
        %v9164 = vsel %vm2398, %v8774, %v8872
        %v9165 = vsel %vm2398, %v8776, %v8874
        %v9166 = vsel %vm2398, %v8778, %v8876
        %v9167 = vsel %vm3359, %v9135, %v8912
        %v9168 = vsel %vm3359, %v9136, %v8914
        %v9169 = vsel %vm3359, %v9137, %v8916
        %v9170 = vsel %vm3359, %v9138, %v8918
        %v9171 = vsel %vm3359, %v9139, %v8920
        %v9172 = vsel %vm3359, %v9140, %v8922
        %v9173 = vsel %vm3359, %v9141, %v8924
        %v9174 = vsel %vm3359, %v9142, %v8926
        %v9175 = vsel %vm3359, %v9143, %v8928
        %v9176 = vsel %vm3359, %v9144, %v8930
        %v9177 = vsel %vm3359, %v9145, %v8932
        %v9178 = vsel %vm3359, %v9146, %v8934
        %v9179 = vsel %vm3359, %v9147, %v8936
        %v9180 = vsel %vm3359, %v9148, %v8938
        %v9181 = vsel %vm3359, %v9149, %v8940
        %v9182 = vsel %vm3359, %v9150, %v8942
        %v9183 = vsel %vm3359, %v9151, %v8944
        %v9184 = vsel %vm3359, %v9152, %v8946
        %v9185 = vsel %vm3359, %v9153, %v8948
        %v9186 = vsel %vm3359, %v9154, %v8950
        %v9187 = vsel %vm3359, %v9155, %v8952
        %v9188 = vsel %vm3359, %v9156, %v8954
        %v9189 = vsel %vm3359, %v9157, %v8956
        %v9190 = vsel %vm3359, %v9158, %v8958
        %v9191 = vsel %vm3359, %v9159, %v8960
        %v9192 = vsel %vm3359, %v9160, %v8962
        %v9193 = vsel %vm3359, %v9161, %v8964
        %v9194 = vsel %vm3359, %v9162, %v8966
        %v9195 = vsel %vm3359, %v9163, %v8968
        %v9196 = vsel %vm3359, %v9164, %v8970
        %v9197 = vsel %vm3359, %v9165, %v8972
        %v9198 = vsel %vm3359, %v9166, %v8974
        %s9199 = scalar_lea.vmem %s4, 200
        %v9200 = vld [vmem:[%s9199] sm:$0xff]
        %v9201 = vld [vmem:[%s9199 + $0x8] sm:$0xff]
        %v9202 = vld [vmem:[%s9199 + $0x10] sm:$0xff]
        %v9203 = vld [vmem:[%s9199 + $0x18] sm:$0xff]
        %v9204 = vld [vmem:[%s9199 + $0x20] sm:$0xff]
        %v9205 = vld [vmem:[%s9199 + $0x28] sm:$0xff]
        %v9206 = vld [vmem:[%s9199 + $0x30] sm:$0xff]
        %v9207 = vld [vmem:[%s9199 + $0x38] sm:$0xff]
        %v9208 = vld [vmem:[%s9199 + $0x40] sm:$0xff]
        %v9209 = vld [vmem:[%s9199 + $0x48] sm:$0xff]
        %v9210 = vld [vmem:[%s9199 + $0x50] sm:$0xff]
        %v9211 = vld [vmem:[%s9199 + $0x58] sm:$0xff]
        %v9212 = vld [vmem:[%s9199 + $0x60] sm:$0xff]
        %v9213 = vld [vmem:[%s9199 + $0x68] sm:$0xff]
        %v9214 = vld [vmem:[%s9199 + $0x70] sm:$0xff]
        %v9215 = vld [vmem:[%s9199 + $0x78] sm:$0xff]
        %v9216 = vld [vmem:[%s9199 + $0x80] sm:$0xff]
        %v9217 = vld [vmem:[%s9199 + $0x88] sm:$0xff]
        %v9218 = vld [vmem:[%s9199 + $0x90] sm:$0xff]
        %v9219 = vld [vmem:[%s9199 + $0x98] sm:$0xff]
        %v9220 = vld [vmem:[%s9199 + $0xa0] sm:$0xff]
        %v9221 = vld [vmem:[%s9199 + $0xa8] sm:$0xff]
        %v9222 = vld [vmem:[%s9199 + $0xb0] sm:$0xff]
        %v9223 = vld [vmem:[%s9199 + $0xb8] sm:$0xff]
        %v9224 = vld [vmem:[%s9199 + $0xc0] sm:$0xf]
        %v9226 = vsel %vm3417, %v9167, 0
        %v9229 = vsel %vm3417, %v9168, 0
        %v9232 = vsel %vm3417, %v9169, 0
        %v9235 = vsel %vm3417, %v9170, 0
        %v9238 = vsel %vm3417, %v9171, 0
        %v9241 = vsel %vm3417, %v9172, 0
        %v9244 = vsel %vm3417, %v9173, 0
        %v9247 = vsel %vm3417, %v9174, 0
        %v9250 = vsel %vm3417, %v9175, 0
        %v9253 = vsel %vm3417, %v9176, 0
        %v9256 = vsel %vm3417, %v9177, 0
        %v9259 = vsel %vm3417, %v9178, 0
        %v9262 = vsel %vm3417, %v9179, 0
        %v9265 = vsel %vm3417, %v9180, 0
        %v9268 = vsel %vm3417, %v9181, 0
        %v9271 = vsel %vm3417, %v9182, 0
        %v9274 = vsel %vm3417, %v9183, 0
        %v9277 = vsel %vm3417, %v9184, 0
        %v9280 = vsel %vm3417, %v9185, 0
        %v9283 = vsel %vm3417, %v9186, 0
        %v9286 = vsel %vm3417, %v9187, 0
        %v9289 = vsel %vm3417, %v9188, 0
        %v9292 = vsel %vm3417, %v9189, 0
        %v9295 = vsel %vm3417, %v9190, 0
        %v9298 = vsel %vm3417, %v9191, 0
        %v9301 = vsel %vm3417, %v9192, 0
        %v9304 = vsel %vm3417, %v9193, 0
        %v9307 = vsel %vm3417, %v9194, 0
        %v9310 = vsel %vm3417, %v9195, 0
        %v9313 = vsel %vm3417, %v9196, 0
        %v9316 = vsel %vm3417, %v9197, 0
        %v9319 = vsel %vm3417, %v9198, 0
        %v9322 = vsel %vm3514, %v9224, 0
        %9324 = vmatprep.subr.mxu0 0.0
        %9325 = vmatpush1.msra.mxu0 %v9215
        %9326 = vmatprep.subr.mxu0 0.0
        %9327 = vmatpush1.msra.mxu0 %v9214
        %9328 = vmatprep.subr.mxu0 0.0
        %9329 = vmatpush1.msra.mxu0 %v9213
        %9330 = vmatprep.subr.mxu0 0.0
        %9331 = vmatpush1.msra.mxu0 %v9212
        %9332 = vmatprep.subr.mxu0 0.0
        %9333 = vmatpush1.msra.mxu0 %v9211
        %9334 = vmatprep.subr.mxu0 0.0
        %9335 = vmatpush1.msra.mxu0 %v9210
        %9336 = vmatprep.subr.mxu0 0.0
        %9337 = vmatpush1.msra.mxu0 %v9209
        %9338 = vmatprep.subr.mxu0 0.0
        %9339 = vmatpush1.msra.mxu0 %v9208
        %9340 = vmatprep.subr.mxu0 0.0
        %9341 = vmatpush1.msra.mxu0 %v9207
        %9342 = vmatprep.subr.mxu0 0.0
        %9343 = vmatpush1.msra.mxu0 %v9206
        %9344 = vmatprep.subr.mxu0 0.0
        %9345 = vmatpush1.msra.mxu0 %v9205
        %9346 = vmatprep.subr.mxu0 0.0
        %9347 = vmatpush1.msra.mxu0 %v9204
        %9348 = vmatprep.subr.mxu0 0.0
        %9349 = vmatpush1.msra.mxu0 %v9203
        %9350 = vmatprep.subr.mxu0 0.0
        %9351 = vmatpush1.msra.mxu0 %v9202
        %9352 = vmatprep.subr.mxu0 0.0
        %9353 = vmatpush1.msra.mxu0 %v9201
        %9354 = vmatprep.subr.mxu0 0.0
        %9355 = vmatpush1.msra.mxu0 %v9200
        %9356 = vmatprep.subr.mxu0 0.0
        %9357 = vmatpush2.msra.mxu0 0.0
        %9358 = vmatprep.subr.mxu0 0.0
        %9359 = vmatpush2.msra.mxu0 0.0
        %9360 = vmatprep.subr.mxu0 0.0
        %9361 = vmatpush2.msra.mxu0 0.0
        %9362 = vmatprep.subr.mxu0 0.0
        %9363 = vmatpush2.msra.mxu0 0.0
        %9364 = vmatprep.subr.mxu0 0.0
        %9365 = vmatpush2.msra.mxu0 0.0
        %9366 = vmatprep.subr.mxu0 0.0
        %9367 = vmatpush2.msra.mxu0 0.0
        %9368 = vmatprep.subr.mxu0 0.0
        %9369 = vmatpush2.msra.mxu0 0.0
        %9370 = vmatprep.subr.mxu0 0.0
        %9371 = vmatpush2.msra.mxu0 %v9322
        %9372 = vmatprep.subr.mxu0 0.0
        %9373 = vmatpush2.msra.mxu0 %v9223
        %9374 = vmatprep.subr.mxu0 0.0
        %9375 = vmatpush2.msra.mxu0 %v9222
        %9376 = vmatprep.subr.mxu0 0.0
        %9377 = vmatpush2.msra.mxu0 %v9221
        %9378 = vmatprep.subr.mxu0 0.0
        %9379 = vmatpush2.msra.mxu0 %v9220
        %9380 = vmatprep.subr.mxu0 0.0
        %9381 = vmatpush2.msra.mxu0 %v9219
        %9382 = vmatprep.subr.mxu0 0.0
        %9383 = vmatpush2.msra.mxu0 %v9218
        %9384 = vmatprep.subr.mxu0 0.0
        %9385 = vmatpush2.msra.mxu0 %v9217
        %9386 = vmatprep.subr.mxu0 0.0
        %9387 = vmatpush2.msra.mxu0 %v9216
        %9388 = vmatprep.mubr.f32.mxu0 %v9226
        %9389 = vmatmul.mubr.f32.gmra.mxu0 %v9103
        %v9390 = vpop.f32.mrf.mxu0
        %v9391 = vadd.f32 0.0, %v9390
        %v9392 = vpop.f32.mrf.mxu0
        %9393 = vmatprep.mubr.f32.mxu0 %v9229
        %9394 = vmatmul.mubr.f32.gmra.mxu0 %v9104
        %v9395 = vpop.f32.mrf.mxu0
        %v9396 = vadd.f32 0.0, %v9395
        %v9397 = vpop.f32.mrf.mxu0
        %9398 = vmatprep.mubr.f32.mxu0 %v9232
        %9399 = vmatmul.mubr.f32.gmra.mxu0 %v9105
        %v9400 = vpop.f32.mrf.mxu0
        %v9401 = vadd.f32 0.0, %v9400
        %v9402 = vpop.f32.mrf.mxu0
        %9403 = vmatprep.mubr.f32.mxu0 %v9235
        %9404 = vmatmul.mubr.f32.gmra.mxu0 %v9106
        %v9405 = vpop.f32.mrf.mxu0
        %v9406 = vadd.f32 0.0, %v9405
        %v9407 = vpop.f32.mrf.mxu0
        %9408 = vmatprep.mubr.f32.mxu0 %v9238
        %9409 = vmatmul.mubr.f32.gmra.mxu0 %v9107
        %v9410 = vpop.f32.mrf.mxu0
        %v9411 = vadd.f32 0.0, %v9410
        %v9412 = vpop.f32.mrf.mxu0
        %9413 = vmatprep.mubr.f32.mxu0 %v9241
        %9414 = vmatmul.mubr.f32.gmra.mxu0 %v9108
        %v9415 = vpop.f32.mrf.mxu0
        %v9416 = vadd.f32 0.0, %v9415
        %v9417 = vpop.f32.mrf.mxu0
        %9418 = vmatprep.mubr.f32.mxu0 %v9244
        %9419 = vmatmul.mubr.f32.gmra.mxu0 %v9109
        %v9420 = vpop.f32.mrf.mxu0
        %v9421 = vadd.f32 0.0, %v9420
        %v9422 = vpop.f32.mrf.mxu0
        %9423 = vmatprep.mubr.f32.mxu0 %v9247
        %9424 = vmatmul.mubr.f32.gmra.mxu0 %v9110
        %v9425 = vpop.f32.mrf.mxu0
        %v9426 = vadd.f32 0.0, %v9425
        %v9427 = vpop.f32.mrf.mxu0
        %9428 = vmatprep.mubr.f32.mxu0 %v9250
        %9429 = vmatmul.mubr.f32.gmra.mxu0 %v9111
        %v9430 = vpop.f32.mrf.mxu0
        %v9431 = vadd.f32 0.0, %v9430
        %v9432 = vpop.f32.mrf.mxu0
        %9433 = vmatprep.mubr.f32.mxu0 %v9253
        %9434 = vmatmul.mubr.f32.gmra.mxu0 %v9112
        %v9435 = vpop.f32.mrf.mxu0
        %v9436 = vadd.f32 0.0, %v9435
        %v9437 = vpop.f32.mrf.mxu0
        %9438 = vmatprep.mubr.f32.mxu0 %v9256
        %9439 = vmatmul.mubr.f32.gmra.mxu0 %v9113
        %v9440 = vpop.f32.mrf.mxu0
        %v9441 = vadd.f32 0.0, %v9440
        %v9442 = vpop.f32.mrf.mxu0
        %9443 = vmatprep.mubr.f32.mxu0 %v9259
        %9444 = vmatmul.mubr.f32.gmra.mxu0 %v9114
        %v9445 = vpop.f32.mrf.mxu0
        %v9446 = vadd.f32 0.0, %v9445
        %v9447 = vpop.f32.mrf.mxu0
        %9448 = vmatprep.mubr.f32.mxu0 %v9262
        %9449 = vmatmul.mubr.f32.gmra.mxu0 %v9115
        %v9450 = vpop.f32.mrf.mxu0
        %v9451 = vadd.f32 0.0, %v9450
        %v9452 = vpop.f32.mrf.mxu0
        %9453 = vmatprep.mubr.f32.mxu0 %v9265
        %9454 = vmatmul.mubr.f32.gmra.mxu0 %v9116
        %v9455 = vpop.f32.mrf.mxu0
        %v9456 = vadd.f32 0.0, %v9455
        %v9457 = vpop.f32.mrf.mxu0
        %9458 = vmatprep.mubr.f32.mxu0 %v9268
        %9459 = vmatmul.mubr.f32.gmra.mxu0 %v9117
        %v9460 = vpop.f32.mrf.mxu0
        %v9461 = vadd.f32 0.0, %v9460
        %v9462 = vpop.f32.mrf.mxu0
        %9463 = vmatprep.mubr.f32.mxu0 %v9271
        %9464 = vmatmul.mubr.f32.gmra.mxu0 %v9118
        %v9465 = vpop.f32.mrf.mxu0
        %v9466 = vadd.f32 0.0, %v9465
        %v9467 = vpop.f32.mrf.mxu0
        %9468 = vmatprep.mubr.f32.mxu0 %v9274
        %9469 = vmatmul.mubr.f32.gmra.mxu0 %v9119
        %v9470 = vpop.f32.mrf.mxu0
        %v9471 = vadd.f32 0.0, %v9470
        %v9472 = vpop.f32.mrf.mxu0
        %9473 = vmatprep.mubr.f32.mxu0 %v9277
        %9474 = vmatmul.mubr.f32.gmra.mxu0 %v9120
        %v9475 = vpop.f32.mrf.mxu0
        %v9476 = vadd.f32 0.0, %v9475
        %v9477 = vpop.f32.mrf.mxu0
        %9478 = vmatprep.mubr.f32.mxu0 %v9280
        %9479 = vmatmul.mubr.f32.gmra.mxu0 %v9121
        %v9480 = vpop.f32.mrf.mxu0
        %v9481 = vadd.f32 0.0, %v9480
        %v9482 = vpop.f32.mrf.mxu0
        %9483 = vmatprep.mubr.f32.mxu0 %v9283
        %9484 = vmatmul.mubr.f32.gmra.mxu0 %v9122
        %v9485 = vpop.f32.mrf.mxu0
        %v9486 = vadd.f32 0.0, %v9485
        %v9487 = vpop.f32.mrf.mxu0
        %9488 = vmatprep.mubr.f32.mxu0 %v9286
        %9489 = vmatmul.mubr.f32.gmra.mxu0 %v9123
        %v9490 = vpop.f32.mrf.mxu0
        %v9491 = vadd.f32 0.0, %v9490
        %v9492 = vpop.f32.mrf.mxu0
        %9493 = vmatprep.mubr.f32.mxu0 %v9289
        %9494 = vmatmul.mubr.f32.gmra.mxu0 %v9124
        %v9495 = vpop.f32.mrf.mxu0
        %v9496 = vadd.f32 0.0, %v9495
        %v9497 = vpop.f32.mrf.mxu0
        %9498 = vmatprep.mubr.f32.mxu0 %v9292
        %9499 = vmatmul.mubr.f32.gmra.mxu0 %v9125
        %v9500 = vpop.f32.mrf.mxu0
        %v9501 = vadd.f32 0.0, %v9500
        %v9502 = vpop.f32.mrf.mxu0
        %9503 = vmatprep.mubr.f32.mxu0 %v9295
        %9504 = vmatmul.mubr.f32.gmra.mxu0 %v9126
        %v9505 = vpop.f32.mrf.mxu0
        %v9506 = vadd.f32 0.0, %v9505
        %v9507 = vpop.f32.mrf.mxu0
        %9508 = vmatprep.mubr.f32.mxu0 %v9298
        %9509 = vmatmul.mubr.f32.gmra.mxu0 %v9127
        %v9510 = vpop.f32.mrf.mxu0
        %v9511 = vadd.f32 0.0, %v9510
        %v9512 = vpop.f32.mrf.mxu0
        %9513 = vmatprep.mubr.f32.mxu0 %v9301
        %9514 = vmatmul.mubr.f32.gmra.mxu0 %v9128
        %v9515 = vpop.f32.mrf.mxu0
        %v9516 = vadd.f32 0.0, %v9515
        %v9517 = vpop.f32.mrf.mxu0
        %9518 = vmatprep.mubr.f32.mxu0 %v9304
        %9519 = vmatmul.mubr.f32.gmra.mxu0 %v9129
        %v9520 = vpop.f32.mrf.mxu0
        %v9521 = vadd.f32 0.0, %v9520
        %v9522 = vpop.f32.mrf.mxu0
        %9523 = vmatprep.mubr.f32.mxu0 %v9307
        %9524 = vmatmul.mubr.f32.gmra.mxu0 %v9130
        %v9525 = vpop.f32.mrf.mxu0
        %v9526 = vadd.f32 0.0, %v9525
        %v9527 = vpop.f32.mrf.mxu0
        %9528 = vmatprep.mubr.f32.mxu0 %v9310
        %9529 = vmatmul.mubr.f32.gmra.mxu0 %v9131
        %v9530 = vpop.f32.mrf.mxu0
        %v9531 = vadd.f32 0.0, %v9530
        %v9532 = vpop.f32.mrf.mxu0
        %9533 = vmatprep.mubr.f32.mxu0 %v9313
        %9534 = vmatmul.mubr.f32.gmra.mxu0 %v9132
        %v9535 = vpop.f32.mrf.mxu0
        %v9536 = vadd.f32 0.0, %v9535
        %v9537 = vpop.f32.mrf.mxu0
        %9538 = vmatprep.mubr.f32.mxu0 %v9316
        %9539 = vmatmul.mubr.f32.gmra.mxu0 %v9133
        %v9540 = vpop.f32.mrf.mxu0
        %v9541 = vadd.f32 0.0, %v9540
        %v9542 = vpop.f32.mrf.mxu0
        %9543 = vmatprep.mubr.f32.mxu0 %v9319
        %9544 = vmatmul.mubr.f32.gmra.mxu0 %v9134
        %v9545 = vpop.f32.mrf.mxu0
        %v9546 = vadd.f32 0.0, %v9545
        %v9547 = vpop.f32.mrf.mxu0
        %9548 = vdwg.mxu0
        %s9549 = scalar_lea.vmem %s5, 1
        %v9550 = vld [vmem:[%s9549] sm:$0x1]
        %v9552 = vlaneseq
        %v9553 = vshrl.u32 %v9552, 7
        %v9554 = vsub.s32 0, %v9553
        %v9555 = vrot.slane %v9550, %v9554
        %v9557 = vmul.f32 %v9391, %v9555
        %v9558 = vmul.f32 %v9396, %v9555
        %v9559 = vmul.f32 %v9401, %v9555
        %v9560 = vmul.f32 %v9406, %v9555
        %v9561 = vmul.f32 %v9411, %v9555
        %v9562 = vmul.f32 %v9416, %v9555
        %v9563 = vmul.f32 %v9421, %v9555
        %v9564 = vmul.f32 %v9426, %v9555
        %v9565 = vmul.f32 %v9431, %v9555
        %v9566 = vmul.f32 %v9436, %v9555
        %v9567 = vmul.f32 %v9441, %v9555
        %v9568 = vmul.f32 %v9446, %v9555
        %v9569 = vmul.f32 %v9451, %v9555
        %v9570 = vmul.f32 %v9456, %v9555
        %v9571 = vmul.f32 %v9461, %v9555
        %v9572 = vmul.f32 %v9466, %v9555
        %v9573 = vmul.f32 %v9471, %v9555
        %v9574 = vmul.f32 %v9476, %v9555
        %v9575 = vmul.f32 %v9481, %v9555
        %v9576 = vmul.f32 %v9486, %v9555
        %v9577 = vmul.f32 %v9491, %v9555
        %v9578 = vmul.f32 %v9496, %v9555
        %v9579 = vmul.f32 %v9501, %v9555
        %v9580 = vmul.f32 %v9506, %v9555
        %v9581 = vmul.f32 %v9511, %v9555
        %v9582 = vmul.f32 %v9516, %v9555
        %v9583 = vmul.f32 %v9521, %v9555
        %v9584 = vmul.f32 %v9526, %v9555
        %v9585 = vmul.f32 %v9531, %v9555
        %v9586 = vmul.f32 %v9536, %v9555
        %v9587 = vmul.f32 %v9541, %v9555
        %v9588 = vmul.f32 %v9546, %v9555
        %s9589 = scalar_lea.vmem %s6, 1
        %v9590 = vld [vmem:[%s9589] sm:$0x1]
        %v9592 = vlaneseq
        %v9593 = vshrl.u32 %v9592, 7
        %v9594 = vsub.s32 0, %v9593
        %v9595 = vrot.slane %v9590, %v9594
        %v9597 = vadd.f32 %v9557, %v9595
        %v9598 = vadd.f32 %v9558, %v9595
        %v9599 = vadd.f32 %v9559, %v9595
        %v9600 = vadd.f32 %v9560, %v9595
        %v9601 = vadd.f32 %v9561, %v9595
        %v9602 = vadd.f32 %v9562, %v9595
        %v9603 = vadd.f32 %v9563, %v9595
        %v9604 = vadd.f32 %v9564, %v9595
        %v9605 = vadd.f32 %v9565, %v9595
        %v9606 = vadd.f32 %v9566, %v9595
        %v9607 = vadd.f32 %v9567, %v9595
        %v9608 = vadd.f32 %v9568, %v9595
        %v9609 = vadd.f32 %v9569, %v9595
        %v9610 = vadd.f32 %v9570, %v9595
        %v9611 = vadd.f32 %v9571, %v9595
        %v9612 = vadd.f32 %v9572, %v9595
        %v9613 = vadd.f32 %v9573, %v9595
        %v9614 = vadd.f32 %v9574, %v9595
        %v9615 = vadd.f32 %v9575, %v9595
        %v9616 = vadd.f32 %v9576, %v9595
        %v9617 = vadd.f32 %v9577, %v9595
        %v9618 = vadd.f32 %v9578, %v9595
        %v9619 = vadd.f32 %v9579, %v9595
        %v9620 = vadd.f32 %v9580, %v9595
        %v9621 = vadd.f32 %v9581, %v9595
        %v9622 = vadd.f32 %v9582, %v9595
        %v9623 = vadd.f32 %v9583, %v9595
        %v9624 = vadd.f32 %v9584, %v9595
        %v9625 = vadd.f32 %v9585, %v9595
        %v9626 = vadd.f32 %v9586, %v9595
        %v9627 = vadd.f32 %v9587, %v9595
        %v9628 = vadd.f32 %v9588, %v9595
        %v9629 = vmax.f32 %v9597, 0.0
        %v9630 = vmax.f32 %v9598, 0.0
        %v9631 = vmax.f32 %v9599, 0.0
        %v9632 = vmax.f32 %v9600, 0.0
        %v9633 = vmax.f32 %v9601, 0.0
        %v9634 = vmax.f32 %v9602, 0.0
        %v9635 = vmax.f32 %v9603, 0.0
        %v9636 = vmax.f32 %v9604, 0.0
        %v9637 = vmax.f32 %v9605, 0.0
        %v9638 = vmax.f32 %v9606, 0.0
        %v9639 = vmax.f32 %v9607, 0.0
        %v9640 = vmax.f32 %v9608, 0.0
        %v9641 = vmax.f32 %v9609, 0.0
        %v9642 = vmax.f32 %v9610, 0.0
        %v9643 = vmax.f32 %v9611, 0.0
        %v9644 = vmax.f32 %v9612, 0.0
        %v9645 = vmax.f32 %v9613, 0.0
        %v9646 = vmax.f32 %v9614, 0.0
        %v9647 = vmax.f32 %v9615, 0.0
        %v9648 = vmax.f32 %v9616, 0.0
        %v9649 = vmax.f32 %v9617, 0.0
        %v9650 = vmax.f32 %v9618, 0.0
        %v9651 = vmax.f32 %v9619, 0.0
        %v9652 = vmax.f32 %v9620, 0.0
        %v9653 = vmax.f32 %v9621, 0.0
        %v9654 = vmax.f32 %v9622, 0.0
        %v9655 = vmax.f32 %v9623, 0.0
        %v9656 = vmax.f32 %v9624, 0.0
        %v9657 = vmax.f32 %v9625, 0.0
        %v9658 = vmax.f32 %v9626, 0.0
        %v9659 = vmax.f32 %v9627, 0.0
        %v9660 = vmax.f32 %v9628, 0.0
        %9693 = vrot.lane.b32.xlu0 %v9629, 112
        %v9694 = vpop.permute.xlu0 %9693
        %9695 = vrot.lane.b32.xlu0 %v9630, 112
        %v9696 = vpop.permute.xlu0 %9695
        %9697 = vrot.lane.b32.xlu0 %v9631, 112
        %v9698 = vpop.permute.xlu0 %9697
        %9699 = vrot.lane.b32.xlu0 %v9632, 112
        %v9700 = vpop.permute.xlu0 %9699
        %9701 = vrot.lane.b32.xlu0 %v9633, 112
        %v9702 = vpop.permute.xlu0 %9701
        %9703 = vrot.lane.b32.xlu0 %v9634, 112
        %v9704 = vpop.permute.xlu0 %9703
        %9705 = vrot.lane.b32.xlu0 %v9635, 112
        %v9706 = vpop.permute.xlu0 %9705
        %9707 = vrot.lane.b32.xlu0 %v9636, 112
        %v9708 = vpop.permute.xlu0 %9707
        %9709 = vrot.lane.b32.xlu0 %v9637, 112
        %v9710 = vpop.permute.xlu0 %9709
        %9711 = vrot.lane.b32.xlu0 %v9638, 112
        %v9712 = vpop.permute.xlu0 %9711
        %9713 = vrot.lane.b32.xlu0 %v9639, 112
        %v9714 = vpop.permute.xlu0 %9713
        %9715 = vrot.lane.b32.xlu0 %v9640, 112
        %v9716 = vpop.permute.xlu0 %9715
        %9717 = vrot.lane.b32.xlu0 %v9641, 112
        %v9718 = vpop.permute.xlu0 %9717
        %9719 = vrot.lane.b32.xlu0 %v9642, 112
        %v9720 = vpop.permute.xlu0 %9719
        %9721 = vrot.lane.b32.xlu0 %v9643, 112
        %v9722 = vpop.permute.xlu0 %9721
        %9723 = vrot.lane.b32.xlu0 %v9644, 112
        %v9724 = vpop.permute.xlu0 %9723
        %9725 = vrot.lane.b32.xlu0 %v9645, 112
        %v9726 = vpop.permute.xlu0 %9725
        %9727 = vrot.lane.b32.xlu0 %v9646, 112
        %v9728 = vpop.permute.xlu0 %9727
        %9729 = vrot.lane.b32.xlu0 %v9647, 112
        %v9730 = vpop.permute.xlu0 %9729
        %9731 = vrot.lane.b32.xlu0 %v9648, 112
        %v9732 = vpop.permute.xlu0 %9731
        %9733 = vrot.lane.b32.xlu0 %v9649, 112
        %v9734 = vpop.permute.xlu0 %9733
        %9735 = vrot.lane.b32.xlu0 %v9650, 112
        %v9736 = vpop.permute.xlu0 %9735
        %9737 = vrot.lane.b32.xlu0 %v9651, 112
        %v9738 = vpop.permute.xlu0 %9737
        %9739 = vrot.lane.b32.xlu0 %v9652, 112
        %v9740 = vpop.permute.xlu0 %9739
        %9741 = vrot.lane.b32.xlu0 %v9653, 112
        %v9742 = vpop.permute.xlu0 %9741
        %9743 = vrot.lane.b32.xlu0 %v9654, 112
        %v9744 = vpop.permute.xlu0 %9743
        %9745 = vrot.lane.b32.xlu0 %v9655, 112
        %v9746 = vpop.permute.xlu0 %9745
        %9747 = vrot.lane.b32.xlu0 %v9656, 112
        %v9748 = vpop.permute.xlu0 %9747
        %9749 = vrot.lane.b32.xlu0 %v9657, 112
        %v9750 = vpop.permute.xlu0 %9749
        %9751 = vrot.lane.b32.xlu0 %v9658, 112
        %v9752 = vpop.permute.xlu0 %9751
        %9753 = vrot.lane.b32.xlu0 %v9659, 112
        %v9754 = vpop.permute.xlu0 %9753
        %9755 = vrot.lane.b32.xlu0 %v9660, 112
        %v9756 = vpop.permute.xlu0 %9755
        %v9789 = vadd.f32 %v9629, %v9694
        %v9790 = vadd.f32 %v9630, %v9696
        %v9791 = vadd.f32 %v9631, %v9698
        %v9792 = vadd.f32 %v9632, %v9700
        %v9793 = vadd.f32 %v9633, %v9702
        %v9794 = vadd.f32 %v9634, %v9704
        %v9795 = vadd.f32 %v9635, %v9706
        %v9796 = vadd.f32 %v9636, %v9708
        %v9797 = vadd.f32 %v9637, %v9710
        %v9798 = vadd.f32 %v9638, %v9712
        %v9799 = vadd.f32 %v9639, %v9714
        %v9800 = vadd.f32 %v9640, %v9716
        %v9801 = vadd.f32 %v9641, %v9718
        %v9802 = vadd.f32 %v9642, %v9720
        %v9803 = vadd.f32 %v9643, %v9722
        %v9804 = vadd.f32 %v9644, %v9724
        %v9805 = vadd.f32 %v9645, %v9726
        %v9806 = vadd.f32 %v9646, %v9728
        %v9807 = vadd.f32 %v9647, %v9730
        %v9808 = vadd.f32 %v9648, %v9732
        %v9809 = vadd.f32 %v9649, %v9734
        %v9810 = vadd.f32 %v9650, %v9736
        %v9811 = vadd.f32 %v9651, %v9738
        %v9812 = vadd.f32 %v9652, %v9740
        %v9813 = vadd.f32 %v9653, %v9742
        %v9814 = vadd.f32 %v9654, %v9744
        %v9815 = vadd.f32 %v9655, %v9746
        %v9816 = vadd.f32 %v9656, %v9748
        %v9817 = vadd.f32 %v9657, %v9750
        %v9818 = vadd.f32 %v9658, %v9752
        %v9819 = vadd.f32 %v9659, %v9754
        %v9820 = vadd.f32 %v9660, %v9756
        %9821 = vrot.lane.b32.xlu0 %v9629, 96
        %v9822 = vpop.permute.xlu0 %9821
        %9823 = vrot.lane.b32.xlu0 %v9630, 96
        %v9824 = vpop.permute.xlu0 %9823
        %9825 = vrot.lane.b32.xlu0 %v9631, 96
        %v9826 = vpop.permute.xlu0 %9825
        %9827 = vrot.lane.b32.xlu0 %v9632, 96
        %v9828 = vpop.permute.xlu0 %9827
        %9829 = vrot.lane.b32.xlu0 %v9633, 96
        %v9830 = vpop.permute.xlu0 %9829
        %9831 = vrot.lane.b32.xlu0 %v9634, 96
        %v9832 = vpop.permute.xlu0 %9831
        %9833 = vrot.lane.b32.xlu0 %v9635, 96
        %v9834 = vpop.permute.xlu0 %9833
        %9835 = vrot.lane.b32.xlu0 %v9636, 96
        %v9836 = vpop.permute.xlu0 %9835
        %9837 = vrot.lane.b32.xlu0 %v9637, 96
        %v9838 = vpop.permute.xlu0 %9837
        %9839 = vrot.lane.b32.xlu0 %v9638, 96
        %v9840 = vpop.permute.xlu0 %9839
        %9841 = vrot.lane.b32.xlu0 %v9639, 96
        %v9842 = vpop.permute.xlu0 %9841
        %9843 = vrot.lane.b32.xlu0 %v9640, 96
        %v9844 = vpop.permute.xlu0 %9843
        %9845 = vrot.lane.b32.xlu0 %v9641, 96
        %v9846 = vpop.permute.xlu0 %9845
        %9847 = vrot.lane.b32.xlu0 %v9642, 96
        %v9848 = vpop.permute.xlu0 %9847
        %9849 = vrot.lane.b32.xlu0 %v9643, 96
        %v9850 = vpop.permute.xlu0 %9849
        %9851 = vrot.lane.b32.xlu0 %v9644, 96
        %v9852 = vpop.permute.xlu0 %9851
        %9853 = vrot.lane.b32.xlu0 %v9645, 96
        %v9854 = vpop.permute.xlu0 %9853
        %9855 = vrot.lane.b32.xlu0 %v9646, 96
        %v9856 = vpop.permute.xlu0 %9855
        %9857 = vrot.lane.b32.xlu0 %v9647, 96
        %v9858 = vpop.permute.xlu0 %9857
        %9859 = vrot.lane.b32.xlu0 %v9648, 96
        %v9860 = vpop.permute.xlu0 %9859
        %9861 = vrot.lane.b32.xlu0 %v9649, 96
        %v9862 = vpop.permute.xlu0 %9861
        %9863 = vrot.lane.b32.xlu0 %v9650, 96
        %v9864 = vpop.permute.xlu0 %9863
        %9865 = vrot.lane.b32.xlu0 %v9651, 96
        %v9866 = vpop.permute.xlu0 %9865
        %9867 = vrot.lane.b32.xlu0 %v9652, 96
        %v9868 = vpop.permute.xlu0 %9867
        %9869 = vrot.lane.b32.xlu0 %v9653, 96
        %v9870 = vpop.permute.xlu0 %9869
        %9871 = vrot.lane.b32.xlu0 %v9654, 96
        %v9872 = vpop.permute.xlu0 %9871
        %9873 = vrot.lane.b32.xlu0 %v9655, 96
        %v9874 = vpop.permute.xlu0 %9873
        %9875 = vrot.lane.b32.xlu0 %v9656, 96
        %v9876 = vpop.permute.xlu0 %9875
        %9877 = vrot.lane.b32.xlu0 %v9657, 96
        %v9878 = vpop.permute.xlu0 %9877
        %9879 = vrot.lane.b32.xlu0 %v9658, 96
        %v9880 = vpop.permute.xlu0 %9879
        %9881 = vrot.lane.b32.xlu0 %v9659, 96
        %v9882 = vpop.permute.xlu0 %9881
        %9883 = vrot.lane.b32.xlu0 %v9660, 96
        %v9884 = vpop.permute.xlu0 %9883
        %v9917 = vadd.f32 %v9789, %v9822
        %v9918 = vadd.f32 %v9790, %v9824
        %v9919 = vadd.f32 %v9791, %v9826
        %v9920 = vadd.f32 %v9792, %v9828
        %v9921 = vadd.f32 %v9793, %v9830
        %v9922 = vadd.f32 %v9794, %v9832
        %v9923 = vadd.f32 %v9795, %v9834
        %v9924 = vadd.f32 %v9796, %v9836
        %v9925 = vadd.f32 %v9797, %v9838
        %v9926 = vadd.f32 %v9798, %v9840
        %v9927 = vadd.f32 %v9799, %v9842
        %v9928 = vadd.f32 %v9800, %v9844
        %v9929 = vadd.f32 %v9801, %v9846
        %v9930 = vadd.f32 %v9802, %v9848
        %v9931 = vadd.f32 %v9803, %v9850
        %v9932 = vadd.f32 %v9804, %v9852
        %v9933 = vadd.f32 %v9805, %v9854
        %v9934 = vadd.f32 %v9806, %v9856
        %v9935 = vadd.f32 %v9807, %v9858
        %v9936 = vadd.f32 %v9808, %v9860
        %v9937 = vadd.f32 %v9809, %v9862
        %v9938 = vadd.f32 %v9810, %v9864
        %v9939 = vadd.f32 %v9811, %v9866
        %v9940 = vadd.f32 %v9812, %v9868
        %v9941 = vadd.f32 %v9813, %v9870
        %v9942 = vadd.f32 %v9814, %v9872
        %v9943 = vadd.f32 %v9815, %v9874
        %v9944 = vadd.f32 %v9816, %v9876
        %v9945 = vadd.f32 %v9817, %v9878
        %v9946 = vadd.f32 %v9818, %v9880
        %v9947 = vadd.f32 %v9819, %v9882
        %v9948 = vadd.f32 %v9820, %v9884
        %9949 = vrot.lane.b32.xlu0 %v9629, 80
        %v9950 = vpop.permute.xlu0 %9949
        %9951 = vrot.lane.b32.xlu0 %v9630, 80
        %v9952 = vpop.permute.xlu0 %9951
        %9953 = vrot.lane.b32.xlu0 %v9631, 80
        %v9954 = vpop.permute.xlu0 %9953
        %9955 = vrot.lane.b32.xlu0 %v9632, 80
        %v9956 = vpop.permute.xlu0 %9955
        %9957 = vrot.lane.b32.xlu0 %v9633, 80
        %v9958 = vpop.permute.xlu0 %9957
        %9959 = vrot.lane.b32.xlu0 %v9634, 80
        %v9960 = vpop.permute.xlu0 %9959
        %9961 = vrot.lane.b32.xlu0 %v9635, 80
        %v9962 = vpop.permute.xlu0 %9961
        %9963 = vrot.lane.b32.xlu0 %v9636, 80
        %v9964 = vpop.permute.xlu0 %9963
        %9965 = vrot.lane.b32.xlu0 %v9637, 80
        %v9966 = vpop.permute.xlu0 %9965
        %9967 = vrot.lane.b32.xlu0 %v9638, 80
        %v9968 = vpop.permute.xlu0 %9967
        %9969 = vrot.lane.b32.xlu0 %v9639, 80
        %v9970 = vpop.permute.xlu0 %9969
        %9971 = vrot.lane.b32.xlu0 %v9640, 80
        %v9972 = vpop.permute.xlu0 %9971
        %9973 = vrot.lane.b32.xlu0 %v9641, 80
        %v9974 = vpop.permute.xlu0 %9973
        %9975 = vrot.lane.b32.xlu0 %v9642, 80
        %v9976 = vpop.permute.xlu0 %9975
        %9977 = vrot.lane.b32.xlu0 %v9643, 80
        %v9978 = vpop.permute.xlu0 %9977
        %9979 = vrot.lane.b32.xlu0 %v9644, 80
        %v9980 = vpop.permute.xlu0 %9979
        %9981 = vrot.lane.b32.xlu0 %v9645, 80
        %v9982 = vpop.permute.xlu0 %9981
        %9983 = vrot.lane.b32.xlu0 %v9646, 80
        %v9984 = vpop.permute.xlu0 %9983
        %9985 = vrot.lane.b32.xlu0 %v9647, 80
        %v9986 = vpop.permute.xlu0 %9985
        %9987 = vrot.lane.b32.xlu0 %v9648, 80
        %v9988 = vpop.permute.xlu0 %9987
        %9989 = vrot.lane.b32.xlu0 %v9649, 80
        %v9990 = vpop.permute.xlu0 %9989
        %9991 = vrot.lane.b32.xlu0 %v9650, 80
        %v9992 = vpop.permute.xlu0 %9991
        %9993 = vrot.lane.b32.xlu0 %v9651, 80
        %v9994 = vpop.permute.xlu0 %9993
        %9995 = vrot.lane.b32.xlu0 %v9652, 80
        %v9996 = vpop.permute.xlu0 %9995
        %9997 = vrot.lane.b32.xlu0 %v9653, 80
        %v9998 = vpop.permute.xlu0 %9997
        %9999 = vrot.lane.b32.xlu0 %v9654, 80
        %v10000 = vpop.permute.xlu0 %9999
        %10001 = vrot.lane.b32.xlu0 %v9655, 80
        %v10002 = vpop.permute.xlu0 %10001
        %10003 = vrot.lane.b32.xlu0 %v9656, 80
        %v10004 = vpop.permute.xlu0 %10003
        %10005 = vrot.lane.b32.xlu0 %v9657, 80
        %v10006 = vpop.permute.xlu0 %10005
        %10007 = vrot.lane.b32.xlu0 %v9658, 80
        %v10008 = vpop.permute.xlu0 %10007
        %10009 = vrot.lane.b32.xlu0 %v9659, 80
        %v10010 = vpop.permute.xlu0 %10009
        %10011 = vrot.lane.b32.xlu0 %v9660, 80
        %v10012 = vpop.permute.xlu0 %10011
        %v10045 = vadd.f32 %v9917, %v9950
        %v10046 = vadd.f32 %v9918, %v9952
        %v10047 = vadd.f32 %v9919, %v9954
        %v10048 = vadd.f32 %v9920, %v9956
        %v10049 = vadd.f32 %v9921, %v9958
        %v10050 = vadd.f32 %v9922, %v9960
        %v10051 = vadd.f32 %v9923, %v9962
        %v10052 = vadd.f32 %v9924, %v9964
        %v10053 = vadd.f32 %v9925, %v9966
        %v10054 = vadd.f32 %v9926, %v9968
        %v10055 = vadd.f32 %v9927, %v9970
        %v10056 = vadd.f32 %v9928, %v9972
        %v10057 = vadd.f32 %v9929, %v9974
        %v10058 = vadd.f32 %v9930, %v9976
        %v10059 = vadd.f32 %v9931, %v9978
        %v10060 = vadd.f32 %v9932, %v9980
        %v10061 = vadd.f32 %v9933, %v9982
        %v10062 = vadd.f32 %v9934, %v9984
        %v10063 = vadd.f32 %v9935, %v9986
        %v10064 = vadd.f32 %v9936, %v9988
        %v10065 = vadd.f32 %v9937, %v9990
        %v10066 = vadd.f32 %v9938, %v9992
        %v10067 = vadd.f32 %v9939, %v9994
        %v10068 = vadd.f32 %v9940, %v9996
        %v10069 = vadd.f32 %v9941, %v9998
        %v10070 = vadd.f32 %v9942, %v10000
        %v10071 = vadd.f32 %v9943, %v10002
        %v10072 = vadd.f32 %v9944, %v10004
        %v10073 = vadd.f32 %v9945, %v10006
        %v10074 = vadd.f32 %v9946, %v10008
        %v10075 = vadd.f32 %v9947, %v10010
        %v10076 = vadd.f32 %v9948, %v10012
        %10077 = vst.msk [vmem:[%s4269 + $0x8] sm:$0xff] %vm366, %v6261
        %10078 = vst.msk [vmem:[%s4269 + $0x10] sm:$0xff] %vm366, %v6262
        %10079 = vst.msk [vmem:[%s4269 + $0x28] sm:$0xff] %vm366, %v6263
        %10080 = vst.msk [vmem:[%s4269 + $0x30] sm:$0xff] %vm366, %v6264
        %10081 = vst.msk [vmem:[%s4269 + $0x48] sm:$0xff] %vm366, %v6265
        %10082 = vst.msk [vmem:[%s4269 + $0x50] sm:$0xff] %vm366, %v6266
        %10083 = vst.msk [vmem:[%s4269 + $0x68] sm:$0xff] %vm366, %v6267
        %10084 = vst.msk [vmem:[%s4269 + $0x70] sm:$0xff] %vm366, %v6268
        %10085 = vst.msk [vmem:[%s4269 + $0x88] sm:$0xff] %vm366, %v6269
        %10086 = vst.msk [vmem:[%s4269 + $0x90] sm:$0xff] %vm366, %v6270
        %10087 = vst.msk [vmem:[%s4269 + $0xa8] sm:$0xff] %vm366, %v6271
        %10088 = vst.msk [vmem:[%s4269 + $0xb0] sm:$0xff] %vm366, %v6272
        %10089 = vst.msk [vmem:[%s4269 + $0xc8] sm:$0xff] %vm366, %v6273
        %10090 = vst.msk [vmem:[%s4269 + $0xd0] sm:$0xff] %vm366, %v6274
        %10091 = vst.msk [vmem:[%s4269 + $0xe8] sm:$0xff] %vm366, %v6275
        %10092 = vst.msk [vmem:[%s4269 + $0xf0] sm:$0xff] %vm366, %v6276
        %10093 = vst.msk [vmem:[%s4269 + $0x108] sm:$0xff] %vm366, %v6277
        %10094 = vst.msk [vmem:[%s4269 + $0x110] sm:$0xff] %vm366, %v6278
        %10095 = vst.msk [vmem:[%s4269 + $0x128] sm:$0xff] %vm366, %v6279
        %10096 = vst.msk [vmem:[%s4269 + $0x130] sm:$0xff] %vm366, %v6280
        %10097 = vst.msk [vmem:[%s4269 + $0x148] sm:$0xff] %vm366, %v6281
        %10098 = vst.msk [vmem:[%s4269 + $0x150] sm:$0xff] %vm366, %v6282
        %10099 = vst.msk [vmem:[%s4269 + $0x168] sm:$0xff] %vm366, %v6283
        %10100 = vst.msk [vmem:[%s4269 + $0x170] sm:$0xff] %vm366, %v6284
        %10101 = vst.msk [vmem:[%s4269 + $0x188] sm:$0xff] %vm366, %v6285
        %10102 = vst.msk [vmem:[%s4269 + $0x190] sm:$0xff] %vm366, %v6286
        %10103 = vst.msk [vmem:[%s4269 + $0x1a8] sm:$0xff] %vm366, %v6287
        %10104 = vst.msk [vmem:[%s4269 + $0x1b0] sm:$0xff] %vm366, %v6288
        %10105 = vst.msk [vmem:[%s4269 + $0x1c8] sm:$0xff] %vm366, %v6289
        %10106 = vst.msk [vmem:[%s4269 + $0x1d0] sm:$0xff] %vm366, %v6290
        %10107 = vst.msk [vmem:[%s4269 + $0x1e8] sm:$0xff] %vm366, %v6291
        %10108 = vst.msk [vmem:[%s4269 + $0x1f0] sm:$0xff] %vm366, %v6292
        %v10109 = vld [vmem:[#allocation3] sm:$0xff]
        %v10110 = vld [vmem:[#allocation3 + $0x8] sm:$0xff]
        %v10111 = vld [vmem:[#allocation3 + $0x10] sm:$0xff]
        %v10112 = vld [vmem:[#allocation3 + $0x18] sm:$0xff]
        %v10113 = vld [vmem:[#allocation3 + $0x20] sm:$0xff]
        %v10114 = vld [vmem:[#allocation3 + $0x28] sm:$0xff]
        %v10115 = vld [vmem:[#allocation3 + $0x30] sm:$0xff]
        %v10116 = vld [vmem:[#allocation3 + $0x38] sm:$0xff]
        %v10117 = vld [vmem:[#allocation3 + $0x40] sm:$0xff]
        %v10118 = vld [vmem:[#allocation3 + $0x48] sm:$0xff]
        %v10119 = vld [vmem:[#allocation3 + $0x50] sm:$0xff]
        %v10120 = vld [vmem:[#allocation3 + $0x58] sm:$0xff]
        %v10121 = vld [vmem:[#allocation3 + $0x60] sm:$0xff]
        %v10122 = vld [vmem:[#allocation3 + $0x68] sm:$0xff]
        %v10123 = vld [vmem:[#allocation3 + $0x70] sm:$0xff]
        %v10124 = vld [vmem:[#allocation3 + $0x78] sm:$0xff]
        %v10125 = vld [vmem:[#allocation3 + $0x80] sm:$0xff]
        %v10126 = vld [vmem:[#allocation3 + $0x88] sm:$0xff]
        %v10127 = vld [vmem:[#allocation3 + $0x90] sm:$0xff]
        %v10128 = vld [vmem:[#allocation3 + $0x98] sm:$0xff]
        %v10129 = vld [vmem:[#allocation3 + $0xa0] sm:$0xff]
        %v10130 = vld [vmem:[#allocation3 + $0xa8] sm:$0xff]
        %v10131 = vld [vmem:[#allocation3 + $0xb0] sm:$0xff]
        %v10132 = vld [vmem:[#allocation3 + $0xb8] sm:$0xff]
        %v10133 = vld [vmem:[#allocation3 + $0xc0] sm:$0xff]
        %v10134 = vld [vmem:[#allocation3 + $0xc8] sm:$0xff]
        %v10135 = vld [vmem:[#allocation3 + $0xd0] sm:$0xff]
        %v10136 = vld [vmem:[#allocation3 + $0xd8] sm:$0xff]
        %v10137 = vld [vmem:[#allocation3 + $0xe0] sm:$0xff]
        %v10138 = vld [vmem:[#allocation3 + $0xe8] sm:$0xff]
        %v10139 = vld [vmem:[#allocation3 + $0xf0] sm:$0xff]
        %v10140 = vld [vmem:[#allocation3 + $0xf8] sm:$0xff]
        %v10141 = vld [vmem:[#allocation3 + $0x100] sm:$0xff]
        %v10142 = vld [vmem:[#allocation3 + $0x108] sm:$0xff]
        %v10143 = vld [vmem:[#allocation3 + $0x110] sm:$0xff]
        %v10144 = vld [vmem:[#allocation3 + $0x118] sm:$0xff]
        %v10145 = vld [vmem:[#allocation3 + $0x120] sm:$0xff]
        %v10146 = vld [vmem:[#allocation3 + $0x128] sm:$0xff]
        %v10147 = vld [vmem:[#allocation3 + $0x130] sm:$0xff]
        %v10148 = vld [vmem:[#allocation3 + $0x138] sm:$0xff]
        %v10149 = vld [vmem:[#allocation3 + $0x140] sm:$0xff]
        %v10150 = vld [vmem:[#allocation3 + $0x148] sm:$0xff]
        %v10151 = vld [vmem:[#allocation3 + $0x150] sm:$0xff]
        %v10152 = vld [vmem:[#allocation3 + $0x158] sm:$0xff]
        %v10153 = vld [vmem:[#allocation3 + $0x160] sm:$0xff]
        %v10154 = vld [vmem:[#allocation3 + $0x168] sm:$0xff]
        %v10155 = vld [vmem:[#allocation3 + $0x170] sm:$0xff]
        %v10156 = vld [vmem:[#allocation3 + $0x178] sm:$0xff]
        %v10157 = vld [vmem:[#allocation3 + $0x180] sm:$0xff]
        %v10158 = vld [vmem:[#allocation3 + $0x188] sm:$0xff]
        %v10159 = vld [vmem:[#allocation3 + $0x190] sm:$0xff]
        %v10160 = vld [vmem:[#allocation3 + $0x198] sm:$0xff]
        %v10161 = vld [vmem:[#allocation3 + $0x1a0] sm:$0xff]
        %v10162 = vld [vmem:[#allocation3 + $0x1a8] sm:$0xff]
        %v10163 = vld [vmem:[#allocation3 + $0x1b0] sm:$0xff]
        %v10164 = vld [vmem:[#allocation3 + $0x1b8] sm:$0xff]
        %v10165 = vld [vmem:[#allocation3 + $0x1c0] sm:$0xff]
        %v10166 = vld [vmem:[#allocation3 + $0x1c8] sm:$0xff]
        %v10167 = vld [vmem:[#allocation3 + $0x1d0] sm:$0xff]
        %v10168 = vld [vmem:[#allocation3 + $0x1d8] sm:$0xff]
        %v10169 = vld [vmem:[#allocation3 + $0x1e0] sm:$0xff]
        %v10170 = vld [vmem:[#allocation3 + $0x1e8] sm:$0xff]
        %v10171 = vld [vmem:[#allocation3 + $0x1f0] sm:$0xff]
        %v10172 = vld [vmem:[#allocation3 + $0x1f8] sm:$0xff]
        %v10173 = vld [vmem:[%s4366] sm:$0xff]
        %v10174 = vld [vmem:[%s4366 + $0x8] sm:$0xff]
        %v10175 = vld [vmem:[%s4366 + $0x10] sm:$0xff]
        %v10176 = vld [vmem:[%s4366 + $0x18] sm:$0xff]
        %v10177 = vld [vmem:[%s4366 + $0x20] sm:$0xff]
        %v10178 = vld [vmem:[%s4366 + $0x28] sm:$0xff]
        %v10179 = vld [vmem:[%s4366 + $0x30] sm:$0xff]
        %v10180 = vld [vmem:[%s4366 + $0x38] sm:$0xff]
        %v10181 = vld [vmem:[%s4366 + $0x40] sm:$0xff]
        %v10182 = vld [vmem:[%s4366 + $0x48] sm:$0xff]
        %v10183 = vld [vmem:[%s4366 + $0x50] sm:$0xff]
        %v10184 = vld [vmem:[%s4366 + $0x58] sm:$0xff]
        %v10185 = vld [vmem:[%s4366 + $0x60] sm:$0xff]
        %v10186 = vld [vmem:[%s4366 + $0x68] sm:$0xff]
        %v10187 = vld [vmem:[%s4366 + $0x70] sm:$0xff]
        %v10188 = vld [vmem:[%s4366 + $0x78] sm:$0xff]
        %v10189 = vld [vmem:[%s4366 + $0x80] sm:$0xff]
        %v10190 = vld [vmem:[%s4366 + $0x88] sm:$0xff]
        %v10191 = vld [vmem:[%s4366 + $0x90] sm:$0xff]
        %v10192 = vld [vmem:[%s4366 + $0x98] sm:$0xff]
        %v10193 = vld [vmem:[%s4366 + $0xa0] sm:$0xff]
        %v10194 = vld [vmem:[%s4366 + $0xa8] sm:$0xff]
        %v10195 = vld [vmem:[%s4366 + $0xb0] sm:$0xff]
        %v10196 = vld [vmem:[%s4366 + $0xb8] sm:$0xff]
        %v10197 = vld [vmem:[%s4366 + $0xc0] sm:$0xff]
        %v10198 = vld [vmem:[%s4366 + $0xc8] sm:$0xff]
        %v10199 = vld [vmem:[%s4366 + $0xd0] sm:$0xff]
        %v10200 = vld [vmem:[%s4366 + $0xd8] sm:$0xff]
        %v10201 = vld [vmem:[%s4366 + $0xe0] sm:$0xff]
        %v10202 = vld [vmem:[%s4366 + $0xe8] sm:$0xff]
        %v10203 = vld [vmem:[%s4366 + $0xf0] sm:$0xff]
        %v10204 = vld [vmem:[%s4366 + $0xf8] sm:$0xff]
        %v10205 = vld [vmem:[%s4366 + $0x100] sm:$0xff]
        %v10206 = vld [vmem:[%s4366 + $0x108] sm:$0xff]
        %v10207 = vld [vmem:[%s4366 + $0x110] sm:$0xff]
        %v10208 = vld [vmem:[%s4366 + $0x118] sm:$0xff]
        %v10209 = vld [vmem:[%s4366 + $0x120] sm:$0xff]
        %v10210 = vld [vmem:[%s4366 + $0x128] sm:$0xff]
        %v10211 = vld [vmem:[%s4366 + $0x130] sm:$0xff]
        %v10212 = vld [vmem:[%s4366 + $0x138] sm:$0xff]
        %v10213 = vld [vmem:[%s4366 + $0x140] sm:$0xff]
        %v10214 = vld [vmem:[%s4366 + $0x148] sm:$0xff]
        %v10215 = vld [vmem:[%s4366 + $0x150] sm:$0xff]
        %v10216 = vld [vmem:[%s4366 + $0x158] sm:$0xff]
        %v10217 = vld [vmem:[%s4366 + $0x160] sm:$0xff]
        %v10218 = vld [vmem:[%s4366 + $0x168] sm:$0xff]
        %v10219 = vld [vmem:[%s4366 + $0x170] sm:$0xff]
        %v10220 = vld [vmem:[%s4366 + $0x178] sm:$0xff]
        %v10221 = vld [vmem:[%s4366 + $0x180] sm:$0xff]
        %v10222 = vld [vmem:[%s4366 + $0x188] sm:$0xff]
        %v10223 = vld [vmem:[%s4366 + $0x190] sm:$0xff]
        %v10224 = vld [vmem:[%s4366 + $0x198] sm:$0xff]
        %v10225 = vld [vmem:[%s4366 + $0x1a0] sm:$0xff]
        %v10226 = vld [vmem:[%s4366 + $0x1a8] sm:$0xff]
        %v10227 = vld [vmem:[%s4366 + $0x1b0] sm:$0xff]
        %v10228 = vld [vmem:[%s4366 + $0x1b8] sm:$0xff]
        %v10229 = vld [vmem:[%s4366 + $0x1c0] sm:$0xff]
        %v10230 = vld [vmem:[%s4366 + $0x1c8] sm:$0xff]
        %v10231 = vld [vmem:[%s4366 + $0x1d0] sm:$0xff]
        %v10232 = vld [vmem:[%s4366 + $0x1d8] sm:$0xff]
        %v10233 = vld [vmem:[%s4366 + $0x1e0] sm:$0xff]
        %v10234 = vld [vmem:[%s4366 + $0x1e8] sm:$0xff]
        %v10235 = vld [vmem:[%s4366 + $0x1f0] sm:$0xff]
        %v10236 = vld [vmem:[%s4366 + $0x1f8] sm:$0xff]
        %v10237 = vld [vmem:[%s4269] sm:$0xff]
        %v10238 = vld [vmem:[%s4269 + $0x8] sm:$0xff]
        %v10239 = vld [vmem:[%s4269 + $0x10] sm:$0xff]
        %v10240 = vld [vmem:[%s4269 + $0x18] sm:$0xff]
        %v10241 = vld [vmem:[%s4269 + $0x20] sm:$0xff]
        %v10242 = vld [vmem:[%s4269 + $0x28] sm:$0xff]
        %v10243 = vld [vmem:[%s4269 + $0x30] sm:$0xff]
        %v10244 = vld [vmem:[%s4269 + $0x38] sm:$0xff]
        %v10245 = vld [vmem:[%s4269 + $0x40] sm:$0xff]
        %v10246 = vld [vmem:[%s4269 + $0x48] sm:$0xff]
        %v10247 = vld [vmem:[%s4269 + $0x50] sm:$0xff]
        %v10248 = vld [vmem:[%s4269 + $0x58] sm:$0xff]
        %v10249 = vld [vmem:[%s4269 + $0x60] sm:$0xff]
        %v10250 = vld [vmem:[%s4269 + $0x68] sm:$0xff]
        %v10251 = vld [vmem:[%s4269 + $0x70] sm:$0xff]
        %v10252 = vld [vmem:[%s4269 + $0x78] sm:$0xff]
        %v10253 = vld [vmem:[%s4269 + $0x80] sm:$0xff]
        %v10254 = vld [vmem:[%s4269 + $0x88] sm:$0xff]
        %v10255 = vld [vmem:[%s4269 + $0x90] sm:$0xff]
        %v10256 = vld [vmem:[%s4269 + $0x98] sm:$0xff]
        %v10257 = vld [vmem:[%s4269 + $0xa0] sm:$0xff]
        %v10258 = vld [vmem:[%s4269 + $0xa8] sm:$0xff]
        %v10259 = vld [vmem:[%s4269 + $0xb0] sm:$0xff]
        %v10260 = vld [vmem:[%s4269 + $0xb8] sm:$0xff]
        %v10261 = vld [vmem:[%s4269 + $0xc0] sm:$0xff]
        %v10262 = vld [vmem:[%s4269 + $0xc8] sm:$0xff]
        %v10263 = vld [vmem:[%s4269 + $0xd0] sm:$0xff]
        %v10264 = vld [vmem:[%s4269 + $0xd8] sm:$0xff]
        %v10265 = vld [vmem:[%s4269 + $0xe0] sm:$0xff]
        %v10266 = vld [vmem:[%s4269 + $0xe8] sm:$0xff]
        %v10267 = vld [vmem:[%s4269 + $0xf0] sm:$0xff]
        %v10268 = vld [vmem:[%s4269 + $0xf8] sm:$0xff]
        %v10269 = vld [vmem:[%s4269 + $0x100] sm:$0xff]
        %v10270 = vld [vmem:[%s4269 + $0x108] sm:$0xff]
        %v10271 = vld [vmem:[%s4269 + $0x110] sm:$0xff]
        %v10272 = vld [vmem:[%s4269 + $0x118] sm:$0xff]
        %v10273 = vld [vmem:[%s4269 + $0x120] sm:$0xff]
        %v10274 = vld [vmem:[%s4269 + $0x128] sm:$0xff]
        %v10275 = vld [vmem:[%s4269 + $0x130] sm:$0xff]
        %v10276 = vld [vmem:[%s4269 + $0x138] sm:$0xff]
        %v10277 = vld [vmem:[%s4269 + $0x140] sm:$0xff]
        %v10278 = vld [vmem:[%s4269 + $0x148] sm:$0xff]
        %v10279 = vld [vmem:[%s4269 + $0x150] sm:$0xff]
        %v10280 = vld [vmem:[%s4269 + $0x158] sm:$0xff]
        %v10281 = vld [vmem:[%s4269 + $0x160] sm:$0xff]
        %v10282 = vld [vmem:[%s4269 + $0x168] sm:$0xff]
        %v10283 = vld [vmem:[%s4269 + $0x170] sm:$0xff]
        %v10284 = vld [vmem:[%s4269 + $0x178] sm:$0xff]
        %v10285 = vld [vmem:[%s4269 + $0x180] sm:$0xff]
        %v10286 = vld [vmem:[%s4269 + $0x188] sm:$0xff]
        %v10287 = vld [vmem:[%s4269 + $0x190] sm:$0xff]
        %v10288 = vld [vmem:[%s4269 + $0x198] sm:$0xff]
        %v10289 = vld [vmem:[%s4269 + $0x1a0] sm:$0xff]
        %v10290 = vld [vmem:[%s4269 + $0x1a8] sm:$0xff]
        %v10291 = vld [vmem:[%s4269 + $0x1b0] sm:$0xff]
        %v10292 = vld [vmem:[%s4269 + $0x1b8] sm:$0xff]
        %v10293 = vld [vmem:[%s4269 + $0x1c0] sm:$0xff]
        %v10294 = vld [vmem:[%s4269 + $0x1c8] sm:$0xff]
        %v10295 = vld [vmem:[%s4269 + $0x1d0] sm:$0xff]
        %v10296 = vld [vmem:[%s4269 + $0x1d8] sm:$0xff]
        %v10297 = vld [vmem:[%s4269 + $0x1e0] sm:$0xff]
        %v10298 = vld [vmem:[%s4269 + $0x1e8] sm:$0xff]
        %v10299 = vld [vmem:[%s4269 + $0x1f0] sm:$0xff]
        %v10300 = vld [vmem:[%s4269 + $0x1f8] sm:$0xff]
        %v10301 = vld [vmem:[%s4495] sm:$0xff]
        %v10302 = vld [vmem:[%s4495 + $0x8] sm:$0xff]
        %v10303 = vld [vmem:[%s4495 + $0x10] sm:$0xff]
        %v10304 = vld [vmem:[%s4495 + $0x18] sm:$0xff]
        %v10305 = vld [vmem:[%s4495 + $0x20] sm:$0xff]
        %v10306 = vld [vmem:[%s4495 + $0x28] sm:$0xff]
        %v10307 = vld [vmem:[%s4495 + $0x30] sm:$0xff]
        %v10308 = vld [vmem:[%s4495 + $0x38] sm:$0xff]
        %v10309 = vld [vmem:[%s4495 + $0x40] sm:$0xff]
        %v10310 = vld [vmem:[%s4495 + $0x48] sm:$0xff]
        %v10311 = vld [vmem:[%s4495 + $0x50] sm:$0xff]
        %v10312 = vld [vmem:[%s4495 + $0x58] sm:$0xff]
        %v10313 = vld [vmem:[%s4495 + $0x60] sm:$0xff]
        %v10314 = vld [vmem:[%s4495 + $0x68] sm:$0xff]
        %v10315 = vld [vmem:[%s4495 + $0x70] sm:$0xff]
        %v10316 = vld [vmem:[%s4495 + $0x78] sm:$0xff]
        %v10317 = vld [vmem:[%s4495 + $0x80] sm:$0xff]
        %v10318 = vld [vmem:[%s4495 + $0x88] sm:$0xff]
        %v10319 = vld [vmem:[%s4495 + $0x90] sm:$0xff]
        %v10320 = vld [vmem:[%s4495 + $0x98] sm:$0xff]
        %v10321 = vld [vmem:[%s4495 + $0xa0] sm:$0xff]
        %v10322 = vld [vmem:[%s4495 + $0xa8] sm:$0xff]
        %v10323 = vld [vmem:[%s4495 + $0xb0] sm:$0xff]
        %v10324 = vld [vmem:[%s4495 + $0xb8] sm:$0xff]
        %v10325 = vld [vmem:[%s4495 + $0xc0] sm:$0xff]
        %v10326 = vld [vmem:[%s4495 + $0xc8] sm:$0xff]
        %v10327 = vld [vmem:[%s4495 + $0xd0] sm:$0xff]
        %v10328 = vld [vmem:[%s4495 + $0xd8] sm:$0xff]
        %v10329 = vld [vmem:[%s4495 + $0xe0] sm:$0xff]
        %v10330 = vld [vmem:[%s4495 + $0xe8] sm:$0xff]
        %v10331 = vld [vmem:[%s4495 + $0xf0] sm:$0xff]
        %v10332 = vld [vmem:[%s4495 + $0xf8] sm:$0xff]
        %v10333 = vld [vmem:[%s4495 + $0x100] sm:$0xff]
        %v10334 = vld [vmem:[%s4495 + $0x108] sm:$0xff]
        %v10335 = vld [vmem:[%s4495 + $0x110] sm:$0xff]
        %v10336 = vld [vmem:[%s4495 + $0x118] sm:$0xff]
        %v10337 = vld [vmem:[%s4495 + $0x120] sm:$0xff]
        %v10338 = vld [vmem:[%s4495 + $0x128] sm:$0xff]
        %v10339 = vld [vmem:[%s4495 + $0x130] sm:$0xff]
        %v10340 = vld [vmem:[%s4495 + $0x138] sm:$0xff]
        %v10341 = vld [vmem:[%s4495 + $0x140] sm:$0xff]
        %v10342 = vld [vmem:[%s4495 + $0x148] sm:$0xff]
        %v10343 = vld [vmem:[%s4495 + $0x150] sm:$0xff]
        %v10344 = vld [vmem:[%s4495 + $0x158] sm:$0xff]
        %v10345 = vld [vmem:[%s4495 + $0x160] sm:$0xff]
        %v10346 = vld [vmem:[%s4495 + $0x168] sm:$0xff]
        %v10347 = vld [vmem:[%s4495 + $0x170] sm:$0xff]
        %v10348 = vld [vmem:[%s4495 + $0x178] sm:$0xff]
        %v10349 = vld [vmem:[%s4495 + $0x180] sm:$0xff]
        %v10350 = vld [vmem:[%s4495 + $0x188] sm:$0xff]
        %v10351 = vld [vmem:[%s4495 + $0x190] sm:$0xff]
        %v10352 = vld [vmem:[%s4495 + $0x198] sm:$0xff]
        %v10353 = vld [vmem:[%s4495 + $0x1a0] sm:$0xff]
        %v10354 = vld [vmem:[%s4495 + $0x1a8] sm:$0xff]
        %v10355 = vld [vmem:[%s4495 + $0x1b0] sm:$0xff]
        %v10356 = vld [vmem:[%s4495 + $0x1b8] sm:$0xff]
        %v10357 = vld [vmem:[%s4495 + $0x1c0] sm:$0xff]
        %v10358 = vld [vmem:[%s4495 + $0x1c8] sm:$0xff]
        %v10359 = vld [vmem:[%s4495 + $0x1d0] sm:$0xff]
        %v10360 = vld [vmem:[%s4495 + $0x1d8] sm:$0xff]
        %v10361 = vld [vmem:[%s4495 + $0x1e0] sm:$0xff]
        %v10362 = vld [vmem:[%s4495 + $0x1e8] sm:$0xff]
        %v10363 = vld [vmem:[%s4495 + $0x1f0] sm:$0xff]
        %v10364 = vld [vmem:[%s4495 + $0x1f8] sm:$0xff]
        %v10365 = vld [vmem:[%s4560] sm:$0xff]
        %v10366 = vld [vmem:[%s4560 + $0x8] sm:$0xff]
        %v10367 = vld [vmem:[%s4560 + $0x10] sm:$0xff]
        %v10368 = vld [vmem:[%s4560 + $0x18] sm:$0xff]
        %v10369 = vld [vmem:[%s4560 + $0x20] sm:$0xff]
        %v10370 = vld [vmem:[%s4560 + $0x28] sm:$0xff]
        %v10371 = vld [vmem:[%s4560 + $0x30] sm:$0xff]
        %v10372 = vld [vmem:[%s4560 + $0x38] sm:$0xff]
        %v10373 = vld [vmem:[%s4560 + $0x40] sm:$0xff]
        %v10374 = vld [vmem:[%s4560 + $0x48] sm:$0xff]
        %v10375 = vld [vmem:[%s4560 + $0x50] sm:$0xff]
        %v10376 = vld [vmem:[%s4560 + $0x58] sm:$0xff]
        %v10377 = vld [vmem:[%s4560 + $0x60] sm:$0xff]
        %v10378 = vld [vmem:[%s4560 + $0x68] sm:$0xff]
        %v10379 = vld [vmem:[%s4560 + $0x70] sm:$0xff]
        %v10380 = vld [vmem:[%s4560 + $0x78] sm:$0xff]
        %v10381 = vld [vmem:[%s4560 + $0x80] sm:$0xff]
        %v10382 = vld [vmem:[%s4560 + $0x88] sm:$0xff]
        %v10383 = vld [vmem:[%s4560 + $0x90] sm:$0xff]
        %v10384 = vld [vmem:[%s4560 + $0x98] sm:$0xff]
        %v10385 = vld [vmem:[%s4560 + $0xa0] sm:$0xff]
        %v10386 = vld [vmem:[%s4560 + $0xa8] sm:$0xff]
        %v10387 = vld [vmem:[%s4560 + $0xb0] sm:$0xff]
        %v10388 = vld [vmem:[%s4560 + $0xb8] sm:$0xff]
        %v10389 = vld [vmem:[%s4560 + $0xc0] sm:$0xff]
        %v10390 = vld [vmem:[%s4560 + $0xc8] sm:$0xff]
        %v10391 = vld [vmem:[%s4560 + $0xd0] sm:$0xff]
        %v10392 = vld [vmem:[%s4560 + $0xd8] sm:$0xff]
        %v10393 = vld [vmem:[%s4560 + $0xe0] sm:$0xff]
        %v10394 = vld [vmem:[%s4560 + $0xe8] sm:$0xff]
        %v10395 = vld [vmem:[%s4560 + $0xf0] sm:$0xff]
        %v10396 = vld [vmem:[%s4560 + $0xf8] sm:$0xff]
        %v10397 = vld [vmem:[%s4560 + $0x100] sm:$0xff]
        %v10398 = vld [vmem:[%s4560 + $0x108] sm:$0xff]
        %v10399 = vld [vmem:[%s4560 + $0x110] sm:$0xff]
        %v10400 = vld [vmem:[%s4560 + $0x118] sm:$0xff]
        %v10401 = vld [vmem:[%s4560 + $0x120] sm:$0xff]
        %v10402 = vld [vmem:[%s4560 + $0x128] sm:$0xff]
        %v10403 = vld [vmem:[%s4560 + $0x130] sm:$0xff]
        %v10404 = vld [vmem:[%s4560 + $0x138] sm:$0xff]
        %v10405 = vld [vmem:[%s4560 + $0x140] sm:$0xff]
        %v10406 = vld [vmem:[%s4560 + $0x148] sm:$0xff]
        %v10407 = vld [vmem:[%s4560 + $0x150] sm:$0xff]
        %v10408 = vld [vmem:[%s4560 + $0x158] sm:$0xff]
        %v10409 = vld [vmem:[%s4560 + $0x160] sm:$0xff]
        %v10410 = vld [vmem:[%s4560 + $0x168] sm:$0xff]
        %v10411 = vld [vmem:[%s4560 + $0x170] sm:$0xff]
        %v10412 = vld [vmem:[%s4560 + $0x178] sm:$0xff]
        %v10413 = vld [vmem:[%s4560 + $0x180] sm:$0xff]
        %v10414 = vld [vmem:[%s4560 + $0x188] sm:$0xff]
        %v10415 = vld [vmem:[%s4560 + $0x190] sm:$0xff]
        %v10416 = vld [vmem:[%s4560 + $0x198] sm:$0xff]
        %v10417 = vld [vmem:[%s4560 + $0x1a0] sm:$0xff]
        %v10418 = vld [vmem:[%s4560 + $0x1a8] sm:$0xff]
        %v10419 = vld [vmem:[%s4560 + $0x1b0] sm:$0xff]
        %v10420 = vld [vmem:[%s4560 + $0x1b8] sm:$0xff]
        %v10421 = vld [vmem:[%s4560 + $0x1c0] sm:$0xff]
        %v10422 = vld [vmem:[%s4560 + $0x1c8] sm:$0xff]
        %v10423 = vld [vmem:[%s4560 + $0x1d0] sm:$0xff]
        %v10424 = vld [vmem:[%s4560 + $0x1d8] sm:$0xff]
        %v10425 = vld [vmem:[%s4560 + $0x1e0] sm:$0xff]
        %v10426 = vld [vmem:[%s4560 + $0x1e8] sm:$0xff]
        %v10427 = vld [vmem:[%s4560 + $0x1f0] sm:$0xff]
        %v10428 = vld [vmem:[%s4560 + $0x1f8] sm:$0xff]
        %v10429 = vmax.f32 %v10173, %v10237
        %v10430 = vmax.f32 %v10174, %v10238
        %v10431 = vmax.f32 %v10175, %v10239
        %v10432 = vmax.f32 %v10176, %v10240
        %v10433 = vmax.f32 %v10177, %v10241
        %v10434 = vmax.f32 %v10178, %v10242
        %v10435 = vmax.f32 %v10179, %v10243
        %v10436 = vmax.f32 %v10180, %v10244
        %v10437 = vmax.f32 %v10181, %v10245
        %v10438 = vmax.f32 %v10182, %v10246
        %v10439 = vmax.f32 %v10183, %v10247
        %v10440 = vmax.f32 %v10184, %v10248
        %v10441 = vmax.f32 %v10185, %v10249
        %v10442 = vmax.f32 %v10186, %v10250
        %v10443 = vmax.f32 %v10187, %v10251
        %v10444 = vmax.f32 %v10188, %v10252
        %v10445 = vmax.f32 %v10189, %v10253
        %v10446 = vmax.f32 %v10190, %v10254
        %v10447 = vmax.f32 %v10191, %v10255
        %v10448 = vmax.f32 %v10192, %v10256
        %v10449 = vmax.f32 %v10193, %v10257
        %v10450 = vmax.f32 %v10194, %v10258
        %v10451 = vmax.f32 %v10195, %v10259
        %v10452 = vmax.f32 %v10196, %v10260
        %v10453 = vmax.f32 %v10197, %v10261
        %v10454 = vmax.f32 %v10198, %v10262
        %v10455 = vmax.f32 %v10199, %v10263
        %v10456 = vmax.f32 %v10200, %v10264
        %v10457 = vmax.f32 %v10201, %v10265
        %v10458 = vmax.f32 %v10202, %v10266
        %v10459 = vmax.f32 %v10203, %v10267
        %v10460 = vmax.f32 %v10204, %v10268
        %v10461 = vmax.f32 %v10205, %v10269
        %v10462 = vmax.f32 %v10206, %v10270
        %v10463 = vmax.f32 %v10207, %v10271
        %v10464 = vmax.f32 %v10208, %v10272
        %v10465 = vmax.f32 %v10209, %v10273
        %v10466 = vmax.f32 %v10210, %v10274
        %v10467 = vmax.f32 %v10211, %v10275
        %v10468 = vmax.f32 %v10212, %v10276
        %v10469 = vmax.f32 %v10213, %v10277
        %v10470 = vmax.f32 %v10214, %v10278
        %v10471 = vmax.f32 %v10215, %v10279
        %v10472 = vmax.f32 %v10216, %v10280
        %v10473 = vmax.f32 %v10217, %v10281
        %v10474 = vmax.f32 %v10218, %v10282
        %v10475 = vmax.f32 %v10219, %v10283
        %v10476 = vmax.f32 %v10220, %v10284
        %v10477 = vmax.f32 %v10221, %v10285
        %v10478 = vmax.f32 %v10222, %v10286
        %v10479 = vmax.f32 %v10223, %v10287
        %v10480 = vmax.f32 %v10224, %v10288
        %v10481 = vmax.f32 %v10225, %v10289
        %v10482 = vmax.f32 %v10226, %v10290
        %v10483 = vmax.f32 %v10227, %v10291
        %v10484 = vmax.f32 %v10228, %v10292
        %v10485 = vmax.f32 %v10229, %v10293
        %v10486 = vmax.f32 %v10230, %v10294
        %v10487 = vmax.f32 %v10231, %v10295
        %v10488 = vmax.f32 %v10232, %v10296
        %v10489 = vmax.f32 %v10233, %v10297
        %v10490 = vmax.f32 %v10234, %v10298
        %v10491 = vmax.f32 %v10235, %v10299
        %v10492 = vmax.f32 %v10236, %v10300
        %v10493 = vmax.f32 %v10429, %v10301
        %v10494 = vmax.f32 %v10430, %v10302
        %v10495 = vmax.f32 %v10431, %v10303
        %v10496 = vmax.f32 %v10432, %v10304
        %v10497 = vmax.f32 %v10433, %v10305
        %v10498 = vmax.f32 %v10434, %v10306
        %v10499 = vmax.f32 %v10435, %v10307
        %v10500 = vmax.f32 %v10436, %v10308
        %v10501 = vmax.f32 %v10437, %v10309
        %v10502 = vmax.f32 %v10438, %v10310
        %v10503 = vmax.f32 %v10439, %v10311
        %v10504 = vmax.f32 %v10440, %v10312
        %v10505 = vmax.f32 %v10441, %v10313
        %v10506 = vmax.f32 %v10442, %v10314
        %v10507 = vmax.f32 %v10443, %v10315
        %v10508 = vmax.f32 %v10444, %v10316
        %v10509 = vmax.f32 %v10445, %v10317
        %v10510 = vmax.f32 %v10446, %v10318
        %v10511 = vmax.f32 %v10447, %v10319
        %v10512 = vmax.f32 %v10448, %v10320
        %v10513 = vmax.f32 %v10449, %v10321
        %v10514 = vmax.f32 %v10450, %v10322
        %v10515 = vmax.f32 %v10451, %v10323
        %v10516 = vmax.f32 %v10452, %v10324
        %v10517 = vmax.f32 %v10453, %v10325
        %v10518 = vmax.f32 %v10454, %v10326
        %v10519 = vmax.f32 %v10455, %v10327
        %v10520 = vmax.f32 %v10456, %v10328
        %v10521 = vmax.f32 %v10457, %v10329
        %v10522 = vmax.f32 %v10458, %v10330
        %v10523 = vmax.f32 %v10459, %v10331
        %v10524 = vmax.f32 %v10460, %v10332
        %v10525 = vmax.f32 %v10461, %v10333
        %v10526 = vmax.f32 %v10462, %v10334
        %v10527 = vmax.f32 %v10463, %v10335
        %v10528 = vmax.f32 %v10464, %v10336
        %v10529 = vmax.f32 %v10465, %v10337
        %v10530 = vmax.f32 %v10466, %v10338
        %v10531 = vmax.f32 %v10467, %v10339
        %v10532 = vmax.f32 %v10468, %v10340
        %v10533 = vmax.f32 %v10469, %v10341
        %v10534 = vmax.f32 %v10470, %v10342
        %v10535 = vmax.f32 %v10471, %v10343
        %v10536 = vmax.f32 %v10472, %v10344
        %v10537 = vmax.f32 %v10473, %v10345
        %v10538 = vmax.f32 %v10474, %v10346
        %v10539 = vmax.f32 %v10475, %v10347
        %v10540 = vmax.f32 %v10476, %v10348
        %v10541 = vmax.f32 %v10477, %v10349
        %v10542 = vmax.f32 %v10478, %v10350
        %v10543 = vmax.f32 %v10479, %v10351
        %v10544 = vmax.f32 %v10480, %v10352
        %v10545 = vmax.f32 %v10481, %v10353
        %v10546 = vmax.f32 %v10482, %v10354
        %v10547 = vmax.f32 %v10483, %v10355
        %v10548 = vmax.f32 %v10484, %v10356
        %v10549 = vmax.f32 %v10485, %v10357
        %v10550 = vmax.f32 %v10486, %v10358
        %v10551 = vmax.f32 %v10487, %v10359
        %v10552 = vmax.f32 %v10488, %v10360
        %v10553 = vmax.f32 %v10489, %v10361
        %v10554 = vmax.f32 %v10490, %v10362
        %v10555 = vmax.f32 %v10491, %v10363
        %v10556 = vmax.f32 %v10492, %v10364
        %v10557 = vmax.f32 %v10109, %v10493
        %v10558 = vmax.f32 %v10110, %v10494
        %v10559 = vmax.f32 %v10111, %v10495
        %v10560 = vmax.f32 %v10112, %v10496
        %v10561 = vmax.f32 %v10113, %v10497
        %v10562 = vmax.f32 %v10114, %v10498
        %v10563 = vmax.f32 %v10115, %v10499
        %v10564 = vmax.f32 %v10116, %v10500
        %v10565 = vmax.f32 %v10117, %v10501
        %v10566 = vmax.f32 %v10118, %v10502
        %v10567 = vmax.f32 %v10119, %v10503
        %v10568 = vmax.f32 %v10120, %v10504
        %v10569 = vmax.f32 %v10121, %v10505
        %v10570 = vmax.f32 %v10122, %v10506
        %v10571 = vmax.f32 %v10123, %v10507
        %v10572 = vmax.f32 %v10124, %v10508
        %v10573 = vmax.f32 %v10125, %v10509
        %v10574 = vmax.f32 %v10126, %v10510
        %v10575 = vmax.f32 %v10127, %v10511
        %v10576 = vmax.f32 %v10128, %v10512
        %v10577 = vmax.f32 %v10129, %v10513
        %v10578 = vmax.f32 %v10130, %v10514
        %v10579 = vmax.f32 %v10131, %v10515
        %v10580 = vmax.f32 %v10132, %v10516
        %v10581 = vmax.f32 %v10133, %v10517
        %v10582 = vmax.f32 %v10134, %v10518
        %v10583 = vmax.f32 %v10135, %v10519
        %v10584 = vmax.f32 %v10136, %v10520
        %v10585 = vmax.f32 %v10137, %v10521
        %v10586 = vmax.f32 %v10138, %v10522
        %v10587 = vmax.f32 %v10139, %v10523
        %v10588 = vmax.f32 %v10140, %v10524
        %v10589 = vmax.f32 %v10141, %v10525
        %v10590 = vmax.f32 %v10142, %v10526
        %v10591 = vmax.f32 %v10143, %v10527
        %v10592 = vmax.f32 %v10144, %v10528
        %v10593 = vmax.f32 %v10145, %v10529
        %v10594 = vmax.f32 %v10146, %v10530
        %v10595 = vmax.f32 %v10147, %v10531
        %v10596 = vmax.f32 %v10148, %v10532
        %v10597 = vmax.f32 %v10149, %v10533
        %v10598 = vmax.f32 %v10150, %v10534
        %v10599 = vmax.f32 %v10151, %v10535
        %v10600 = vmax.f32 %v10152, %v10536
        %v10601 = vmax.f32 %v10153, %v10537
        %v10602 = vmax.f32 %v10154, %v10538
        %v10603 = vmax.f32 %v10155, %v10539
        %v10604 = vmax.f32 %v10156, %v10540
        %v10605 = vmax.f32 %v10157, %v10541
        %v10606 = vmax.f32 %v10158, %v10542
        %v10607 = vmax.f32 %v10159, %v10543
        %v10608 = vmax.f32 %v10160, %v10544
        %v10609 = vmax.f32 %v10161, %v10545
        %v10610 = vmax.f32 %v10162, %v10546
        %v10611 = vmax.f32 %v10163, %v10547
        %v10612 = vmax.f32 %v10164, %v10548
        %v10613 = vmax.f32 %v10165, %v10549
        %v10614 = vmax.f32 %v10166, %v10550
        %v10615 = vmax.f32 %v10167, %v10551
        %v10616 = vmax.f32 %v10168, %v10552
        %v10617 = vmax.f32 %v10169, %v10553
        %v10618 = vmax.f32 %v10170, %v10554
        %v10619 = vmax.f32 %v10171, %v10555
        %v10620 = vmax.f32 %v10172, %v10556
        %v10621 = vmax.f32 %v10557, %v10365
        %v10622 = vmax.f32 %v10558, %v10366
        %v10623 = vmax.f32 %v10559, %v10367
        %v10624 = vmax.f32 %v10560, %v10368
        %v10625 = vmax.f32 %v10561, %v10369
        %v10626 = vmax.f32 %v10562, %v10370
        %v10627 = vmax.f32 %v10563, %v10371
        %v10628 = vmax.f32 %v10564, %v10372
        %v10629 = vmax.f32 %v10565, %v10373
        %v10630 = vmax.f32 %v10566, %v10374
        %v10631 = vmax.f32 %v10567, %v10375
        %v10632 = vmax.f32 %v10568, %v10376
        %v10633 = vmax.f32 %v10569, %v10377
        %v10634 = vmax.f32 %v10570, %v10378
        %v10635 = vmax.f32 %v10571, %v10379
        %v10636 = vmax.f32 %v10572, %v10380
        %v10637 = vmax.f32 %v10573, %v10381
        %v10638 = vmax.f32 %v10574, %v10382
        %v10639 = vmax.f32 %v10575, %v10383
        %v10640 = vmax.f32 %v10576, %v10384
        %v10641 = vmax.f32 %v10577, %v10385
        %v10642 = vmax.f32 %v10578, %v10386
        %v10643 = vmax.f32 %v10579, %v10387
        %v10644 = vmax.f32 %v10580, %v10388
        %v10645 = vmax.f32 %v10581, %v10389
        %v10646 = vmax.f32 %v10582, %v10390
        %v10647 = vmax.f32 %v10583, %v10391
        %v10648 = vmax.f32 %v10584, %v10392
        %v10649 = vmax.f32 %v10585, %v10393
        %v10650 = vmax.f32 %v10586, %v10394
        %v10651 = vmax.f32 %v10587, %v10395
        %v10652 = vmax.f32 %v10588, %v10396
        %v10653 = vmax.f32 %v10589, %v10397
        %v10654 = vmax.f32 %v10590, %v10398
        %v10655 = vmax.f32 %v10591, %v10399
        %v10656 = vmax.f32 %v10592, %v10400
        %v10657 = vmax.f32 %v10593, %v10401
        %v10658 = vmax.f32 %v10594, %v10402
        %v10659 = vmax.f32 %v10595, %v10403
        %v10660 = vmax.f32 %v10596, %v10404
        %v10661 = vmax.f32 %v10597, %v10405
        %v10662 = vmax.f32 %v10598, %v10406
        %v10663 = vmax.f32 %v10599, %v10407
        %v10664 = vmax.f32 %v10600, %v10408
        %v10665 = vmax.f32 %v10601, %v10409
        %v10666 = vmax.f32 %v10602, %v10410
        %v10667 = vmax.f32 %v10603, %v10411
        %v10668 = vmax.f32 %v10604, %v10412
        %v10669 = vmax.f32 %v10605, %v10413
        %v10670 = vmax.f32 %v10606, %v10414
        %v10671 = vmax.f32 %v10607, %v10415
        %v10672 = vmax.f32 %v10608, %v10416
        %v10673 = vmax.f32 %v10609, %v10417
        %v10674 = vmax.f32 %v10610, %v10418
        %v10675 = vmax.f32 %v10611, %v10419
        %v10676 = vmax.f32 %v10612, %v10420
        %v10677 = vmax.f32 %v10613, %v10421
        %v10678 = vmax.f32 %v10614, %v10422
        %v10679 = vmax.f32 %v10615, %v10423
        %v10680 = vmax.f32 %v10616, %v10424
        %v10681 = vmax.f32 %v10617, %v10425
        %v10682 = vmax.f32 %v10618, %v10426
        %v10683 = vmax.f32 %v10619, %v10427
        %v10684 = vmax.f32 %v10620, %v10428
        %v10717 = vrot.slane %v10494, 1
        %v10718 = vrot.slane %v10495, 1
        %v10719 = vsel %vm4913, %v10717, %v10718
        %v10720 = vrot.slane %v10498, 1
        %v10721 = vrot.slane %v10499, 1
        %v10722 = vsel %vm4913, %v10720, %v10721
        %v10723 = vrot.slane %v10502, 1
        %v10724 = vrot.slane %v10503, 1
        %v10725 = vsel %vm4913, %v10723, %v10724
        %v10726 = vrot.slane %v10506, 1
        %v10727 = vrot.slane %v10507, 1
        %v10728 = vsel %vm4913, %v10726, %v10727
        %v10729 = vrot.slane %v10510, 1
        %v10730 = vrot.slane %v10511, 1
        %v10731 = vsel %vm4913, %v10729, %v10730
        %v10732 = vrot.slane %v10514, 1
        %v10733 = vrot.slane %v10515, 1
        %v10734 = vsel %vm4913, %v10732, %v10733
        %v10735 = vrot.slane %v10518, 1
        %v10736 = vrot.slane %v10519, 1
        %v10737 = vsel %vm4913, %v10735, %v10736
        %v10738 = vrot.slane %v10522, 1
        %v10739 = vrot.slane %v10523, 1
        %v10740 = vsel %vm4913, %v10738, %v10739
        %v10741 = vrot.slane %v10526, 1
        %v10742 = vrot.slane %v10527, 1
        %v10743 = vsel %vm4913, %v10741, %v10742
        %v10744 = vrot.slane %v10530, 1
        %v10745 = vrot.slane %v10531, 1
        %v10746 = vsel %vm4913, %v10744, %v10745
        %v10747 = vrot.slane %v10534, 1
        %v10748 = vrot.slane %v10535, 1
        %v10749 = vsel %vm4913, %v10747, %v10748
        %v10750 = vrot.slane %v10538, 1
        %v10751 = vrot.slane %v10539, 1
        %v10752 = vsel %vm4913, %v10750, %v10751
        %v10753 = vrot.slane %v10542, 1
        %v10754 = vrot.slane %v10543, 1
        %v10755 = vsel %vm4913, %v10753, %v10754
        %v10756 = vrot.slane %v10546, 1
        %v10757 = vrot.slane %v10547, 1
        %v10758 = vsel %vm4913, %v10756, %v10757
        %v10759 = vrot.slane %v10550, 1
        %v10760 = vrot.slane %v10551, 1
        %v10761 = vsel %vm4913, %v10759, %v10760
        %v10762 = vrot.slane %v10554, 1
        %v10763 = vrot.slane %v10555, 1
        %v10764 = vsel %vm4913, %v10762, %v10763
        %v10813 = vmax.f32 %v10493, %v10717
        %v10814 = vmax.f32 %v10494, %v10719
        %v10815 = vmax.f32 %v10495, %v10718
        %v10816 = vmax.f32 %v10497, %v10720
        %v10817 = vmax.f32 %v10498, %v10722
        %v10818 = vmax.f32 %v10499, %v10721
        %v10819 = vmax.f32 %v10501, %v10723
        %v10820 = vmax.f32 %v10502, %v10725
        %v10821 = vmax.f32 %v10503, %v10724
        %v10822 = vmax.f32 %v10505, %v10726
        %v10823 = vmax.f32 %v10506, %v10728
        %v10824 = vmax.f32 %v10507, %v10727
        %v10825 = vmax.f32 %v10509, %v10729
        %v10826 = vmax.f32 %v10510, %v10731
        %v10827 = vmax.f32 %v10511, %v10730
        %v10828 = vmax.f32 %v10513, %v10732
        %v10829 = vmax.f32 %v10514, %v10734
        %v10830 = vmax.f32 %v10515, %v10733
        %v10831 = vmax.f32 %v10517, %v10735
        %v10832 = vmax.f32 %v10518, %v10737
        %v10833 = vmax.f32 %v10519, %v10736
        %v10834 = vmax.f32 %v10521, %v10738
        %v10835 = vmax.f32 %v10522, %v10740
        %v10836 = vmax.f32 %v10523, %v10739
        %v10837 = vmax.f32 %v10525, %v10741
        %v10838 = vmax.f32 %v10526, %v10743
        %v10839 = vmax.f32 %v10527, %v10742
        %v10840 = vmax.f32 %v10529, %v10744
        %v10841 = vmax.f32 %v10530, %v10746
        %v10842 = vmax.f32 %v10531, %v10745
        %v10843 = vmax.f32 %v10533, %v10747
        %v10844 = vmax.f32 %v10534, %v10749
        %v10845 = vmax.f32 %v10535, %v10748
        %v10846 = vmax.f32 %v10537, %v10750
        %v10847 = vmax.f32 %v10538, %v10752
        %v10848 = vmax.f32 %v10539, %v10751
        %v10849 = vmax.f32 %v10541, %v10753
        %v10850 = vmax.f32 %v10542, %v10755
        %v10851 = vmax.f32 %v10543, %v10754
        %v10852 = vmax.f32 %v10545, %v10756
        %v10853 = vmax.f32 %v10546, %v10758
        %v10854 = vmax.f32 %v10547, %v10757
        %v10855 = vmax.f32 %v10549, %v10759
        %v10856 = vmax.f32 %v10550, %v10761
        %v10857 = vmax.f32 %v10551, %v10760
        %v10858 = vmax.f32 %v10553, %v10762
        %v10859 = vmax.f32 %v10554, %v10764
        %v10860 = vmax.f32 %v10555, %v10763
        %v10877 = vrot.slane %v10494, 2
        %v10878 = vrot.slane %v10495, 2
        %v10879 = vsel %vm5074, %v10877, %v10878
        %v10880 = vrot.slane %v10496, 2
        %v10881 = vsel %vm5074, %v10878, %v10880
        %v10882 = vrot.slane %v10498, 2
        %v10883 = vrot.slane %v10499, 2
        %v10884 = vsel %vm5074, %v10882, %v10883
        %v10885 = vrot.slane %v10500, 2
        %v10886 = vsel %vm5074, %v10883, %v10885
        %v10887 = vrot.slane %v10502, 2
        %v10888 = vrot.slane %v10503, 2
        %v10889 = vsel %vm5074, %v10887, %v10888
        %v10890 = vrot.slane %v10504, 2
        %v10891 = vsel %vm5074, %v10888, %v10890
        %v10892 = vrot.slane %v10506, 2
        %v10893 = vrot.slane %v10507, 2
        %v10894 = vsel %vm5074, %v10892, %v10893
        %v10895 = vrot.slane %v10508, 2
        %v10896 = vsel %vm5074, %v10893, %v10895
        %v10897 = vrot.slane %v10510, 2
        %v10898 = vrot.slane %v10511, 2
        %v10899 = vsel %vm5074, %v10897, %v10898
        %v10900 = vrot.slane %v10512, 2
        %v10901 = vsel %vm5074, %v10898, %v10900
        %v10902 = vrot.slane %v10514, 2
        %v10903 = vrot.slane %v10515, 2
        %v10904 = vsel %vm5074, %v10902, %v10903
        %v10905 = vrot.slane %v10516, 2
        %v10906 = vsel %vm5074, %v10903, %v10905
        %v10907 = vrot.slane %v10518, 2
        %v10908 = vrot.slane %v10519, 2
        %v10909 = vsel %vm5074, %v10907, %v10908
        %v10910 = vrot.slane %v10520, 2
        %v10911 = vsel %vm5074, %v10908, %v10910
        %v10912 = vrot.slane %v10522, 2
        %v10913 = vrot.slane %v10523, 2
        %v10914 = vsel %vm5074, %v10912, %v10913
        %v10915 = vrot.slane %v10524, 2
        %v10916 = vsel %vm5074, %v10913, %v10915
        %v10917 = vrot.slane %v10526, 2
        %v10918 = vrot.slane %v10527, 2
        %v10919 = vsel %vm5074, %v10917, %v10918
        %v10920 = vrot.slane %v10528, 2
        %v10921 = vsel %vm5074, %v10918, %v10920
        %v10922 = vrot.slane %v10530, 2
        %v10923 = vrot.slane %v10531, 2
        %v10924 = vsel %vm5074, %v10922, %v10923
        %v10925 = vrot.slane %v10532, 2
        %v10926 = vsel %vm5074, %v10923, %v10925
        %v10927 = vrot.slane %v10534, 2
        %v10928 = vrot.slane %v10535, 2
        %v10929 = vsel %vm5074, %v10927, %v10928
        %v10930 = vrot.slane %v10536, 2
        %v10931 = vsel %vm5074, %v10928, %v10930
        %v10932 = vrot.slane %v10538, 2
        %v10933 = vrot.slane %v10539, 2
        %v10934 = vsel %vm5074, %v10932, %v10933
        %v10935 = vrot.slane %v10540, 2
        %v10936 = vsel %vm5074, %v10933, %v10935
        %v10937 = vrot.slane %v10542, 2
        %v10938 = vrot.slane %v10543, 2
        %v10939 = vsel %vm5074, %v10937, %v10938
        %v10940 = vrot.slane %v10544, 2
        %v10941 = vsel %vm5074, %v10938, %v10940
        %v10942 = vrot.slane %v10546, 2
        %v10943 = vrot.slane %v10547, 2
        %v10944 = vsel %vm5074, %v10942, %v10943
        %v10945 = vrot.slane %v10548, 2
        %v10946 = vsel %vm5074, %v10943, %v10945
        %v10947 = vrot.slane %v10550, 2
        %v10948 = vrot.slane %v10551, 2
        %v10949 = vsel %vm5074, %v10947, %v10948
        %v10950 = vrot.slane %v10552, 2
        %v10951 = vsel %vm5074, %v10948, %v10950
        %v10952 = vrot.slane %v10554, 2
        %v10953 = vrot.slane %v10555, 2
        %v10954 = vsel %vm5074, %v10952, %v10953
        %v10955 = vrot.slane %v10556, 2
        %v10956 = vsel %vm5074, %v10953, %v10955
        %v11005 = vmax.f32 %v10813, %v10877
        %v11006 = vmax.f32 %v10814, %v10879
        %v11007 = vmax.f32 %v10815, %v10881
        %v11008 = vmax.f32 %v10816, %v10882
        %v11009 = vmax.f32 %v10817, %v10884
        %v11010 = vmax.f32 %v10818, %v10886
        %v11011 = vmax.f32 %v10819, %v10887
        %v11012 = vmax.f32 %v10820, %v10889
        %v11013 = vmax.f32 %v10821, %v10891
        %v11014 = vmax.f32 %v10822, %v10892
        %v11015 = vmax.f32 %v10823, %v10894
        %v11016 = vmax.f32 %v10824, %v10896
        %v11017 = vmax.f32 %v10825, %v10897
        %v11018 = vmax.f32 %v10826, %v10899
        %v11019 = vmax.f32 %v10827, %v10901
        %v11020 = vmax.f32 %v10828, %v10902
        %v11021 = vmax.f32 %v10829, %v10904
        %v11022 = vmax.f32 %v10830, %v10906
        %v11023 = vmax.f32 %v10831, %v10907
        %v11024 = vmax.f32 %v10832, %v10909
        %v11025 = vmax.f32 %v10833, %v10911
        %v11026 = vmax.f32 %v10834, %v10912
        %v11027 = vmax.f32 %v10835, %v10914
        %v11028 = vmax.f32 %v10836, %v10916
        %v11029 = vmax.f32 %v10837, %v10917
        %v11030 = vmax.f32 %v10838, %v10919
        %v11031 = vmax.f32 %v10839, %v10921
        %v11032 = vmax.f32 %v10840, %v10922
        %v11033 = vmax.f32 %v10841, %v10924
        %v11034 = vmax.f32 %v10842, %v10926
        %v11035 = vmax.f32 %v10843, %v10927
        %v11036 = vmax.f32 %v10844, %v10929
        %v11037 = vmax.f32 %v10845, %v10931
        %v11038 = vmax.f32 %v10846, %v10932
        %v11039 = vmax.f32 %v10847, %v10934
        %v11040 = vmax.f32 %v10848, %v10936
        %v11041 = vmax.f32 %v10849, %v10937
        %v11042 = vmax.f32 %v10850, %v10939
        %v11043 = vmax.f32 %v10851, %v10941
        %v11044 = vmax.f32 %v10852, %v10942
        %v11045 = vmax.f32 %v10853, %v10944
        %v11046 = vmax.f32 %v10854, %v10946
        %v11047 = vmax.f32 %v10855, %v10947
        %v11048 = vmax.f32 %v10856, %v10949
        %v11049 = vmax.f32 %v10857, %v10951
        %v11050 = vmax.f32 %v10858, %v10952
        %v11051 = vmax.f32 %v10859, %v10954
        %v11052 = vmax.f32 %v10860, %v10956
        %v11101 = vrot.slane %v10621, 1
        %v11102 = vrot.slane %v10622, 1
        %v11103 = vsel %vm4913, %v11101, %v11102
        %v11104 = vrot.slane %v10623, 1
        %v11105 = vsel %vm4913, %v11102, %v11104
        %v11106 = vrot.slane %v10625, 1
        %v11107 = vrot.slane %v10626, 1
        %v11108 = vsel %vm4913, %v11106, %v11107
        %v11109 = vrot.slane %v10627, 1
        %v11110 = vsel %vm4913, %v11107, %v11109
        %v11111 = vrot.slane %v10629, 1
        %v11112 = vrot.slane %v10630, 1
        %v11113 = vsel %vm4913, %v11111, %v11112
        %v11114 = vrot.slane %v10631, 1
        %v11115 = vsel %vm4913, %v11112, %v11114
        %v11116 = vrot.slane %v10633, 1
        %v11117 = vrot.slane %v10634, 1
        %v11118 = vsel %vm4913, %v11116, %v11117
        %v11119 = vrot.slane %v10635, 1
        %v11120 = vsel %vm4913, %v11117, %v11119
        %v11121 = vrot.slane %v10637, 1
        %v11122 = vrot.slane %v10638, 1
        %v11123 = vsel %vm4913, %v11121, %v11122
        %v11124 = vrot.slane %v10639, 1
        %v11125 = vsel %vm4913, %v11122, %v11124
        %v11126 = vrot.slane %v10641, 1
        %v11127 = vrot.slane %v10642, 1
        %v11128 = vsel %vm4913, %v11126, %v11127
        %v11129 = vrot.slane %v10643, 1
        %v11130 = vsel %vm4913, %v11127, %v11129
        %v11131 = vrot.slane %v10645, 1
        %v11132 = vrot.slane %v10646, 1
        %v11133 = vsel %vm4913, %v11131, %v11132
        %v11134 = vrot.slane %v10647, 1
        %v11135 = vsel %vm4913, %v11132, %v11134
        %v11136 = vrot.slane %v10649, 1
        %v11137 = vrot.slane %v10650, 1
        %v11138 = vsel %vm4913, %v11136, %v11137
        %v11139 = vrot.slane %v10651, 1
        %v11140 = vsel %vm4913, %v11137, %v11139
        %v11141 = vrot.slane %v10653, 1
        %v11142 = vrot.slane %v10654, 1
        %v11143 = vsel %vm4913, %v11141, %v11142
        %v11144 = vrot.slane %v10655, 1
        %v11145 = vsel %vm4913, %v11142, %v11144
        %v11146 = vrot.slane %v10657, 1
        %v11147 = vrot.slane %v10658, 1
        %v11148 = vsel %vm4913, %v11146, %v11147
        %v11149 = vrot.slane %v10659, 1
        %v11150 = vsel %vm4913, %v11147, %v11149
        %v11151 = vrot.slane %v10661, 1
        %v11152 = vrot.slane %v10662, 1
        %v11153 = vsel %vm4913, %v11151, %v11152
        %v11154 = vrot.slane %v10663, 1
        %v11155 = vsel %vm4913, %v11152, %v11154
        %v11156 = vrot.slane %v10665, 1
        %v11157 = vrot.slane %v10666, 1
        %v11158 = vsel %vm4913, %v11156, %v11157
        %v11159 = vrot.slane %v10667, 1
        %v11160 = vsel %vm4913, %v11157, %v11159
        %v11161 = vrot.slane %v10669, 1
        %v11162 = vrot.slane %v10670, 1
        %v11163 = vsel %vm4913, %v11161, %v11162
        %v11164 = vrot.slane %v10671, 1
        %v11165 = vsel %vm4913, %v11162, %v11164
        %v11166 = vrot.slane %v10673, 1
        %v11167 = vrot.slane %v10674, 1
        %v11168 = vsel %vm4913, %v11166, %v11167
        %v11169 = vrot.slane %v10675, 1
        %v11170 = vsel %vm4913, %v11167, %v11169
        %v11171 = vrot.slane %v10677, 1
        %v11172 = vrot.slane %v10678, 1
        %v11173 = vsel %vm4913, %v11171, %v11172
        %v11174 = vrot.slane %v10679, 1
        %v11175 = vsel %vm4913, %v11172, %v11174
        %v11176 = vrot.slane %v10681, 1
        %v11177 = vrot.slane %v10682, 1
        %v11178 = vsel %vm4913, %v11176, %v11177
        %v11179 = vrot.slane %v10683, 1
        %v11180 = vsel %vm4913, %v11177, %v11179
        %v11229 = vmax.f32 %v10621, %v11103
        %v11230 = vmax.f32 %v10622, %v11105
        %v11231 = vmax.f32 %v10623, %v11104
        %v11232 = vmax.f32 %v10625, %v11108
        %v11233 = vmax.f32 %v10626, %v11110
        %v11234 = vmax.f32 %v10627, %v11109
        %v11235 = vmax.f32 %v10629, %v11113
        %v11236 = vmax.f32 %v10630, %v11115
        %v11237 = vmax.f32 %v10631, %v11114
        %v11238 = vmax.f32 %v10633, %v11118
        %v11239 = vmax.f32 %v10634, %v11120
        %v11240 = vmax.f32 %v10635, %v11119
        %v11241 = vmax.f32 %v10637, %v11123
        %v11242 = vmax.f32 %v10638, %v11125
        %v11243 = vmax.f32 %v10639, %v11124
        %v11244 = vmax.f32 %v10641, %v11128
        %v11245 = vmax.f32 %v10642, %v11130
        %v11246 = vmax.f32 %v10643, %v11129
        %v11247 = vmax.f32 %v10645, %v11133
        %v11248 = vmax.f32 %v10646, %v11135
        %v11249 = vmax.f32 %v10647, %v11134
        %v11250 = vmax.f32 %v10649, %v11138
        %v11251 = vmax.f32 %v10650, %v11140
        %v11252 = vmax.f32 %v10651, %v11139
        %v11253 = vmax.f32 %v10653, %v11143
        %v11254 = vmax.f32 %v10654, %v11145
        %v11255 = vmax.f32 %v10655, %v11144
        %v11256 = vmax.f32 %v10657, %v11148
        %v11257 = vmax.f32 %v10658, %v11150
        %v11258 = vmax.f32 %v10659, %v11149
        %v11259 = vmax.f32 %v10661, %v11153
        %v11260 = vmax.f32 %v10662, %v11155
        %v11261 = vmax.f32 %v10663, %v11154
        %v11262 = vmax.f32 %v10665, %v11158
        %v11263 = vmax.f32 %v10666, %v11160
        %v11264 = vmax.f32 %v10667, %v11159
        %v11265 = vmax.f32 %v10669, %v11163
        %v11266 = vmax.f32 %v10670, %v11165
        %v11267 = vmax.f32 %v10671, %v11164
        %v11268 = vmax.f32 %v10673, %v11168
        %v11269 = vmax.f32 %v10674, %v11170
        %v11270 = vmax.f32 %v10675, %v11169
        %v11271 = vmax.f32 %v10677, %v11173
        %v11272 = vmax.f32 %v10678, %v11175
        %v11273 = vmax.f32 %v10679, %v11174
        %v11274 = vmax.f32 %v10681, %v11178
        %v11275 = vmax.f32 %v10682, %v11180
        %v11276 = vmax.f32 %v10683, %v11179
        %v11293 = vrot.slane %v10624, 1
        %v11294 = vsel %vm4913, %v11104, %v11293
        %v11295 = vrot.slane %v10628, 1
        %v11296 = vsel %vm4913, %v11109, %v11295
        %v11297 = vrot.slane %v10632, 1
        %v11298 = vsel %vm4913, %v11114, %v11297
        %v11299 = vrot.slane %v10636, 1
        %v11300 = vsel %vm4913, %v11119, %v11299
        %v11301 = vrot.slane %v10640, 1
        %v11302 = vsel %vm4913, %v11124, %v11301
        %v11303 = vrot.slane %v10644, 1
        %v11304 = vsel %vm4913, %v11129, %v11303
        %v11305 = vrot.slane %v10648, 1
        %v11306 = vsel %vm4913, %v11134, %v11305
        %v11307 = vrot.slane %v10652, 1
        %v11308 = vsel %vm4913, %v11139, %v11307
        %v11309 = vrot.slane %v10656, 1
        %v11310 = vsel %vm4913, %v11144, %v11309
        %v11311 = vrot.slane %v10660, 1
        %v11312 = vsel %vm4913, %v11149, %v11311
        %v11313 = vrot.slane %v10664, 1
        %v11314 = vsel %vm4913, %v11154, %v11313
        %v11315 = vrot.slane %v10668, 1
        %v11316 = vsel %vm4913, %v11159, %v11315
        %v11317 = vrot.slane %v10672, 1
        %v11318 = vsel %vm4913, %v11164, %v11317
        %v11319 = vrot.slane %v10676, 1
        %v11320 = vsel %vm4913, %v11169, %v11319
        %v11321 = vrot.slane %v10680, 1
        %v11322 = vsel %vm4913, %v11174, %v11321
        %v11323 = vrot.slane %v10684, 1
        %v11324 = vsel %vm4913, %v11179, %v11323
        %v11341 = vmax.f32 %v10623, %v11294
        %v11342 = vmax.f32 %v10627, %v11296
        %v11343 = vmax.f32 %v10631, %v11298
        %v11344 = vmax.f32 %v10635, %v11300
        %v11345 = vmax.f32 %v10639, %v11302
        %v11346 = vmax.f32 %v10643, %v11304
        %v11347 = vmax.f32 %v10647, %v11306
        %v11348 = vmax.f32 %v10651, %v11308
        %v11349 = vmax.f32 %v10655, %v11310
        %v11350 = vmax.f32 %v10659, %v11312
        %v11351 = vmax.f32 %v10663, %v11314
        %v11352 = vmax.f32 %v10667, %v11316
        %v11353 = vmax.f32 %v10671, %v11318
        %v11354 = vmax.f32 %v10675, %v11320
        %v11355 = vmax.f32 %v10679, %v11322
        %v11356 = vmax.f32 %v10683, %v11324
        %v11389 = vrot.slane %v11230, 2
        %v11390 = vrot.slane %v11341, 2
        %v11391 = vsel %vm5074, %v11389, %v11390
        %v11392 = vrot.slane %v11233, 2
        %v11393 = vrot.slane %v11342, 2
        %v11394 = vsel %vm5074, %v11392, %v11393
        %v11395 = vrot.slane %v11236, 2
        %v11396 = vrot.slane %v11343, 2
        %v11397 = vsel %vm5074, %v11395, %v11396
        %v11398 = vrot.slane %v11239, 2
        %v11399 = vrot.slane %v11344, 2
        %v11400 = vsel %vm5074, %v11398, %v11399
        %v11401 = vrot.slane %v11242, 2
        %v11402 = vrot.slane %v11345, 2
        %v11403 = vsel %vm5074, %v11401, %v11402
        %v11404 = vrot.slane %v11245, 2
        %v11405 = vrot.slane %v11346, 2
        %v11406 = vsel %vm5074, %v11404, %v11405
        %v11407 = vrot.slane %v11248, 2
        %v11408 = vrot.slane %v11347, 2
        %v11409 = vsel %vm5074, %v11407, %v11408
        %v11410 = vrot.slane %v11251, 2
        %v11411 = vrot.slane %v11348, 2
        %v11412 = vsel %vm5074, %v11410, %v11411
        %v11413 = vrot.slane %v11254, 2
        %v11414 = vrot.slane %v11349, 2
        %v11415 = vsel %vm5074, %v11413, %v11414
        %v11416 = vrot.slane %v11257, 2
        %v11417 = vrot.slane %v11350, 2
        %v11418 = vsel %vm5074, %v11416, %v11417
        %v11419 = vrot.slane %v11260, 2
        %v11420 = vrot.slane %v11351, 2
        %v11421 = vsel %vm5074, %v11419, %v11420
        %v11422 = vrot.slane %v11263, 2
        %v11423 = vrot.slane %v11352, 2
        %v11424 = vsel %vm5074, %v11422, %v11423
        %v11425 = vrot.slane %v11266, 2
        %v11426 = vrot.slane %v11353, 2
        %v11427 = vsel %vm5074, %v11425, %v11426
        %v11428 = vrot.slane %v11269, 2
        %v11429 = vrot.slane %v11354, 2
        %v11430 = vsel %vm5074, %v11428, %v11429
        %v11431 = vrot.slane %v11272, 2
        %v11432 = vrot.slane %v11355, 2
        %v11433 = vsel %vm5074, %v11431, %v11432
        %v11434 = vrot.slane %v11275, 2
        %v11435 = vrot.slane %v11356, 2
        %v11436 = vsel %vm5074, %v11434, %v11435
        %v11485 = vmax.f32 %v11229, %v11389
        %v11486 = vmax.f32 %v11230, %v11391
        %v11487 = vmax.f32 %v11231, %v11390
        %v11488 = vmax.f32 %v11232, %v11392
        %v11489 = vmax.f32 %v11233, %v11394
        %v11490 = vmax.f32 %v11234, %v11393
        %v11491 = vmax.f32 %v11235, %v11395
        %v11492 = vmax.f32 %v11236, %v11397
        %v11493 = vmax.f32 %v11237, %v11396
        %v11494 = vmax.f32 %v11238, %v11398
        %v11495 = vmax.f32 %v11239, %v11400
        %v11496 = vmax.f32 %v11240, %v11399
        %v11497 = vmax.f32 %v11241, %v11401
        %v11498 = vmax.f32 %v11242, %v11403
        %v11499 = vmax.f32 %v11243, %v11402
        %v11500 = vmax.f32 %v11244, %v11404
        %v11501 = vmax.f32 %v11245, %v11406
        %v11502 = vmax.f32 %v11246, %v11405
        %v11503 = vmax.f32 %v11247, %v11407
        %v11504 = vmax.f32 %v11248, %v11409
        %v11505 = vmax.f32 %v11249, %v11408
        %v11506 = vmax.f32 %v11250, %v11410
        %v11507 = vmax.f32 %v11251, %v11412
        %v11508 = vmax.f32 %v11252, %v11411
        %v11509 = vmax.f32 %v11253, %v11413
        %v11510 = vmax.f32 %v11254, %v11415
        %v11511 = vmax.f32 %v11255, %v11414
        %v11512 = vmax.f32 %v11256, %v11416
        %v11513 = vmax.f32 %v11257, %v11418
        %v11514 = vmax.f32 %v11258, %v11417
        %v11515 = vmax.f32 %v11259, %v11419
        %v11516 = vmax.f32 %v11260, %v11421
        %v11517 = vmax.f32 %v11261, %v11420
        %v11518 = vmax.f32 %v11262, %v11422
        %v11519 = vmax.f32 %v11263, %v11424
        %v11520 = vmax.f32 %v11264, %v11423
        %v11521 = vmax.f32 %v11265, %v11425
        %v11522 = vmax.f32 %v11266, %v11427
        %v11523 = vmax.f32 %v11267, %v11426
        %v11524 = vmax.f32 %v11268, %v11428
        %v11525 = vmax.f32 %v11269, %v11430
        %v11526 = vmax.f32 %v11270, %v11429
        %v11527 = vmax.f32 %v11271, %v11431
        %v11528 = vmax.f32 %v11272, %v11433
        %v11529 = vmax.f32 %v11273, %v11432
        %v11530 = vmax.f32 %v11274, %v11434
        %v11531 = vmax.f32 %v11275, %v11436
        %v11532 = vmax.f32 %v11276, %v11435
        %v11533 = vrot.slane %v10622, 4
        %v11534 = vrot.slane %v10623, 4
        %v11535 = vsel %vm3514, %v11533, %v11534
        %v11536 = vrot.slane %v10624, 4
        %v11537 = vsel %vm3514, %v11534, %v11536
        %v11538 = vrot.slane %v10626, 4
        %v11539 = vrot.slane %v10627, 4
        %v11540 = vsel %vm3514, %v11538, %v11539
        %v11541 = vrot.slane %v10628, 4
        %v11542 = vsel %vm3514, %v11539, %v11541
        %v11543 = vrot.slane %v10630, 4
        %v11544 = vrot.slane %v10631, 4
        %v11545 = vsel %vm3514, %v11543, %v11544
        %v11546 = vrot.slane %v10632, 4
        %v11547 = vsel %vm3514, %v11544, %v11546
        %v11548 = vrot.slane %v10634, 4
        %v11549 = vrot.slane %v10635, 4
        %v11550 = vsel %vm3514, %v11548, %v11549
        %v11551 = vrot.slane %v10636, 4
        %v11552 = vsel %vm3514, %v11549, %v11551
        %v11553 = vrot.slane %v10638, 4
        %v11554 = vrot.slane %v10639, 4
        %v11555 = vsel %vm3514, %v11553, %v11554
        %v11556 = vrot.slane %v10640, 4
        %v11557 = vsel %vm3514, %v11554, %v11556
        %v11558 = vrot.slane %v10642, 4
        %v11559 = vrot.slane %v10643, 4
        %v11560 = vsel %vm3514, %v11558, %v11559
        %v11561 = vrot.slane %v10644, 4
        %v11562 = vsel %vm3514, %v11559, %v11561
        %v11563 = vrot.slane %v10646, 4
        %v11564 = vrot.slane %v10647, 4
        %v11565 = vsel %vm3514, %v11563, %v11564
        %v11566 = vrot.slane %v10648, 4
        %v11567 = vsel %vm3514, %v11564, %v11566
        %v11568 = vrot.slane %v10650, 4
        %v11569 = vrot.slane %v10651, 4
        %v11570 = vsel %vm3514, %v11568, %v11569
        %v11571 = vrot.slane %v10652, 4
        %v11572 = vsel %vm3514, %v11569, %v11571
        %v11573 = vrot.slane %v10654, 4
        %v11574 = vrot.slane %v10655, 4
        %v11575 = vsel %vm3514, %v11573, %v11574
        %v11576 = vrot.slane %v10656, 4
        %v11577 = vsel %vm3514, %v11574, %v11576
        %v11578 = vrot.slane %v10658, 4
        %v11579 = vrot.slane %v10659, 4
        %v11580 = vsel %vm3514, %v11578, %v11579
        %v11581 = vrot.slane %v10660, 4
        %v11582 = vsel %vm3514, %v11579, %v11581
        %v11583 = vrot.slane %v10662, 4
        %v11584 = vrot.slane %v10663, 4
        %v11585 = vsel %vm3514, %v11583, %v11584
        %v11586 = vrot.slane %v10664, 4
        %v11587 = vsel %vm3514, %v11584, %v11586
        %v11588 = vrot.slane %v10666, 4
        %v11589 = vrot.slane %v10667, 4
        %v11590 = vsel %vm3514, %v11588, %v11589
        %v11591 = vrot.slane %v10668, 4
        %v11592 = vsel %vm3514, %v11589, %v11591
        %v11593 = vrot.slane %v10670, 4
        %v11594 = vrot.slane %v10671, 4
        %v11595 = vsel %vm3514, %v11593, %v11594
        %v11596 = vrot.slane %v10672, 4
        %v11597 = vsel %vm3514, %v11594, %v11596
        %v11598 = vrot.slane %v10674, 4
        %v11599 = vrot.slane %v10675, 4
        %v11600 = vsel %vm3514, %v11598, %v11599
        %v11601 = vrot.slane %v10676, 4
        %v11602 = vsel %vm3514, %v11599, %v11601
        %v11603 = vrot.slane %v10678, 4
        %v11604 = vrot.slane %v10679, 4
        %v11605 = vsel %vm3514, %v11603, %v11604
        %v11606 = vrot.slane %v10680, 4
        %v11607 = vsel %vm3514, %v11604, %v11606
        %v11608 = vrot.slane %v10682, 4
        %v11609 = vrot.slane %v10683, 4
        %v11610 = vsel %vm3514, %v11608, %v11609
        %v11611 = vrot.slane %v10684, 4
        %v11612 = vsel %vm3514, %v11609, %v11611
        %v11661 = vmax.f32 %v11485, %v11533
        %v11662 = vmax.f32 %v11486, %v11535
        %v11663 = vmax.f32 %v11487, %v11537
        %v11664 = vmax.f32 %v11488, %v11538
        %v11665 = vmax.f32 %v11489, %v11540
        %v11666 = vmax.f32 %v11490, %v11542
        %v11667 = vmax.f32 %v11491, %v11543
        %v11668 = vmax.f32 %v11492, %v11545
        %v11669 = vmax.f32 %v11493, %v11547
        %v11670 = vmax.f32 %v11494, %v11548
        %v11671 = vmax.f32 %v11495, %v11550
        %v11672 = vmax.f32 %v11496, %v11552
        %v11673 = vmax.f32 %v11497, %v11553
        %v11674 = vmax.f32 %v11498, %v11555
        %v11675 = vmax.f32 %v11499, %v11557
        %v11676 = vmax.f32 %v11500, %v11558
        %v11677 = vmax.f32 %v11501, %v11560
        %v11678 = vmax.f32 %v11502, %v11562
        %v11679 = vmax.f32 %v11503, %v11563
        %v11680 = vmax.f32 %v11504, %v11565
        %v11681 = vmax.f32 %v11505, %v11567
        %v11682 = vmax.f32 %v11506, %v11568
        %v11683 = vmax.f32 %v11507, %v11570
        %v11684 = vmax.f32 %v11508, %v11572
        %v11685 = vmax.f32 %v11509, %v11573
        %v11686 = vmax.f32 %v11510, %v11575
        %v11687 = vmax.f32 %v11511, %v11577
        %v11688 = vmax.f32 %v11512, %v11578
        %v11689 = vmax.f32 %v11513, %v11580
        %v11690 = vmax.f32 %v11514, %v11582
        %v11691 = vmax.f32 %v11515, %v11583
        %v11692 = vmax.f32 %v11516, %v11585
        %v11693 = vmax.f32 %v11517, %v11587
        %v11694 = vmax.f32 %v11518, %v11588
        %v11695 = vmax.f32 %v11519, %v11590
        %v11696 = vmax.f32 %v11520, %v11592
        %v11697 = vmax.f32 %v11521, %v11593
        %v11698 = vmax.f32 %v11522, %v11595
        %v11699 = vmax.f32 %v11523, %v11597
        %v11700 = vmax.f32 %v11524, %v11598
        %v11701 = vmax.f32 %v11525, %v11600
        %v11702 = vmax.f32 %v11526, %v11602
        %v11703 = vmax.f32 %v11527, %v11603
        %v11704 = vmax.f32 %v11528, %v11605
        %v11705 = vmax.f32 %v11529, %v11607
        %v11706 = vmax.f32 %v11530, %v11608
        %v11707 = vmax.f32 %v11531, %v11610
        %v11708 = vmax.f32 %v11532, %v11612
        %v11757 = vrot.slane %v11005, 7
        %v11758 = vrot.slane %v11006, 7
        %v11759 = vsel %vm5955, %v11757, %v11758
        %v11760 = vrot.slane %v11007, 7
        %v11761 = vsel %vm5955, %v11758, %v11760
        %v11762 = vrot.slane %v11008, 7
        %v11763 = vrot.slane %v11009, 7
        %v11764 = vsel %vm5955, %v11762, %v11763
        %v11765 = vrot.slane %v11010, 7
        %v11766 = vsel %vm5955, %v11763, %v11765
        %v11767 = vrot.slane %v11011, 7
        %v11768 = vrot.slane %v11012, 7
        %v11769 = vsel %vm5955, %v11767, %v11768
        %v11770 = vrot.slane %v11013, 7
        %v11771 = vsel %vm5955, %v11768, %v11770
        %v11772 = vrot.slane %v11014, 7
        %v11773 = vrot.slane %v11015, 7
        %v11774 = vsel %vm5955, %v11772, %v11773
        %v11775 = vrot.slane %v11016, 7
        %v11776 = vsel %vm5955, %v11773, %v11775
        %v11777 = vrot.slane %v11017, 7
        %v11778 = vrot.slane %v11018, 7
        %v11779 = vsel %vm5955, %v11777, %v11778
        %v11780 = vrot.slane %v11019, 7
        %v11781 = vsel %vm5955, %v11778, %v11780
        %v11782 = vrot.slane %v11020, 7
        %v11783 = vrot.slane %v11021, 7
        %v11784 = vsel %vm5955, %v11782, %v11783
        %v11785 = vrot.slane %v11022, 7
        %v11786 = vsel %vm5955, %v11783, %v11785
        %v11787 = vrot.slane %v11023, 7
        %v11788 = vrot.slane %v11024, 7
        %v11789 = vsel %vm5955, %v11787, %v11788
        %v11790 = vrot.slane %v11025, 7
        %v11791 = vsel %vm5955, %v11788, %v11790
        %v11792 = vrot.slane %v11026, 7
        %v11793 = vrot.slane %v11027, 7
        %v11794 = vsel %vm5955, %v11792, %v11793
        %v11795 = vrot.slane %v11028, 7
        %v11796 = vsel %vm5955, %v11793, %v11795
        %v11797 = vrot.slane %v11029, 7
        %v11798 = vrot.slane %v11030, 7
        %v11799 = vsel %vm5955, %v11797, %v11798
        %v11800 = vrot.slane %v11031, 7
        %v11801 = vsel %vm5955, %v11798, %v11800
        %v11802 = vrot.slane %v11032, 7
        %v11803 = vrot.slane %v11033, 7
        %v11804 = vsel %vm5955, %v11802, %v11803
        %v11805 = vrot.slane %v11034, 7
        %v11806 = vsel %vm5955, %v11803, %v11805
        %v11807 = vrot.slane %v11035, 7
        %v11808 = vrot.slane %v11036, 7
        %v11809 = vsel %vm5955, %v11807, %v11808
        %v11810 = vrot.slane %v11037, 7
        %v11811 = vsel %vm5955, %v11808, %v11810
        %v11812 = vrot.slane %v11038, 7
        %v11813 = vrot.slane %v11039, 7
        %v11814 = vsel %vm5955, %v11812, %v11813
        %v11815 = vrot.slane %v11040, 7
        %v11816 = vsel %vm5955, %v11813, %v11815
        %v11817 = vrot.slane %v11041, 7
        %v11818 = vrot.slane %v11042, 7
        %v11819 = vsel %vm5955, %v11817, %v11818
        %v11820 = vrot.slane %v11043, 7
        %v11821 = vsel %vm5955, %v11818, %v11820
        %v11822 = vrot.slane %v11044, 7
        %v11823 = vrot.slane %v11045, 7
        %v11824 = vsel %vm5955, %v11822, %v11823
        %v11825 = vrot.slane %v11046, 7
        %v11826 = vsel %vm5955, %v11823, %v11825
        %v11827 = vrot.slane %v11047, 7
        %v11828 = vrot.slane %v11048, 7
        %v11829 = vsel %vm5955, %v11827, %v11828
        %v11830 = vrot.slane %v11049, 7
        %v11831 = vsel %vm5955, %v11828, %v11830
        %v11832 = vrot.slane %v11050, 7
        %v11833 = vrot.slane %v11051, 7
        %v11834 = vsel %vm5955, %v11832, %v11833
        %v11835 = vrot.slane %v11052, 7
        %v11836 = vsel %vm5955, %v11833, %v11835
        %v11869 = vadd.f32 %v10045, %v11759
        %v11870 = vadd.f32 %v10046, %v11761
        %v11871 = vadd.f32 %v10047, %v11764
        %v11872 = vadd.f32 %v10048, %v11766
        %v11873 = vadd.f32 %v10049, %v11769
        %v11874 = vadd.f32 %v10050, %v11771
        %v11875 = vadd.f32 %v10051, %v11774
        %v11876 = vadd.f32 %v10052, %v11776
        %v11877 = vadd.f32 %v10053, %v11779
        %v11878 = vadd.f32 %v10054, %v11781
        %v11879 = vadd.f32 %v10055, %v11784
        %v11880 = vadd.f32 %v10056, %v11786
        %v11881 = vadd.f32 %v10057, %v11789
        %v11882 = vadd.f32 %v10058, %v11791
        %v11883 = vadd.f32 %v10059, %v11794
        %v11884 = vadd.f32 %v10060, %v11796
        %v11885 = vadd.f32 %v10061, %v11799
        %v11886 = vadd.f32 %v10062, %v11801
        %v11887 = vadd.f32 %v10063, %v11804
        %v11888 = vadd.f32 %v10064, %v11806
        %v11889 = vadd.f32 %v10065, %v11809
        %v11890 = vadd.f32 %v10066, %v11811
        %v11891 = vadd.f32 %v10067, %v11814
        %v11892 = vadd.f32 %v10068, %v11816
        %v11893 = vadd.f32 %v10069, %v11819
        %v11894 = vadd.f32 %v10070, %v11821
        %v11895 = vadd.f32 %v10071, %v11824
        %v11896 = vadd.f32 %v10072, %v11826
        %v11897 = vadd.f32 %v10073, %v11829
        %v11898 = vadd.f32 %v10074, %v11831
        %v11899 = vadd.f32 %v10075, %v11834
        %v11900 = vadd.f32 %v10076, %v11836
        %v11949 = vrot.slane %v11661, 6
        %v11950 = vrot.slane %v11662, 6
        %v11951 = vsel %vm6148, %v11949, %v11950
        %v11952 = vrot.slane %v11663, 6
        %v11953 = vsel %vm6148, %v11950, %v11952
        %v11954 = vrot.slane %v11664, 6
        %v11955 = vrot.slane %v11665, 6
        %v11956 = vsel %vm6148, %v11954, %v11955
        %v11957 = vrot.slane %v11666, 6
        %v11958 = vsel %vm6148, %v11955, %v11957
        %v11959 = vrot.slane %v11667, 6
        %v11960 = vrot.slane %v11668, 6
        %v11961 = vsel %vm6148, %v11959, %v11960
        %v11962 = vrot.slane %v11669, 6
        %v11963 = vsel %vm6148, %v11960, %v11962
        %v11964 = vrot.slane %v11670, 6
        %v11965 = vrot.slane %v11671, 6
        %v11966 = vsel %vm6148, %v11964, %v11965
        %v11967 = vrot.slane %v11672, 6
        %v11968 = vsel %vm6148, %v11965, %v11967
        %v11969 = vrot.slane %v11673, 6
        %v11970 = vrot.slane %v11674, 6
        %v11971 = vsel %vm6148, %v11969, %v11970
        %v11972 = vrot.slane %v11675, 6
        %v11973 = vsel %vm6148, %v11970, %v11972
        %v11974 = vrot.slane %v11676, 6
        %v11975 = vrot.slane %v11677, 6
        %v11976 = vsel %vm6148, %v11974, %v11975
        %v11977 = vrot.slane %v11678, 6
        %v11978 = vsel %vm6148, %v11975, %v11977
        %v11979 = vrot.slane %v11679, 6
        %v11980 = vrot.slane %v11680, 6
        %v11981 = vsel %vm6148, %v11979, %v11980
        %v11982 = vrot.slane %v11681, 6
        %v11983 = vsel %vm6148, %v11980, %v11982
        %v11984 = vrot.slane %v11682, 6
        %v11985 = vrot.slane %v11683, 6
        %v11986 = vsel %vm6148, %v11984, %v11985
        %v11987 = vrot.slane %v11684, 6
        %v11988 = vsel %vm6148, %v11985, %v11987
        %v11989 = vrot.slane %v11685, 6
        %v11990 = vrot.slane %v11686, 6
        %v11991 = vsel %vm6148, %v11989, %v11990
        %v11992 = vrot.slane %v11687, 6
        %v11993 = vsel %vm6148, %v11990, %v11992
        %v11994 = vrot.slane %v11688, 6
        %v11995 = vrot.slane %v11689, 6
        %v11996 = vsel %vm6148, %v11994, %v11995
        %v11997 = vrot.slane %v11690, 6
        %v11998 = vsel %vm6148, %v11995, %v11997
        %v11999 = vrot.slane %v11691, 6
        %v12000 = vrot.slane %v11692, 6
        %v12001 = vsel %vm6148, %v11999, %v12000
        %v12002 = vrot.slane %v11693, 6
        %v12003 = vsel %vm6148, %v12000, %v12002
        %v12004 = vrot.slane %v11694, 6
        %v12005 = vrot.slane %v11695, 6
        %v12006 = vsel %vm6148, %v12004, %v12005
        %v12007 = vrot.slane %v11696, 6
        %v12008 = vsel %vm6148, %v12005, %v12007
        %v12009 = vrot.slane %v11697, 6
        %v12010 = vrot.slane %v11698, 6
        %v12011 = vsel %vm6148, %v12009, %v12010
        %v12012 = vrot.slane %v11699, 6
        %v12013 = vsel %vm6148, %v12010, %v12012
        %v12014 = vrot.slane %v11700, 6
        %v12015 = vrot.slane %v11701, 6
        %v12016 = vsel %vm6148, %v12014, %v12015
        %v12017 = vrot.slane %v11702, 6
        %v12018 = vsel %vm6148, %v12015, %v12017
        %v12019 = vrot.slane %v11703, 6
        %v12020 = vrot.slane %v11704, 6
        %v12021 = vsel %vm6148, %v12019, %v12020
        %v12022 = vrot.slane %v11705, 6
        %v12023 = vsel %vm6148, %v12020, %v12022
        %v12024 = vrot.slane %v11706, 6
        %v12025 = vrot.slane %v11707, 6
        %v12026 = vsel %vm6148, %v12024, %v12025
        %v12027 = vrot.slane %v11708, 6
        %v12028 = vsel %vm6148, %v12025, %v12027
        %v12061 = vadd.f32 %v11869, %v11951
        %v12062 = vadd.f32 %v11870, %v11953
        %v12063 = vadd.f32 %v11871, %v11956
        %v12064 = vadd.f32 %v11872, %v11958
        %v12065 = vadd.f32 %v11873, %v11961
        %v12066 = vadd.f32 %v11874, %v11963
        %v12067 = vadd.f32 %v11875, %v11966
        %v12068 = vadd.f32 %v11876, %v11968
        %v12069 = vadd.f32 %v11877, %v11971
        %v12070 = vadd.f32 %v11878, %v11973
        %v12071 = vadd.f32 %v11879, %v11976
        %v12072 = vadd.f32 %v11880, %v11978
        %v12073 = vadd.f32 %v11881, %v11981
        %v12074 = vadd.f32 %v11882, %v11983
        %v12075 = vadd.f32 %v11883, %v11986
        %v12076 = vadd.f32 %v11884, %v11988
        %v12077 = vadd.f32 %v11885, %v11991
        %v12078 = vadd.f32 %v11886, %v11993
        %v12079 = vadd.f32 %v11887, %v11996
        %v12080 = vadd.f32 %v11888, %v11998
        %v12081 = vadd.f32 %v11889, %v12001
        %v12082 = vadd.f32 %v11890, %v12003
        %v12083 = vadd.f32 %v11891, %v12006
        %v12084 = vadd.f32 %v11892, %v12008
        %v12085 = vadd.f32 %v11893, %v12011
        %v12086 = vadd.f32 %v11894, %v12013
        %v12087 = vadd.f32 %v11895, %v12016
        %v12088 = vadd.f32 %v11896, %v12018
        %v12089 = vadd.f32 %v11897, %v12021
        %v12090 = vadd.f32 %v11898, %v12023
        %v12091 = vadd.f32 %v11899, %v12026
        %v12092 = vadd.f32 %v11900, %v12028
        %12093 = vst.msk [vmem:[%s271] sm:$0xff] %vm366, %v12061
        %12094 = vst.msk [vmem:[%s271 + $0x8] sm:$0xff] %vm366, %v12062
        %12095 = vst.msk [vmem:[%s271 + $0x10] sm:$0xff] %vm366, %v12063
        %12096 = vst.msk [vmem:[%s271 + $0x18] sm:$0xff] %vm366, %v12064
        %12097 = vst.msk [vmem:[%s271 + $0x20] sm:$0xff] %vm366, %v12065
        %12098 = vst.msk [vmem:[%s271 + $0x28] sm:$0xff] %vm366, %v12066
        %12099 = vst.msk [vmem:[%s271 + $0x30] sm:$0xff] %vm366, %v12067
        %12100 = vst.msk [vmem:[%s271 + $0x38] sm:$0xff] %vm366, %v12068
        %12101 = vst.msk [vmem:[%s271 + $0x40] sm:$0xff] %vm366, %v12069
        %12102 = vst.msk [vmem:[%s271 + $0x48] sm:$0xff] %vm366, %v12070
        %12103 = vst.msk [vmem:[%s271 + $0x50] sm:$0xff] %vm366, %v12071
        %12104 = vst.msk [vmem:[%s271 + $0x58] sm:$0xff] %vm366, %v12072
        %12105 = vst.msk [vmem:[%s271 + $0x60] sm:$0xff] %vm366, %v12073
        %12106 = vst.msk [vmem:[%s271 + $0x68] sm:$0xff] %vm366, %v12074
        %12107 = vst.msk [vmem:[%s271 + $0x70] sm:$0xff] %vm366, %v12075
        %12108 = vst.msk [vmem:[%s271 + $0x78] sm:$0xff] %vm366, %v12076
        %12109 = vst.msk [vmem:[%s271 + $0x80] sm:$0xff] %vm366, %v12077
        %12110 = vst.msk [vmem:[%s271 + $0x88] sm:$0xff] %vm366, %v12078
        %12111 = vst.msk [vmem:[%s271 + $0x90] sm:$0xff] %vm366, %v12079
        %12112 = vst.msk [vmem:[%s271 + $0x98] sm:$0xff] %vm366, %v12080
        %12113 = vst.msk [vmem:[%s271 + $0xa0] sm:$0xff] %vm366, %v12081
        %12114 = vst.msk [vmem:[%s271 + $0xa8] sm:$0xff] %vm366, %v12082
        %12115 = vst.msk [vmem:[%s271 + $0xb0] sm:$0xff] %vm366, %v12083
        %12116 = vst.msk [vmem:[%s271 + $0xb8] sm:$0xff] %vm366, %v12084
        %12117 = vst.msk [vmem:[%s271 + $0xc0] sm:$0xff] %vm366, %v12085
        %12118 = vst.msk [vmem:[%s271 + $0xc8] sm:$0xff] %vm366, %v12086
        %12119 = vst.msk [vmem:[%s271 + $0xd0] sm:$0xff] %vm366, %v12087
        %12120 = vst.msk [vmem:[%s271 + $0xd8] sm:$0xff] %vm366, %v12088
        %12121 = vst.msk [vmem:[%s271 + $0xe0] sm:$0xff] %vm366, %v12089
        %12122 = vst.msk [vmem:[%s271 + $0xe8] sm:$0xff] %vm366, %v12090
        %12123 = vst.msk [vmem:[%s271 + $0xf0] sm:$0xff] %vm366, %v12091
        %12124 = vst.msk [vmem:[%s271 + $0xf8] sm:$0xff] %vm366, %v12092
        %s12125 = sand.u32 %s181, 1
        %s12126 = scalar_lea.sflag [#allocation5], %s12125
        %s12127 = sand.u32 %s181, 1
        %s12128 = smul.addr %s12127, 256
        %s12129 = scalar_lea.vmem [#allocation4], %s12128
        // Predicated region
        $region49: #{tpu_custom_call.1} parent=47 // pred_check
          %p12130 = pneg %p191
        $region50: #{tpu_custom_call.1} parent=47 // pred_check_branch
          %12132 = sbr.rel (%p12130) target = $region52
        $region51: #{tpu_custom_call.1} parent=47 // pred_region
          %s12134 = ssub.s32 4096, 4096
          %12135 = vsyncadd %s12126, %s12134
          %s12136 = smul.addr %s21, 32
          %s12137 = smul.addr %s12136, 128
          %s12138 = scalar_lea.hbm %s7, %s12137
          %s12139 = sshll.u32 %s12129, 4
          %s12140 = int_to_ptr.vmem [resolvable:$true] %s12139
          %12145 = dma.vmem_to_hbm [thread:$0]  %s12140, 4096, %s12138, %s12126, 128, 128, 8
        $region52: #{tpu_custom_call.1} parent=47 // pred_fallthru
          _
      $region48: #{tpu_custom_call.1} parent=5 // pred_fallthru
        _
      %p12146 = scmp.le.s32.totalorder 2, %s16
      // Predicated region
      $region53: #{tpu_custom_call.1} parent=5 // pred_check
        %p12147 = pneg %p12146
      $region54: #{tpu_custom_call.1} parent=5 // pred_check_branch
        %12149 = sbr.rel (%p12147) target = $region56
      $region55: #{tpu_custom_call.1} parent=5 // pred_region
        %s12150 = ssub.s32 %s16, 2
        // Predicated region
        $region57: #{tpu_custom_call.1} parent=55 // pred_check
          %p12151 = pneg %p197
        $region58: #{tpu_custom_call.1} parent=55 // pred_check_branch
          %12153 = sbr.rel (%p12151) target = $region60
        $region59: #{tpu_custom_call.1} parent=55 // pred_region
          %s12154 = sand.u32 %s182, 1
          %s12155 = scalar_lea.sflag [#allocation5], %s12154
          %s12156 = sand.u32 %s182, 1
          %s12157 = smul.addr %s12156, 256
          %s12158 = scalar_lea.vmem [#allocation4], %s12157
          %12159 = dma.done %s12155, 4096
        $region60: #{tpu_custom_call.1} parent=55 // pred_fallthru
          _
      $region56: #{tpu_custom_call.1} parent=5 // pred_fallthru
        _
    $region6: #{tpu_custom_call.1} parent=1 // loop_footer
      %s20 = sadd.s32 1, %s16
    $region7: #{tpu_custom_call.1} parent=1 // loop_footer_branch
      %15 = sbr.rel target = $region3
    $region8: #{tpu_custom_call.1} parent=1 // loop_exit
      _
    %12160 = vsyncpa [#allocation5], 1
    %s12161 = scalar_lea.sflag [#allocation5], 1
    %12162 = vsyncpa %s12161, 1

</llo_original>
